<compile_context>
chip_gen: v7x
topology: tpu7x:2x2x1
jax: 0.10.0
libtpu: 0.0.40
codegen_flags: <defaults>
</compile_context>

<pallas_src>
import jax
import jax.numpy as jnp
from jax import lax
from jax.experimental import pallas as pl
from jax.experimental.pallas import tpu as pltpu

CONV_CHANNELS = [16, 8, 8]
FC_CHANNELS = [288, 144, 2]
NUM_GROUPS = 4


# ----------------------------------------------------------------------------
# In-kernel helpers
# ----------------------------------------------------------------------------
def _write_padded(pad_ref, v, N, H, W, C):
    """Write v (N, H, W, C) into the interior of pad_ref (N, H+2, W+2, C) and
    zero only the 1-pixel border (5 plain stores, no full-buffer memset)."""
    zrow = jnp.zeros((N, 1, W + 2, C), jnp.float32)
    zcol = jnp.zeros((N, H, 1, C), jnp.float32)
    pad_ref[:, pl.ds(0, 1), :, :] = zrow
    pad_ref[:, pl.ds(H + 1, 1), :, :] = zrow
    pad_ref[:, pl.ds(1, H), pl.ds(0, 1), :] = zcol
    pad_ref[:, pl.ds(1, H), pl.ds(W + 1, 1), :] = zcol
    pad_ref[:, pl.ds(1, H), pl.ds(1, W), :] = v


def _conv_gn_relu_pool(pad_ref, t_ref, w_ref, b_ref, ga_ref, N, H, W, Cin, Cout):
    """Conv3x3(pad=1) + GroupNorm(4, eps=0, affine=False) + ReLU + MaxPool2x2.

    pad_ref: (N, H+2, W+2, Cin) f32, zero border + valid interior.
    t_ref:   (N*(H//2), W, Cout) f32 scratch for the H-pooled activation.
    w_ref:   (9*Cin, Cout) bf16, rows ordered (dh, dw, cin).
    b_ref:   (1, Cout) f32.
    ga_ref:  (Cout, Cout) f32 block-diagonal group-averaging matrix (1/cg baked in).
    Returns pooled activation (N, H//2, W//2, Cout) f32.
    """
    # ---- 3x3 conv as a single im2col MXU matmul (contraction depth 9*Cin) ----
    cols = []
    for dh in range(3):
        for dw in range(3):
            cols.append(pad_ref[:, pl.ds(dh, H), pl.ds(dw, W), :]
                        .reshape(N * H * W, Cin).astype(jnp.bfloat16))
    patches = jnp.concatenate(cols, axis=-1)                     # (N*H*W, 9*Cin) bf16
    acc = jnp.dot(patches, w_ref[...],
                  preferred_element_type=jnp.float32) + b_ref[...]
    y = acc.reshape(N, H * W, Cout)                              # (N, S, Cout) f32

    # ---- GroupNorm(eps=0, affine=False) + ReLU: E[x^2]-E[x]^2 f32 stats,
    #      group-average + broadcast-back fused into ONE (C, C) matmul ----
    s = jnp.concatenate([jnp.sum(y, axis=1), jnp.sum(y * y, axis=1)], axis=0)
    stats = jnp.dot(s * (1.0 / float(H * W)), ga_ref[...],
                    preferred_element_type=jnp.float32)          # (2N, Cout)
    mean = stats[:N]
    var = jnp.maximum(stats[N:] - mean * mean, 0.0)              # guard f32 cancellation
    y = jnp.maximum((y - mean[:, None, :]) * lax.rsqrt(var)[:, None, :], 0.0)

    # ---- 2x2 max pool ----
    Hh, Wh = H // 2, W // 2
    # H direction: leading-dims-only reshape (layout-free) + VPU max.
    t_ref[...] = jnp.max(y.reshape(N * Hh, 2, W, Cout), axis=1)  # (N*Hh, W, Cout)
    # W direction: sublane-strided even/odd reads from the tiny scratch + VPU max.
    pooled = jnp.maximum(t_ref[:, pl.ds(0, Wh, 2), :],
                         t_ref[:, pl.ds(1, Wh, 2), :])           # (N*Hh, Wh, Cout)
    return pooled.reshape(N, Hh, Wh, Cout)


def _gn_relu_fc(h, oh_ref, ot_ref):
    """GroupNorm(4, eps=0, affine=False) + ReLU on h of shape (N, C).
    oh_ref: (C, G) f32 one-hot scaled by 1/(C/G);  ot_ref: (G, C) f32 one-hot."""
    N = h.shape[0]
    s = jnp.concatenate([h, h * h], axis=0)                          # (2N, C)
    g = jnp.dot(s, oh_ref[...], preferred_element_type=jnp.float32)  # (2N, G)
    stats = jnp.dot(g, ot_ref[...], preferred_element_type=jnp.float32)
    mean = stats[:N]
    var = jnp.maximum(stats[N:] - mean * mean, 0.0)
    return jnp.maximum((h - mean) * lax.rsqrt(var), 0.0)


# ----------------------------------------------------------------------------
# The fused kernel: 3 conv blocks + flatten + FC stack
# ----------------------------------------------------------------------------
def _dann_kernel(x_ref, cw1, cb1, cw2, cb2, cw3, cb3,
                 fw1, fb1, fw2, fb2, fw3, fb3,
                 ga1, ga23, oh1, ot1, oh2, ot2,
                 out_ref, pad1, pad2, pad3, t1, t2, t3):
    N, H0, W0, C0 = x_ref.shape
    C1 = cw1.shape[1]
    C2 = cw2.shape[1]

    # ---- conv block 1 ----
    _write_padded(pad1, x_ref[...], N, H0, W0, C0)
    a = _conv_gn_relu_pool(pad1, t1, cw1, cb1, ga1, N, H0, W0, C0, C1)

    # ---- conv block 2 ----
    H1, W1 = H0 // 2, W0 // 2
    _write_padded(pad2, a, N, H1, W1, C1)
    a = _conv_gn_relu_pool(pad2, t2, cw2, cb2, ga23, N, H1, W1, C1, C2)

    # ---- conv block 3 ----
    H2, W2 = H1 // 2, W1 // 2
    _write_padded(pad3, a, N, H2, W2, C2)
    a = _conv_gn_relu_pool(pad3, t3, cw3, cb3, ga23, N, H2, W2, C2, cw3.shape[1])

    # ---- flatten + FC stack.  PyTorch's channel-major flatten is folded into the
    #      fw1 layout (kernel-side lane order is (h, w, c)); ReverseLayerF is
    #      identity in the forward pass.
    H3, W3 = a.shape[1], a.shape[2]
    flat = jnp.concatenate([a[:, i, j, :] for i in range(H3) for j in range(W3)],
                           axis=-1)                                    # (N, H3*W3*C3)
    h = jnp.dot(flat.astype(jnp.bfloat16), fw1[...],
                preferred_element_type=jnp.float32) + fb1[...]
    h = _gn_relu_fc(h, oh1, ot1)                                       # (N, 288)
    h = jnp.dot(h.astype(jnp.bfloat16), fw2[...],
                preferred_element_type=jnp.float32) + fb2[...]
    h = _gn_relu_fc(h, oh2, ot2)                                       # (N, 144)
    out_ref[...] = jnp.dot(h.astype(jnp.bfloat16), fw3[...],
                           preferred_element_type=jnp.float32) + fb3[...]


# ----------------------------------------------------------------------------
# Parameter init (torch layout) + conversion to kernel layout + GN constants
# ----------------------------------------------------------------------------
def _group_avg_matrix(C, G):
    """(C, C) block-diagonal matrix: 1/(C/G) for channels in the same group."""
    cg = C // G
    c = jnp.arange(C)
    same = (c[:, None] // cg) == (c[None, :] // cg)
    return same.astype(jnp.float32) / float(cg)


def _group_onehot_pair(C, G):
    """((C, G) one-hot scaled by 1/(C/G), (G, C) plain one-hot)."""
    cg = C // G
    c = jnp.arange(C)
    g = jnp.arange(G)
    oh = ((c[:, None] // cg) == g[None, :]).astype(jnp.float32)
    return oh / float(cg), jnp.transpose(oh)


def init_params(key, input_channels, input_size):
    """Synthetic params in PyTorch layout, converted to kernel layout:
       conv W (Cout,Cin,3,3) -> (9*Cin, Cout) bf16, rows (dh, dw, cin);
       FC1 W (F1, C*H*W)     -> (H*W*C, F1) bf16 (absorbs the channel-major flatten);
       FC2/3 W (out, in)     -> (in, out) bf16;  biases -> (1, out) f32;
       plus small constant GroupNorm group-averaging / one-hot matrices."""
    keys = jax.random.split(key, 12)
    ki = 0
    conv = []
    in_c = input_channels
    size = input_size
    for out_c in CONV_CHANNELS:
        w_t = 0.1 * jax.random.normal(keys[ki], (out_c, in_c, 3, 3), jnp.float32); ki += 1
        b_t = 0.1 * jax.random.normal(keys[ki], (out_c,), jnp.float32); ki += 1
        w_k = jnp.transpose(w_t, (2, 3, 1, 0)).reshape(9 * in_c, out_c).astype(jnp.bfloat16)
        conv.append((w_k, b_t.reshape(1, out_c)))
        in_c = out_c
        size //= 2

    c_last = CONV_CHANNELS[-1]
    in_f = c_last * size * size
    fc = []
    for i, out_f in enumerate(FC_CHANNELS):
        w_t = 0.1 * jax.random.normal(keys[ki], (out_f, in_f), jnp.float32); ki += 1
        b_t = 0.1 * jax.random.normal(keys[ki], (out_f,), jnp.float32); ki += 1
        if i == 0:
            # torch flat index j = c*(H*W) + h*W + w  ->  kernel lane order (h, w, c)
            w_k = jnp.transpose(w_t.reshape(out_f, c_last, size, size),
                                (2, 3, 1, 0)).reshape(size * size * c_last, out_f)
        else:
            w_k = jnp.transpose(w_t, (1, 0))
        fc.append((w_k.astype(jnp.bfloat16), b_t.reshape(1, out_f)))
        in_f = out_f

    gn = {
        "conv": (_group_avg_matrix(CONV_CHANNELS[0], NUM_GROUPS),
                 _group_avg_matrix(CONV_CHANNELS[1], NUM_GROUPS)),  # conv2 == conv3 (C=8)
        "fc": (_group_onehot_pair(FC_CHANNELS[0], NUM_GROUPS),
               _group_onehot_pair(FC_CHANNELS[1], NUM_GROUPS)),
    }
    return {"conv": conv, "fc": fc, "gn": gn}


# ----------------------------------------------------------------------------
# Forward wrapper: a single fused pallas_call
# ----------------------------------------------------------------------------
@jax.jit
def feature_discriminator_dann_forward(x_nchw, alpha, params):
    del alpha  # gradient reversal only affects the backward pass
    # NCHW -> NHWC stays in the wrapper (one fused XLA transpose under the same jit).
    x = jnp.transpose(x_nchw, (0, 2, 3, 1)).astype(jnp.float32)
    N, H, W, C0 = x.shape
    (cw1, cb1), (cw2, cb2), (cw3, cb3) = params["conv"]
    (fw1, fb1), (fw2, fb2), (fw3, fb3) = params["fc"]
    ga1, ga23 = params["gn"]["conv"]
    (oh1, ot1), (oh2, ot2) = params["gn"]["fc"]
    C1, C2, C3 = CONV_CHANNELS
    H1, W1 = H // 2, W // 2
    H2, W2 = H1 // 2, W1 // 2
    H3 = H2 // 2
    return pl.pallas_call(
        _dann_kernel,
        out_shape=jax.ShapeDtypeStruct((N, FC_CHANNELS[-1]), jnp.float32),
        in_specs=[pl.BlockSpec(memory_space=pltpu.MemorySpace.VMEM)] * 19,
        out_specs=pl.BlockSpec(memory_space=pltpu.MemorySpace.VMEM),
        scratch_shapes=[
            pltpu.VMEM((N, H + 2, W + 2, C0), jnp.float32),    # padded input, layer 1
            pltpu.VMEM((N, H1 + 2, W1 + 2, C1), jnp.float32),  # padded input, layer 2
            pltpu.VMEM((N, H2 + 2, W2 + 2, C2), jnp.float32),  # padded input, layer 3
            pltpu.VMEM((N * H1, W, C1), jnp.float32),          # H-pooled rows, layer 1
            pltpu.VMEM((N * H2, W1, C2), jnp.float32),         # H-pooled rows, layer 2
            pltpu.VMEM((N * H3, W2, C3), jnp.float32),         # H-pooled rows, layer 3
        ],
    )(x, cw1, cb1, cw2, cb2, cw3, cb3, fw1, fb1, fw2, fb2, fw3, fb3,
      ga1, ga23, oh1, ot1, oh2, ot2)


if __name__ == "__main__":
    batch, input_channels, input_size = 2, 4, 16
    key = jax.random.PRNGKey(0)
    k_x, k_p = jax.random.split(key)
    x = jax.random.normal(k_x, (batch, input_channels, input_size, input_size),
                          jnp.float32)
    params = init_params(k_p, input_channels, input_size)
    alpha = 1.0
    out = feature_discriminator_dann_forward(x, alpha, params)
    out = jax.block_until_ready(out)
    assert out.shape == (batch, FC_CHANNELS[-1]), out.shape
    assert bool(jnp.all(jnp.isfinite(out))), "non-finite output"
    print("KERNEL_OK")
</pallas_src>

<mosaic_0001>
module attributes {stable_mosaic.version = 11 : i64} {
  func.func @_dann_kernel(%arg0: memref<2x16x16x4xf32, #tpu.memory_space<vmem>>, %arg1: memref<36x16xbf16, #tpu.memory_space<vmem>>, %arg2: memref<1x16xf32, #tpu.memory_space<vmem>>, %arg3: memref<144x8xbf16, #tpu.memory_space<vmem>>, %arg4: memref<1x8xf32, #tpu.memory_space<vmem>>, %arg5: memref<72x8xbf16, #tpu.memory_space<vmem>>, %arg6: memref<1x8xf32, #tpu.memory_space<vmem>>, %arg7: memref<32x288xbf16, #tpu.memory_space<vmem>>, %arg8: memref<1x288xf32, #tpu.memory_space<vmem>>, %arg9: memref<288x144xbf16, #tpu.memory_space<vmem>>, %arg10: memref<1x144xf32, #tpu.memory_space<vmem>>, %arg11: memref<144x2xbf16, #tpu.memory_space<vmem>>, %arg12: memref<1x2xf32, #tpu.memory_space<vmem>>, %arg13: memref<16x16xf32, #tpu.memory_space<vmem>>, %arg14: memref<8x8xf32, #tpu.memory_space<vmem>>, %arg15: memref<288x4xf32, #tpu.memory_space<vmem>>, %arg16: memref<4x288xf32, #tpu.memory_space<vmem>>, %arg17: memref<144x4xf32, #tpu.memory_space<vmem>>, %arg18: memref<4x144xf32, #tpu.memory_space<vmem>>, %arg19: memref<2x2xf32, #tpu.memory_space<vmem>>, %arg20: memref<2x18x18x4xf32, #tpu.memory_space<vmem>>, %arg21: memref<2x10x10x16xf32, #tpu.memory_space<vmem>>, %arg22: memref<2x6x6x8xf32, #tpu.memory_space<vmem>>, %arg23: memref<16x16x16xf32, #tpu.memory_space<vmem>>, %arg24: memref<8x8x8xf32, #tpu.memory_space<vmem>>, %arg25: memref<4x4x8xf32, #tpu.memory_space<vmem>>) attributes {dimension_semantics = [], scalar_prefetch = 0 : i64, scratch_operands = 6 : i64, tpu.core_type = #tpu.core_type<tc>} {
    %c0 = arith.constant 0 : index
    %c0_0 = arith.constant 0 : index
    %c0_1 = arith.constant 0 : index
    %c0_2 = arith.constant 0 : index
    %0 = vector.load %arg0[%c0, %c0_0, %c0_1, %c0_2] : memref<2x16x16x4xf32, #tpu.memory_space<vmem>>, vector<2x16x16x4xf32>
    %cst = arith.constant 0.000000e+00 : f32
    %1 = vector.broadcast %cst : f32 to vector<2x1x18x4xf32>
    %cst_3 = arith.constant 0.000000e+00 : f32
    %2 = vector.broadcast %cst_3 : f32 to vector<2x16x1x4xf32>
    %c0_4 = arith.constant 0 : index
    %c0_5 = arith.constant 0 : index
    %c0_6 = arith.constant 0 : index
    %c0_7 = arith.constant 0 : index
    %3 = vector.load %arg20[%c0_4, %c0_5, %c0_6, %c0_7] : memref<2x18x18x4xf32, #tpu.memory_space<vmem>>, vector<2x1x18x4xf32>
    tpu.vector_store %arg20[%c0_4, %c0_5, %c0_6, %c0_7], %1 {strides = array<i32>} : memref<2x18x18x4xf32, #tpu.memory_space<vmem>>, vector<2x1x18x4xf32>,
    %c0_8 = arith.constant 0 : index
    %c17 = arith.constant 17 : index
    %c0_9 = arith.constant 0 : index
    %c0_10 = arith.constant 0 : index
    %4 = vector.load %arg20[%c0_8, %c17, %c0_9, %c0_10] : memref<2x18x18x4xf32, #tpu.memory_space<vmem>>, vector<2x1x18x4xf32>
    tpu.vector_store %arg20[%c0_8, %c17, %c0_9, %c0_10], %1 {strides = array<i32>} : memref<2x18x18x4xf32, #tpu.memory_space<vmem>>, vector<2x1x18x4xf32>,
    %c0_11 = arith.constant 0 : index
    %c1 = arith.constant 1 : index
    %c0_12 = arith.constant 0 : index
    %c0_13 = arith.constant 0 : index
    %5 = vector.load %arg20[%c0_11, %c1, %c0_12, %c0_13] : memref<2x18x18x4xf32, #tpu.memory_space<vmem>>, vector<2x16x1x4xf32>
    tpu.vector_store %arg20[%c0_11, %c1, %c0_12, %c0_13], %2 {strides = array<i32>} : memref<2x18x18x4xf32, #tpu.memory_space<vmem>>, vector<2x16x1x4xf32>,
    %c0_14 = arith.constant 0 : index
    %c1_15 = arith.constant 1 : index
    %c17_16 = arith.constant 17 : index
    %c0_17 = arith.constant 0 : index
    %6 = vector.load %arg20[%c0_14, %c1_15, %c17_16, %c0_17] : memref<2x18x18x4xf32, #tpu.memory_space<vmem>>, vector<2x16x1x4xf32>
    tpu.vector_store %arg20[%c0_14, %c1_15, %c17_16, %c0_17], %2 {strides = array<i32>} : memref<2x18x18x4xf32, #tpu.memory_space<vmem>>, vector<2x16x1x4xf32>,
    %c0_18 = arith.constant 0 : index
    %c1_19 = arith.constant 1 : index
    %c1_20 = arith.constant 1 : index
    %c0_21 = arith.constant 0 : index
    %7 = vector.load %arg20[%c0_18, %c1_19, %c1_20, %c0_21] : memref<2x18x18x4xf32, #tpu.memory_space<vmem>>, vector<2x16x16x4xf32>
    tpu.vector_store %arg20[%c0_18, %c1_19, %c1_20, %c0_21], %0 {strides = array<i32>} : memref<2x18x18x4xf32, #tpu.memory_space<vmem>>, vector<2x16x16x4xf32>,
    %c0_22 = arith.constant 0 : index
    %c0_23 = arith.constant 0 : index
    %c0_24 = arith.constant 0 : index
    %c0_25 = arith.constant 0 : index
    %8 = vector.load %arg20[%c0_22, %c0_23, %c0_24, %c0_25] : memref<2x18x18x4xf32, #tpu.memory_space<vmem>>, vector<2x16x16x4xf32>
    %9 = vector.shape_cast %8 : vector<2x16x16x4xf32> to vector<512x4xf32>
    %10 = arith.truncf %9 : vector<512x4xf32> to vector<512x4xbf16>
    %c0_26 = arith.constant 0 : index
    %c0_27 = arith.constant 0 : index
    %c1_28 = arith.constant 1 : index
    %c0_29 = arith.constant 0 : index
    %11 = vector.load %arg20[%c0_26, %c0_27, %c1_28, %c0_29] : memref<2x18x18x4xf32, #tpu.memory_space<vmem>>, vector<2x16x16x4xf32>
    %12 = vector.shape_cast %11 : vector<2x16x16x4xf32> to vector<512x4xf32>
    %13 = arith.truncf %12 : vector<512x4xf32> to vector<512x4xbf16>
    %c0_30 = arith.constant 0 : index
    %c0_31 = arith.constant 0 : index
    %c2 = arith.constant 2 : index
    %c0_32 = arith.constant 0 : index
    %14 = vector.load %arg20[%c0_30, %c0_31, %c2, %c0_32] : memref<2x18x18x4xf32, #tpu.memory_space<vmem>>, vector<2x16x16x4xf32>
    %15 = vector.shape_cast %14 : vector<2x16x16x4xf32> to vector<512x4xf32>
    %16 = arith.truncf %15 : vector<512x4xf32> to vector<512x4xbf16>
    %c0_33 = arith.constant 0 : index
    %c1_34 = arith.constant 1 : index
    %c0_35 = arith.constant 0 : index
    %c0_36 = arith.constant 0 : index
    %17 = vector.load %arg20[%c0_33, %c1_34, %c0_35, %c0_36] : memref<2x18x18x4xf32, #tpu.memory_space<vmem>>, vector<2x16x16x4xf32>
    %18 = vector.shape_cast %17 : vector<2x16x16x4xf32> to vector<512x4xf32>
    %19 = arith.truncf %18 : vector<512x4xf32> to vector<512x4xbf16>
    %c0_37 = arith.constant 0 : index
    %c1_38 = arith.constant 1 : index
    %c1_39 = arith.constant 1 : index
    %c0_40 = arith.constant 0 : index
    %20 = vector.load %arg20[%c0_37, %c1_38, %c1_39, %c0_40] : memref<2x18x18x4xf32, #tpu.memory_space<vmem>>, vector<2x16x16x4xf32>
    %21 = vector.shape_cast %20 : vector<2x16x16x4xf32> to vector<512x4xf32>
    %22 = arith.truncf %21 : vector<512x4xf32> to vector<512x4xbf16>
    %c0_41 = arith.constant 0 : index
    %c1_42 = arith.constant 1 : index
    %c2_43 = arith.constant 2 : index
    %c0_44 = arith.constant 0 : index
    %23 = vector.load %arg20[%c0_41, %c1_42, %c2_43, %c0_44] : memref<2x18x18x4xf32, #tpu.memory_space<vmem>>, vector<2x16x16x4xf32>
    %24 = vector.shape_cast %23 : vector<2x16x16x4xf32> to vector<512x4xf32>
    %25 = arith.truncf %24 : vector<512x4xf32> to vector<512x4xbf16>
    %c0_45 = arith.constant 0 : index
    %c2_46 = arith.constant 2 : index
    %c0_47 = arith.constant 0 : index
    %c0_48 = arith.constant 0 : index
    %26 = vector.load %arg20[%c0_45, %c2_46, %c0_47, %c0_48] : memref<2x18x18x4xf32, #tpu.memory_space<vmem>>, vector<2x16x16x4xf32>
    %27 = vector.shape_cast %26 : vector<2x16x16x4xf32> to vector<512x4xf32>
    %28 = arith.truncf %27 : vector<512x4xf32> to vector<512x4xbf16>
    %c0_49 = arith.constant 0 : index
    %c2_50 = arith.constant 2 : index
    %c1_51 = arith.constant 1 : index
    %c0_52 = arith.constant 0 : index
    %29 = vector.load %arg20[%c0_49, %c2_50, %c1_51, %c0_52] : memref<2x18x18x4xf32, #tpu.memory_space<vmem>>, vector<2x16x16x4xf32>
    %30 = vector.shape_cast %29 : vector<2x16x16x4xf32> to vector<512x4xf32>
    %31 = arith.truncf %30 : vector<512x4xf32> to vector<512x4xbf16>
    %c0_53 = arith.constant 0 : index
    %c2_54 = arith.constant 2 : index
    %c2_55 = arith.constant 2 : index
    %c0_56 = arith.constant 0 : index
    %32 = vector.load %arg20[%c0_53, %c2_54, %c2_55, %c0_56] : memref<2x18x18x4xf32, #tpu.memory_space<vmem>>, vector<2x16x16x4xf32>
    %33 = vector.shape_cast %32 : vector<2x16x16x4xf32> to vector<512x4xf32>
    %34 = arith.truncf %33 : vector<512x4xf32> to vector<512x4xbf16>
    %35 = tpu.concatenate %10, %13, %16, %19, %22, %25, %28, %31, %34 in 1 : vector<512x4xbf16>, vector<512x4xbf16>, vector<512x4xbf16>, vector<512x4xbf16>, vector<512x4xbf16>, vector<512x4xbf16>, vector<512x4xbf16>, vector<512x4xbf16>, vector<512x4xbf16> -> vector<512x36xbf16>
    %c0_57 = arith.constant 0 : index
    %c0_58 = arith.constant 0 : index
    %36 = vector.load %arg1[%c0_57, %c0_58] : memref<36x16xbf16, #tpu.memory_space<vmem>>, vector<36x16xbf16>
    %cst_59 = arith.constant dense<0.000000e+00> : vector<512x16xf32>
    %37 = tpu.matmul %35, %36, %cst_59 {dimension_numbers = #tpu.dot_dimension_numbers<[1], [0], [0], [1], [0, 0, 1, 1], [], []>} : vector<512x36xbf16>, vector<36x16xbf16>, vector<512x16xf32> -> vector<512x16xf32>
    %c0_60 = arith.constant 0 : index
    %c0_61 = arith.constant 0 : index
    %38 = vector.load %arg2[%c0_60, %c0_61] : memref<1x16xf32, #tpu.memory_space<vmem>>, vector<1x16xf32>
    %39 = vector.broadcast %38 : vector<1x16xf32> to vector<512x16xf32>
    %40 = arith.addf %37, %39 : vector<512x16xf32>
    %41 = vector.shape_cast %40 : vector<512x16xf32> to vector<2x256x16xf32>
    %cst_62 = arith.constant dense<0.000000e+00> : vector<2x16xf32>
    %42 = vector.multi_reduction <add>, %41, %cst_62 [1] : vector<2x256x16xf32> to vector<2x16xf32>
    %43 = arith.mulf %41, %41 : vector<2x256x16xf32>
    %cst_63 = arith.constant dense<0.000000e+00> : vector<2x16xf32>
    %44 = vector.multi_reduction <add>, %43, %cst_63 [1] : vector<2x256x16xf32> to vector<2x16xf32>
    %45 = tpu.concatenate %42, %44 in 0 : vector<2x16xf32>, vector<2x16xf32> -> vector<4x16xf32>
    %cst_64 = arith.constant 3.906250e-03 : f32
    %46 = vector.broadcast %cst_64 : f32 to vector<4x16xf32>
    %47 = arith.mulf %45, %46 : vector<4x16xf32>
    %c0_65 = arith.constant 0 : index
    %c0_66 = arith.constant 0 : index
    %48 = vector.load %arg13[%c0_65, %c0_66] : memref<16x16xf32, #tpu.memory_space<vmem>>, vector<16x16xf32>
    %cst_67 = arith.constant dense<0.000000e+00> : vector<4x16xf32>
    %49 = tpu.matmul %47, %48, %cst_67 {dimension_numbers = #tpu.dot_dimension_numbers<[1], [0], [0], [1], [0, 0, 1, 1], [], []>} : vector<4x16xf32>, vector<16x16xf32>, vector<4x16xf32> -> vector<4x16xf32>
    %50 = vector.extract_strided_slice %49 {offsets = [0, 0], sizes = [2, 16], strides = [1, 1]} : vector<4x16xf32> to vector<2x16xf32>
    %51 = vector.extract_strided_slice %49 {offsets = [2, 0], sizes = [2, 16], strides = [1, 1]} : vector<4x16xf32> to vector<2x16xf32>
    %52 = arith.mulf %50, %50 : vector<2x16xf32>
    %53 = arith.subf %51, %52 : vector<2x16xf32>
    %cst_68 = arith.constant 0.000000e+00 : f32
    %54 = vector.broadcast %cst_68 : f32 to vector<2x16xf32>
    %55 = arith.maximumf %53, %54 : vector<2x16xf32>
    %56 = vector.shape_cast %50 : vector<2x16xf32> to vector<2x1x16xf32>
    %57 = vector.broadcast %56 : vector<2x1x16xf32> to vector<2x256x16xf32>
    %58 = arith.subf %41, %57 : vector<2x256x16xf32>
    %59 = math.rsqrt %55 : vector<2x16xf32>
    %60 = vector.shape_cast %59 : vector<2x16xf32> to vector<2x1x16xf32>
    %61 = vector.broadcast %60 : vector<2x1x16xf32> to vector<2x256x16xf32>
    %62 = arith.mulf %58, %61 : vector<2x256x16xf32>
    %cst_69 = arith.constant 0.000000e+00 : f32
    %63 = vector.broadcast %cst_69 : f32 to vector<2x256x16xf32>
    %64 = arith.maximumf %62, %63 : vector<2x256x16xf32>
    %65 = vector.shape_cast %64 : vector<2x256x16xf32> to vector<16x2x16x16xf32>
    %cst_70 = arith.constant dense<0xFF800000> : vector<16x16x16xf32>
    %66 = vector.multi_reduction <maximumf>, %65, %cst_70 [1] : vector<16x2x16x16xf32> to vector<16x16x16xf32>
    %c0_71 = arith.constant 0 : index
    %c0_72 = arith.constant 0 : index
    %c0_73 = arith.constant 0 : index
    %67 = vector.load %arg23[%c0_71, %c0_72, %c0_73] : memref<16x16x16xf32, #tpu.memory_space<vmem>>, vector<16x16x16xf32>
    tpu.vector_store %arg23[%c0_71, %c0_72, %c0_73], %66 {strides = array<i32>} : memref<16x16x16xf32, #tpu.memory_space<vmem>>, vector<16x16x16xf32>,
    %c0_74 = arith.constant 0 : index
    %c0_75 = arith.constant 0 : index
    %c0_76 = arith.constant 0 : index
    %68 = tpu.strided_load %arg23[%c0_74, %c0_75, %c0_76] {strides = array<i32: 1, 2, 1>} : memref<16x16x16xf32, #tpu.memory_space<vmem>>, vector<16x8x16xf32>
    %c0_77 = arith.constant 0 : index
    %c1_78 = arith.constant 1 : index
    %c0_79 = arith.constant 0 : index
    %69 = tpu.strided_load %arg23[%c0_77, %c1_78, %c0_79] {strides = array<i32: 1, 2, 1>} : memref<16x16x16xf32, #tpu.memory_space<vmem>>, vector<16x8x16xf32>
    %70 = arith.maximumf %68, %69 : vector<16x8x16xf32>
    %71 = vector.shape_cast %70 : vector<16x8x16xf32> to vector<2x8x8x16xf32>
    %cst_80 = arith.constant 0.000000e+00 : f32
    %72 = vector.broadcast %cst_80 : f32 to vector<2x1x10x16xf32>
    %cst_81 = arith.constant 0.000000e+00 : f32
    %73 = vector.broadcast %cst_81 : f32 to vector<2x8x1x16xf32>
    %c0_82 = arith.constant 0 : index
    %c0_83 = arith.constant 0 : index
    %c0_84 = arith.constant 0 : index
    %c0_85 = arith.constant 0 : index
    %74 = vector.load %arg21[%c0_82, %c0_83, %c0_84, %c0_85] : memref<2x10x10x16xf32, #tpu.memory_space<vmem>>, vector<2x1x10x16xf32>
    tpu.vector_store %arg21[%c0_82, %c0_83, %c0_84, %c0_85], %72 {strides = array<i32>} : memref<2x10x10x16xf32, #tpu.memory_space<vmem>>, vector<2x1x10x16xf32>,
    %c0_86 = arith.constant 0 : index
    %c9 = arith.constant 9 : index
    %c0_87 = arith.constant 0 : index
    %c0_88 = arith.constant 0 : index
    %75 = vector.load %arg21[%c0_86, %c9, %c0_87, %c0_88] : memref<2x10x10x16xf32, #tpu.memory_space<vmem>>, vector<2x1x10x16xf32>
    tpu.vector_store %arg21[%c0_86, %c9, %c0_87, %c0_88], %72 {strides = array<i32>} : memref<2x10x10x16xf32, #tpu.memory_space<vmem>>, vector<2x1x10x16xf32>,
    %c0_89 = arith.constant 0 : index
    %c1_90 = arith.constant 1 : index
    %c0_91 = arith.constant 0 : index
    %c0_92 = arith.constant 0 : index
    %76 = vector.load %arg21[%c0_89, %c1_90, %c0_91, %c0_92] : memref<2x10x10x16xf32, #tpu.memory_space<vmem>>, vector<2x8x1x16xf32>
    tpu.vector_store %arg21[%c0_89, %c1_90, %c0_91, %c0_92], %73 {strides = array<i32>} : memref<2x10x10x16xf32, #tpu.memory_space<vmem>>, vector<2x8x1x16xf32>,
    %c0_93 = arith.constant 0 : index
    %c1_94 = arith.constant 1 : index
    %c9_95 = arith.constant 9 : index
    %c0_96 = arith.constant 0 : index
    %77 = vector.load %arg21[%c0_93, %c1_94, %c9_95, %c0_96] : memref<2x10x10x16xf32, #tpu.memory_space<vmem>>, vector<2x8x1x16xf32>
    tpu.vector_store %arg21[%c0_93, %c1_94, %c9_95, %c0_96], %73 {strides = array<i32>} : memref<2x10x10x16xf32, #tpu.memory_space<vmem>>, vector<2x8x1x16xf32>,
    %c0_97 = arith.constant 0 : index
    %c1_98 = arith.constant 1 : index
    %c1_99 = arith.constant 1 : index
    %c0_100 = arith.constant 0 : index
    %78 = vector.load %arg21[%c0_97, %c1_98, %c1_99, %c0_100] : memref<2x10x10x16xf32, #tpu.memory_space<vmem>>, vector<2x8x8x16xf32>
    tpu.vector_store %arg21[%c0_97, %c1_98, %c1_99, %c0_100], %71 {strides = array<i32>} : memref<2x10x10x16xf32, #tpu.memory_space<vmem>>, vector<2x8x8x16xf32>,
    %c0_101 = arith.constant 0 : index
    %c0_102 = arith.constant 0 : index
    %c0_103 = arith.constant 0 : index
    %c0_104 = arith.constant 0 : index
    %79 = vector.load %arg21[%c0_101, %c0_102, %c0_103, %c0_104] : memref<2x10x10x16xf32, #tpu.memory_space<vmem>>, vector<2x8x8x16xf32>
    %80 = vector.shape_cast %79 : vector<2x8x8x16xf32> to vector<128x16xf32>
    %81 = arith.truncf %80 : vector<128x16xf32> to vector<128x16xbf16>
    %c0_105 = arith.constant 0 : index
    %c0_106 = arith.constant 0 : index
    %c1_107 = arith.constant 1 : index
    %c0_108 = arith.constant 0 : index
    %82 = vector.load %arg21[%c0_105, %c0_106, %c1_107, %c0_108] : memref<2x10x10x16xf32, #tpu.memory_space<vmem>>, vector<2x8x8x16xf32>
    %83 = vector.shape_cast %82 : vector<2x8x8x16xf32> to vector<128x16xf32>
    %84 = arith.truncf %83 : vector<128x16xf32> to vector<128x16xbf16>
    %c0_109 = arith.constant 0 : index
    %c0_110 = arith.constant 0 : index
    %c2_111 = arith.constant 2 : index
    %c0_112 = arith.constant 0 : index
    %85 = vector.load %arg21[%c0_109, %c0_110, %c2_111, %c0_112] : memref<2x10x10x16xf32, #tpu.memory_space<vmem>>, vector<2x8x8x16xf32>
    %86 = vector.shape_cast %85 : vector<2x8x8x16xf32> to vector<128x16xf32>
    %87 = arith.truncf %86 : vector<128x16xf32> to vector<128x16xbf16>
    %c0_113 = arith.constant 0 : index
    %c1_114 = arith.constant 1 : index
    %c0_115 = arith.constant 0 : index
    %c0_116 = arith.constant 0 : index
    %88 = vector.load %arg21[%c0_113, %c1_114, %c0_115, %c0_116] : memref<2x10x10x16xf32, #tpu.memory_space<vmem>>, vector<2x8x8x16xf32>
    %89 = vector.shape_cast %88 : vector<2x8x8x16xf32> to vector<128x16xf32>
    %90 = arith.truncf %89 : vector<128x16xf32> to vector<128x16xbf16>
    %c0_117 = arith.constant 0 : index
    %c1_118 = arith.constant 1 : index
    %c1_119 = arith.constant 1 : index
    %c0_120 = arith.constant 0 : index
    %91 = vector.load %arg21[%c0_117, %c1_118, %c1_119, %c0_120] : memref<2x10x10x16xf32, #tpu.memory_space<vmem>>, vector<2x8x8x16xf32>
    %92 = vector.shape_cast %91 : vector<2x8x8x16xf32> to vector<128x16xf32>
    %93 = arith.truncf %92 : vector<128x16xf32> to vector<128x16xbf16>
    %c0_121 = arith.constant 0 : index
    %c1_122 = arith.constant 1 : index
    %c2_123 = arith.constant 2 : index
    %c0_124 = arith.constant 0 : index
    %94 = vector.load %arg21[%c0_121, %c1_122, %c2_123, %c0_124] : memref<2x10x10x16xf32, #tpu.memory_space<vmem>>, vector<2x8x8x16xf32>
    %95 = vector.shape_cast %94 : vector<2x8x8x16xf32> to vector<128x16xf32>
    %96 = arith.truncf %95 : vector<128x16xf32> to vector<128x16xbf16>
    %c0_125 = arith.constant 0 : index
    %c2_126 = arith.constant 2 : index
    %c0_127 = arith.constant 0 : index
    %c0_128 = arith.constant 0 : index
    %97 = vector.load %arg21[%c0_125, %c2_126, %c0_127, %c0_128] : memref<2x10x10x16xf32, #tpu.memory_space<vmem>>, vector<2x8x8x16xf32>
    %98 = vector.shape_cast %97 : vector<2x8x8x16xf32> to vector<128x16xf32>
    %99 = arith.truncf %98 : vector<128x16xf32> to vector<128x16xbf16>
    %c0_129 = arith.constant 0 : index
    %c2_130 = arith.constant 2 : index
    %c1_131 = arith.constant 1 : index
    %c0_132 = arith.constant 0 : index
    %100 = vector.load %arg21[%c0_129, %c2_130, %c1_131, %c0_132] : memref<2x10x10x16xf32, #tpu.memory_space<vmem>>, vector<2x8x8x16xf32>
    %101 = vector.shape_cast %100 : vector<2x8x8x16xf32> to vector<128x16xf32>
    %102 = arith.truncf %101 : vector<128x16xf32> to vector<128x16xbf16>
    %c0_133 = arith.constant 0 : index
    %c2_134 = arith.constant 2 : index
    %c2_135 = arith.constant 2 : index
    %c0_136 = arith.constant 0 : index
    %103 = vector.load %arg21[%c0_133, %c2_134, %c2_135, %c0_136] : memref<2x10x10x16xf32, #tpu.memory_space<vmem>>, vector<2x8x8x16xf32>
    %104 = vector.shape_cast %103 : vector<2x8x8x16xf32> to vector<128x16xf32>
    %105 = arith.truncf %104 : vector<128x16xf32> to vector<128x16xbf16>
    %106 = tpu.concatenate %81, %84, %87, %90, %93, %96, %99, %102, %105 in 1 : vector<128x16xbf16>, vector<128x16xbf16>, vector<128x16xbf16>, vector<128x16xbf16>, vector<128x16xbf16>, vector<128x16xbf16>, vector<128x16xbf16>, vector<128x16xbf16>, vector<128x16xbf16> -> vector<128x144xbf16>
    %c0_137 = arith.constant 0 : index
    %c0_138 = arith.constant 0 : index
    %107 = vector.load %arg3[%c0_137, %c0_138] : memref<144x8xbf16, #tpu.memory_space<vmem>>, vector<144x8xbf16>
    %cst_139 = arith.constant dense<0.000000e+00> : vector<128x8xf32>
    %108 = tpu.matmul %106, %107, %cst_139 {dimension_numbers = #tpu.dot_dimension_numbers<[1], [0], [0], [1], [0, 0, 1, 1], [], []>} : vector<128x144xbf16>, vector<144x8xbf16>, vector<128x8xf32> -> vector<128x8xf32>
    %c0_140 = arith.constant 0 : index
    %c0_141 = arith.constant 0 : index
    %109 = vector.load %arg4[%c0_140, %c0_141] : memref<1x8xf32, #tpu.memory_space<vmem>>, vector<1x8xf32>
    %110 = vector.broadcast %109 : vector<1x8xf32> to vector<128x8xf32>
    %111 = arith.addf %108, %110 : vector<128x8xf32>
    %112 = vector.shape_cast %111 : vector<128x8xf32> to vector<2x64x8xf32>
    %cst_142 = arith.constant dense<0.000000e+00> : vector<2x8xf32>
    %113 = vector.multi_reduction <add>, %112, %cst_142 [1] : vector<2x64x8xf32> to vector<2x8xf32>
    %114 = arith.mulf %112, %112 : vector<2x64x8xf32>
    %cst_143 = arith.constant dense<0.000000e+00> : vector<2x8xf32>
    %115 = vector.multi_reduction <add>, %114, %cst_143 [1] : vector<2x64x8xf32> to vector<2x8xf32>
    %116 = tpu.concatenate %113, %115 in 0 : vector<2x8xf32>, vector<2x8xf32> -> vector<4x8xf32>
    %cst_144 = arith.constant 1.562500e-02 : f32
    %117 = vector.broadcast %cst_144 : f32 to vector<4x8xf32>
    %118 = arith.mulf %116, %117 : vector<4x8xf32>
    %c0_145 = arith.constant 0 : index
    %c0_146 = arith.constant 0 : index
    %119 = vector.load %arg14[%c0_145, %c0_146] : memref<8x8xf32, #tpu.memory_space<vmem>>, vector<8x8xf32>
    %cst_147 = arith.constant dense<0.000000e+00> : vector<4x8xf32>
    %120 = tpu.matmul %118, %119, %cst_147 {dimension_numbers = #tpu.dot_dimension_numbers<[1], [0], [0], [1], [0, 0, 1, 1], [], []>} : vector<4x8xf32>, vector<8x8xf32>, vector<4x8xf32> -> vector<4x8xf32>
    %121 = vector.extract_strided_slice %120 {offsets = [0, 0], sizes = [2, 8], strides = [1, 1]} : vector<4x8xf32> to vector<2x8xf32>
    %122 = vector.extract_strided_slice %120 {offsets = [2, 0], sizes = [2, 8], strides = [1, 1]} : vector<4x8xf32> to vector<2x8xf32>
    %123 = arith.mulf %121, %121 : vector<2x8xf32>
    %124 = arith.subf %122, %123 : vector<2x8xf32>
    %cst_148 = arith.constant 0.000000e+00 : f32
    %125 = vector.broadcast %cst_148 : f32 to vector<2x8xf32>
    %126 = arith.maximumf %124, %125 : vector<2x8xf32>
    %127 = vector.shape_cast %121 : vector<2x8xf32> to vector<2x1x8xf32>
    %128 = vector.broadcast %127 : vector<2x1x8xf32> to vector<2x64x8xf32>
    %129 = arith.subf %112, %128 : vector<2x64x8xf32>
    %130 = math.rsqrt %126 : vector<2x8xf32>
    %131 = vector.shape_cast %130 : vector<2x8xf32> to vector<2x1x8xf32>
    %132 = vector.broadcast %131 : vector<2x1x8xf32> to vector<2x64x8xf32>
    %133 = arith.mulf %129, %132 : vector<2x64x8xf32>
    %cst_149 = arith.constant 0.000000e+00 : f32
    %134 = vector.broadcast %cst_149 : f32 to vector<2x64x8xf32>
    %135 = arith.maximumf %133, %134 : vector<2x64x8xf32>
    %136 = vector.shape_cast %135 : vector<2x64x8xf32> to vector<8x2x8x8xf32>
    %cst_150 = arith.constant dense<0xFF800000> : vector<8x8x8xf32>
    %137 = vector.multi_reduction <maximumf>, %136, %cst_150 [1] : vector<8x2x8x8xf32> to vector<8x8x8xf32>
    %c0_151 = arith.constant 0 : index
    %c0_152 = arith.constant 0 : index
    %c0_153 = arith.constant 0 : index
    %138 = vector.load %arg24[%c0_151, %c0_152, %c0_153] : memref<8x8x8xf32, #tpu.memory_space<vmem>>, vector<8x8x8xf32>
    tpu.vector_store %arg24[%c0_151, %c0_152, %c0_153], %137 {strides = array<i32>} : memref<8x8x8xf32, #tpu.memory_space<vmem>>, vector<8x8x8xf32>,
    %c0_154 = arith.constant 0 : index
    %c0_155 = arith.constant 0 : index
    %c0_156 = arith.constant 0 : index
    %139 = tpu.strided_load %arg24[%c0_154, %c0_155, %c0_156] {strides = array<i32: 1, 2, 1>} : memref<8x8x8xf32, #tpu.memory_space<vmem>>, vector<8x4x8xf32>
    %c0_157 = arith.constant 0 : index
    %c1_158 = arith.constant 1 : index
    %c0_159 = arith.constant 0 : index
    %140 = tpu.strided_load %arg24[%c0_157, %c1_158, %c0_159] {strides = array<i32: 1, 2, 1>} : memref<8x8x8xf32, #tpu.memory_space<vmem>>, vector<8x4x8xf32>
    %141 = arith.maximumf %139, %140 : vector<8x4x8xf32>
    %142 = vector.shape_cast %141 : vector<8x4x8xf32> to vector<2x4x4x8xf32>
    %cst_160 = arith.constant 0.000000e+00 : f32
    %143 = vector.broadcast %cst_160 : f32 to vector<2x1x6x8xf32>
    %cst_161 = arith.constant 0.000000e+00 : f32
    %144 = vector.broadcast %cst_161 : f32 to vector<2x4x1x8xf32>
    %c0_162 = arith.constant 0 : index
    %c0_163 = arith.constant 0 : index
    %c0_164 = arith.constant 0 : index
    %c0_165 = arith.constant 0 : index
    %145 = vector.load %arg22[%c0_162, %c0_163, %c0_164, %c0_165] : memref<2x6x6x8xf32, #tpu.memory_space<vmem>>, vector<2x1x6x8xf32>
    tpu.vector_store %arg22[%c0_162, %c0_163, %c0_164, %c0_165], %143 {strides = array<i32>} : memref<2x6x6x8xf32, #tpu.memory_space<vmem>>, vector<2x1x6x8xf32>,
    %c0_166 = arith.constant 0 : index
    %c5 = arith.constant 5 : index
    %c0_167 = arith.constant 0 : index
    %c0_168 = arith.constant 0 : index
    %146 = vector.load %arg22[%c0_166, %c5, %c0_167, %c0_168] : memref<2x6x6x8xf32, #tpu.memory_space<vmem>>, vector<2x1x6x8xf32>
    tpu.vector_store %arg22[%c0_166, %c5, %c0_167, %c0_168], %143 {strides = array<i32>} : memref<2x6x6x8xf32, #tpu.memory_space<vmem>>, vector<2x1x6x8xf32>,
    %c0_169 = arith.constant 0 : index
    %c1_170 = arith.constant 1 : index
    %c0_171 = arith.constant 0 : index
    %c0_172 = arith.constant 0 : index
    %147 = vector.load %arg22[%c0_169, %c1_170, %c0_171, %c0_172] : memref<2x6x6x8xf32, #tpu.memory_space<vmem>>, vector<2x4x1x8xf32>
    tpu.vector_store %arg22[%c0_169, %c1_170, %c0_171, %c0_172], %144 {strides = array<i32>} : memref<2x6x6x8xf32, #tpu.memory_space<vmem>>, vector<2x4x1x8xf32>,
    %c0_173 = arith.constant 0 : index
    %c1_174 = arith.constant 1 : index
    %c5_175 = arith.constant 5 : index
    %c0_176 = arith.constant 0 : index
    %148 = vector.load %arg22[%c0_173, %c1_174, %c5_175, %c0_176] : memref<2x6x6x8xf32, #tpu.memory_space<vmem>>, vector<2x4x1x8xf32>
    tpu.vector_store %arg22[%c0_173, %c1_174, %c5_175, %c0_176], %144 {strides = array<i32>} : memref<2x6x6x8xf32, #tpu.memory_space<vmem>>, vector<2x4x1x8xf32>,
    %c0_177 = arith.constant 0 : index
    %c1_178 = arith.constant 1 : index
    %c1_179 = arith.constant 1 : index
    %c0_180 = arith.constant 0 : index
    %149 = vector.load %arg22[%c0_177, %c1_178, %c1_179, %c0_180] : memref<2x6x6x8xf32, #tpu.memory_space<vmem>>, vector<2x4x4x8xf32>
    tpu.vector_store %arg22[%c0_177, %c1_178, %c1_179, %c0_180], %142 {strides = array<i32>} : memref<2x6x6x8xf32, #tpu.memory_space<vmem>>, vector<2x4x4x8xf32>,
    %c0_181 = arith.constant 0 : index
    %c0_182 = arith.constant 0 : index
    %c0_183 = arith.constant 0 : index
    %c0_184 = arith.constant 0 : index
    %150 = vector.load %arg22[%c0_181, %c0_182, %c0_183, %c0_184] : memref<2x6x6x8xf32, #tpu.memory_space<vmem>>, vector<2x4x4x8xf32>
    %151 = vector.shape_cast %150 : vector<2x4x4x8xf32> to vector<32x8xf32>
    %152 = arith.truncf %151 : vector<32x8xf32> to vector<32x8xbf16>
    %c0_185 = arith.constant 0 : index
    %c0_186 = arith.constant 0 : index
    %c1_187 = arith.constant 1 : index
    %c0_188 = arith.constant 0 : index
    %153 = vector.load %arg22[%c0_185, %c0_186, %c1_187, %c0_188] : memref<2x6x6x8xf32, #tpu.memory_space<vmem>>, vector<2x4x4x8xf32>
    %154 = vector.shape_cast %153 : vector<2x4x4x8xf32> to vector<32x8xf32>
    %155 = arith.truncf %154 : vector<32x8xf32> to vector<32x8xbf16>
    %c0_189 = arith.constant 0 : index
    %c0_190 = arith.constant 0 : index
    %c2_191 = arith.constant 2 : index
    %c0_192 = arith.constant 0 : index
    %156 = vector.load %arg22[%c0_189, %c0_190, %c2_191, %c0_192] : memref<2x6x6x8xf32, #tpu.memory_space<vmem>>, vector<2x4x4x8xf32>
    %157 = vector.shape_cast %156 : vector<2x4x4x8xf32> to vector<32x8xf32>
    %158 = arith.truncf %157 : vector<32x8xf32> to vector<32x8xbf16>
    %c0_193 = arith.constant 0 : index
    %c1_194 = arith.constant 1 : index
    %c0_195 = arith.constant 0 : index
    %c0_196 = arith.constant 0 : index
    %159 = vector.load %arg22[%c0_193, %c1_194, %c0_195, %c0_196] : memref<2x6x6x8xf32, #tpu.memory_space<vmem>>, vector<2x4x4x8xf32>
    %160 = vector.shape_cast %159 : vector<2x4x4x8xf32> to vector<32x8xf32>
    %161 = arith.truncf %160 : vector<32x8xf32> to vector<32x8xbf16>
    %c0_197 = arith.constant 0 : index
    %c1_198 = arith.constant 1 : index
    %c1_199 = arith.constant 1 : index
    %c0_200 = arith.constant 0 : index
    %162 = vector.load %arg22[%c0_197, %c1_198, %c1_199, %c0_200] : memref<2x6x6x8xf32, #tpu.memory_space<vmem>>, vector<2x4x4x8xf32>
    %163 = vector.shape_cast %162 : vector<2x4x4x8xf32> to vector<32x8xf32>
    %164 = arith.truncf %163 : vector<32x8xf32> to vector<32x8xbf16>
    %c0_201 = arith.constant 0 : index
    %c1_202 = arith.constant 1 : index
    %c2_203 = arith.constant 2 : index
    %c0_204 = arith.constant 0 : index
    %165 = vector.load %arg22[%c0_201, %c1_202, %c2_203, %c0_204] : memref<2x6x6x8xf32, #tpu.memory_space<vmem>>, vector<2x4x4x8xf32>
    %166 = vector.shape_cast %165 : vector<2x4x4x8xf32> to vector<32x8xf32>
    %167 = arith.truncf %166 : vector<32x8xf32> to vector<32x8xbf16>
    %c0_205 = arith.constant 0 : index
    %c2_206 = arith.constant 2 : index
    %c0_207 = arith.constant 0 : index
    %c0_208 = arith.constant 0 : index
    %168 = vector.load %arg22[%c0_205, %c2_206, %c0_207, %c0_208] : memref<2x6x6x8xf32, #tpu.memory_space<vmem>>, vector<2x4x4x8xf32>
    %169 = vector.shape_cast %168 : vector<2x4x4x8xf32> to vector<32x8xf32>
    %170 = arith.truncf %169 : vector<32x8xf32> to vector<32x8xbf16>
    %c0_209 = arith.constant 0 : index
    %c2_210 = arith.constant 2 : index
    %c1_211 = arith.constant 1 : index
    %c0_212 = arith.constant 0 : index
    %171 = vector.load %arg22[%c0_209, %c2_210, %c1_211, %c0_212] : memref<2x6x6x8xf32, #tpu.memory_space<vmem>>, vector<2x4x4x8xf32>
    %172 = vector.shape_cast %171 : vector<2x4x4x8xf32> to vector<32x8xf32>
    %173 = arith.truncf %172 : vector<32x8xf32> to vector<32x8xbf16>
    %c0_213 = arith.constant 0 : index
    %c2_214 = arith.constant 2 : index
    %c2_215 = arith.constant 2 : index
    %c0_216 = arith.constant 0 : index
    %174 = vector.load %arg22[%c0_213, %c2_214, %c2_215, %c0_216] : memref<2x6x6x8xf32, #tpu.memory_space<vmem>>, vector<2x4x4x8xf32>
    %175 = vector.shape_cast %174 : vector<2x4x4x8xf32> to vector<32x8xf32>
    %176 = arith.truncf %175 : vector<32x8xf32> to vector<32x8xbf16>
    %177 = tpu.concatenate %152, %155, %158, %161, %164, %167, %170, %173, %176 in 1 : vector<32x8xbf16>, vector<32x8xbf16>, vector<32x8xbf16>, vector<32x8xbf16>, vector<32x8xbf16>, vector<32x8xbf16>, vector<32x8xbf16>, vector<32x8xbf16>, vector<32x8xbf16> -> vector<32x72xbf16>
    %c0_217 = arith.constant 0 : index
    %c0_218 = arith.constant 0 : index
    %178 = vector.load %arg5[%c0_217, %c0_218] : memref<72x8xbf16, #tpu.memory_space<vmem>>, vector<72x8xbf16>
    %cst_219 = arith.constant dense<0.000000e+00> : vector<32x8xf32>
    %179 = tpu.matmul %177, %178, %cst_219 {dimension_numbers = #tpu.dot_dimension_numbers<[1], [0], [0], [1], [0, 0, 1, 1], [], []>} : vector<32x72xbf16>, vector<72x8xbf16>, vector<32x8xf32> -> vector<32x8xf32>
    %c0_220 = arith.constant 0 : index
    %c0_221 = arith.constant 0 : index
    %180 = vector.load %arg6[%c0_220, %c0_221] : memref<1x8xf32, #tpu.memory_space<vmem>>, vector<1x8xf32>
    %181 = vector.broadcast %180 : vector<1x8xf32> to vector<32x8xf32>
    %182 = arith.addf %179, %181 : vector<32x8xf32>
    %183 = vector.shape_cast %182 : vector<32x8xf32> to vector<2x16x8xf32>
    %cst_222 = arith.constant dense<0.000000e+00> : vector<2x8xf32>
    %184 = vector.multi_reduction <add>, %183, %cst_222 [1] : vector<2x16x8xf32> to vector<2x8xf32>
    %185 = arith.mulf %183, %183 : vector<2x16x8xf32>
    %cst_223 = arith.constant dense<0.000000e+00> : vector<2x8xf32>
    %186 = vector.multi_reduction <add>, %185, %cst_223 [1] : vector<2x16x8xf32> to vector<2x8xf32>
    %187 = tpu.concatenate %184, %186 in 0 : vector<2x8xf32>, vector<2x8xf32> -> vector<4x8xf32>
    %cst_224 = arith.constant 6.250000e-02 : f32
    %188 = vector.broadcast %cst_224 : f32 to vector<4x8xf32>
    %189 = arith.mulf %187, %188 : vector<4x8xf32>
    %c0_225 = arith.constant 0 : index
    %c0_226 = arith.constant 0 : index
    %190 = vector.load %arg14[%c0_225, %c0_226] : memref<8x8xf32, #tpu.memory_space<vmem>>, vector<8x8xf32>
    %cst_227 = arith.constant dense<0.000000e+00> : vector<4x8xf32>
    %191 = tpu.matmul %189, %190, %cst_227 {dimension_numbers = #tpu.dot_dimension_numbers<[1], [0], [0], [1], [0, 0, 1, 1], [], []>} : vector<4x8xf32>, vector<8x8xf32>, vector<4x8xf32> -> vector<4x8xf32>
    %192 = vector.extract_strided_slice %191 {offsets = [0, 0], sizes = [2, 8], strides = [1, 1]} : vector<4x8xf32> to vector<2x8xf32>
    %193 = vector.extract_strided_slice %191 {offsets = [2, 0], sizes = [2, 8], strides = [1, 1]} : vector<4x8xf32> to vector<2x8xf32>
    %194 = arith.mulf %192, %192 : vector<2x8xf32>
    %195 = arith.subf %193, %194 : vector<2x8xf32>
    %cst_228 = arith.constant 0.000000e+00 : f32
    %196 = vector.broadcast %cst_228 : f32 to vector<2x8xf32>
    %197 = arith.maximumf %195, %196 : vector<2x8xf32>
    %198 = vector.shape_cast %192 : vector<2x8xf32> to vector<2x1x8xf32>
    %199 = vector.broadcast %198 : vector<2x1x8xf32> to vector<2x16x8xf32>
    %200 = arith.subf %183, %199 : vector<2x16x8xf32>
    %201 = math.rsqrt %197 : vector<2x8xf32>
    %202 = vector.shape_cast %201 : vector<2x8xf32> to vector<2x1x8xf32>
    %203 = vector.broadcast %202 : vector<2x1x8xf32> to vector<2x16x8xf32>
    %204 = arith.mulf %200, %203 : vector<2x16x8xf32>
    %cst_229 = arith.constant 0.000000e+00 : f32
    %205 = vector.broadcast %cst_229 : f32 to vector<2x16x8xf32>
    %206 = arith.maximumf %204, %205 : vector<2x16x8xf32>
    %207 = vector.shape_cast %206 : vector<2x16x8xf32> to vector<4x2x4x8xf32>
    %cst_230 = arith.constant dense<0xFF800000> : vector<4x4x8xf32>
    %208 = vector.multi_reduction <maximumf>, %207, %cst_230 [1] : vector<4x2x4x8xf32> to vector<4x4x8xf32>
    %c0_231 = arith.constant 0 : index
    %c0_232 = arith.constant 0 : index
    %c0_233 = arith.constant 0 : index
    %209 = vector.load %arg25[%c0_231, %c0_232, %c0_233] : memref<4x4x8xf32, #tpu.memory_space<vmem>>, vector<4x4x8xf32>
    tpu.vector_store %arg25[%c0_231, %c0_232, %c0_233], %208 {strides = array<i32>} : memref<4x4x8xf32, #tpu.memory_space<vmem>>, vector<4x4x8xf32>,
    %c0_234 = arith.constant 0 : index
    %c0_235 = arith.constant 0 : index
    %c0_236 = arith.constant 0 : index
    %210 = tpu.strided_load %arg25[%c0_234, %c0_235, %c0_236] {strides = array<i32: 1, 2, 1>} : memref<4x4x8xf32, #tpu.memory_space<vmem>>, vector<4x2x8xf32>
    %c0_237 = arith.constant 0 : index
    %c1_238 = arith.constant 1 : index
    %c0_239 = arith.constant 0 : index
    %211 = tpu.strided_load %arg25[%c0_237, %c1_238, %c0_239] {strides = array<i32: 1, 2, 1>} : memref<4x4x8xf32, #tpu.memory_space<vmem>>, vector<4x2x8xf32>
    %212 = arith.maximumf %210, %211 : vector<4x2x8xf32>
    %213 = vector.shape_cast %212 : vector<4x2x8xf32> to vector<2x2x2x8xf32>
    %214 = vector.extract_strided_slice %213 {offsets = [0, 0, 0, 0], sizes = [2, 1, 1, 8], strides = [1, 1, 1, 1]} : vector<2x2x2x8xf32> to vector<2x1x1x8xf32>
    %215 = vector.shape_cast %214 : vector<2x1x1x8xf32> to vector<2x8xf32>
    %216 = vector.extract_strided_slice %213 {offsets = [0, 0, 1, 0], sizes = [2, 1, 1, 8], strides = [1, 1, 1, 1]} : vector<2x2x2x8xf32> to vector<2x1x1x8xf32>
    %217 = vector.shape_cast %216 : vector<2x1x1x8xf32> to vector<2x8xf32>
    %218 = vector.extract_strided_slice %213 {offsets = [0, 1, 0, 0], sizes = [2, 1, 1, 8], strides = [1, 1, 1, 1]} : vector<2x2x2x8xf32> to vector<2x1x1x8xf32>
    %219 = vector.shape_cast %218 : vector<2x1x1x8xf32> to vector<2x8xf32>
    %220 = vector.extract_strided_slice %213 {offsets = [0, 1, 1, 0], sizes = [2, 1, 1, 8], strides = [1, 1, 1, 1]} : vector<2x2x2x8xf32> to vector<2x1x1x8xf32>
    %221 = vector.shape_cast %220 : vector<2x1x1x8xf32> to vector<2x8xf32>
    %222 = tpu.concatenate %215, %217, %219, %221 in 1 : vector<2x8xf32>, vector<2x8xf32>, vector<2x8xf32>, vector<2x8xf32> -> vector<2x32xf32>
    %223 = arith.truncf %222 : vector<2x32xf32> to vector<2x32xbf16>
    %c0_240 = arith.constant 0 : index
    %c0_241 = arith.constant 0 : index
    %224 = vector.load %arg7[%c0_240, %c0_241] : memref<32x288xbf16, #tpu.memory_space<vmem>>, vector<32x288xbf16>
    %cst_242 = arith.constant dense<0.000000e+00> : vector<2x288xf32>
    %225 = tpu.matmul %223, %224, %cst_242 {dimension_numbers = #tpu.dot_dimension_numbers<[1], [0], [0], [1], [0, 0, 1, 1], [], []>} : vector<2x32xbf16>, vector<32x288xbf16>, vector<2x288xf32> -> vector<2x288xf32>
    %c0_243 = arith.constant 0 : index
    %c0_244 = arith.constant 0 : index
    %226 = vector.load %arg8[%c0_243, %c0_244] : memref<1x288xf32, #tpu.memory_space<vmem>>, vector<1x288xf32>
    %227 = vector.broadcast %226 : vector<1x288xf32> to vector<2x288xf32>
    %228 = arith.addf %225, %227 : vector<2x288xf32>
    %229 = arith.mulf %228, %228 : vector<2x288xf32>
    %230 = tpu.concatenate %228, %229 in 0 : vector<2x288xf32>, vector<2x288xf32> -> vector<4x288xf32>
    %c0_245 = arith.constant 0 : index
    %c0_246 = arith.constant 0 : index
    %231 = vector.load %arg15[%c0_245, %c0_246] : memref<288x4xf32, #tpu.memory_space<vmem>>, vector<288x4xf32>
    %cst_247 = arith.constant dense<0.000000e+00> : vector<4x4xf32>
    %232 = tpu.matmul %230, %231, %cst_247 {dimension_numbers = #tpu.dot_dimension_numbers<[1], [0], [0], [1], [0, 0, 1, 1], [], []>} : vector<4x288xf32>, vector<288x4xf32>, vector<4x4xf32> -> vector<4x4xf32>
    %c0_248 = arith.constant 0 : index
    %c0_249 = arith.constant 0 : index
    %233 = vector.load %arg16[%c0_248, %c0_249] : memref<4x288xf32, #tpu.memory_space<vmem>>, vector<4x288xf32>
    %cst_250 = arith.constant dense<0.000000e+00> : vector<4x288xf32>
    %234 = tpu.matmul %232, %233, %cst_250 {dimension_numbers = #tpu.dot_dimension_numbers<[1], [0], [0], [1], [0, 0, 1, 1], [], []>} : vector<4x4xf32>, vector<4x288xf32>, vector<4x288xf32> -> vector<4x288xf32>
    %235 = vector.extract_strided_slice %234 {offsets = [0, 0], sizes = [2, 288], strides = [1, 1]} : vector<4x288xf32> to vector<2x288xf32>
    %236 = vector.extract_strided_slice %234 {offsets = [2, 0], sizes = [2, 288], strides = [1, 1]} : vector<4x288xf32> to vector<2x288xf32>
    %237 = arith.mulf %235, %235 : vector<2x288xf32>
    %238 = arith.subf %236, %237 : vector<2x288xf32>
    %cst_251 = arith.constant 0.000000e+00 : f32
    %239 = vector.broadcast %cst_251 : f32 to vector<2x288xf32>
    %240 = arith.maximumf %238, %239 : vector<2x288xf32>
    %241 = arith.subf %228, %235 : vector<2x288xf32>
    %242 = math.rsqrt %240 : vector<2x288xf32>
    %243 = arith.mulf %241, %242 : vector<2x288xf32>
    %cst_252 = arith.constant 0.000000e+00 : f32
    %244 = vector.broadcast %cst_252 : f32 to vector<2x288xf32>
    %245 = arith.maximumf %243, %244 : vector<2x288xf32>
    %246 = arith.truncf %245 : vector<2x288xf32> to vector<2x288xbf16>
    %c0_253 = arith.constant 0 : index
    %c0_254 = arith.constant 0 : index
    %247 = vector.load %arg9[%c0_253, %c0_254] : memref<288x144xbf16, #tpu.memory_space<vmem>>, vector<288x144xbf16>
    %cst_255 = arith.constant dense<0.000000e+00> : vector<2x144xf32>
    %248 = tpu.matmul %246, %247, %cst_255 {dimension_numbers = #tpu.dot_dimension_numbers<[1], [0], [0], [1], [0, 0, 1, 1], [], []>} : vector<2x288xbf16>, vector<288x144xbf16>, vector<2x144xf32> -> vector<2x144xf32>
    %c0_256 = arith.constant 0 : index
    %c0_257 = arith.constant 0 : index
    %249 = vector.load %arg10[%c0_256, %c0_257] : memref<1x144xf32, #tpu.memory_space<vmem>>, vector<1x144xf32>
    %250 = vector.broadcast %249 : vector<1x144xf32> to vector<2x144xf32>
    %251 = arith.addf %248, %250 : vector<2x144xf32>
    %252 = arith.mulf %251, %251 : vector<2x144xf32>
    %253 = tpu.concatenate %251, %252 in 0 : vector<2x144xf32>, vector<2x144xf32> -> vector<4x144xf32>
    %c0_258 = arith.constant 0 : index
    %c0_259 = arith.constant 0 : index
    %254 = vector.load %arg17[%c0_258, %c0_259] : memref<144x4xf32, #tpu.memory_space<vmem>>, vector<144x4xf32>
    %cst_260 = arith.constant dense<0.000000e+00> : vector<4x4xf32>
    %255 = tpu.matmul %253, %254, %cst_260 {dimension_numbers = #tpu.dot_dimension_numbers<[1], [0], [0], [1], [0, 0, 1, 1], [], []>} : vector<4x144xf32>, vector<144x4xf32>, vector<4x4xf32> -> vector<4x4xf32>
    %c0_261 = arith.constant 0 : index
    %c0_262 = arith.constant 0 : index
    %256 = vector.load %arg18[%c0_261, %c0_262] : memref<4x144xf32, #tpu.memory_space<vmem>>, vector<4x144xf32>
    %cst_263 = arith.constant dense<0.000000e+00> : vector<4x144xf32>
    %257 = tpu.matmul %255, %256, %cst_263 {dimension_numbers = #tpu.dot_dimension_numbers<[1], [0], [0], [1], [0, 0, 1, 1], [], []>} : vector<4x4xf32>, vector<4x144xf32>, vector<4x144xf32> -> vector<4x144xf32>
    %258 = vector.extract_strided_slice %257 {offsets = [0, 0], sizes = [2, 144], strides = [1, 1]} : vector<4x144xf32> to vector<2x144xf32>
    %259 = vector.extract_strided_slice %257 {offsets = [2, 0], sizes = [2, 144], strides = [1, 1]} : vector<4x144xf32> to vector<2x144xf32>
    %260 = arith.mulf %258, %258 : vector<2x144xf32>
    %261 = arith.subf %259, %260 : vector<2x144xf32>
    %cst_264 = arith.constant 0.000000e+00 : f32
    %262 = vector.broadcast %cst_264 : f32 to vector<2x144xf32>
    %263 = arith.maximumf %261, %262 : vector<2x144xf32>
    %264 = arith.subf %251, %258 : vector<2x144xf32>
    %265 = math.rsqrt %263 : vector<2x144xf32>
    %266 = arith.mulf %264, %265 : vector<2x144xf32>
    %cst_265 = arith.constant 0.000000e+00 : f32
    %267 = vector.broadcast %cst_265 : f32 to vector<2x144xf32>
    %268 = arith.maximumf %266, %267 : vector<2x144xf32>
    %269 = arith.truncf %268 : vector<2x144xf32> to vector<2x144xbf16>
    %c0_266 = arith.constant 0 : index
    %c0_267 = arith.constant 0 : index
    %270 = vector.load %arg11[%c0_266, %c0_267] : memref<144x2xbf16, #tpu.memory_space<vmem>>, vector<144x2xbf16>
    %cst_268 = arith.constant dense<0.000000e+00> : vector<2x2xf32>
    %271 = tpu.matmul %269, %270, %cst_268 {dimension_numbers = #tpu.dot_dimension_numbers<[1], [0], [0], [1], [0, 0, 1, 1], [], []>} : vector<2x144xbf16>, vector<144x2xbf16>, vector<2x2xf32> -> vector<2x2xf32>
    %c0_269 = arith.constant 0 : index
    %c0_270 = arith.constant 0 : index
    %272 = vector.load %arg12[%c0_269, %c0_270] : memref<1x2xf32, #tpu.memory_space<vmem>>, vector<1x2xf32>
    %273 = vector.broadcast %272 : vector<1x2xf32> to vector<2x2xf32>
    %274 = arith.addf %271, %273 : vector<2x2xf32>
    %c0_271 = arith.constant 0 : index
    %c0_272 = arith.constant 0 : index
    %275 = vector.load %arg19[%c0_271, %c0_272] : memref<2x2xf32, #tpu.memory_space<vmem>>, vector<2x2xf32>
    tpu.vector_store %arg19[%c0_271, %c0_272], %274 {strides = array<i32>} : memref<2x2xf32, #tpu.memory_space<vmem>>, vector<2x2xf32>,
    return
  }
}

</mosaic_0001>

<llo_original>
// kernel: feature_discriminator_dann_forward.1
$region0: #{feature_discriminator_dann_forward.1}
  #allocation0 [shape = 'u32[]', space=smem, size = 0x4, offset = 0x4, fixed_abs, tag = 'smem constant byte address 0x4 - core index']
  #allocation1 [shape = 'u32[144,128]{1,0:T(1,128)}', space=vmem, size = 0x12000, scoped, tag = 'internal scratch']
  #allocation2 [shape = 'f32[2,18,18,4]{3,2,1,0:T(8,128)}', space=vmem, size = 0x6c000, scoped, tag = 'scratch operand']
  #allocation3 [shape = 'f32[2,10,10,16]{3,2,1,0:T(8,128)}', space=vmem, size = 0x28000, scoped, tag = 'scratch operand']
  #allocation4 [shape = 'f32[2,6,6,8]{3,2,1,0:T(8,128)}', space=vmem, size = 0xc000, scoped, tag = 'scratch operand']
  #allocation5 [shape = 'f32[16,16,16]{2,1,0:T(8,128)}', space=vmem, size = 0x20000, scoped, tag = 'scratch operand']
  #allocation6 [shape = 'f32[8,8,8]{2,1,0:T(8,128)}', space=vmem, size = 0x8000, scoped, tag = 'scratch operand']
  #allocation7 [shape = 'f32[4,4,8]{2,1,0:T(4,128)}', space=vmem, size = 0x2000, scoped, tag = 'scratch operand']
  %s0 = inlined_call_operand.vmem [shape: f32[2,16,16,4], index: 0, kind: input, shape index: {}]
  %s1 = inlined_call_operand.vmem [shape: bf16[36,16], index: 1, kind: input, shape index: {}]
  %s2 = inlined_call_operand.vmem [shape: f32[1,16], index: 2, kind: input, shape index: {}]
  %s3 = inlined_call_operand.vmem [shape: bf16[144,8], index: 3, kind: input, shape index: {}]
  %s4 = inlined_call_operand.vmem [shape: f32[1,8], index: 4, kind: input, shape index: {}]
  %s5 = inlined_call_operand.vmem [shape: bf16[72,8], index: 5, kind: input, shape index: {}]
  %s6 = inlined_call_operand.vmem [shape: f32[1,8], index: 6, kind: input, shape index: {}]
  %s7 = inlined_call_operand.vmem [shape: bf16[32,288], index: 7, kind: input, shape index: {}]
  %s8 = inlined_call_operand.vmem [shape: f32[1,288], index: 8, kind: input, shape index: {}]
  %s9 = inlined_call_operand.vmem [shape: bf16[288,144], index: 9, kind: input, shape index: {}]
  %s10 = inlined_call_operand.vmem [shape: f32[1,144], index: 10, kind: input, shape index: {}]
  %s11 = inlined_call_operand.vmem [shape: bf16[144,2], index: 11, kind: input, shape index: {}]
  %s12 = inlined_call_operand.vmem [shape: f32[1,2], index: 12, kind: input, shape index: {}]
  %s13 = inlined_call_operand.vmem [shape: f32[16,16], index: 13, kind: input, shape index: {}]
  %s14 = inlined_call_operand.vmem [shape: f32[8,8], index: 14, kind: input, shape index: {}]
  %s15 = inlined_call_operand.vmem [shape: f32[288,4], index: 15, kind: input, shape index: {}]
  %s16 = inlined_call_operand.vmem [shape: f32[4,288], index: 16, kind: input, shape index: {}]
  %s17 = inlined_call_operand.vmem [shape: f32[144,4], index: 17, kind: input, shape index: {}]
  %s18 = inlined_call_operand.vmem [shape: f32[4,144], index: 18, kind: input, shape index: {}]
  %s19 = inlined_call_operand.hbm [shape: f32[2,2], index: 19, kind: output, shape index: {}]
  %s20 = sld [smem:[#allocation0]]
  $region86: #{feature_discriminator_dann_forward.1} parent=0
    _
  %s22 = ssub.s32 1, %s20
  %s23 = scalar_select 0, %s22, %s20
  $region1: #{feature_discriminator_dann_forward.1} parent=0
    #allocation8 [shape = 'u8[1024]{0}', space=vmem, size = 0x400, scoped, tag = 'output window, operand 0, single buffered']
    #allocation9 [shape = 's32[1]{0}', space=sflag, size = 0x4, scoped, tag = 'scoped memory for feature_discriminator_dann_forward.1']
    %24 = vsyncpa [#allocation9], 0
    // Predicated region
    $region2: #{feature_discriminator_dann_forward.1} parent=1 // pred_check
      _
    $region3: #{feature_discriminator_dann_forward.1} parent=1 // pred_check_branch
      %26 = sbr.rel (0) target = $region5
    $region4: #{feature_discriminator_dann_forward.1} parent=1 // pred_region
      _
    $region5: #{feature_discriminator_dann_forward.1} parent=1 // pred_fallthru
      _
    // Predicated region
    $region6: #{feature_discriminator_dann_forward.1} parent=1 // pred_check
      _
    $region7: #{feature_discriminator_dann_forward.1} parent=1 // pred_check_branch
      %28 = sbr.rel (0) target = $region9
    $region8: #{feature_discriminator_dann_forward.1} parent=1 // pred_region
      _
    $region9: #{feature_discriminator_dann_forward.1} parent=1 // pred_fallthru
      _
    // Predicated region
    $region10: #{feature_discriminator_dann_forward.1} parent=1 // pred_check
      _
    $region11: #{feature_discriminator_dann_forward.1} parent=1 // pred_check_branch
      %30 = sbr.rel (0) target = $region13
    $region12: #{feature_discriminator_dann_forward.1} parent=1 // pred_region
      _
    $region13: #{feature_discriminator_dann_forward.1} parent=1 // pred_fallthru
      _
    // Predicated region
    $region14: #{feature_discriminator_dann_forward.1} parent=1 // pred_check
      _
    $region15: #{feature_discriminator_dann_forward.1} parent=1 // pred_check_branch
      %32 = sbr.rel (0) target = $region17
    $region16: #{feature_discriminator_dann_forward.1} parent=1 // pred_region
      _
    $region17: #{feature_discriminator_dann_forward.1} parent=1 // pred_fallthru
      _
    // Predicated region
    $region18: #{feature_discriminator_dann_forward.1} parent=1 // pred_check
      _
    $region19: #{feature_discriminator_dann_forward.1} parent=1 // pred_check_branch
      %34 = sbr.rel (0) target = $region21
    $region20: #{feature_discriminator_dann_forward.1} parent=1 // pred_region
      _
    $region21: #{feature_discriminator_dann_forward.1} parent=1 // pred_fallthru
      _
    // Predicated region
    $region22: #{feature_discriminator_dann_forward.1} parent=1 // pred_check
      _
    $region23: #{feature_discriminator_dann_forward.1} parent=1 // pred_check_branch
      %36 = sbr.rel (0) target = $region25
    $region24: #{feature_discriminator_dann_forward.1} parent=1 // pred_region
      _
    $region25: #{feature_discriminator_dann_forward.1} parent=1 // pred_fallthru
      _
    // Predicated region
    $region26: #{feature_discriminator_dann_forward.1} parent=1 // pred_check
      _
    $region27: #{feature_discriminator_dann_forward.1} parent=1 // pred_check_branch
      %38 = sbr.rel (0) target = $region29
    $region28: #{feature_discriminator_dann_forward.1} parent=1 // pred_region
      _
    $region29: #{feature_discriminator_dann_forward.1} parent=1 // pred_fallthru
      _
    // Predicated region
    $region30: #{feature_discriminator_dann_forward.1} parent=1 // pred_check
      _
    $region31: #{feature_discriminator_dann_forward.1} parent=1 // pred_check_branch
      %40 = sbr.rel (0) target = $region33
    $region32: #{feature_discriminator_dann_forward.1} parent=1 // pred_region
      _
    $region33: #{feature_discriminator_dann_forward.1} parent=1 // pred_fallthru
      _
    // Predicated region
    $region34: #{feature_discriminator_dann_forward.1} parent=1 // pred_check
      _
    $region35: #{feature_discriminator_dann_forward.1} parent=1 // pred_check_branch
      %42 = sbr.rel (0) target = $region37
    $region36: #{feature_discriminator_dann_forward.1} parent=1 // pred_region
      _
    $region37: #{feature_discriminator_dann_forward.1} parent=1 // pred_fallthru
      _
    // Predicated region
    $region38: #{feature_discriminator_dann_forward.1} parent=1 // pred_check
      _
    $region39: #{feature_discriminator_dann_forward.1} parent=1 // pred_check_branch
      %44 = sbr.rel (0) target = $region41
    $region40: #{feature_discriminator_dann_forward.1} parent=1 // pred_region
      _
    $region41: #{feature_discriminator_dann_forward.1} parent=1 // pred_fallthru
      _
    // Predicated region
    $region42: #{feature_discriminator_dann_forward.1} parent=1 // pred_check
      _
    $region43: #{feature_discriminator_dann_forward.1} parent=1 // pred_check_branch
      %46 = sbr.rel (0) target = $region45
    $region44: #{feature_discriminator_dann_forward.1} parent=1 // pred_region
      _
    $region45: #{feature_discriminator_dann_forward.1} parent=1 // pred_fallthru
      _
    // Predicated region
    $region46: #{feature_discriminator_dann_forward.1} parent=1 // pred_check
      _
    $region47: #{feature_discriminator_dann_forward.1} parent=1 // pred_check_branch
      %48 = sbr.rel (0) target = $region49
    $region48: #{feature_discriminator_dann_forward.1} parent=1 // pred_region
      _
    $region49: #{feature_discriminator_dann_forward.1} parent=1 // pred_fallthru
      _
    // Predicated region
    $region50: #{feature_discriminator_dann_forward.1} parent=1 // pred_check
      _
    $region51: #{feature_discriminator_dann_forward.1} parent=1 // pred_check_branch
      %50 = sbr.rel (0) target = $region53
    $region52: #{feature_discriminator_dann_forward.1} parent=1 // pred_region
      _
    $region53: #{feature_discriminator_dann_forward.1} parent=1 // pred_fallthru
      _
    // Predicated region
    $region54: #{feature_discriminator_dann_forward.1} parent=1 // pred_check
      _
    $region55: #{feature_discriminator_dann_forward.1} parent=1 // pred_check_branch
      %52 = sbr.rel (0) target = $region57
    $region56: #{feature_discriminator_dann_forward.1} parent=1 // pred_region
      _
    $region57: #{feature_discriminator_dann_forward.1} parent=1 // pred_fallthru
      _
    // Predicated region
    $region58: #{feature_discriminator_dann_forward.1} parent=1 // pred_check
      _
    $region59: #{feature_discriminator_dann_forward.1} parent=1 // pred_check_branch
      %54 = sbr.rel (0) target = $region61
    $region60: #{feature_discriminator_dann_forward.1} parent=1 // pred_region
      _
    $region61: #{feature_discriminator_dann_forward.1} parent=1 // pred_fallthru
      _
    // Predicated region
    $region62: #{feature_discriminator_dann_forward.1} parent=1 // pred_check
      _
    $region63: #{feature_discriminator_dann_forward.1} parent=1 // pred_check_branch
      %56 = sbr.rel (0) target = $region65
    $region64: #{feature_discriminator_dann_forward.1} parent=1 // pred_region
      _
    $region65: #{feature_discriminator_dann_forward.1} parent=1 // pred_fallthru
      _
    // Predicated region
    $region66: #{feature_discriminator_dann_forward.1} parent=1 // pred_check
      _
    $region67: #{feature_discriminator_dann_forward.1} parent=1 // pred_check_branch
      %58 = sbr.rel (0) target = $region69
    $region68: #{feature_discriminator_dann_forward.1} parent=1 // pred_region
      _
    $region69: #{feature_discriminator_dann_forward.1} parent=1 // pred_fallthru
      _
    // Predicated region
    $region70: #{feature_discriminator_dann_forward.1} parent=1 // pred_check
      _
    $region71: #{feature_discriminator_dann_forward.1} parent=1 // pred_check_branch
      %60 = sbr.rel (0) target = $region73
    $region72: #{feature_discriminator_dann_forward.1} parent=1 // pred_region
      _
    $region73: #{feature_discriminator_dann_forward.1} parent=1 // pred_fallthru
      _
    // Predicated region
    $region74: #{feature_discriminator_dann_forward.1} parent=1 // pred_check
      _
    $region75: #{feature_discriminator_dann_forward.1} parent=1 // pred_check_branch
      %62 = sbr.rel (0) target = $region77
    $region76: #{feature_discriminator_dann_forward.1} parent=1 // pred_region
      _
    $region77: #{feature_discriminator_dann_forward.1} parent=1 // pred_fallthru
      _
    %v64 = vld [vmem:[%s0] sm:$0xff]
    %v65 = vld [vmem:[%s0 + $0x8] sm:$0xff]
    %v66 = vld [vmem:[%s0 + $0x10] sm:$0xff]
    %v67 = vld [vmem:[%s0 + $0x18] sm:$0xff]
    %v68 = vld [vmem:[%s0 + $0x20] sm:$0xff]
    %v69 = vld [vmem:[%s0 + $0x28] sm:$0xff]
    %v70 = vld [vmem:[%s0 + $0x30] sm:$0xff]
    %v71 = vld [vmem:[%s0 + $0x38] sm:$0xff]
    %v72 = vld [vmem:[%s0 + $0x40] sm:$0xff]
    %v73 = vld [vmem:[%s0 + $0x48] sm:$0xff]
    %v74 = vld [vmem:[%s0 + $0x50] sm:$0xff]
    %v75 = vld [vmem:[%s0 + $0x58] sm:$0xff]
    %v76 = vld [vmem:[%s0 + $0x60] sm:$0xff]
    %v77 = vld [vmem:[%s0 + $0x68] sm:$0xff]
    %v78 = vld [vmem:[%s0 + $0x70] sm:$0xff]
    %v79 = vld [vmem:[%s0 + $0x78] sm:$0xff]
    %v80 = vld [vmem:[%s0 + $0x80] sm:$0xff]
    %v81 = vld [vmem:[%s0 + $0x88] sm:$0xff]
    %v82 = vld [vmem:[%s0 + $0x90] sm:$0xff]
    %v83 = vld [vmem:[%s0 + $0x98] sm:$0xff]
    %v84 = vld [vmem:[%s0 + $0xa0] sm:$0xff]
    %v85 = vld [vmem:[%s0 + $0xa8] sm:$0xff]
    %v86 = vld [vmem:[%s0 + $0xb0] sm:$0xff]
    %v87 = vld [vmem:[%s0 + $0xb8] sm:$0xff]
    %v88 = vld [vmem:[%s0 + $0xc0] sm:$0xff]
    %v89 = vld [vmem:[%s0 + $0xc8] sm:$0xff]
    %v90 = vld [vmem:[%s0 + $0xd0] sm:$0xff]
    %v91 = vld [vmem:[%s0 + $0xd8] sm:$0xff]
    %v92 = vld [vmem:[%s0 + $0xe0] sm:$0xff]
    %v93 = vld [vmem:[%s0 + $0xe8] sm:$0xff]
    %v94 = vld [vmem:[%s0 + $0xf0] sm:$0xff]
    %v95 = vld [vmem:[%s0 + $0xf8] sm:$0xff]
    %v96 = vld [vmem:[%s0 + $0x100] sm:$0xff]
    %v97 = vld [vmem:[%s0 + $0x108] sm:$0xff]
    %v98 = vld [vmem:[%s0 + $0x110] sm:$0xff]
    %v99 = vld [vmem:[%s0 + $0x118] sm:$0xff]
    %v100 = vld [vmem:[%s0 + $0x120] sm:$0xff]
    %v101 = vld [vmem:[%s0 + $0x128] sm:$0xff]
    %v102 = vld [vmem:[%s0 + $0x130] sm:$0xff]
    %v103 = vld [vmem:[%s0 + $0x138] sm:$0xff]
    %v104 = vld [vmem:[%s0 + $0x140] sm:$0xff]
    %v105 = vld [vmem:[%s0 + $0x148] sm:$0xff]
    %v106 = vld [vmem:[%s0 + $0x150] sm:$0xff]
    %v107 = vld [vmem:[%s0 + $0x158] sm:$0xff]
    %v108 = vld [vmem:[%s0 + $0x160] sm:$0xff]
    %v109 = vld [vmem:[%s0 + $0x168] sm:$0xff]
    %v110 = vld [vmem:[%s0 + $0x170] sm:$0xff]
    %v111 = vld [vmem:[%s0 + $0x178] sm:$0xff]
    %v112 = vld [vmem:[%s0 + $0x180] sm:$0xff]
    %v113 = vld [vmem:[%s0 + $0x188] sm:$0xff]
    %v114 = vld [vmem:[%s0 + $0x190] sm:$0xff]
    %v115 = vld [vmem:[%s0 + $0x198] sm:$0xff]
    %v116 = vld [vmem:[%s0 + $0x1a0] sm:$0xff]
    %v117 = vld [vmem:[%s0 + $0x1a8] sm:$0xff]
    %v118 = vld [vmem:[%s0 + $0x1b0] sm:$0xff]
    %v119 = vld [vmem:[%s0 + $0x1b8] sm:$0xff]
    %v120 = vld [vmem:[%s0 + $0x1c0] sm:$0xff]
    %v121 = vld [vmem:[%s0 + $0x1c8] sm:$0xff]
    %v122 = vld [vmem:[%s0 + $0x1d0] sm:$0xff]
    %v123 = vld [vmem:[%s0 + $0x1d8] sm:$0xff]
    %v124 = vld [vmem:[%s0 + $0x1e0] sm:$0xff]
    %v125 = vld [vmem:[%s0 + $0x1e8] sm:$0xff]
    %v126 = vld [vmem:[%s0 + $0x1f0] sm:$0xff]
    %v127 = vld [vmem:[%s0 + $0x1f8] sm:$0xff]
    %vm128 = vcmask 31744
    %129 = vst.msk [vmem:[#allocation2] sm:$0xff] %vm128, 0.0
    %130 = vst.msk [vmem:[#allocation2 + $0x8] sm:$0xff] %vm128, 0.0
    %vm131 = vcmask 25600
    %132 = vst.msk [vmem:[#allocation2 + $0x10] sm:$0x3] %vm131, 0.0
    %133 = vst.msk [vmem:[#allocation2 + $0x1b0] sm:$0xff] %vm128, 0.0
    %134 = vst.msk [vmem:[#allocation2 + $0x1b8] sm:$0xff] %vm128, 0.0
    %135 = vst.msk [vmem:[#allocation2 + $0x1c0] sm:$0x3] %vm131, 0.0
    %s136 = scalar_lea.vmem [#allocation2], 408
    %137 = vst.msk [vmem:[%s136] sm:$0xff] %vm128, 0.0
    %138 = vst.msk [vmem:[%s136 + $0x8] sm:$0xff] %vm128, 0.0
    %139 = vst.msk [vmem:[%s136 + $0x10] sm:$0x3] %vm131, 0.0
    %140 = vst.msk [vmem:[%s136 + $0x1b0] sm:$0xff] %vm128, 0.0
    %141 = vst.msk [vmem:[%s136 + $0x1b8] sm:$0xff] %vm128, 0.0
    %142 = vst.msk [vmem:[%s136 + $0x1c0] sm:$0x3] %vm131, 0.0
    %s143 = scalar_lea.vmem [#allocation2], 24
    %vm144 = vcmask 24576
    %145 = vst.msk [vmem:[%s143] sm:$0x1] %vm144, 0.0
    %146 = vst.msk [vmem:[%s143 + $0x18] sm:$0x1] %vm144, 0.0
    %147 = vst.msk [vmem:[%s143 + $0x30] sm:$0x1] %vm144, 0.0
    %148 = vst.msk [vmem:[%s143 + $0x48] sm:$0x1] %vm144, 0.0
    %149 = vst.msk [vmem:[%s143 + $0x60] sm:$0x1] %vm144, 0.0
    %150 = vst.msk [vmem:[%s143 + $0x78] sm:$0x1] %vm144, 0.0
    %151 = vst.msk [vmem:[%s143 + $0x90] sm:$0x1] %vm144, 0.0
    %152 = vst.msk [vmem:[%s143 + $0xa8] sm:$0x1] %vm144, 0.0
    %153 = vst.msk [vmem:[%s143 + $0xc0] sm:$0x1] %vm144, 0.0
    %154 = vst.msk [vmem:[%s143 + $0xd8] sm:$0x1] %vm144, 0.0
    %155 = vst.msk [vmem:[%s143 + $0xf0] sm:$0x1] %vm144, 0.0
    %156 = vst.msk [vmem:[%s143 + $0x108] sm:$0x1] %vm144, 0.0
    %157 = vst.msk [vmem:[%s143 + $0x120] sm:$0x1] %vm144, 0.0
    %158 = vst.msk [vmem:[%s143 + $0x138] sm:$0x1] %vm144, 0.0
    %159 = vst.msk [vmem:[%s143 + $0x150] sm:$0x1] %vm144, 0.0
    %160 = vst.msk [vmem:[%s143 + $0x168] sm:$0x1] %vm144, 0.0
    %161 = vst.msk [vmem:[%s143 + $0x1b0] sm:$0x1] %vm144, 0.0
    %162 = vst.msk [vmem:[%s143 + $0x1c8] sm:$0x1] %vm144, 0.0
    %163 = vst.msk [vmem:[%s143 + $0x1e0] sm:$0x1] %vm144, 0.0
    %164 = vst.msk [vmem:[%s143 + $0x1f8] sm:$0x1] %vm144, 0.0
    %165 = vst.msk [vmem:[%s143 + $0x210] sm:$0x1] %vm144, 0.0
    %166 = vst.msk [vmem:[%s143 + $0x228] sm:$0x1] %vm144, 0.0
    %167 = vst.msk [vmem:[%s143 + $0x240] sm:$0x1] %vm144, 0.0
    %168 = vst.msk [vmem:[%s143 + $0x258] sm:$0x1] %vm144, 0.0
    %169 = vst.msk [vmem:[%s143 + $0x270] sm:$0x1] %vm144, 0.0
    %170 = vst.msk [vmem:[%s143 + $0x288] sm:$0x1] %vm144, 0.0
    %171 = vst.msk [vmem:[%s143 + $0x2a0] sm:$0x1] %vm144, 0.0
    %172 = vst.msk [vmem:[%s143 + $0x2b8] sm:$0x1] %vm144, 0.0
    %173 = vst.msk [vmem:[%s143 + $0x2d0] sm:$0x1] %vm144, 0.0
    %174 = vst.msk [vmem:[%s143 + $0x2e8] sm:$0x1] %vm144, 0.0
    %175 = vst.msk [vmem:[%s143 + $0x300] sm:$0x1] %vm144, 0.0
    %176 = vst.msk [vmem:[%s143 + $0x318] sm:$0x1] %vm144, 0.0
    %177 = vst.msk [vmem:[%s143 + $0x11] sm:$0x1] %vm144, 0.0
    %178 = vst.msk [vmem:[%s143 + $0x29] sm:$0x1] %vm144, 0.0
    %179 = vst.msk [vmem:[%s143 + $0x41] sm:$0x1] %vm144, 0.0
    %180 = vst.msk [vmem:[%s143 + $0x59] sm:$0x1] %vm144, 0.0
    %181 = vst.msk [vmem:[%s143 + $0x71] sm:$0x1] %vm144, 0.0
    %182 = vst.msk [vmem:[%s143 + $0x89] sm:$0x1] %vm144, 0.0
    %183 = vst.msk [vmem:[%s143 + $0xa1] sm:$0x1] %vm144, 0.0
    %184 = vst.msk [vmem:[%s143 + $0xb9] sm:$0x1] %vm144, 0.0
    %185 = vst.msk [vmem:[%s143 + $0xd1] sm:$0x1] %vm144, 0.0
    %186 = vst.msk [vmem:[%s143 + $0xe9] sm:$0x1] %vm144, 0.0
    %187 = vst.msk [vmem:[%s143 + $0x101] sm:$0x1] %vm144, 0.0
    %188 = vst.msk [vmem:[%s143 + $0x119] sm:$0x1] %vm144, 0.0
    %189 = vst.msk [vmem:[%s143 + $0x131] sm:$0x1] %vm144, 0.0
    %190 = vst.msk [vmem:[%s143 + $0x149] sm:$0x1] %vm144, 0.0
    %191 = vst.msk [vmem:[%s143 + $0x161] sm:$0x1] %vm144, 0.0
    %192 = vst.msk [vmem:[%s143 + $0x179] sm:$0x1] %vm144, 0.0
    %193 = vst.msk [vmem:[%s143 + $0x1c1] sm:$0x1] %vm144, 0.0
    %194 = vst.msk [vmem:[%s143 + $0x1d9] sm:$0x1] %vm144, 0.0
    %195 = vst.msk [vmem:[%s143 + $0x1f1] sm:$0x1] %vm144, 0.0
    %196 = vst.msk [vmem:[%s143 + $0x209] sm:$0x1] %vm144, 0.0
    %197 = vst.msk [vmem:[%s143 + $0x221] sm:$0x1] %vm144, 0.0
    %198 = vst.msk [vmem:[%s143 + $0x239] sm:$0x1] %vm144, 0.0
    %199 = vst.msk [vmem:[%s143 + $0x251] sm:$0x1] %vm144, 0.0
    %200 = vst.msk [vmem:[%s143 + $0x269] sm:$0x1] %vm144, 0.0
    %201 = vst.msk [vmem:[%s143 + $0x281] sm:$0x1] %vm144, 0.0
    %202 = vst.msk [vmem:[%s143 + $0x299] sm:$0x1] %vm144, 0.0
    %203 = vst.msk [vmem:[%s143 + $0x2b1] sm:$0x1] %vm144, 0.0
    %204 = vst.msk [vmem:[%s143 + $0x2c9] sm:$0x1] %vm144, 0.0
    %205 = vst.msk [vmem:[%s143 + $0x2e1] sm:$0x1] %vm144, 0.0
    %206 = vst.msk [vmem:[%s143 + $0x2f9] sm:$0x1] %vm144, 0.0
    %207 = vst.msk [vmem:[%s143 + $0x311] sm:$0x1] %vm144, 0.0
    %208 = vst.msk [vmem:[%s143 + $0x329] sm:$0x1] %vm144, 0.0
    %209 = vst.msk [vmem:[%s143 + $0x1] sm:$0xff] %vm128, %v64
    %210 = vst.msk [vmem:[%s143 + $0x9] sm:$0xff] %vm128, %v65
    %211 = vst.msk [vmem:[%s143 + $0x19] sm:$0xff] %vm128, %v66
    %212 = vst.msk [vmem:[%s143 + $0x21] sm:$0xff] %vm128, %v67
    %213 = vst.msk [vmem:[%s143 + $0x31] sm:$0xff] %vm128, %v68
    %214 = vst.msk [vmem:[%s143 + $0x39] sm:$0xff] %vm128, %v69
    %215 = vst.msk [vmem:[%s143 + $0x49] sm:$0xff] %vm128, %v70
    %216 = vst.msk [vmem:[%s143 + $0x51] sm:$0xff] %vm128, %v71
    %217 = vst.msk [vmem:[%s143 + $0x61] sm:$0xff] %vm128, %v72
    %218 = vst.msk [vmem:[%s143 + $0x69] sm:$0xff] %vm128, %v73
    %219 = vst.msk [vmem:[%s143 + $0x79] sm:$0xff] %vm128, %v74
    %220 = vst.msk [vmem:[%s143 + $0x81] sm:$0xff] %vm128, %v75
    %221 = vst.msk [vmem:[%s143 + $0x91] sm:$0xff] %vm128, %v76
    %222 = vst.msk [vmem:[%s143 + $0x99] sm:$0xff] %vm128, %v77
    %223 = vst.msk [vmem:[%s143 + $0xa9] sm:$0xff] %vm128, %v78
    %224 = vst.msk [vmem:[%s143 + $0xb1] sm:$0xff] %vm128, %v79
    %225 = vst.msk [vmem:[%s143 + $0xc1] sm:$0xff] %vm128, %v80
    %226 = vst.msk [vmem:[%s143 + $0xc9] sm:$0xff] %vm128, %v81
    %227 = vst.msk [vmem:[%s143 + $0xd9] sm:$0xff] %vm128, %v82
    %228 = vst.msk [vmem:[%s143 + $0xe1] sm:$0xff] %vm128, %v83
    %229 = vst.msk [vmem:[%s143 + $0xf1] sm:$0xff] %vm128, %v84
    %230 = vst.msk [vmem:[%s143 + $0xf9] sm:$0xff] %vm128, %v85
    %231 = vst.msk [vmem:[%s143 + $0x109] sm:$0xff] %vm128, %v86
    %232 = vst.msk [vmem:[%s143 + $0x111] sm:$0xff] %vm128, %v87
    %233 = vst.msk [vmem:[%s143 + $0x121] sm:$0xff] %vm128, %v88
    %234 = vst.msk [vmem:[%s143 + $0x129] sm:$0xff] %vm128, %v89
    %235 = vst.msk [vmem:[%s143 + $0x139] sm:$0xff] %vm128, %v90
    %236 = vst.msk [vmem:[%s143 + $0x141] sm:$0xff] %vm128, %v91
    %237 = vst.msk [vmem:[%s143 + $0x151] sm:$0xff] %vm128, %v92
    %238 = vst.msk [vmem:[%s143 + $0x159] sm:$0xff] %vm128, %v93
    %239 = vst.msk [vmem:[%s143 + $0x169] sm:$0xff] %vm128, %v94
    %240 = vst.msk [vmem:[%s143 + $0x171] sm:$0xff] %vm128, %v95
    %241 = vst.msk [vmem:[%s143 + $0x1b1] sm:$0xff] %vm128, %v96
    %242 = vst.msk [vmem:[%s143 + $0x1b9] sm:$0xff] %vm128, %v97
    %243 = vst.msk [vmem:[%s143 + $0x1c9] sm:$0xff] %vm128, %v98
    %244 = vst.msk [vmem:[%s143 + $0x1d1] sm:$0xff] %vm128, %v99
    %245 = vst.msk [vmem:[%s143 + $0x1e1] sm:$0xff] %vm128, %v100
    %246 = vst.msk [vmem:[%s143 + $0x1e9] sm:$0xff] %vm128, %v101
    %247 = vst.msk [vmem:[%s143 + $0x1f9] sm:$0xff] %vm128, %v102
    %248 = vst.msk [vmem:[%s143 + $0x201] sm:$0xff] %vm128, %v103
    %249 = vst.msk [vmem:[%s143 + $0x211] sm:$0xff] %vm128, %v104
    %250 = vst.msk [vmem:[%s143 + $0x219] sm:$0xff] %vm128, %v105
    %251 = vst.msk [vmem:[%s143 + $0x229] sm:$0xff] %vm128, %v106
    %252 = vst.msk [vmem:[%s143 + $0x231] sm:$0xff] %vm128, %v107
    %253 = vst.msk [vmem:[%s143 + $0x241] sm:$0xff] %vm128, %v108
    %254 = vst.msk [vmem:[%s143 + $0x249] sm:$0xff] %vm128, %v109
    %255 = vst.msk [vmem:[%s143 + $0x259] sm:$0xff] %vm128, %v110
    %256 = vst.msk [vmem:[%s143 + $0x261] sm:$0xff] %vm128, %v111
    %257 = vst.msk [vmem:[%s143 + $0x271] sm:$0xff] %vm128, %v112
    %258 = vst.msk [vmem:[%s143 + $0x279] sm:$0xff] %vm128, %v113
    %259 = vst.msk [vmem:[%s143 + $0x289] sm:$0xff] %vm128, %v114
    %260 = vst.msk [vmem:[%s143 + $0x291] sm:$0xff] %vm128, %v115
    %261 = vst.msk [vmem:[%s143 + $0x2a1] sm:$0xff] %vm128, %v116
    %262 = vst.msk [vmem:[%s143 + $0x2a9] sm:$0xff] %vm128, %v117
    %263 = vst.msk [vmem:[%s143 + $0x2b9] sm:$0xff] %vm128, %v118
    %264 = vst.msk [vmem:[%s143 + $0x2c1] sm:$0xff] %vm128, %v119
    %265 = vst.msk [vmem:[%s143 + $0x2d1] sm:$0xff] %vm128, %v120
    %266 = vst.msk [vmem:[%s143 + $0x2d9] sm:$0xff] %vm128, %v121
    %267 = vst.msk [vmem:[%s143 + $0x2e9] sm:$0xff] %vm128, %v122
    %268 = vst.msk [vmem:[%s143 + $0x2f1] sm:$0xff] %vm128, %v123
    %269 = vst.msk [vmem:[%s143 + $0x301] sm:$0xff] %vm128, %v124
    %270 = vst.msk [vmem:[%s143 + $0x309] sm:$0xff] %vm128, %v125
    %271 = vst.msk [vmem:[%s143 + $0x319] sm:$0xff] %vm128, %v126
    %272 = vst.msk [vmem:[%s143 + $0x321] sm:$0xff] %vm128, %v127
    %v273 = vld [vmem:[#allocation2] sm:$0xff]
    %v274 = vld [vmem:[#allocation2 + $0x8] sm:$0xff]
    %v275 = vld [vmem:[#allocation2 + $0x18] sm:$0xff]
    %v276 = vld [vmem:[#allocation2 + $0x20] sm:$0xff]
    %v277 = vld [vmem:[#allocation2 + $0x30] sm:$0xff]
    %v278 = vld [vmem:[#allocation2 + $0x38] sm:$0xff]
    %v279 = vld [vmem:[#allocation2 + $0x48] sm:$0xff]
    %v280 = vld [vmem:[#allocation2 + $0x50] sm:$0xff]
    %v281 = vld [vmem:[#allocation2 + $0x60] sm:$0xff]
    %v282 = vld [vmem:[#allocation2 + $0x68] sm:$0xff]
    %v283 = vld [vmem:[#allocation2 + $0x78] sm:$0xff]
    %v284 = vld [vmem:[#allocation2 + $0x80] sm:$0xff]
    %v285 = vld [vmem:[#allocation2 + $0x90] sm:$0xff]
    %v286 = vld [vmem:[#allocation2 + $0x98] sm:$0xff]
    %v287 = vld [vmem:[#allocation2 + $0xa8] sm:$0xff]
    %v288 = vld [vmem:[#allocation2 + $0xb0] sm:$0xff]
    %v289 = vld [vmem:[#allocation2 + $0xc0] sm:$0xff]
    %v290 = vld [vmem:[#allocation2 + $0xc8] sm:$0xff]
    %v291 = vld [vmem:[#allocation2 + $0xd8] sm:$0xff]
    %v292 = vld [vmem:[#allocation2 + $0xe0] sm:$0xff]
    %v293 = vld [vmem:[#allocation2 + $0xf0] sm:$0xff]
    %v294 = vld [vmem:[#allocation2 + $0xf8] sm:$0xff]
    %v295 = vld [vmem:[#allocation2 + $0x108] sm:$0xff]
    %v296 = vld [vmem:[#allocation2 + $0x110] sm:$0xff]
    %v297 = vld [vmem:[#allocation2 + $0x120] sm:$0xff]
    %v298 = vld [vmem:[#allocation2 + $0x128] sm:$0xff]
    %v299 = vld [vmem:[#allocation2 + $0x138] sm:$0xff]
    %v300 = vld [vmem:[#allocation2 + $0x140] sm:$0xff]
    %v301 = vld [vmem:[#allocation2 + $0x150] sm:$0xff]
    %v302 = vld [vmem:[#allocation2 + $0x158] sm:$0xff]
    %v303 = vld [vmem:[#allocation2 + $0x168] sm:$0xff]
    %v304 = vld [vmem:[#allocation2 + $0x170] sm:$0xff]
    %v305 = vld [vmem:[#allocation2 + $0x1b0] sm:$0xff]
    %v306 = vld [vmem:[#allocation2 + $0x1b8] sm:$0xff]
    %v307 = vld [vmem:[#allocation2 + $0x1c8] sm:$0xff]
    %v308 = vld [vmem:[#allocation2 + $0x1d0] sm:$0xff]
    %v309 = vld [vmem:[#allocation2 + $0x1e0] sm:$0xff]
    %v310 = vld [vmem:[#allocation2 + $0x1e8] sm:$0xff]
    %v311 = vld [vmem:[#allocation2 + $0x1f8] sm:$0xff]
    %v312 = vld [vmem:[#allocation2 + $0x200] sm:$0xff]
    %v313 = vld [vmem:[#allocation2 + $0x210] sm:$0xff]
    %v314 = vld [vmem:[#allocation2 + $0x218] sm:$0xff]
    %v315 = vld [vmem:[#allocation2 + $0x228] sm:$0xff]
    %v316 = vld [vmem:[#allocation2 + $0x230] sm:$0xff]
    %v317 = vld [vmem:[#allocation2 + $0x240] sm:$0xff]
    %v318 = vld [vmem:[#allocation2 + $0x248] sm:$0xff]
    %v319 = vld [vmem:[#allocation2 + $0x258] sm:$0xff]
    %v320 = vld [vmem:[#allocation2 + $0x260] sm:$0xff]
    %v321 = vld [vmem:[#allocation2 + $0x270] sm:$0xff]
    %v322 = vld [vmem:[#allocation2 + $0x278] sm:$0xff]
    %v323 = vld [vmem:[#allocation2 + $0x288] sm:$0xff]
    %v324 = vld [vmem:[#allocation2 + $0x290] sm:$0xff]
    %v325 = vld [vmem:[#allocation2 + $0x2a0] sm:$0xff]
    %v326 = vld [vmem:[#allocation2 + $0x2a8] sm:$0xff]
    %v327 = vld [vmem:[#allocation2 + $0x2b8] sm:$0xff]
    %v328 = vld [vmem:[#allocation2 + $0x2c0] sm:$0xff]
    %v329 = vld [vmem:[#allocation2 + $0x2d0] sm:$0xff]
    %v330 = vld [vmem:[#allocation2 + $0x2d8] sm:$0xff]
    %v331 = vld [vmem:[#allocation2 + $0x2e8] sm:$0xff]
    %v332 = vld [vmem:[#allocation2 + $0x2f0] sm:$0xff]
    %v333 = vld [vmem:[#allocation2 + $0x300] sm:$0xff]
    %v334 = vld [vmem:[#allocation2 + $0x308] sm:$0xff]
    %v335 = vld [vmem:[#allocation2 + $0x318] sm:$0xff]
    %v336 = vld [vmem:[#allocation2 + $0x320] sm:$0xff]
    %v337 = vpack.c.bf16 %v274, %v273
    %v338 = vpack.c.bf16 %v276, %v275
    %v339 = vpack.c.bf16 %v278, %v277
    %v340 = vpack.c.bf16 %v280, %v279
    %v341 = vpack.c.bf16 %v282, %v281
    %v342 = vpack.c.bf16 %v284, %v283
    %v343 = vpack.c.bf16 %v286, %v285
    %v344 = vpack.c.bf16 %v288, %v287
    %v345 = vpack.c.bf16 %v290, %v289
    %v346 = vpack.c.bf16 %v292, %v291
    %v347 = vpack.c.bf16 %v294, %v293
    %v348 = vpack.c.bf16 %v296, %v295
    %v349 = vpack.c.bf16 %v298, %v297
    %v350 = vpack.c.bf16 %v300, %v299
    %v351 = vpack.c.bf16 %v302, %v301
    %v352 = vpack.c.bf16 %v304, %v303
    %v353 = vpack.c.bf16 %v306, %v305
    %v354 = vpack.c.bf16 %v308, %v307
    %v355 = vpack.c.bf16 %v310, %v309
    %v356 = vpack.c.bf16 %v312, %v311
    %v357 = vpack.c.bf16 %v314, %v313
    %v358 = vpack.c.bf16 %v316, %v315
    %v359 = vpack.c.bf16 %v318, %v317
    %v360 = vpack.c.bf16 %v320, %v319
    %v361 = vpack.c.bf16 %v322, %v321
    %v362 = vpack.c.bf16 %v324, %v323
    %v363 = vpack.c.bf16 %v326, %v325
    %v364 = vpack.c.bf16 %v328, %v327
    %v365 = vpack.c.bf16 %v330, %v329
    %v366 = vpack.c.bf16 %v332, %v331
    %v367 = vpack.c.bf16 %v334, %v333
    %v368 = vpack.c.bf16 %v336, %v335
    %v369 = vld [vmem:[#allocation2 + $0x1] sm:$0xff]
    %v370 = vld [vmem:[#allocation2 + $0x9] sm:$0xff]
    %v371 = vld [vmem:[#allocation2 + $0x19] sm:$0xff]
    %v372 = vld [vmem:[#allocation2 + $0x21] sm:$0xff]
    %v373 = vld [vmem:[#allocation2 + $0x31] sm:$0xff]
    %v374 = vld [vmem:[#allocation2 + $0x39] sm:$0xff]
    %v375 = vld [vmem:[#allocation2 + $0x49] sm:$0xff]
    %v376 = vld [vmem:[#allocation2 + $0x51] sm:$0xff]
    %v377 = vld [vmem:[#allocation2 + $0x61] sm:$0xff]
    %v378 = vld [vmem:[#allocation2 + $0x69] sm:$0xff]
    %v379 = vld [vmem:[#allocation2 + $0x79] sm:$0xff]
    %v380 = vld [vmem:[#allocation2 + $0x81] sm:$0xff]
    %v381 = vld [vmem:[#allocation2 + $0x91] sm:$0xff]
    %v382 = vld [vmem:[#allocation2 + $0x99] sm:$0xff]
    %v383 = vld [vmem:[#allocation2 + $0xa9] sm:$0xff]
    %v384 = vld [vmem:[#allocation2 + $0xb1] sm:$0xff]
    %v385 = vld [vmem:[#allocation2 + $0xc1] sm:$0xff]
    %v386 = vld [vmem:[#allocation2 + $0xc9] sm:$0xff]
    %v387 = vld [vmem:[#allocation2 + $0xd9] sm:$0xff]
    %v388 = vld [vmem:[#allocation2 + $0xe1] sm:$0xff]
    %v389 = vld [vmem:[#allocation2 + $0xf1] sm:$0xff]
    %v390 = vld [vmem:[#allocation2 + $0xf9] sm:$0xff]
    %v391 = vld [vmem:[#allocation2 + $0x109] sm:$0xff]
    %v392 = vld [vmem:[#allocation2 + $0x111] sm:$0xff]
    %v393 = vld [vmem:[#allocation2 + $0x121] sm:$0xff]
    %v394 = vld [vmem:[#allocation2 + $0x129] sm:$0xff]
    %v395 = vld [vmem:[#allocation2 + $0x139] sm:$0xff]
    %v396 = vld [vmem:[#allocation2 + $0x141] sm:$0xff]
    %v397 = vld [vmem:[#allocation2 + $0x151] sm:$0xff]
    %v398 = vld [vmem:[#allocation2 + $0x159] sm:$0xff]
    %v399 = vld [vmem:[#allocation2 + $0x169] sm:$0xff]
    %v400 = vld [vmem:[#allocation2 + $0x171] sm:$0xff]
    %v401 = vld [vmem:[#allocation2 + $0x1b1] sm:$0xff]
    %v402 = vld [vmem:[#allocation2 + $0x1b9] sm:$0xff]
    %v403 = vld [vmem:[#allocation2 + $0x1c9] sm:$0xff]
    %v404 = vld [vmem:[#allocation2 + $0x1d1] sm:$0xff]
    %v405 = vld [vmem:[#allocation2 + $0x1e1] sm:$0xff]
    %v406 = vld [vmem:[#allocation2 + $0x1e9] sm:$0xff]
    %v407 = vld [vmem:[#allocation2 + $0x1f9] sm:$0xff]
    %v408 = vld [vmem:[#allocation2 + $0x201] sm:$0xff]
    %v409 = vld [vmem:[#allocation2 + $0x211] sm:$0xff]
    %v410 = vld [vmem:[#allocation2 + $0x219] sm:$0xff]
    %v411 = vld [vmem:[#allocation2 + $0x229] sm:$0xff]
    %v412 = vld [vmem:[#allocation2 + $0x231] sm:$0xff]
    %v413 = vld [vmem:[#allocation2 + $0x241] sm:$0xff]
    %v414 = vld [vmem:[#allocation2 + $0x249] sm:$0xff]
    %v415 = vld [vmem:[#allocation2 + $0x259] sm:$0xff]
    %v416 = vld [vmem:[#allocation2 + $0x261] sm:$0xff]
    %v417 = vld [vmem:[#allocation2 + $0x271] sm:$0xff]
    %v418 = vld [vmem:[#allocation2 + $0x279] sm:$0xff]
    %v419 = vld [vmem:[#allocation2 + $0x289] sm:$0xff]
    %v420 = vld [vmem:[#allocation2 + $0x291] sm:$0xff]
    %v421 = vld [vmem:[#allocation2 + $0x2a1] sm:$0xff]
    %v422 = vld [vmem:[#allocation2 + $0x2a9] sm:$0xff]
    %v423 = vld [vmem:[#allocation2 + $0x2b9] sm:$0xff]
    %v424 = vld [vmem:[#allocation2 + $0x2c1] sm:$0xff]
    %v425 = vld [vmem:[#allocation2 + $0x2d1] sm:$0xff]
    %v426 = vld [vmem:[#allocation2 + $0x2d9] sm:$0xff]
    %v427 = vld [vmem:[#allocation2 + $0x2e9] sm:$0xff]
    %v428 = vld [vmem:[#allocation2 + $0x2f1] sm:$0xff]
    %v429 = vld [vmem:[#allocation2 + $0x301] sm:$0xff]
    %v430 = vld [vmem:[#allocation2 + $0x309] sm:$0xff]
    %v431 = vld [vmem:[#allocation2 + $0x319] sm:$0xff]
    %v432 = vld [vmem:[#allocation2 + $0x321] sm:$0xff]
    %v433 = vpack.c.bf16 %v370, %v369
    %v434 = vpack.c.bf16 %v372, %v371
    %v435 = vpack.c.bf16 %v374, %v373
    %v436 = vpack.c.bf16 %v376, %v375
    %v437 = vpack.c.bf16 %v378, %v377
    %v438 = vpack.c.bf16 %v380, %v379
    %v439 = vpack.c.bf16 %v382, %v381
    %v440 = vpack.c.bf16 %v384, %v383
    %v441 = vpack.c.bf16 %v386, %v385
    %v442 = vpack.c.bf16 %v388, %v387
    %v443 = vpack.c.bf16 %v390, %v389
    %v444 = vpack.c.bf16 %v392, %v391
    %v445 = vpack.c.bf16 %v394, %v393
    %v446 = vpack.c.bf16 %v396, %v395
    %v447 = vpack.c.bf16 %v398, %v397
    %v448 = vpack.c.bf16 %v400, %v399
    %v449 = vpack.c.bf16 %v402, %v401
    %v450 = vpack.c.bf16 %v404, %v403
    %v451 = vpack.c.bf16 %v406, %v405
    %v452 = vpack.c.bf16 %v408, %v407
    %v453 = vpack.c.bf16 %v410, %v409
    %v454 = vpack.c.bf16 %v412, %v411
    %v455 = vpack.c.bf16 %v414, %v413
    %v456 = vpack.c.bf16 %v416, %v415
    %v457 = vpack.c.bf16 %v418, %v417
    %v458 = vpack.c.bf16 %v420, %v419
    %v459 = vpack.c.bf16 %v422, %v421
    %v460 = vpack.c.bf16 %v424, %v423
    %v461 = vpack.c.bf16 %v426, %v425
    %v462 = vpack.c.bf16 %v428, %v427
    %v463 = vpack.c.bf16 %v430, %v429
    %v464 = vpack.c.bf16 %v432, %v431
    %v465 = vld [vmem:[#allocation2 + $0x2] sm:$0xff]
    %v466 = vld [vmem:[#allocation2 + $0xa] sm:$0xff]
    %v467 = vld [vmem:[#allocation2 + $0x1a] sm:$0xff]
    %v468 = vld [vmem:[#allocation2 + $0x22] sm:$0xff]
    %v469 = vld [vmem:[#allocation2 + $0x32] sm:$0xff]
    %v470 = vld [vmem:[#allocation2 + $0x3a] sm:$0xff]
    %v471 = vld [vmem:[#allocation2 + $0x4a] sm:$0xff]
    %v472 = vld [vmem:[#allocation2 + $0x52] sm:$0xff]
    %v473 = vld [vmem:[#allocation2 + $0x62] sm:$0xff]
    %v474 = vld [vmem:[#allocation2 + $0x6a] sm:$0xff]
    %v475 = vld [vmem:[#allocation2 + $0x7a] sm:$0xff]
    %v476 = vld [vmem:[#allocation2 + $0x82] sm:$0xff]
    %v477 = vld [vmem:[#allocation2 + $0x92] sm:$0xff]
    %v478 = vld [vmem:[#allocation2 + $0x9a] sm:$0xff]
    %v479 = vld [vmem:[#allocation2 + $0xaa] sm:$0xff]
    %v480 = vld [vmem:[#allocation2 + $0xb2] sm:$0xff]
    %v481 = vld [vmem:[#allocation2 + $0xc2] sm:$0xff]
    %v482 = vld [vmem:[#allocation2 + $0xca] sm:$0xff]
    %v483 = vld [vmem:[#allocation2 + $0xda] sm:$0xff]
    %v484 = vld [vmem:[#allocation2 + $0xe2] sm:$0xff]
    %v485 = vld [vmem:[#allocation2 + $0xf2] sm:$0xff]
    %v486 = vld [vmem:[#allocation2 + $0xfa] sm:$0xff]
    %v487 = vld [vmem:[#allocation2 + $0x10a] sm:$0xff]
    %v488 = vld [vmem:[#allocation2 + $0x112] sm:$0xff]
    %v489 = vld [vmem:[#allocation2 + $0x122] sm:$0xff]
    %v490 = vld [vmem:[#allocation2 + $0x12a] sm:$0xff]
    %v491 = vld [vmem:[#allocation2 + $0x13a] sm:$0xff]
    %v492 = vld [vmem:[#allocation2 + $0x142] sm:$0xff]
    %v493 = vld [vmem:[#allocation2 + $0x152] sm:$0xff]
    %v494 = vld [vmem:[#allocation2 + $0x15a] sm:$0xff]
    %v495 = vld [vmem:[#allocation2 + $0x16a] sm:$0xff]
    %v496 = vld [vmem:[#allocation2 + $0x172] sm:$0xff]
    %v497 = vld [vmem:[#allocation2 + $0x1b2] sm:$0xff]
    %v498 = vld [vmem:[#allocation2 + $0x1ba] sm:$0xff]
    %v499 = vld [vmem:[#allocation2 + $0x1ca] sm:$0xff]
    %v500 = vld [vmem:[#allocation2 + $0x1d2] sm:$0xff]
    %v501 = vld [vmem:[#allocation2 + $0x1e2] sm:$0xff]
    %v502 = vld [vmem:[#allocation2 + $0x1ea] sm:$0xff]
    %v503 = vld [vmem:[#allocation2 + $0x1fa] sm:$0xff]
    %v504 = vld [vmem:[#allocation2 + $0x202] sm:$0xff]
    %v505 = vld [vmem:[#allocation2 + $0x212] sm:$0xff]
    %v506 = vld [vmem:[#allocation2 + $0x21a] sm:$0xff]
    %v507 = vld [vmem:[#allocation2 + $0x22a] sm:$0xff]
    %v508 = vld [vmem:[#allocation2 + $0x232] sm:$0xff]
    %v509 = vld [vmem:[#allocation2 + $0x242] sm:$0xff]
    %v510 = vld [vmem:[#allocation2 + $0x24a] sm:$0xff]
    %v511 = vld [vmem:[#allocation2 + $0x25a] sm:$0xff]
    %v512 = vld [vmem:[#allocation2 + $0x262] sm:$0xff]
    %v513 = vld [vmem:[#allocation2 + $0x272] sm:$0xff]
    %v514 = vld [vmem:[#allocation2 + $0x27a] sm:$0xff]
    %v515 = vld [vmem:[#allocation2 + $0x28a] sm:$0xff]
    %v516 = vld [vmem:[#allocation2 + $0x292] sm:$0xff]
    %v517 = vld [vmem:[#allocation2 + $0x2a2] sm:$0xff]
    %v518 = vld [vmem:[#allocation2 + $0x2aa] sm:$0xff]
    %v519 = vld [vmem:[#allocation2 + $0x2ba] sm:$0xff]
    %v520 = vld [vmem:[#allocation2 + $0x2c2] sm:$0xff]
    %v521 = vld [vmem:[#allocation2 + $0x2d2] sm:$0xff]
    %v522 = vld [vmem:[#allocation2 + $0x2da] sm:$0xff]
    %v523 = vld [vmem:[#allocation2 + $0x2ea] sm:$0xff]
    %v524 = vld [vmem:[#allocation2 + $0x2f2] sm:$0xff]
    %v525 = vld [vmem:[#allocation2 + $0x302] sm:$0xff]
    %v526 = vld [vmem:[#allocation2 + $0x30a] sm:$0xff]
    %v527 = vld [vmem:[#allocation2 + $0x31a] sm:$0xff]
    %v528 = vld [vmem:[#allocation2 + $0x322] sm:$0xff]
    %v529 = vpack.c.bf16 %v466, %v465
    %v530 = vpack.c.bf16 %v468, %v467
    %v531 = vpack.c.bf16 %v470, %v469
    %v532 = vpack.c.bf16 %v472, %v471
    %v533 = vpack.c.bf16 %v474, %v473
    %v534 = vpack.c.bf16 %v476, %v475
    %v535 = vpack.c.bf16 %v478, %v477
    %v536 = vpack.c.bf16 %v480, %v479
    %v537 = vpack.c.bf16 %v482, %v481
    %v538 = vpack.c.bf16 %v484, %v483
    %v539 = vpack.c.bf16 %v486, %v485
    %v540 = vpack.c.bf16 %v488, %v487
    %v541 = vpack.c.bf16 %v490, %v489
    %v542 = vpack.c.bf16 %v492, %v491
    %v543 = vpack.c.bf16 %v494, %v493
    %v544 = vpack.c.bf16 %v496, %v495
    %v545 = vpack.c.bf16 %v498, %v497
    %v546 = vpack.c.bf16 %v500, %v499
    %v547 = vpack.c.bf16 %v502, %v501
    %v548 = vpack.c.bf16 %v504, %v503
    %v549 = vpack.c.bf16 %v506, %v505
    %v550 = vpack.c.bf16 %v508, %v507
    %v551 = vpack.c.bf16 %v510, %v509
    %v552 = vpack.c.bf16 %v512, %v511
    %v553 = vpack.c.bf16 %v514, %v513
    %v554 = vpack.c.bf16 %v516, %v515
    %v555 = vpack.c.bf16 %v518, %v517
    %v556 = vpack.c.bf16 %v520, %v519
    %v557 = vpack.c.bf16 %v522, %v521
    %v558 = vpack.c.bf16 %v524, %v523
    %v559 = vpack.c.bf16 %v526, %v525
    %v560 = vpack.c.bf16 %v528, %v527
    %v561 = vld [vmem:[%s143] sm:$0xff]
    %v562 = vld [vmem:[%s143 + $0x8] sm:$0xff]
    %v563 = vld [vmem:[%s143 + $0x18] sm:$0xff]
    %v564 = vld [vmem:[%s143 + $0x20] sm:$0xff]
    %v565 = vld [vmem:[%s143 + $0x30] sm:$0xff]
    %v566 = vld [vmem:[%s143 + $0x38] sm:$0xff]
    %v567 = vld [vmem:[%s143 + $0x48] sm:$0xff]
    %v568 = vld [vmem:[%s143 + $0x50] sm:$0xff]
    %v569 = vld [vmem:[%s143 + $0x60] sm:$0xff]
    %v570 = vld [vmem:[%s143 + $0x68] sm:$0xff]
    %v571 = vld [vmem:[%s143 + $0x78] sm:$0xff]
    %v572 = vld [vmem:[%s143 + $0x80] sm:$0xff]
    %v573 = vld [vmem:[%s143 + $0x90] sm:$0xff]
    %v574 = vld [vmem:[%s143 + $0x98] sm:$0xff]
    %v575 = vld [vmem:[%s143 + $0xa8] sm:$0xff]
    %v576 = vld [vmem:[%s143 + $0xb0] sm:$0xff]
    %v577 = vld [vmem:[%s143 + $0xc0] sm:$0xff]
    %v578 = vld [vmem:[%s143 + $0xc8] sm:$0xff]
    %v579 = vld [vmem:[%s143 + $0xd8] sm:$0xff]
    %v580 = vld [vmem:[%s143 + $0xe0] sm:$0xff]
    %v581 = vld [vmem:[%s143 + $0xf0] sm:$0xff]
    %v582 = vld [vmem:[%s143 + $0xf8] sm:$0xff]
    %v583 = vld [vmem:[%s143 + $0x108] sm:$0xff]
    %v584 = vld [vmem:[%s143 + $0x110] sm:$0xff]
    %v585 = vld [vmem:[%s143 + $0x120] sm:$0xff]
    %v586 = vld [vmem:[%s143 + $0x128] sm:$0xff]
    %v587 = vld [vmem:[%s143 + $0x138] sm:$0xff]
    %v588 = vld [vmem:[%s143 + $0x140] sm:$0xff]
    %v589 = vld [vmem:[%s143 + $0x150] sm:$0xff]
    %v590 = vld [vmem:[%s143 + $0x158] sm:$0xff]
    %v591 = vld [vmem:[%s143 + $0x168] sm:$0xff]
    %v592 = vld [vmem:[%s143 + $0x170] sm:$0xff]
    %v593 = vld [vmem:[%s143 + $0x1b0] sm:$0xff]
    %v594 = vld [vmem:[%s143 + $0x1b8] sm:$0xff]
    %v595 = vld [vmem:[%s143 + $0x1c8] sm:$0xff]
    %v596 = vld [vmem:[%s143 + $0x1d0] sm:$0xff]
    %v597 = vld [vmem:[%s143 + $0x1e0] sm:$0xff]
    %v598 = vld [vmem:[%s143 + $0x1e8] sm:$0xff]
    %v599 = vld [vmem:[%s143 + $0x1f8] sm:$0xff]
    %v600 = vld [vmem:[%s143 + $0x200] sm:$0xff]
    %v601 = vld [vmem:[%s143 + $0x210] sm:$0xff]
    %v602 = vld [vmem:[%s143 + $0x218] sm:$0xff]
    %v603 = vld [vmem:[%s143 + $0x228] sm:$0xff]
    %v604 = vld [vmem:[%s143 + $0x230] sm:$0xff]
    %v605 = vld [vmem:[%s143 + $0x240] sm:$0xff]
    %v606 = vld [vmem:[%s143 + $0x248] sm:$0xff]
    %v607 = vld [vmem:[%s143 + $0x258] sm:$0xff]
    %v608 = vld [vmem:[%s143 + $0x260] sm:$0xff]
    %v609 = vld [vmem:[%s143 + $0x270] sm:$0xff]
    %v610 = vld [vmem:[%s143 + $0x278] sm:$0xff]
    %v611 = vld [vmem:[%s143 + $0x288] sm:$0xff]
    %v612 = vld [vmem:[%s143 + $0x290] sm:$0xff]
    %v613 = vld [vmem:[%s143 + $0x2a0] sm:$0xff]
    %v614 = vld [vmem:[%s143 + $0x2a8] sm:$0xff]
    %v615 = vld [vmem:[%s143 + $0x2b8] sm:$0xff]
    %v616 = vld [vmem:[%s143 + $0x2c0] sm:$0xff]
    %v617 = vld [vmem:[%s143 + $0x2d0] sm:$0xff]
    %v618 = vld [vmem:[%s143 + $0x2d8] sm:$0xff]
    %v619 = vld [vmem:[%s143 + $0x2e8] sm:$0xff]
    %v620 = vld [vmem:[%s143 + $0x2f0] sm:$0xff]
    %v621 = vld [vmem:[%s143 + $0x300] sm:$0xff]
    %v622 = vld [vmem:[%s143 + $0x308] sm:$0xff]
    %v623 = vld [vmem:[%s143 + $0x318] sm:$0xff]
    %v624 = vld [vmem:[%s143 + $0x320] sm:$0xff]
    %v625 = vpack.c.bf16 %v562, %v561
    %v626 = vpack.c.bf16 %v564, %v563
    %v627 = vpack.c.bf16 %v566, %v565
    %v628 = vpack.c.bf16 %v568, %v567
    %v629 = vpack.c.bf16 %v570, %v569
    %v630 = vpack.c.bf16 %v572, %v571
    %v631 = vpack.c.bf16 %v574, %v573
    %v632 = vpack.c.bf16 %v576, %v575
    %v633 = vpack.c.bf16 %v578, %v577
    %v634 = vpack.c.bf16 %v580, %v579
    %v635 = vpack.c.bf16 %v582, %v581
    %v636 = vpack.c.bf16 %v584, %v583
    %v637 = vpack.c.bf16 %v586, %v585
    %v638 = vpack.c.bf16 %v588, %v587
    %v639 = vpack.c.bf16 %v590, %v589
    %v640 = vpack.c.bf16 %v592, %v591
    %v641 = vpack.c.bf16 %v594, %v593
    %v642 = vpack.c.bf16 %v596, %v595
    %v643 = vpack.c.bf16 %v598, %v597
    %v644 = vpack.c.bf16 %v600, %v599
    %v645 = vpack.c.bf16 %v602, %v601
    %v646 = vpack.c.bf16 %v604, %v603
    %v647 = vpack.c.bf16 %v606, %v605
    %v648 = vpack.c.bf16 %v608, %v607
    %v649 = vpack.c.bf16 %v610, %v609
    %v650 = vpack.c.bf16 %v612, %v611
    %v651 = vpack.c.bf16 %v614, %v613
    %v652 = vpack.c.bf16 %v616, %v615
    %v653 = vpack.c.bf16 %v618, %v617
    %v654 = vpack.c.bf16 %v620, %v619
    %v655 = vpack.c.bf16 %v622, %v621
    %v656 = vpack.c.bf16 %v624, %v623
    %v657 = vld [vmem:[%s143 + $0x1] sm:$0xff]
    %v658 = vld [vmem:[%s143 + $0x9] sm:$0xff]
    %v659 = vld [vmem:[%s143 + $0x19] sm:$0xff]
    %v660 = vld [vmem:[%s143 + $0x21] sm:$0xff]
    %v661 = vld [vmem:[%s143 + $0x31] sm:$0xff]
    %v662 = vld [vmem:[%s143 + $0x39] sm:$0xff]
    %v663 = vld [vmem:[%s143 + $0x49] sm:$0xff]
    %v664 = vld [vmem:[%s143 + $0x51] sm:$0xff]
    %v665 = vld [vmem:[%s143 + $0x61] sm:$0xff]
    %v666 = vld [vmem:[%s143 + $0x69] sm:$0xff]
    %v667 = vld [vmem:[%s143 + $0x79] sm:$0xff]
    %v668 = vld [vmem:[%s143 + $0x81] sm:$0xff]
    %v669 = vld [vmem:[%s143 + $0x91] sm:$0xff]
    %v670 = vld [vmem:[%s143 + $0x99] sm:$0xff]
    %v671 = vld [vmem:[%s143 + $0xa9] sm:$0xff]
    %v672 = vld [vmem:[%s143 + $0xb1] sm:$0xff]
    %v673 = vld [vmem:[%s143 + $0xc1] sm:$0xff]
    %v674 = vld [vmem:[%s143 + $0xc9] sm:$0xff]
    %v675 = vld [vmem:[%s143 + $0xd9] sm:$0xff]
    %v676 = vld [vmem:[%s143 + $0xe1] sm:$0xff]
    %v677 = vld [vmem:[%s143 + $0xf1] sm:$0xff]
    %v678 = vld [vmem:[%s143 + $0xf9] sm:$0xff]
    %v679 = vld [vmem:[%s143 + $0x109] sm:$0xff]
    %v680 = vld [vmem:[%s143 + $0x111] sm:$0xff]
    %v681 = vld [vmem:[%s143 + $0x121] sm:$0xff]
    %v682 = vld [vmem:[%s143 + $0x129] sm:$0xff]
    %v683 = vld [vmem:[%s143 + $0x139] sm:$0xff]
    %v684 = vld [vmem:[%s143 + $0x141] sm:$0xff]
    %v685 = vld [vmem:[%s143 + $0x151] sm:$0xff]
    %v686 = vld [vmem:[%s143 + $0x159] sm:$0xff]
    %v687 = vld [vmem:[%s143 + $0x169] sm:$0xff]
    %v688 = vld [vmem:[%s143 + $0x171] sm:$0xff]
    %v689 = vld [vmem:[%s143 + $0x1b1] sm:$0xff]
    %v690 = vld [vmem:[%s143 + $0x1b9] sm:$0xff]
    %v691 = vld [vmem:[%s143 + $0x1c9] sm:$0xff]
    %v692 = vld [vmem:[%s143 + $0x1d1] sm:$0xff]
    %v693 = vld [vmem:[%s143 + $0x1e1] sm:$0xff]
    %v694 = vld [vmem:[%s143 + $0x1e9] sm:$0xff]
    %v695 = vld [vmem:[%s143 + $0x1f9] sm:$0xff]
    %v696 = vld [vmem:[%s143 + $0x201] sm:$0xff]
    %v697 = vld [vmem:[%s143 + $0x211] sm:$0xff]
    %v698 = vld [vmem:[%s143 + $0x219] sm:$0xff]
    %v699 = vld [vmem:[%s143 + $0x229] sm:$0xff]
    %v700 = vld [vmem:[%s143 + $0x231] sm:$0xff]
    %v701 = vld [vmem:[%s143 + $0x241] sm:$0xff]
    %v702 = vld [vmem:[%s143 + $0x249] sm:$0xff]
    %v703 = vld [vmem:[%s143 + $0x259] sm:$0xff]
    %v704 = vld [vmem:[%s143 + $0x261] sm:$0xff]
    %v705 = vld [vmem:[%s143 + $0x271] sm:$0xff]
    %v706 = vld [vmem:[%s143 + $0x279] sm:$0xff]
    %v707 = vld [vmem:[%s143 + $0x289] sm:$0xff]
    %v708 = vld [vmem:[%s143 + $0x291] sm:$0xff]
    %v709 = vld [vmem:[%s143 + $0x2a1] sm:$0xff]
    %v710 = vld [vmem:[%s143 + $0x2a9] sm:$0xff]
    %v711 = vld [vmem:[%s143 + $0x2b9] sm:$0xff]
    %v712 = vld [vmem:[%s143 + $0x2c1] sm:$0xff]
    %v713 = vld [vmem:[%s143 + $0x2d1] sm:$0xff]
    %v714 = vld [vmem:[%s143 + $0x2d9] sm:$0xff]
    %v715 = vld [vmem:[%s143 + $0x2e9] sm:$0xff]
    %v716 = vld [vmem:[%s143 + $0x2f1] sm:$0xff]
    %v717 = vld [vmem:[%s143 + $0x301] sm:$0xff]
    %v718 = vld [vmem:[%s143 + $0x309] sm:$0xff]
    %v719 = vld [vmem:[%s143 + $0x319] sm:$0xff]
    %v720 = vld [vmem:[%s143 + $0x321] sm:$0xff]
    %v721 = vpack.c.bf16 %v658, %v657
    %v722 = vpack.c.bf16 %v660, %v659
    %v723 = vpack.c.bf16 %v662, %v661
    %v724 = vpack.c.bf16 %v664, %v663
    %v725 = vpack.c.bf16 %v666, %v665
    %v726 = vpack.c.bf16 %v668, %v667
    %v727 = vpack.c.bf16 %v670, %v669
    %v728 = vpack.c.bf16 %v672, %v671
    %v729 = vpack.c.bf16 %v674, %v673
    %v730 = vpack.c.bf16 %v676, %v675
    %v731 = vpack.c.bf16 %v678, %v677
    %v732 = vpack.c.bf16 %v680, %v679
    %v733 = vpack.c.bf16 %v682, %v681
    %v734 = vpack.c.bf16 %v684, %v683
    %v735 = vpack.c.bf16 %v686, %v685
    %v736 = vpack.c.bf16 %v688, %v687
    %v737 = vpack.c.bf16 %v690, %v689
    %v738 = vpack.c.bf16 %v692, %v691
    %v739 = vpack.c.bf16 %v694, %v693
    %v740 = vpack.c.bf16 %v696, %v695
    %v741 = vpack.c.bf16 %v698, %v697
    %v742 = vpack.c.bf16 %v700, %v699
    %v743 = vpack.c.bf16 %v702, %v701
    %v744 = vpack.c.bf16 %v704, %v703
    %v745 = vpack.c.bf16 %v706, %v705
    %v746 = vpack.c.bf16 %v708, %v707
    %v747 = vpack.c.bf16 %v710, %v709
    %v748 = vpack.c.bf16 %v712, %v711
    %v749 = vpack.c.bf16 %v714, %v713
    %v750 = vpack.c.bf16 %v716, %v715
    %v751 = vpack.c.bf16 %v718, %v717
    %v752 = vpack.c.bf16 %v720, %v719
    %v753 = vld [vmem:[%s143 + $0x2] sm:$0xff]
    %v754 = vld [vmem:[%s143 + $0xa] sm:$0xff]
    %v755 = vld [vmem:[%s143 + $0x1a] sm:$0xff]
    %v756 = vld [vmem:[%s143 + $0x22] sm:$0xff]
    %v757 = vld [vmem:[%s143 + $0x32] sm:$0xff]
    %v758 = vld [vmem:[%s143 + $0x3a] sm:$0xff]
    %v759 = vld [vmem:[%s143 + $0x4a] sm:$0xff]
    %v760 = vld [vmem:[%s143 + $0x52] sm:$0xff]
    %v761 = vld [vmem:[%s143 + $0x62] sm:$0xff]
    %v762 = vld [vmem:[%s143 + $0x6a] sm:$0xff]
    %v763 = vld [vmem:[%s143 + $0x7a] sm:$0xff]
    %v764 = vld [vmem:[%s143 + $0x82] sm:$0xff]
    %v765 = vld [vmem:[%s143 + $0x92] sm:$0xff]
    %v766 = vld [vmem:[%s143 + $0x9a] sm:$0xff]
    %v767 = vld [vmem:[%s143 + $0xaa] sm:$0xff]
    %v768 = vld [vmem:[%s143 + $0xb2] sm:$0xff]
    %v769 = vld [vmem:[%s143 + $0xc2] sm:$0xff]
    %v770 = vld [vmem:[%s143 + $0xca] sm:$0xff]
    %v771 = vld [vmem:[%s143 + $0xda] sm:$0xff]
    %v772 = vld [vmem:[%s143 + $0xe2] sm:$0xff]
    %v773 = vld [vmem:[%s143 + $0xf2] sm:$0xff]
    %v774 = vld [vmem:[%s143 + $0xfa] sm:$0xff]
    %v775 = vld [vmem:[%s143 + $0x10a] sm:$0xff]
    %v776 = vld [vmem:[%s143 + $0x112] sm:$0xff]
    %v777 = vld [vmem:[%s143 + $0x122] sm:$0xff]
    %v778 = vld [vmem:[%s143 + $0x12a] sm:$0xff]
    %v779 = vld [vmem:[%s143 + $0x13a] sm:$0xff]
    %v780 = vld [vmem:[%s143 + $0x142] sm:$0xff]
    %v781 = vld [vmem:[%s143 + $0x152] sm:$0xff]
    %v782 = vld [vmem:[%s143 + $0x15a] sm:$0xff]
    %v783 = vld [vmem:[%s143 + $0x16a] sm:$0xff]
    %v784 = vld [vmem:[%s143 + $0x172] sm:$0xff]
    %v785 = vld [vmem:[%s143 + $0x1b2] sm:$0xff]
    %v786 = vld [vmem:[%s143 + $0x1ba] sm:$0xff]
    %v787 = vld [vmem:[%s143 + $0x1ca] sm:$0xff]
    %v788 = vld [vmem:[%s143 + $0x1d2] sm:$0xff]
    %v789 = vld [vmem:[%s143 + $0x1e2] sm:$0xff]
    %v790 = vld [vmem:[%s143 + $0x1ea] sm:$0xff]
    %v791 = vld [vmem:[%s143 + $0x1fa] sm:$0xff]
    %v792 = vld [vmem:[%s143 + $0x202] sm:$0xff]
    %v793 = vld [vmem:[%s143 + $0x212] sm:$0xff]
    %v794 = vld [vmem:[%s143 + $0x21a] sm:$0xff]
    %v795 = vld [vmem:[%s143 + $0x22a] sm:$0xff]
    %v796 = vld [vmem:[%s143 + $0x232] sm:$0xff]
    %v797 = vld [vmem:[%s143 + $0x242] sm:$0xff]
    %v798 = vld [vmem:[%s143 + $0x24a] sm:$0xff]
    %v799 = vld [vmem:[%s143 + $0x25a] sm:$0xff]
    %v800 = vld [vmem:[%s143 + $0x262] sm:$0xff]
    %v801 = vld [vmem:[%s143 + $0x272] sm:$0xff]
    %v802 = vld [vmem:[%s143 + $0x27a] sm:$0xff]
    %v803 = vld [vmem:[%s143 + $0x28a] sm:$0xff]
    %v804 = vld [vmem:[%s143 + $0x292] sm:$0xff]
    %v805 = vld [vmem:[%s143 + $0x2a2] sm:$0xff]
    %v806 = vld [vmem:[%s143 + $0x2aa] sm:$0xff]
    %v807 = vld [vmem:[%s143 + $0x2ba] sm:$0xff]
    %v808 = vld [vmem:[%s143 + $0x2c2] sm:$0xff]
    %v809 = vld [vmem:[%s143 + $0x2d2] sm:$0xff]
    %v810 = vld [vmem:[%s143 + $0x2da] sm:$0xff]
    %v811 = vld [vmem:[%s143 + $0x2ea] sm:$0xff]
    %v812 = vld [vmem:[%s143 + $0x2f2] sm:$0xff]
    %v813 = vld [vmem:[%s143 + $0x302] sm:$0xff]
    %v814 = vld [vmem:[%s143 + $0x30a] sm:$0xff]
    %v815 = vld [vmem:[%s143 + $0x31a] sm:$0xff]
    %v816 = vld [vmem:[%s143 + $0x322] sm:$0xff]
    %v817 = vpack.c.bf16 %v754, %v753
    %v818 = vpack.c.bf16 %v756, %v755
    %v819 = vpack.c.bf16 %v758, %v757
    %v820 = vpack.c.bf16 %v760, %v759
    %v821 = vpack.c.bf16 %v762, %v761
    %v822 = vpack.c.bf16 %v764, %v763
    %v823 = vpack.c.bf16 %v766, %v765
    %v824 = vpack.c.bf16 %v768, %v767
    %v825 = vpack.c.bf16 %v770, %v769
    %v826 = vpack.c.bf16 %v772, %v771
    %v827 = vpack.c.bf16 %v774, %v773
    %v828 = vpack.c.bf16 %v776, %v775
    %v829 = vpack.c.bf16 %v778, %v777
    %v830 = vpack.c.bf16 %v780, %v779
    %v831 = vpack.c.bf16 %v782, %v781
    %v832 = vpack.c.bf16 %v784, %v783
    %v833 = vpack.c.bf16 %v786, %v785
    %v834 = vpack.c.bf16 %v788, %v787
    %v835 = vpack.c.bf16 %v790, %v789
    %v836 = vpack.c.bf16 %v792, %v791
    %v837 = vpack.c.bf16 %v794, %v793
    %v838 = vpack.c.bf16 %v796, %v795
    %v839 = vpack.c.bf16 %v798, %v797
    %v840 = vpack.c.bf16 %v800, %v799
    %v841 = vpack.c.bf16 %v802, %v801
    %v842 = vpack.c.bf16 %v804, %v803
    %v843 = vpack.c.bf16 %v806, %v805
    %v844 = vpack.c.bf16 %v808, %v807
    %v845 = vpack.c.bf16 %v810, %v809
    %v846 = vpack.c.bf16 %v812, %v811
    %v847 = vpack.c.bf16 %v814, %v813
    %v848 = vpack.c.bf16 %v816, %v815
    %s849 = scalar_lea.vmem [#allocation2], 48
    %v850 = vld [vmem:[%s849] sm:$0xff]
    %v851 = vld [vmem:[%s849 + $0x8] sm:$0xff]
    %v852 = vld [vmem:[%s849 + $0x18] sm:$0xff]
    %v853 = vld [vmem:[%s849 + $0x20] sm:$0xff]
    %v854 = vld [vmem:[%s849 + $0x30] sm:$0xff]
    %v855 = vld [vmem:[%s849 + $0x38] sm:$0xff]
    %v856 = vld [vmem:[%s849 + $0x48] sm:$0xff]
    %v857 = vld [vmem:[%s849 + $0x50] sm:$0xff]
    %v858 = vld [vmem:[%s849 + $0x60] sm:$0xff]
    %v859 = vld [vmem:[%s849 + $0x68] sm:$0xff]
    %v860 = vld [vmem:[%s849 + $0x78] sm:$0xff]
    %v861 = vld [vmem:[%s849 + $0x80] sm:$0xff]
    %v862 = vld [vmem:[%s849 + $0x90] sm:$0xff]
    %v863 = vld [vmem:[%s849 + $0x98] sm:$0xff]
    %v864 = vld [vmem:[%s849 + $0xa8] sm:$0xff]
    %v865 = vld [vmem:[%s849 + $0xb0] sm:$0xff]
    %v866 = vld [vmem:[%s849 + $0xc0] sm:$0xff]
    %v867 = vld [vmem:[%s849 + $0xc8] sm:$0xff]
    %v868 = vld [vmem:[%s849 + $0xd8] sm:$0xff]
    %v869 = vld [vmem:[%s849 + $0xe0] sm:$0xff]
    %v870 = vld [vmem:[%s849 + $0xf0] sm:$0xff]
    %v871 = vld [vmem:[%s849 + $0xf8] sm:$0xff]
    %v872 = vld [vmem:[%s849 + $0x108] sm:$0xff]
    %v873 = vld [vmem:[%s849 + $0x110] sm:$0xff]
    %v874 = vld [vmem:[%s849 + $0x120] sm:$0xff]
    %v875 = vld [vmem:[%s849 + $0x128] sm:$0xff]
    %v876 = vld [vmem:[%s849 + $0x138] sm:$0xff]
    %v877 = vld [vmem:[%s849 + $0x140] sm:$0xff]
    %v878 = vld [vmem:[%s849 + $0x150] sm:$0xff]
    %v879 = vld [vmem:[%s849 + $0x158] sm:$0xff]
    %v880 = vld [vmem:[%s849 + $0x168] sm:$0xff]
    %v881 = vld [vmem:[%s849 + $0x170] sm:$0xff]
    %v882 = vld [vmem:[%s849 + $0x1b0] sm:$0xff]
    %v883 = vld [vmem:[%s849 + $0x1b8] sm:$0xff]
    %v884 = vld [vmem:[%s849 + $0x1c8] sm:$0xff]
    %v885 = vld [vmem:[%s849 + $0x1d0] sm:$0xff]
    %v886 = vld [vmem:[%s849 + $0x1e0] sm:$0xff]
    %v887 = vld [vmem:[%s849 + $0x1e8] sm:$0xff]
    %v888 = vld [vmem:[%s849 + $0x1f8] sm:$0xff]
    %v889 = vld [vmem:[%s849 + $0x200] sm:$0xff]
    %v890 = vld [vmem:[%s849 + $0x210] sm:$0xff]
    %v891 = vld [vmem:[%s849 + $0x218] sm:$0xff]
    %v892 = vld [vmem:[%s849 + $0x228] sm:$0xff]
    %v893 = vld [vmem:[%s849 + $0x230] sm:$0xff]
    %v894 = vld [vmem:[%s849 + $0x240] sm:$0xff]
    %v895 = vld [vmem:[%s849 + $0x248] sm:$0xff]
    %v896 = vld [vmem:[%s849 + $0x258] sm:$0xff]
    %v897 = vld [vmem:[%s849 + $0x260] sm:$0xff]
    %v898 = vld [vmem:[%s849 + $0x270] sm:$0xff]
    %v899 = vld [vmem:[%s849 + $0x278] sm:$0xff]
    %v900 = vld [vmem:[%s849 + $0x288] sm:$0xff]
    %v901 = vld [vmem:[%s849 + $0x290] sm:$0xff]
    %v902 = vld [vmem:[%s849 + $0x2a0] sm:$0xff]
    %v903 = vld [vmem:[%s849 + $0x2a8] sm:$0xff]
    %v904 = vld [vmem:[%s849 + $0x2b8] sm:$0xff]
    %v905 = vld [vmem:[%s849 + $0x2c0] sm:$0xff]
    %v906 = vld [vmem:[%s849 + $0x2d0] sm:$0xff]
    %v907 = vld [vmem:[%s849 + $0x2d8] sm:$0xff]
    %v908 = vld [vmem:[%s849 + $0x2e8] sm:$0xff]
    %v909 = vld [vmem:[%s849 + $0x2f0] sm:$0xff]
    %v910 = vld [vmem:[%s849 + $0x300] sm:$0xff]
    %v911 = vld [vmem:[%s849 + $0x308] sm:$0xff]
    %v912 = vld [vmem:[%s849 + $0x318] sm:$0xff]
    %v913 = vld [vmem:[%s849 + $0x320] sm:$0xff]
    %v914 = vpack.c.bf16 %v851, %v850
    %v915 = vpack.c.bf16 %v853, %v852
    %v916 = vpack.c.bf16 %v855, %v854
    %v917 = vpack.c.bf16 %v857, %v856
    %v918 = vpack.c.bf16 %v859, %v858
    %v919 = vpack.c.bf16 %v861, %v860
    %v920 = vpack.c.bf16 %v863, %v862
    %v921 = vpack.c.bf16 %v865, %v864
    %v922 = vpack.c.bf16 %v867, %v866
    %v923 = vpack.c.bf16 %v869, %v868
    %v924 = vpack.c.bf16 %v871, %v870
    %v925 = vpack.c.bf16 %v873, %v872
    %v926 = vpack.c.bf16 %v875, %v874
    %v927 = vpack.c.bf16 %v877, %v876
    %v928 = vpack.c.bf16 %v879, %v878
    %v929 = vpack.c.bf16 %v881, %v880
    %v930 = vpack.c.bf16 %v883, %v882
    %v931 = vpack.c.bf16 %v885, %v884
    %v932 = vpack.c.bf16 %v887, %v886
    %v933 = vpack.c.bf16 %v889, %v888
    %v934 = vpack.c.bf16 %v891, %v890
    %v935 = vpack.c.bf16 %v893, %v892
    %v936 = vpack.c.bf16 %v895, %v894
    %v937 = vpack.c.bf16 %v897, %v896
    %v938 = vpack.c.bf16 %v899, %v898
    %v939 = vpack.c.bf16 %v901, %v900
    %v940 = vpack.c.bf16 %v903, %v902
    %v941 = vpack.c.bf16 %v905, %v904
    %v942 = vpack.c.bf16 %v907, %v906
    %v943 = vpack.c.bf16 %v909, %v908
    %v944 = vpack.c.bf16 %v911, %v910
    %v945 = vpack.c.bf16 %v913, %v912
    %v946 = vld [vmem:[%s849 + $0x1] sm:$0xff]
    %v947 = vld [vmem:[%s849 + $0x9] sm:$0xff]
    %v948 = vld [vmem:[%s849 + $0x19] sm:$0xff]
    %v949 = vld [vmem:[%s849 + $0x21] sm:$0xff]
    %v950 = vld [vmem:[%s849 + $0x31] sm:$0xff]
    %v951 = vld [vmem:[%s849 + $0x39] sm:$0xff]
    %v952 = vld [vmem:[%s849 + $0x49] sm:$0xff]
    %v953 = vld [vmem:[%s849 + $0x51] sm:$0xff]
    %v954 = vld [vmem:[%s849 + $0x61] sm:$0xff]
    %v955 = vld [vmem:[%s849 + $0x69] sm:$0xff]
    %v956 = vld [vmem:[%s849 + $0x79] sm:$0xff]
    %v957 = vld [vmem:[%s849 + $0x81] sm:$0xff]
    %v958 = vld [vmem:[%s849 + $0x91] sm:$0xff]
    %v959 = vld [vmem:[%s849 + $0x99] sm:$0xff]
    %v960 = vld [vmem:[%s849 + $0xa9] sm:$0xff]
    %v961 = vld [vmem:[%s849 + $0xb1] sm:$0xff]
    %v962 = vld [vmem:[%s849 + $0xc1] sm:$0xff]
    %v963 = vld [vmem:[%s849 + $0xc9] sm:$0xff]
    %v964 = vld [vmem:[%s849 + $0xd9] sm:$0xff]
    %v965 = vld [vmem:[%s849 + $0xe1] sm:$0xff]
    %v966 = vld [vmem:[%s849 + $0xf1] sm:$0xff]
    %v967 = vld [vmem:[%s849 + $0xf9] sm:$0xff]
    %v968 = vld [vmem:[%s849 + $0x109] sm:$0xff]
    %v969 = vld [vmem:[%s849 + $0x111] sm:$0xff]
    %v970 = vld [vmem:[%s849 + $0x121] sm:$0xff]
    %v971 = vld [vmem:[%s849 + $0x129] sm:$0xff]
    %v972 = vld [vmem:[%s849 + $0x139] sm:$0xff]
    %v973 = vld [vmem:[%s849 + $0x141] sm:$0xff]
    %v974 = vld [vmem:[%s849 + $0x151] sm:$0xff]
    %v975 = vld [vmem:[%s849 + $0x159] sm:$0xff]
    %v976 = vld [vmem:[%s849 + $0x169] sm:$0xff]
    %v977 = vld [vmem:[%s849 + $0x171] sm:$0xff]
    %v978 = vld [vmem:[%s849 + $0x1b1] sm:$0xff]
    %v979 = vld [vmem:[%s849 + $0x1b9] sm:$0xff]
    %v980 = vld [vmem:[%s849 + $0x1c9] sm:$0xff]
    %v981 = vld [vmem:[%s849 + $0x1d1] sm:$0xff]
    %v982 = vld [vmem:[%s849 + $0x1e1] sm:$0xff]
    %v983 = vld [vmem:[%s849 + $0x1e9] sm:$0xff]
    %v984 = vld [vmem:[%s849 + $0x1f9] sm:$0xff]
    %v985 = vld [vmem:[%s849 + $0x201] sm:$0xff]
    %v986 = vld [vmem:[%s849 + $0x211] sm:$0xff]
    %v987 = vld [vmem:[%s849 + $0x219] sm:$0xff]
    %v988 = vld [vmem:[%s849 + $0x229] sm:$0xff]
    %v989 = vld [vmem:[%s849 + $0x231] sm:$0xff]
    %v990 = vld [vmem:[%s849 + $0x241] sm:$0xff]
    %v991 = vld [vmem:[%s849 + $0x249] sm:$0xff]
    %v992 = vld [vmem:[%s849 + $0x259] sm:$0xff]
    %v993 = vld [vmem:[%s849 + $0x261] sm:$0xff]
    %v994 = vld [vmem:[%s849 + $0x271] sm:$0xff]
    %v995 = vld [vmem:[%s849 + $0x279] sm:$0xff]
    %v996 = vld [vmem:[%s849 + $0x289] sm:$0xff]
    %v997 = vld [vmem:[%s849 + $0x291] sm:$0xff]
    %v998 = vld [vmem:[%s849 + $0x2a1] sm:$0xff]
    %v999 = vld [vmem:[%s849 + $0x2a9] sm:$0xff]
    %v1000 = vld [vmem:[%s849 + $0x2b9] sm:$0xff]
    %v1001 = vld [vmem:[%s849 + $0x2c1] sm:$0xff]
    %v1002 = vld [vmem:[%s849 + $0x2d1] sm:$0xff]
    %v1003 = vld [vmem:[%s849 + $0x2d9] sm:$0xff]
    %v1004 = vld [vmem:[%s849 + $0x2e9] sm:$0xff]
    %v1005 = vld [vmem:[%s849 + $0x2f1] sm:$0xff]
    %v1006 = vld [vmem:[%s849 + $0x301] sm:$0xff]
    %v1007 = vld [vmem:[%s849 + $0x309] sm:$0xff]
    %v1008 = vld [vmem:[%s849 + $0x319] sm:$0xff]
    %v1009 = vld [vmem:[%s849 + $0x321] sm:$0xff]
    %v1010 = vpack.c.bf16 %v947, %v946
    %v1011 = vpack.c.bf16 %v949, %v948
    %v1012 = vpack.c.bf16 %v951, %v950
    %v1013 = vpack.c.bf16 %v953, %v952
    %v1014 = vpack.c.bf16 %v955, %v954
    %v1015 = vpack.c.bf16 %v957, %v956
    %v1016 = vpack.c.bf16 %v959, %v958
    %v1017 = vpack.c.bf16 %v961, %v960
    %v1018 = vpack.c.bf16 %v963, %v962
    %v1019 = vpack.c.bf16 %v965, %v964
    %v1020 = vpack.c.bf16 %v967, %v966
    %v1021 = vpack.c.bf16 %v969, %v968
    %v1022 = vpack.c.bf16 %v971, %v970
    %v1023 = vpack.c.bf16 %v973, %v972
    %v1024 = vpack.c.bf16 %v975, %v974
    %v1025 = vpack.c.bf16 %v977, %v976
    %v1026 = vpack.c.bf16 %v979, %v978
    %v1027 = vpack.c.bf16 %v981, %v980
    %v1028 = vpack.c.bf16 %v983, %v982
    %v1029 = vpack.c.bf16 %v985, %v984
    %v1030 = vpack.c.bf16 %v987, %v986
    %v1031 = vpack.c.bf16 %v989, %v988
    %v1032 = vpack.c.bf16 %v991, %v990
    %v1033 = vpack.c.bf16 %v993, %v992
    %v1034 = vpack.c.bf16 %v995, %v994
    %v1035 = vpack.c.bf16 %v997, %v996
    %v1036 = vpack.c.bf16 %v999, %v998
    %v1037 = vpack.c.bf16 %v1001, %v1000
    %v1038 = vpack.c.bf16 %v1003, %v1002
    %v1039 = vpack.c.bf16 %v1005, %v1004
    %v1040 = vpack.c.bf16 %v1007, %v1006
    %v1041 = vpack.c.bf16 %v1009, %v1008
    %v1042 = vld [vmem:[%s849 + $0x2] sm:$0xff]
    %v1043 = vld [vmem:[%s849 + $0xa] sm:$0xff]
    %v1044 = vld [vmem:[%s849 + $0x1a] sm:$0xff]
    %v1045 = vld [vmem:[%s849 + $0x22] sm:$0xff]
    %v1046 = vld [vmem:[%s849 + $0x32] sm:$0xff]
    %v1047 = vld [vmem:[%s849 + $0x3a] sm:$0xff]
    %v1048 = vld [vmem:[%s849 + $0x4a] sm:$0xff]
    %v1049 = vld [vmem:[%s849 + $0x52] sm:$0xff]
    %v1050 = vld [vmem:[%s849 + $0x62] sm:$0xff]
    %v1051 = vld [vmem:[%s849 + $0x6a] sm:$0xff]
    %v1052 = vld [vmem:[%s849 + $0x7a] sm:$0xff]
    %v1053 = vld [vmem:[%s849 + $0x82] sm:$0xff]
    %v1054 = vld [vmem:[%s849 + $0x92] sm:$0xff]
    %v1055 = vld [vmem:[%s849 + $0x9a] sm:$0xff]
    %v1056 = vld [vmem:[%s849 + $0xaa] sm:$0xff]
    %v1057 = vld [vmem:[%s849 + $0xb2] sm:$0xff]
    %v1058 = vld [vmem:[%s849 + $0xc2] sm:$0xff]
    %v1059 = vld [vmem:[%s849 + $0xca] sm:$0xff]
    %v1060 = vld [vmem:[%s849 + $0xda] sm:$0xff]
    %v1061 = vld [vmem:[%s849 + $0xe2] sm:$0xff]
    %v1062 = vld [vmem:[%s849 + $0xf2] sm:$0xff]
    %v1063 = vld [vmem:[%s849 + $0xfa] sm:$0xff]
    %v1064 = vld [vmem:[%s849 + $0x10a] sm:$0xff]
    %v1065 = vld [vmem:[%s849 + $0x112] sm:$0xff]
    %v1066 = vld [vmem:[%s849 + $0x122] sm:$0xff]
    %v1067 = vld [vmem:[%s849 + $0x12a] sm:$0xff]
    %v1068 = vld [vmem:[%s849 + $0x13a] sm:$0xff]
    %v1069 = vld [vmem:[%s849 + $0x142] sm:$0xff]
    %v1070 = vld [vmem:[%s849 + $0x152] sm:$0xff]
    %v1071 = vld [vmem:[%s849 + $0x15a] sm:$0xff]
    %v1072 = vld [vmem:[%s849 + $0x16a] sm:$0xff]
    %v1073 = vld [vmem:[%s849 + $0x172] sm:$0xff]
    %v1074 = vld [vmem:[%s849 + $0x1b2] sm:$0xff]
    %v1075 = vld [vmem:[%s849 + $0x1ba] sm:$0xff]
    %v1076 = vld [vmem:[%s849 + $0x1ca] sm:$0xff]
    %v1077 = vld [vmem:[%s849 + $0x1d2] sm:$0xff]
    %v1078 = vld [vmem:[%s849 + $0x1e2] sm:$0xff]
    %v1079 = vld [vmem:[%s849 + $0x1ea] sm:$0xff]
    %v1080 = vld [vmem:[%s849 + $0x1fa] sm:$0xff]
    %v1081 = vld [vmem:[%s849 + $0x202] sm:$0xff]
    %v1082 = vld [vmem:[%s849 + $0x212] sm:$0xff]
    %v1083 = vld [vmem:[%s849 + $0x21a] sm:$0xff]
    %v1084 = vld [vmem:[%s849 + $0x22a] sm:$0xff]
    %v1085 = vld [vmem:[%s849 + $0x232] sm:$0xff]
    %v1086 = vld [vmem:[%s849 + $0x242] sm:$0xff]
    %v1087 = vld [vmem:[%s849 + $0x24a] sm:$0xff]
    %v1088 = vld [vmem:[%s849 + $0x25a] sm:$0xff]
    %v1089 = vld [vmem:[%s849 + $0x262] sm:$0xff]
    %v1090 = vld [vmem:[%s849 + $0x272] sm:$0xff]
    %v1091 = vld [vmem:[%s849 + $0x27a] sm:$0xff]
    %v1092 = vld [vmem:[%s849 + $0x28a] sm:$0xff]
    %v1093 = vld [vmem:[%s849 + $0x292] sm:$0xff]
    %v1094 = vld [vmem:[%s849 + $0x2a2] sm:$0xff]
    %v1095 = vld [vmem:[%s849 + $0x2aa] sm:$0xff]
    %v1096 = vld [vmem:[%s849 + $0x2ba] sm:$0xff]
    %v1097 = vld [vmem:[%s849 + $0x2c2] sm:$0xff]
    %v1098 = vld [vmem:[%s849 + $0x2d2] sm:$0xff]
    %v1099 = vld [vmem:[%s849 + $0x2da] sm:$0xff]
    %v1100 = vld [vmem:[%s849 + $0x2ea] sm:$0xff]
    %v1101 = vld [vmem:[%s849 + $0x2f2] sm:$0xff]
    %v1102 = vld [vmem:[%s849 + $0x302] sm:$0xff]
    %v1103 = vld [vmem:[%s849 + $0x30a] sm:$0xff]
    %v1104 = vld [vmem:[%s849 + $0x31a] sm:$0xff]
    %v1105 = vld [vmem:[%s849 + $0x322] sm:$0xff]
    %v1106 = vpack.c.bf16 %v1043, %v1042
    %v1107 = vpack.c.bf16 %v1045, %v1044
    %v1108 = vpack.c.bf16 %v1047, %v1046
    %v1109 = vpack.c.bf16 %v1049, %v1048
    %v1110 = vpack.c.bf16 %v1051, %v1050
    %v1111 = vpack.c.bf16 %v1053, %v1052
    %v1112 = vpack.c.bf16 %v1055, %v1054
    %v1113 = vpack.c.bf16 %v1057, %v1056
    %v1114 = vpack.c.bf16 %v1059, %v1058
    %v1115 = vpack.c.bf16 %v1061, %v1060
    %v1116 = vpack.c.bf16 %v1063, %v1062
    %v1117 = vpack.c.bf16 %v1065, %v1064
    %v1118 = vpack.c.bf16 %v1067, %v1066
    %v1119 = vpack.c.bf16 %v1069, %v1068
    %v1120 = vpack.c.bf16 %v1071, %v1070
    %v1121 = vpack.c.bf16 %v1073, %v1072
    %v1122 = vpack.c.bf16 %v1075, %v1074
    %v1123 = vpack.c.bf16 %v1077, %v1076
    %v1124 = vpack.c.bf16 %v1079, %v1078
    %v1125 = vpack.c.bf16 %v1081, %v1080
    %v1126 = vpack.c.bf16 %v1083, %v1082
    %v1127 = vpack.c.bf16 %v1085, %v1084
    %v1128 = vpack.c.bf16 %v1087, %v1086
    %v1129 = vpack.c.bf16 %v1089, %v1088
    %v1130 = vpack.c.bf16 %v1091, %v1090
    %v1131 = vpack.c.bf16 %v1093, %v1092
    %v1132 = vpack.c.bf16 %v1095, %v1094
    %v1133 = vpack.c.bf16 %v1097, %v1096
    %v1134 = vpack.c.bf16 %v1099, %v1098
    %v1135 = vpack.c.bf16 %v1101, %v1100
    %v1136 = vpack.c.bf16 %v1103, %v1102
    %v1137 = vpack.c.bf16 %v1105, %v1104
    %1170 = vrot.lane.b32.xlu0 %v433, 4
    %v1171 = vpop.permute.xlu0 %1170
    %1172 = vrot.lane.b32.xlu0 %v434, 4
    %v1173 = vpop.permute.xlu0 %1172
    %1174 = vrot.lane.b32.xlu0 %v435, 4
    %v1175 = vpop.permute.xlu0 %1174
    %1176 = vrot.lane.b32.xlu0 %v436, 4
    %v1177 = vpop.permute.xlu0 %1176
    %1178 = vrot.lane.b32.xlu0 %v437, 4
    %v1179 = vpop.permute.xlu0 %1178
    %1180 = vrot.lane.b32.xlu0 %v438, 4
    %v1181 = vpop.permute.xlu0 %1180
    %1182 = vrot.lane.b32.xlu0 %v439, 4
    %v1183 = vpop.permute.xlu0 %1182
    %1184 = vrot.lane.b32.xlu0 %v440, 4
    %v1185 = vpop.permute.xlu0 %1184
    %1186 = vrot.lane.b32.xlu0 %v441, 4
    %v1187 = vpop.permute.xlu0 %1186
    %1188 = vrot.lane.b32.xlu0 %v442, 4
    %v1189 = vpop.permute.xlu0 %1188
    %1190 = vrot.lane.b32.xlu0 %v443, 4
    %v1191 = vpop.permute.xlu0 %1190
    %1192 = vrot.lane.b32.xlu0 %v444, 4
    %v1193 = vpop.permute.xlu0 %1192
    %1194 = vrot.lane.b32.xlu0 %v445, 4
    %v1195 = vpop.permute.xlu0 %1194
    %1196 = vrot.lane.b32.xlu0 %v446, 4
    %v1197 = vpop.permute.xlu0 %1196
    %1198 = vrot.lane.b32.xlu0 %v447, 4
    %v1199 = vpop.permute.xlu0 %1198
    %1200 = vrot.lane.b32.xlu0 %v448, 4
    %v1201 = vpop.permute.xlu0 %1200
    %1202 = vrot.lane.b32.xlu0 %v449, 4
    %v1203 = vpop.permute.xlu0 %1202
    %1204 = vrot.lane.b32.xlu0 %v450, 4
    %v1205 = vpop.permute.xlu0 %1204
    %1206 = vrot.lane.b32.xlu0 %v451, 4
    %v1207 = vpop.permute.xlu0 %1206
    %1208 = vrot.lane.b32.xlu0 %v452, 4
    %v1209 = vpop.permute.xlu0 %1208
    %1210 = vrot.lane.b32.xlu0 %v453, 4
    %v1211 = vpop.permute.xlu0 %1210
    %1212 = vrot.lane.b32.xlu0 %v454, 4
    %v1213 = vpop.permute.xlu0 %1212
    %1214 = vrot.lane.b32.xlu0 %v455, 4
    %v1215 = vpop.permute.xlu0 %1214
    %1216 = vrot.lane.b32.xlu0 %v456, 4
    %v1217 = vpop.permute.xlu0 %1216
    %1218 = vrot.lane.b32.xlu0 %v457, 4
    %v1219 = vpop.permute.xlu0 %1218
    %1220 = vrot.lane.b32.xlu0 %v458, 4
    %v1221 = vpop.permute.xlu0 %1220
    %1222 = vrot.lane.b32.xlu0 %v459, 4
    %v1223 = vpop.permute.xlu0 %1222
    %1224 = vrot.lane.b32.xlu0 %v460, 4
    %v1225 = vpop.permute.xlu0 %1224
    %1226 = vrot.lane.b32.xlu0 %v461, 4
    %v1227 = vpop.permute.xlu0 %1226
    %1228 = vrot.lane.b32.xlu0 %v462, 4
    %v1229 = vpop.permute.xlu0 %1228
    %1230 = vrot.lane.b32.xlu0 %v463, 4
    %v1231 = vpop.permute.xlu0 %1230
    %1232 = vrot.lane.b32.xlu0 %v464, 4
    %v1233 = vpop.permute.xlu0 %1232
    %1266 = vrot.lane.b32.xlu0 %v529, 8
    %v1267 = vpop.permute.xlu0 %1266
    %1268 = vrot.lane.b32.xlu0 %v530, 8
    %v1269 = vpop.permute.xlu0 %1268
    %1270 = vrot.lane.b32.xlu0 %v531, 8
    %v1271 = vpop.permute.xlu0 %1270
    %1272 = vrot.lane.b32.xlu0 %v532, 8
    %v1273 = vpop.permute.xlu0 %1272
    %1274 = vrot.lane.b32.xlu0 %v533, 8
    %v1275 = vpop.permute.xlu0 %1274
    %1276 = vrot.lane.b32.xlu0 %v534, 8
    %v1277 = vpop.permute.xlu0 %1276
    %1278 = vrot.lane.b32.xlu0 %v535, 8
    %v1279 = vpop.permute.xlu0 %1278
    %1280 = vrot.lane.b32.xlu0 %v536, 8
    %v1281 = vpop.permute.xlu0 %1280
    %1282 = vrot.lane.b32.xlu0 %v537, 8
    %v1283 = vpop.permute.xlu0 %1282
    %1284 = vrot.lane.b32.xlu0 %v538, 8
    %v1285 = vpop.permute.xlu0 %1284
    %1286 = vrot.lane.b32.xlu0 %v539, 8
    %v1287 = vpop.permute.xlu0 %1286
    %1288 = vrot.lane.b32.xlu0 %v540, 8
    %v1289 = vpop.permute.xlu0 %1288
    %1290 = vrot.lane.b32.xlu0 %v541, 8
    %v1291 = vpop.permute.xlu0 %1290
    %1292 = vrot.lane.b32.xlu0 %v542, 8
    %v1293 = vpop.permute.xlu0 %1292
    %1294 = vrot.lane.b32.xlu0 %v543, 8
    %v1295 = vpop.permute.xlu0 %1294
    %1296 = vrot.lane.b32.xlu0 %v544, 8
    %v1297 = vpop.permute.xlu0 %1296
    %1298 = vrot.lane.b32.xlu0 %v545, 8
    %v1299 = vpop.permute.xlu0 %1298
    %1300 = vrot.lane.b32.xlu0 %v546, 8
    %v1301 = vpop.permute.xlu0 %1300
    %1302 = vrot.lane.b32.xlu0 %v547, 8
    %v1303 = vpop.permute.xlu0 %1302
    %1304 = vrot.lane.b32.xlu0 %v548, 8
    %v1305 = vpop.permute.xlu0 %1304
    %1306 = vrot.lane.b32.xlu0 %v549, 8
    %v1307 = vpop.permute.xlu0 %1306
    %1308 = vrot.lane.b32.xlu0 %v550, 8
    %v1309 = vpop.permute.xlu0 %1308
    %1310 = vrot.lane.b32.xlu0 %v551, 8
    %v1311 = vpop.permute.xlu0 %1310
    %1312 = vrot.lane.b32.xlu0 %v552, 8
    %v1313 = vpop.permute.xlu0 %1312
    %1314 = vrot.lane.b32.xlu0 %v553, 8
    %v1315 = vpop.permute.xlu0 %1314
    %1316 = vrot.lane.b32.xlu0 %v554, 8
    %v1317 = vpop.permute.xlu0 %1316
    %1318 = vrot.lane.b32.xlu0 %v555, 8
    %v1319 = vpop.permute.xlu0 %1318
    %1320 = vrot.lane.b32.xlu0 %v556, 8
    %v1321 = vpop.permute.xlu0 %1320
    %1322 = vrot.lane.b32.xlu0 %v557, 8
    %v1323 = vpop.permute.xlu0 %1322
    %1324 = vrot.lane.b32.xlu0 %v558, 8
    %v1325 = vpop.permute.xlu0 %1324
    %1326 = vrot.lane.b32.xlu0 %v559, 8
    %v1327 = vpop.permute.xlu0 %1326
    %1328 = vrot.lane.b32.xlu0 %v560, 8
    %v1329 = vpop.permute.xlu0 %1328
    %1362 = vrot.lane.b32.xlu0 %v625, 12
    %v1363 = vpop.permute.xlu0 %1362
    %1364 = vrot.lane.b32.xlu0 %v626, 12
    %v1365 = vpop.permute.xlu0 %1364
    %1366 = vrot.lane.b32.xlu0 %v627, 12
    %v1367 = vpop.permute.xlu0 %1366
    %1368 = vrot.lane.b32.xlu0 %v628, 12
    %v1369 = vpop.permute.xlu0 %1368
    %1370 = vrot.lane.b32.xlu0 %v629, 12
    %v1371 = vpop.permute.xlu0 %1370
    %1372 = vrot.lane.b32.xlu0 %v630, 12
    %v1373 = vpop.permute.xlu0 %1372
    %1374 = vrot.lane.b32.xlu0 %v631, 12
    %v1375 = vpop.permute.xlu0 %1374
    %1376 = vrot.lane.b32.xlu0 %v632, 12
    %v1377 = vpop.permute.xlu0 %1376
    %1378 = vrot.lane.b32.xlu0 %v633, 12
    %v1379 = vpop.permute.xlu0 %1378
    %1380 = vrot.lane.b32.xlu0 %v634, 12
    %v1381 = vpop.permute.xlu0 %1380
    %1382 = vrot.lane.b32.xlu0 %v635, 12
    %v1383 = vpop.permute.xlu0 %1382
    %1384 = vrot.lane.b32.xlu0 %v636, 12
    %v1385 = vpop.permute.xlu0 %1384
    %1386 = vrot.lane.b32.xlu0 %v637, 12
    %v1387 = vpop.permute.xlu0 %1386
    %1388 = vrot.lane.b32.xlu0 %v638, 12
    %v1389 = vpop.permute.xlu0 %1388
    %1390 = vrot.lane.b32.xlu0 %v639, 12
    %v1391 = vpop.permute.xlu0 %1390
    %1392 = vrot.lane.b32.xlu0 %v640, 12
    %v1393 = vpop.permute.xlu0 %1392
    %1394 = vrot.lane.b32.xlu0 %v641, 12
    %v1395 = vpop.permute.xlu0 %1394
    %1396 = vrot.lane.b32.xlu0 %v642, 12
    %v1397 = vpop.permute.xlu0 %1396
    %1398 = vrot.lane.b32.xlu0 %v643, 12
    %v1399 = vpop.permute.xlu0 %1398
    %1400 = vrot.lane.b32.xlu0 %v644, 12
    %v1401 = vpop.permute.xlu0 %1400
    %1402 = vrot.lane.b32.xlu0 %v645, 12
    %v1403 = vpop.permute.xlu0 %1402
    %1404 = vrot.lane.b32.xlu0 %v646, 12
    %v1405 = vpop.permute.xlu0 %1404
    %1406 = vrot.lane.b32.xlu0 %v647, 12
    %v1407 = vpop.permute.xlu0 %1406
    %1408 = vrot.lane.b32.xlu0 %v648, 12
    %v1409 = vpop.permute.xlu0 %1408
    %1410 = vrot.lane.b32.xlu0 %v649, 12
    %v1411 = vpop.permute.xlu0 %1410
    %1412 = vrot.lane.b32.xlu0 %v650, 12
    %v1413 = vpop.permute.xlu0 %1412
    %1414 = vrot.lane.b32.xlu0 %v651, 12
    %v1415 = vpop.permute.xlu0 %1414
    %1416 = vrot.lane.b32.xlu0 %v652, 12
    %v1417 = vpop.permute.xlu0 %1416
    %1418 = vrot.lane.b32.xlu0 %v653, 12
    %v1419 = vpop.permute.xlu0 %1418
    %1420 = vrot.lane.b32.xlu0 %v654, 12
    %v1421 = vpop.permute.xlu0 %1420
    %1422 = vrot.lane.b32.xlu0 %v655, 12
    %v1423 = vpop.permute.xlu0 %1422
    %1424 = vrot.lane.b32.xlu0 %v656, 12
    %v1425 = vpop.permute.xlu0 %1424
    %1458 = vrot.lane.b32.xlu0 %v721, 16
    %v1459 = vpop.permute.xlu0 %1458
    %1460 = vrot.lane.b32.xlu0 %v722, 16
    %v1461 = vpop.permute.xlu0 %1460
    %1462 = vrot.lane.b32.xlu0 %v723, 16
    %v1463 = vpop.permute.xlu0 %1462
    %1464 = vrot.lane.b32.xlu0 %v724, 16
    %v1465 = vpop.permute.xlu0 %1464
    %1466 = vrot.lane.b32.xlu0 %v725, 16
    %v1467 = vpop.permute.xlu0 %1466
    %1468 = vrot.lane.b32.xlu0 %v726, 16
    %v1469 = vpop.permute.xlu0 %1468
    %1470 = vrot.lane.b32.xlu0 %v727, 16
    %v1471 = vpop.permute.xlu0 %1470
    %1472 = vrot.lane.b32.xlu0 %v728, 16
    %v1473 = vpop.permute.xlu0 %1472
    %1474 = vrot.lane.b32.xlu0 %v729, 16
    %v1475 = vpop.permute.xlu0 %1474
    %1476 = vrot.lane.b32.xlu0 %v730, 16
    %v1477 = vpop.permute.xlu0 %1476
    %1478 = vrot.lane.b32.xlu0 %v731, 16
    %v1479 = vpop.permute.xlu0 %1478
    %1480 = vrot.lane.b32.xlu0 %v732, 16
    %v1481 = vpop.permute.xlu0 %1480
    %1482 = vrot.lane.b32.xlu0 %v733, 16
    %v1483 = vpop.permute.xlu0 %1482
    %1484 = vrot.lane.b32.xlu0 %v734, 16
    %v1485 = vpop.permute.xlu0 %1484
    %1486 = vrot.lane.b32.xlu0 %v735, 16
    %v1487 = vpop.permute.xlu0 %1486
    %1488 = vrot.lane.b32.xlu0 %v736, 16
    %v1489 = vpop.permute.xlu0 %1488
    %1490 = vrot.lane.b32.xlu0 %v737, 16
    %v1491 = vpop.permute.xlu0 %1490
    %1492 = vrot.lane.b32.xlu0 %v738, 16
    %v1493 = vpop.permute.xlu0 %1492
    %1494 = vrot.lane.b32.xlu0 %v739, 16
    %v1495 = vpop.permute.xlu0 %1494
    %1496 = vrot.lane.b32.xlu0 %v740, 16
    %v1497 = vpop.permute.xlu0 %1496
    %1498 = vrot.lane.b32.xlu0 %v741, 16
    %v1499 = vpop.permute.xlu0 %1498
    %1500 = vrot.lane.b32.xlu0 %v742, 16
    %v1501 = vpop.permute.xlu0 %1500
    %1502 = vrot.lane.b32.xlu0 %v743, 16
    %v1503 = vpop.permute.xlu0 %1502
    %1504 = vrot.lane.b32.xlu0 %v744, 16
    %v1505 = vpop.permute.xlu0 %1504
    %1506 = vrot.lane.b32.xlu0 %v745, 16
    %v1507 = vpop.permute.xlu0 %1506
    %1508 = vrot.lane.b32.xlu0 %v746, 16
    %v1509 = vpop.permute.xlu0 %1508
    %1510 = vrot.lane.b32.xlu0 %v747, 16
    %v1511 = vpop.permute.xlu0 %1510
    %1512 = vrot.lane.b32.xlu0 %v748, 16
    %v1513 = vpop.permute.xlu0 %1512
    %1514 = vrot.lane.b32.xlu0 %v749, 16
    %v1515 = vpop.permute.xlu0 %1514
    %1516 = vrot.lane.b32.xlu0 %v750, 16
    %v1517 = vpop.permute.xlu0 %1516
    %1518 = vrot.lane.b32.xlu0 %v751, 16
    %v1519 = vpop.permute.xlu0 %1518
    %1520 = vrot.lane.b32.xlu0 %v752, 16
    %v1521 = vpop.permute.xlu0 %1520
    %1554 = vrot.lane.b32.xlu0 %v817, 20
    %v1555 = vpop.permute.xlu0 %1554
    %1556 = vrot.lane.b32.xlu0 %v818, 20
    %v1557 = vpop.permute.xlu0 %1556
    %1558 = vrot.lane.b32.xlu0 %v819, 20
    %v1559 = vpop.permute.xlu0 %1558
    %1560 = vrot.lane.b32.xlu0 %v820, 20
    %v1561 = vpop.permute.xlu0 %1560
    %1562 = vrot.lane.b32.xlu0 %v821, 20
    %v1563 = vpop.permute.xlu0 %1562
    %1564 = vrot.lane.b32.xlu0 %v822, 20
    %v1565 = vpop.permute.xlu0 %1564
    %1566 = vrot.lane.b32.xlu0 %v823, 20
    %v1567 = vpop.permute.xlu0 %1566
    %1568 = vrot.lane.b32.xlu0 %v824, 20
    %v1569 = vpop.permute.xlu0 %1568
    %1570 = vrot.lane.b32.xlu0 %v825, 20
    %v1571 = vpop.permute.xlu0 %1570
    %1572 = vrot.lane.b32.xlu0 %v826, 20
    %v1573 = vpop.permute.xlu0 %1572
    %1574 = vrot.lane.b32.xlu0 %v827, 20
    %v1575 = vpop.permute.xlu0 %1574
    %1576 = vrot.lane.b32.xlu0 %v828, 20
    %v1577 = vpop.permute.xlu0 %1576
    %1578 = vrot.lane.b32.xlu0 %v829, 20
    %v1579 = vpop.permute.xlu0 %1578
    %1580 = vrot.lane.b32.xlu0 %v830, 20
    %v1581 = vpop.permute.xlu0 %1580
    %1582 = vrot.lane.b32.xlu0 %v831, 20
    %v1583 = vpop.permute.xlu0 %1582
    %1584 = vrot.lane.b32.xlu0 %v832, 20
    %v1585 = vpop.permute.xlu0 %1584
    %1586 = vrot.lane.b32.xlu0 %v833, 20
    %v1587 = vpop.permute.xlu0 %1586
    %1588 = vrot.lane.b32.xlu0 %v834, 20
    %v1589 = vpop.permute.xlu0 %1588
    %1590 = vrot.lane.b32.xlu0 %v835, 20
    %v1591 = vpop.permute.xlu0 %1590
    %1592 = vrot.lane.b32.xlu0 %v836, 20
    %v1593 = vpop.permute.xlu0 %1592
    %1594 = vrot.lane.b32.xlu0 %v837, 20
    %v1595 = vpop.permute.xlu0 %1594
    %1596 = vrot.lane.b32.xlu0 %v838, 20
    %v1597 = vpop.permute.xlu0 %1596
    %1598 = vrot.lane.b32.xlu0 %v839, 20
    %v1599 = vpop.permute.xlu0 %1598
    %1600 = vrot.lane.b32.xlu0 %v840, 20
    %v1601 = vpop.permute.xlu0 %1600
    %1602 = vrot.lane.b32.xlu0 %v841, 20
    %v1603 = vpop.permute.xlu0 %1602
    %1604 = vrot.lane.b32.xlu0 %v842, 20
    %v1605 = vpop.permute.xlu0 %1604
    %1606 = vrot.lane.b32.xlu0 %v843, 20
    %v1607 = vpop.permute.xlu0 %1606
    %1608 = vrot.lane.b32.xlu0 %v844, 20
    %v1609 = vpop.permute.xlu0 %1608
    %1610 = vrot.lane.b32.xlu0 %v845, 20
    %v1611 = vpop.permute.xlu0 %1610
    %1612 = vrot.lane.b32.xlu0 %v846, 20
    %v1613 = vpop.permute.xlu0 %1612
    %1614 = vrot.lane.b32.xlu0 %v847, 20
    %v1615 = vpop.permute.xlu0 %1614
    %1616 = vrot.lane.b32.xlu0 %v848, 20
    %v1617 = vpop.permute.xlu0 %1616
    %1650 = vrot.lane.b32.xlu0 %v914, 24
    %v1651 = vpop.permute.xlu0 %1650
    %1652 = vrot.lane.b32.xlu0 %v915, 24
    %v1653 = vpop.permute.xlu0 %1652
    %1654 = vrot.lane.b32.xlu0 %v916, 24
    %v1655 = vpop.permute.xlu0 %1654
    %1656 = vrot.lane.b32.xlu0 %v917, 24
    %v1657 = vpop.permute.xlu0 %1656
    %1658 = vrot.lane.b32.xlu0 %v918, 24
    %v1659 = vpop.permute.xlu0 %1658
    %1660 = vrot.lane.b32.xlu0 %v919, 24
    %v1661 = vpop.permute.xlu0 %1660
    %1662 = vrot.lane.b32.xlu0 %v920, 24
    %v1663 = vpop.permute.xlu0 %1662
    %1664 = vrot.lane.b32.xlu0 %v921, 24
    %v1665 = vpop.permute.xlu0 %1664
    %1666 = vrot.lane.b32.xlu0 %v922, 24
    %v1667 = vpop.permute.xlu0 %1666
    %1668 = vrot.lane.b32.xlu0 %v923, 24
    %v1669 = vpop.permute.xlu0 %1668
    %1670 = vrot.lane.b32.xlu0 %v924, 24
    %v1671 = vpop.permute.xlu0 %1670
    %1672 = vrot.lane.b32.xlu0 %v925, 24
    %v1673 = vpop.permute.xlu0 %1672
    %1674 = vrot.lane.b32.xlu0 %v926, 24
    %v1675 = vpop.permute.xlu0 %1674
    %1676 = vrot.lane.b32.xlu0 %v927, 24
    %v1677 = vpop.permute.xlu0 %1676
    %1678 = vrot.lane.b32.xlu0 %v928, 24
    %v1679 = vpop.permute.xlu0 %1678
    %1680 = vrot.lane.b32.xlu0 %v929, 24
    %v1681 = vpop.permute.xlu0 %1680
    %1682 = vrot.lane.b32.xlu0 %v930, 24
    %v1683 = vpop.permute.xlu0 %1682
    %1684 = vrot.lane.b32.xlu0 %v931, 24
    %v1685 = vpop.permute.xlu0 %1684
    %1686 = vrot.lane.b32.xlu0 %v932, 24
    %v1687 = vpop.permute.xlu0 %1686
    %1688 = vrot.lane.b32.xlu0 %v933, 24
    %v1689 = vpop.permute.xlu0 %1688
    %1690 = vrot.lane.b32.xlu0 %v934, 24
    %v1691 = vpop.permute.xlu0 %1690
    %1692 = vrot.lane.b32.xlu0 %v935, 24
    %v1693 = vpop.permute.xlu0 %1692
    %1694 = vrot.lane.b32.xlu0 %v936, 24
    %v1695 = vpop.permute.xlu0 %1694
    %1696 = vrot.lane.b32.xlu0 %v937, 24
    %v1697 = vpop.permute.xlu0 %1696
    %1698 = vrot.lane.b32.xlu0 %v938, 24
    %v1699 = vpop.permute.xlu0 %1698
    %1700 = vrot.lane.b32.xlu0 %v939, 24
    %v1701 = vpop.permute.xlu0 %1700
    %1702 = vrot.lane.b32.xlu0 %v940, 24
    %v1703 = vpop.permute.xlu0 %1702
    %1704 = vrot.lane.b32.xlu0 %v941, 24
    %v1705 = vpop.permute.xlu0 %1704
    %1706 = vrot.lane.b32.xlu0 %v942, 24
    %v1707 = vpop.permute.xlu0 %1706
    %1708 = vrot.lane.b32.xlu0 %v943, 24
    %v1709 = vpop.permute.xlu0 %1708
    %1710 = vrot.lane.b32.xlu0 %v944, 24
    %v1711 = vpop.permute.xlu0 %1710
    %1712 = vrot.lane.b32.xlu0 %v945, 24
    %v1713 = vpop.permute.xlu0 %1712
    %1746 = vrot.lane.b32.xlu0 %v1010, 28
    %v1747 = vpop.permute.xlu0 %1746
    %1748 = vrot.lane.b32.xlu0 %v1011, 28
    %v1749 = vpop.permute.xlu0 %1748
    %1750 = vrot.lane.b32.xlu0 %v1012, 28
    %v1751 = vpop.permute.xlu0 %1750
    %1752 = vrot.lane.b32.xlu0 %v1013, 28
    %v1753 = vpop.permute.xlu0 %1752
    %1754 = vrot.lane.b32.xlu0 %v1014, 28
    %v1755 = vpop.permute.xlu0 %1754
    %1756 = vrot.lane.b32.xlu0 %v1015, 28
    %v1757 = vpop.permute.xlu0 %1756
    %1758 = vrot.lane.b32.xlu0 %v1016, 28
    %v1759 = vpop.permute.xlu0 %1758
    %1760 = vrot.lane.b32.xlu0 %v1017, 28
    %v1761 = vpop.permute.xlu0 %1760
    %1762 = vrot.lane.b32.xlu0 %v1018, 28
    %v1763 = vpop.permute.xlu0 %1762
    %1764 = vrot.lane.b32.xlu0 %v1019, 28
    %v1765 = vpop.permute.xlu0 %1764
    %1766 = vrot.lane.b32.xlu0 %v1020, 28
    %v1767 = vpop.permute.xlu0 %1766
    %1768 = vrot.lane.b32.xlu0 %v1021, 28
    %v1769 = vpop.permute.xlu0 %1768
    %1770 = vrot.lane.b32.xlu0 %v1022, 28
    %v1771 = vpop.permute.xlu0 %1770
    %1772 = vrot.lane.b32.xlu0 %v1023, 28
    %v1773 = vpop.permute.xlu0 %1772
    %1774 = vrot.lane.b32.xlu0 %v1024, 28
    %v1775 = vpop.permute.xlu0 %1774
    %1776 = vrot.lane.b32.xlu0 %v1025, 28
    %v1777 = vpop.permute.xlu0 %1776
    %1778 = vrot.lane.b32.xlu0 %v1026, 28
    %v1779 = vpop.permute.xlu0 %1778
    %1780 = vrot.lane.b32.xlu0 %v1027, 28
    %v1781 = vpop.permute.xlu0 %1780
    %1782 = vrot.lane.b32.xlu0 %v1028, 28
    %v1783 = vpop.permute.xlu0 %1782
    %1784 = vrot.lane.b32.xlu0 %v1029, 28
    %v1785 = vpop.permute.xlu0 %1784
    %1786 = vrot.lane.b32.xlu0 %v1030, 28
    %v1787 = vpop.permute.xlu0 %1786
    %1788 = vrot.lane.b32.xlu0 %v1031, 28
    %v1789 = vpop.permute.xlu0 %1788
    %1790 = vrot.lane.b32.xlu0 %v1032, 28
    %v1791 = vpop.permute.xlu0 %1790
    %1792 = vrot.lane.b32.xlu0 %v1033, 28
    %v1793 = vpop.permute.xlu0 %1792
    %1794 = vrot.lane.b32.xlu0 %v1034, 28
    %v1795 = vpop.permute.xlu0 %1794
    %1796 = vrot.lane.b32.xlu0 %v1035, 28
    %v1797 = vpop.permute.xlu0 %1796
    %1798 = vrot.lane.b32.xlu0 %v1036, 28
    %v1799 = vpop.permute.xlu0 %1798
    %1800 = vrot.lane.b32.xlu0 %v1037, 28
    %v1801 = vpop.permute.xlu0 %1800
    %1802 = vrot.lane.b32.xlu0 %v1038, 28
    %v1803 = vpop.permute.xlu0 %1802
    %1804 = vrot.lane.b32.xlu0 %v1039, 28
    %v1805 = vpop.permute.xlu0 %1804
    %1806 = vrot.lane.b32.xlu0 %v1040, 28
    %v1807 = vpop.permute.xlu0 %1806
    %1808 = vrot.lane.b32.xlu0 %v1041, 28
    %v1809 = vpop.permute.xlu0 %1808
    %1842 = vrot.lane.b32.xlu0 %v1106, 32
    %v1843 = vpop.permute.xlu0 %1842
    %1844 = vrot.lane.b32.xlu0 %v1107, 32
    %v1845 = vpop.permute.xlu0 %1844
    %1846 = vrot.lane.b32.xlu0 %v1108, 32
    %v1847 = vpop.permute.xlu0 %1846
    %1848 = vrot.lane.b32.xlu0 %v1109, 32
    %v1849 = vpop.permute.xlu0 %1848
    %1850 = vrot.lane.b32.xlu0 %v1110, 32
    %v1851 = vpop.permute.xlu0 %1850
    %1852 = vrot.lane.b32.xlu0 %v1111, 32
    %v1853 = vpop.permute.xlu0 %1852
    %1854 = vrot.lane.b32.xlu0 %v1112, 32
    %v1855 = vpop.permute.xlu0 %1854
    %1856 = vrot.lane.b32.xlu0 %v1113, 32
    %v1857 = vpop.permute.xlu0 %1856
    %1858 = vrot.lane.b32.xlu0 %v1114, 32
    %v1859 = vpop.permute.xlu0 %1858
    %1860 = vrot.lane.b32.xlu0 %v1115, 32
    %v1861 = vpop.permute.xlu0 %1860
    %1862 = vrot.lane.b32.xlu0 %v1116, 32
    %v1863 = vpop.permute.xlu0 %1862
    %1864 = vrot.lane.b32.xlu0 %v1117, 32
    %v1865 = vpop.permute.xlu0 %1864
    %1866 = vrot.lane.b32.xlu0 %v1118, 32
    %v1867 = vpop.permute.xlu0 %1866
    %1868 = vrot.lane.b32.xlu0 %v1119, 32
    %v1869 = vpop.permute.xlu0 %1868
    %1870 = vrot.lane.b32.xlu0 %v1120, 32
    %v1871 = vpop.permute.xlu0 %1870
    %1872 = vrot.lane.b32.xlu0 %v1121, 32
    %v1873 = vpop.permute.xlu0 %1872
    %1874 = vrot.lane.b32.xlu0 %v1122, 32
    %v1875 = vpop.permute.xlu0 %1874
    %1876 = vrot.lane.b32.xlu0 %v1123, 32
    %v1877 = vpop.permute.xlu0 %1876
    %1878 = vrot.lane.b32.xlu0 %v1124, 32
    %v1879 = vpop.permute.xlu0 %1878
    %1880 = vrot.lane.b32.xlu0 %v1125, 32
    %v1881 = vpop.permute.xlu0 %1880
    %1882 = vrot.lane.b32.xlu0 %v1126, 32
    %v1883 = vpop.permute.xlu0 %1882
    %1884 = vrot.lane.b32.xlu0 %v1127, 32
    %v1885 = vpop.permute.xlu0 %1884
    %1886 = vrot.lane.b32.xlu0 %v1128, 32
    %v1887 = vpop.permute.xlu0 %1886
    %1888 = vrot.lane.b32.xlu0 %v1129, 32
    %v1889 = vpop.permute.xlu0 %1888
    %1890 = vrot.lane.b32.xlu0 %v1130, 32
    %v1891 = vpop.permute.xlu0 %1890
    %1892 = vrot.lane.b32.xlu0 %v1131, 32
    %v1893 = vpop.permute.xlu0 %1892
    %1894 = vrot.lane.b32.xlu0 %v1132, 32
    %v1895 = vpop.permute.xlu0 %1894
    %1896 = vrot.lane.b32.xlu0 %v1133, 32
    %v1897 = vpop.permute.xlu0 %1896
    %1898 = vrot.lane.b32.xlu0 %v1134, 32
    %v1899 = vpop.permute.xlu0 %1898
    %1900 = vrot.lane.b32.xlu0 %v1135, 32
    %v1901 = vpop.permute.xlu0 %1900
    %1902 = vrot.lane.b32.xlu0 %v1136, 32
    %v1903 = vpop.permute.xlu0 %1902
    %1904 = vrot.lane.b32.xlu0 %v1137, 32
    %v1905 = vpop.permute.xlu0 %1904
    %v1908 = vsel %vm128, %v337, %v1171
    %v1911 = vsel %vm128, %v338, %v1173
    %v1914 = vsel %vm128, %v339, %v1175
    %v1917 = vsel %vm128, %v340, %v1177
    %v1920 = vsel %vm128, %v341, %v1179
    %v1923 = vsel %vm128, %v342, %v1181
    %v1926 = vsel %vm128, %v343, %v1183
    %v1929 = vsel %vm128, %v344, %v1185
    %v1932 = vsel %vm128, %v345, %v1187
    %v1935 = vsel %vm128, %v346, %v1189
    %v1938 = vsel %vm128, %v347, %v1191
    %v1941 = vsel %vm128, %v348, %v1193
    %v1944 = vsel %vm128, %v349, %v1195
    %v1947 = vsel %vm128, %v350, %v1197
    %v1950 = vsel %vm128, %v351, %v1199
    %v1953 = vsel %vm128, %v352, %v1201
    %v1956 = vsel %vm128, %v353, %v1203
    %v1959 = vsel %vm128, %v354, %v1205
    %v1962 = vsel %vm128, %v355, %v1207
    %v1965 = vsel %vm128, %v356, %v1209
    %v1968 = vsel %vm128, %v357, %v1211
    %v1971 = vsel %vm128, %v358, %v1213
    %v1974 = vsel %vm128, %v359, %v1215
    %v1977 = vsel %vm128, %v360, %v1217
    %v1980 = vsel %vm128, %v361, %v1219
    %v1983 = vsel %vm128, %v362, %v1221
    %v1986 = vsel %vm128, %v363, %v1223
    %v1989 = vsel %vm128, %v364, %v1225
    %v1992 = vsel %vm128, %v365, %v1227
    %v1995 = vsel %vm128, %v366, %v1229
    %v1998 = vsel %vm128, %v367, %v1231
    %v2001 = vsel %vm128, %v368, %v1233
    %vm2002 = vcmask 64512
    %v2004 = vsel %vm2002, %v1908, %v1267
    %v2006 = vsel %vm2002, %v1911, %v1269
    %v2008 = vsel %vm2002, %v1914, %v1271
    %v2010 = vsel %vm2002, %v1917, %v1273
    %v2012 = vsel %vm2002, %v1920, %v1275
    %v2014 = vsel %vm2002, %v1923, %v1277
    %v2016 = vsel %vm2002, %v1926, %v1279
    %v2018 = vsel %vm2002, %v1929, %v1281
    %v2020 = vsel %vm2002, %v1932, %v1283
    %v2022 = vsel %vm2002, %v1935, %v1285
    %v2024 = vsel %vm2002, %v1938, %v1287
    %v2026 = vsel %vm2002, %v1941, %v1289
    %v2028 = vsel %vm2002, %v1944, %v1291
    %v2030 = vsel %vm2002, %v1947, %v1293
    %v2032 = vsel %vm2002, %v1950, %v1295
    %v2034 = vsel %vm2002, %v1953, %v1297
    %v2036 = vsel %vm2002, %v1956, %v1299
    %v2038 = vsel %vm2002, %v1959, %v1301
    %v2040 = vsel %vm2002, %v1962, %v1303
    %v2042 = vsel %vm2002, %v1965, %v1305
    %v2044 = vsel %vm2002, %v1968, %v1307
    %v2046 = vsel %vm2002, %v1971, %v1309
    %v2048 = vsel %vm2002, %v1974, %v1311
    %v2050 = vsel %vm2002, %v1977, %v1313
    %v2052 = vsel %vm2002, %v1980, %v1315
    %v2054 = vsel %vm2002, %v1983, %v1317
    %v2056 = vsel %vm2002, %v1986, %v1319
    %v2058 = vsel %vm2002, %v1989, %v1321
    %v2060 = vsel %vm2002, %v1992, %v1323
    %v2062 = vsel %vm2002, %v1995, %v1325
    %v2064 = vsel %vm2002, %v1998, %v1327
    %v2066 = vsel %vm2002, %v2001, %v1329
    %vm2067 = vcmask 97280
    %v2069 = vsel %vm2067, %v2004, %v1363
    %v2071 = vsel %vm2067, %v2006, %v1365
    %v2073 = vsel %vm2067, %v2008, %v1367
    %v2075 = vsel %vm2067, %v2010, %v1369
    %v2077 = vsel %vm2067, %v2012, %v1371
    %v2079 = vsel %vm2067, %v2014, %v1373
    %v2081 = vsel %vm2067, %v2016, %v1375
    %v2083 = vsel %vm2067, %v2018, %v1377
    %v2085 = vsel %vm2067, %v2020, %v1379
    %v2087 = vsel %vm2067, %v2022, %v1381
    %v2089 = vsel %vm2067, %v2024, %v1383
    %v2091 = vsel %vm2067, %v2026, %v1385
    %v2093 = vsel %vm2067, %v2028, %v1387
    %v2095 = vsel %vm2067, %v2030, %v1389
    %v2097 = vsel %vm2067, %v2032, %v1391
    %v2099 = vsel %vm2067, %v2034, %v1393
    %v2101 = vsel %vm2067, %v2036, %v1395
    %v2103 = vsel %vm2067, %v2038, %v1397
    %v2105 = vsel %vm2067, %v2040, %v1399
    %v2107 = vsel %vm2067, %v2042, %v1401
    %v2109 = vsel %vm2067, %v2044, %v1403
    %v2111 = vsel %vm2067, %v2046, %v1405
    %v2113 = vsel %vm2067, %v2048, %v1407
    %v2115 = vsel %vm2067, %v2050, %v1409
    %v2117 = vsel %vm2067, %v2052, %v1411
    %v2119 = vsel %vm2067, %v2054, %v1413
    %v2121 = vsel %vm2067, %v2056, %v1415
    %v2123 = vsel %vm2067, %v2058, %v1417
    %v2125 = vsel %vm2067, %v2060, %v1419
    %v2127 = vsel %vm2067, %v2062, %v1421
    %v2129 = vsel %vm2067, %v2064, %v1423
    %v2131 = vsel %vm2067, %v2066, %v1425
    %vm2132 = vcmask 130048
    %v2134 = vsel %vm2132, %v2069, %v1459
    %v2136 = vsel %vm2132, %v2071, %v1461
    %v2138 = vsel %vm2132, %v2073, %v1463
    %v2140 = vsel %vm2132, %v2075, %v1465
    %v2142 = vsel %vm2132, %v2077, %v1467
    %v2144 = vsel %vm2132, %v2079, %v1469
    %v2146 = vsel %vm2132, %v2081, %v1471
    %v2148 = vsel %vm2132, %v2083, %v1473
    %v2150 = vsel %vm2132, %v2085, %v1475
    %v2152 = vsel %vm2132, %v2087, %v1477
    %v2154 = vsel %vm2132, %v2089, %v1479
    %v2156 = vsel %vm2132, %v2091, %v1481
    %v2158 = vsel %vm2132, %v2093, %v1483
    %v2160 = vsel %vm2132, %v2095, %v1485
    %v2162 = vsel %vm2132, %v2097, %v1487
    %v2164 = vsel %vm2132, %v2099, %v1489
    %v2166 = vsel %vm2132, %v2101, %v1491
    %v2168 = vsel %vm2132, %v2103, %v1493
    %v2170 = vsel %vm2132, %v2105, %v1495
    %v2172 = vsel %vm2132, %v2107, %v1497
    %v2174 = vsel %vm2132, %v2109, %v1499
    %v2176 = vsel %vm2132, %v2111, %v1501
    %v2178 = vsel %vm2132, %v2113, %v1503
    %v2180 = vsel %vm2132, %v2115, %v1505
    %v2182 = vsel %vm2132, %v2117, %v1507
    %v2184 = vsel %vm2132, %v2119, %v1509
    %v2186 = vsel %vm2132, %v2121, %v1511
    %v2188 = vsel %vm2132, %v2123, %v1513
    %v2190 = vsel %vm2132, %v2125, %v1515
    %v2192 = vsel %vm2132, %v2127, %v1517
    %v2194 = vsel %vm2132, %v2129, %v1519
    %v2196 = vsel %vm2132, %v2131, %v1521
    %vm2197 = vcmask 162816
    %v2199 = vsel %vm2197, %v2134, %v1555
    %v2201 = vsel %vm2197, %v2136, %v1557
    %v2203 = vsel %vm2197, %v2138, %v1559
    %v2205 = vsel %vm2197, %v2140, %v1561
    %v2207 = vsel %vm2197, %v2142, %v1563
    %v2209 = vsel %vm2197, %v2144, %v1565
    %v2211 = vsel %vm2197, %v2146, %v1567
    %v2213 = vsel %vm2197, %v2148, %v1569
    %v2215 = vsel %vm2197, %v2150, %v1571
    %v2217 = vsel %vm2197, %v2152, %v1573
    %v2219 = vsel %vm2197, %v2154, %v1575
    %v2221 = vsel %vm2197, %v2156, %v1577
    %v2223 = vsel %vm2197, %v2158, %v1579
    %v2225 = vsel %vm2197, %v2160, %v1581
    %v2227 = vsel %vm2197, %v2162, %v1583
    %v2229 = vsel %vm2197, %v2164, %v1585
    %v2231 = vsel %vm2197, %v2166, %v1587
    %v2233 = vsel %vm2197, %v2168, %v1589
    %v2235 = vsel %vm2197, %v2170, %v1591
    %v2237 = vsel %vm2197, %v2172, %v1593
    %v2239 = vsel %vm2197, %v2174, %v1595
    %v2241 = vsel %vm2197, %v2176, %v1597
    %v2243 = vsel %vm2197, %v2178, %v1599
    %v2245 = vsel %vm2197, %v2180, %v1601
    %v2247 = vsel %vm2197, %v2182, %v1603
    %v2249 = vsel %vm2197, %v2184, %v1605
    %v2251 = vsel %vm2197, %v2186, %v1607
    %v2253 = vsel %vm2197, %v2188, %v1609
    %v2255 = vsel %vm2197, %v2190, %v1611
    %v2257 = vsel %vm2197, %v2192, %v1613
    %v2259 = vsel %vm2197, %v2194, %v1615
    %v2261 = vsel %vm2197, %v2196, %v1617
    %vm2262 = vcmask 195584
    %v2264 = vsel %vm2262, %v2199, %v1651
    %v2266 = vsel %vm2262, %v2201, %v1653
    %v2268 = vsel %vm2262, %v2203, %v1655
    %v2270 = vsel %vm2262, %v2205, %v1657
    %v2272 = vsel %vm2262, %v2207, %v1659
    %v2274 = vsel %vm2262, %v2209, %v1661
    %v2276 = vsel %vm2262, %v2211, %v1663
    %v2278 = vsel %vm2262, %v2213, %v1665
    %v2280 = vsel %vm2262, %v2215, %v1667
    %v2282 = vsel %vm2262, %v2217, %v1669
    %v2284 = vsel %vm2262, %v2219, %v1671
    %v2286 = vsel %vm2262, %v2221, %v1673
    %v2288 = vsel %vm2262, %v2223, %v1675
    %v2290 = vsel %vm2262, %v2225, %v1677
    %v2292 = vsel %vm2262, %v2227, %v1679
    %v2294 = vsel %vm2262, %v2229, %v1681
    %v2296 = vsel %vm2262, %v2231, %v1683
    %v2298 = vsel %vm2262, %v2233, %v1685
    %v2300 = vsel %vm2262, %v2235, %v1687
    %v2302 = vsel %vm2262, %v2237, %v1689
    %v2304 = vsel %vm2262, %v2239, %v1691
    %v2306 = vsel %vm2262, %v2241, %v1693
    %v2308 = vsel %vm2262, %v2243, %v1695
    %v2310 = vsel %vm2262, %v2245, %v1697
    %v2312 = vsel %vm2262, %v2247, %v1699
    %v2314 = vsel %vm2262, %v2249, %v1701
    %v2316 = vsel %vm2262, %v2251, %v1703
    %v2318 = vsel %vm2262, %v2253, %v1705
    %v2320 = vsel %vm2262, %v2255, %v1707
    %v2322 = vsel %vm2262, %v2257, %v1709
    %v2324 = vsel %vm2262, %v2259, %v1711
    %v2326 = vsel %vm2262, %v2261, %v1713
    %vm2327 = vcmask 228352
    %v2329 = vsel %vm2327, %v2264, %v1747
    %v2331 = vsel %vm2327, %v2266, %v1749
    %v2333 = vsel %vm2327, %v2268, %v1751
    %v2335 = vsel %vm2327, %v2270, %v1753
    %v2337 = vsel %vm2327, %v2272, %v1755
    %v2339 = vsel %vm2327, %v2274, %v1757
    %v2341 = vsel %vm2327, %v2276, %v1759
    %v2343 = vsel %vm2327, %v2278, %v1761
    %v2345 = vsel %vm2327, %v2280, %v1763
    %v2347 = vsel %vm2327, %v2282, %v1765
    %v2349 = vsel %vm2327, %v2284, %v1767
    %v2351 = vsel %vm2327, %v2286, %v1769
    %v2353 = vsel %vm2327, %v2288, %v1771
    %v2355 = vsel %vm2327, %v2290, %v1773
    %v2357 = vsel %vm2327, %v2292, %v1775
    %v2359 = vsel %vm2327, %v2294, %v1777
    %v2361 = vsel %vm2327, %v2296, %v1779
    %v2363 = vsel %vm2327, %v2298, %v1781
    %v2365 = vsel %vm2327, %v2300, %v1783
    %v2367 = vsel %vm2327, %v2302, %v1785
    %v2369 = vsel %vm2327, %v2304, %v1787
    %v2371 = vsel %vm2327, %v2306, %v1789
    %v2373 = vsel %vm2327, %v2308, %v1791
    %v2375 = vsel %vm2327, %v2310, %v1793
    %v2377 = vsel %vm2327, %v2312, %v1795
    %v2379 = vsel %vm2327, %v2314, %v1797
    %v2381 = vsel %vm2327, %v2316, %v1799
    %v2383 = vsel %vm2327, %v2318, %v1801
    %v2385 = vsel %vm2327, %v2320, %v1803
    %v2387 = vsel %vm2327, %v2322, %v1805
    %v2389 = vsel %vm2327, %v2324, %v1807
    %v2391 = vsel %vm2327, %v2326, %v1809
    %vm2392 = vcmask 261120
    %v2394 = vsel %vm2392, %v2329, %v1843
    %v2396 = vsel %vm2392, %v2331, %v1845
    %v2398 = vsel %vm2392, %v2333, %v1847
    %v2400 = vsel %vm2392, %v2335, %v1849
    %v2402 = vsel %vm2392, %v2337, %v1851
    %v2404 = vsel %vm2392, %v2339, %v1853
    %v2406 = vsel %vm2392, %v2341, %v1855
    %v2408 = vsel %vm2392, %v2343, %v1857
    %v2410 = vsel %vm2392, %v2345, %v1859
    %v2412 = vsel %vm2392, %v2347, %v1861
    %v2414 = vsel %vm2392, %v2349, %v1863
    %v2416 = vsel %vm2392, %v2351, %v1865
    %v2418 = vsel %vm2392, %v2353, %v1867
    %v2420 = vsel %vm2392, %v2355, %v1869
    %v2422 = vsel %vm2392, %v2357, %v1871
    %v2424 = vsel %vm2392, %v2359, %v1873
    %v2426 = vsel %vm2392, %v2361, %v1875
    %v2428 = vsel %vm2392, %v2363, %v1877
    %v2430 = vsel %vm2392, %v2365, %v1879
    %v2432 = vsel %vm2392, %v2367, %v1881
    %v2434 = vsel %vm2392, %v2369, %v1883
    %v2436 = vsel %vm2392, %v2371, %v1885
    %v2438 = vsel %vm2392, %v2373, %v1887
    %v2440 = vsel %vm2392, %v2375, %v1889
    %v2442 = vsel %vm2392, %v2377, %v1891
    %v2444 = vsel %vm2392, %v2379, %v1893
    %v2446 = vsel %vm2392, %v2381, %v1895
    %v2448 = vsel %vm2392, %v2383, %v1897
    %v2450 = vsel %vm2392, %v2385, %v1899
    %v2452 = vsel %vm2392, %v2387, %v1901
    %v2454 = vsel %vm2392, %v2389, %v1903
    %v2456 = vsel %vm2392, %v2391, %v1905
    %v2457 = vld [vmem:[%s1] sm:$0xf]
    %v2458 = vld [vmem:[%s1 + $0x4] sm:$0xf]
    %v2459 = vld [vmem:[%s1 + $0x8] sm:$0xf]
    %v2460 = vld [vmem:[%s1 + $0xc] sm:$0xf]
    %v2461 = vld [vmem:[%s1 + $0x10] sm:$0x3]
    %v2462 = vld [vmem:[%s2] sm:$0x1]
    %v2464 = vlaneseq
    %v2465 = vshrl.u32 %v2464, 7
    %v2466 = vsub.s32 0, %v2465
    %v2467 = vrot.slane %v2462, %v2466
    %v2474 = vunpack.c.l.b16 %v2457
    %v2475 = vunpack.c.l.b16 %v2458
    %v2476 = vunpack.c.l.b16 %v2459
    %v2477 = vunpack.c.l.b16 %v2460
    %v2478 = vunpack.c.l.b16 %v2461
    %v2479 = vpack.c.b16 %v2475, %v2474
    %v2480 = vpack.c.b16 %v2477, %v2476
    %v2481 = vpack.c.b16 %v2478, %v2478
    %vm2484 = vcmask 293888
    %v2485 = vsel %vm2484, %v2394, 0
    %v2487 = vsel %vm2484, %v2396, 0
    %v2489 = vsel %vm2484, %v2398, 0
    %v2491 = vsel %vm2484, %v2400, 0
    %v2493 = vsel %vm2484, %v2402, 0
    %v2495 = vsel %vm2484, %v2404, 0
    %v2497 = vsel %vm2484, %v2406, 0
    %v2499 = vsel %vm2484, %v2408, 0
    %v2501 = vsel %vm2484, %v2410, 0
    %v2503 = vsel %vm2484, %v2412, 0
    %v2505 = vsel %vm2484, %v2414, 0
    %v2507 = vsel %vm2484, %v2416, 0
    %v2509 = vsel %vm2484, %v2418, 0
    %v2511 = vsel %vm2484, %v2420, 0
    %v2513 = vsel %vm2484, %v2422, 0
    %v2515 = vsel %vm2484, %v2424, 0
    %v2517 = vsel %vm2484, %v2426, 0
    %v2519 = vsel %vm2484, %v2428, 0
    %v2521 = vsel %vm2484, %v2430, 0
    %v2523 = vsel %vm2484, %v2432, 0
    %v2525 = vsel %vm2484, %v2434, 0
    %v2527 = vsel %vm2484, %v2436, 0
    %v2529 = vsel %vm2484, %v2438, 0
    %v2531 = vsel %vm2484, %v2440, 0
    %v2533 = vsel %vm2484, %v2442, 0
    %v2535 = vsel %vm2484, %v2444, 0
    %v2537 = vsel %vm2484, %v2446, 0
    %v2539 = vsel %vm2484, %v2448, 0
    %v2541 = vsel %vm2484, %v2450, 0
    %v2543 = vsel %vm2484, %v2452, 0
    %v2545 = vsel %vm2484, %v2454, 0
    %v2547 = vsel %vm2484, %v2456, 0
    %vm2549 = vcmask 1041408
    %v2551 = vsel %vm2549, %v2481, 0
    %2553 = vmatprep.subr.bf16.mxu0 0
    %2554 = vmatpush1.bf16.msra.mxu0 %v2479
    %2555 = vmatprep.subr.bf16.mxu0 0
    %2556 = vmatpush1.bf16.msra.mxu0 %v2480
    %2557 = vmatprep.subr.bf16.mxu0 0
    %2558 = vmatpush1.bf16.msra.mxu0 %v2551
    %2559 = vmatprep.subr.bf16.mxu0 0
    %2560 = vmatpush1.bf16.msra.mxu0 0
    %2561 = vmatprep.subr.bf16.mxu0 0
    %2562 = vmatpush1.bf16.msra.mxu0 0
    %2563 = vmatprep.subr.bf16.mxu0 0
    %2564 = vmatpush1.bf16.msra.mxu0 0
    %2565 = vmatprep.subr.bf16.mxu0 0
    %2566 = vmatpush1.bf16.msra.mxu0 0
    %2567 = vmatprep.subr.bf16.mxu0 0
    %2568 = vmatpush1.bf16.msra.mxu0 0
    %2569 = vmatprep.subr.bf16.mxu0 0
    %2570 = vmatpush1.bf16.msra.mxu0 0
    %2571 = vmatprep.subr.bf16.mxu0 0
    %2572 = vmatpush1.bf16.msra.mxu0 0
    %2573 = vmatprep.subr.bf16.mxu0 0
    %2574 = vmatpush1.bf16.msra.mxu0 0
    %2575 = vmatprep.subr.bf16.mxu0 0
    %2576 = vmatpush1.bf16.msra.mxu0 0
    %2577 = vmatprep.subr.bf16.mxu0 0
    %2578 = vmatpush1.bf16.msra.mxu0 0
    %2579 = vmatprep.subr.bf16.mxu0 0
    %2580 = vmatpush1.bf16.msra.mxu0 0
    %2581 = vmatprep.subr.bf16.mxu0 0
    %2582 = vmatpush1.bf16.msra.mxu0 0
    %2583 = vmatprep.subr.bf16.mxu0 0
    %2584 = vmatpush1.bf16.msra.mxu0 0
    %2585 = vmatprep.mubr.bf16.mxu0 0
    %2586 = vmatmul.mubr.bf16.gmra.mrb[0].mxu0 %v2485
    %v2587 = vpop.f32.mrb[0].mxu0
    %v2588 = vadd.f32 %v2467, %v2587
    %v2589 = vpop.f32.mrb[0].mxu0
    %v2590 = vpop.f32.mrb[0].mxu0
    %v2591 = vadd.f32 %v2467, %v2590
    %v2592 = vpop.f32.mrb[0].mxu0
    %2593 = vmatprep.mubr.bf16.mxu0 0
    %2594 = vmatmul.mubr.bf16.gmra.mrb[0].mxu0 %v2487
    %v2595 = vpop.f32.mrb[0].mxu0
    %v2596 = vadd.f32 %v2467, %v2595
    %v2597 = vpop.f32.mrb[0].mxu0
    %v2598 = vpop.f32.mrb[0].mxu0
    %v2599 = vadd.f32 %v2467, %v2598
    %v2600 = vpop.f32.mrb[0].mxu0
    %2601 = vmatprep.mubr.bf16.mxu0 0
    %2602 = vmatmul.mubr.bf16.gmra.mrb[0].mxu0 %v2489
    %v2603 = vpop.f32.mrb[0].mxu0
    %v2604 = vadd.f32 %v2467, %v2603
    %v2605 = vpop.f32.mrb[0].mxu0
    %v2606 = vpop.f32.mrb[0].mxu0
    %v2607 = vadd.f32 %v2467, %v2606
    %v2608 = vpop.f32.mrb[0].mxu0
    %2609 = vmatprep.mubr.bf16.mxu0 0
    %2610 = vmatmul.mubr.bf16.gmra.mrb[0].mxu0 %v2491
    %v2611 = vpop.f32.mrb[0].mxu0
    %v2612 = vadd.f32 %v2467, %v2611
    %v2613 = vpop.f32.mrb[0].mxu0
    %v2614 = vpop.f32.mrb[0].mxu0
    %v2615 = vadd.f32 %v2467, %v2614
    %v2616 = vpop.f32.mrb[0].mxu0
    %2617 = vmatprep.mubr.bf16.mxu0 0
    %2618 = vmatmul.mubr.bf16.gmra.mrb[0].mxu0 %v2493
    %v2619 = vpop.f32.mrb[0].mxu0
    %v2620 = vadd.f32 %v2467, %v2619
    %v2621 = vpop.f32.mrb[0].mxu0
    %v2622 = vpop.f32.mrb[0].mxu0
    %v2623 = vadd.f32 %v2467, %v2622
    %v2624 = vpop.f32.mrb[0].mxu0
    %2625 = vmatprep.mubr.bf16.mxu0 0
    %2626 = vmatmul.mubr.bf16.gmra.mrb[0].mxu0 %v2495
    %v2627 = vpop.f32.mrb[0].mxu0
    %v2628 = vadd.f32 %v2467, %v2627
    %v2629 = vpop.f32.mrb[0].mxu0
    %v2630 = vpop.f32.mrb[0].mxu0
    %v2631 = vadd.f32 %v2467, %v2630
    %v2632 = vpop.f32.mrb[0].mxu0
    %2633 = vmatprep.mubr.bf16.mxu0 0
    %2634 = vmatmul.mubr.bf16.gmra.mrb[0].mxu0 %v2497
    %v2635 = vpop.f32.mrb[0].mxu0
    %v2636 = vadd.f32 %v2467, %v2635
    %v2637 = vpop.f32.mrb[0].mxu0
    %v2638 = vpop.f32.mrb[0].mxu0
    %v2639 = vadd.f32 %v2467, %v2638
    %v2640 = vpop.f32.mrb[0].mxu0
    %2641 = vmatprep.mubr.bf16.mxu0 0
    %2642 = vmatmul.mubr.bf16.gmra.mrb[0].mxu0 %v2499
    %v2643 = vpop.f32.mrb[0].mxu0
    %v2644 = vadd.f32 %v2467, %v2643
    %v2645 = vpop.f32.mrb[0].mxu0
    %v2646 = vpop.f32.mrb[0].mxu0
    %v2647 = vadd.f32 %v2467, %v2646
    %v2648 = vpop.f32.mrb[0].mxu0
    %2649 = vmatprep.mubr.bf16.mxu0 0
    %2650 = vmatmul.mubr.bf16.gmra.mrb[0].mxu0 %v2501
    %v2651 = vpop.f32.mrb[0].mxu0
    %v2652 = vadd.f32 %v2467, %v2651
    %v2653 = vpop.f32.mrb[0].mxu0
    %v2654 = vpop.f32.mrb[0].mxu0
    %v2655 = vadd.f32 %v2467, %v2654
    %v2656 = vpop.f32.mrb[0].mxu0
    %2657 = vmatprep.mubr.bf16.mxu0 0
    %2658 = vmatmul.mubr.bf16.gmra.mrb[0].mxu0 %v2503
    %v2659 = vpop.f32.mrb[0].mxu0
    %v2660 = vadd.f32 %v2467, %v2659
    %v2661 = vpop.f32.mrb[0].mxu0
    %v2662 = vpop.f32.mrb[0].mxu0
    %v2663 = vadd.f32 %v2467, %v2662
    %v2664 = vpop.f32.mrb[0].mxu0
    %2665 = vmatprep.mubr.bf16.mxu0 0
    %2666 = vmatmul.mubr.bf16.gmra.mrb[0].mxu0 %v2505
    %v2667 = vpop.f32.mrb[0].mxu0
    %v2668 = vadd.f32 %v2467, %v2667
    %v2669 = vpop.f32.mrb[0].mxu0
    %v2670 = vpop.f32.mrb[0].mxu0
    %v2671 = vadd.f32 %v2467, %v2670
    %v2672 = vpop.f32.mrb[0].mxu0
    %2673 = vmatprep.mubr.bf16.mxu0 0
    %2674 = vmatmul.mubr.bf16.gmra.mrb[0].mxu0 %v2507
    %v2675 = vpop.f32.mrb[0].mxu0
    %v2676 = vadd.f32 %v2467, %v2675
    %v2677 = vpop.f32.mrb[0].mxu0
    %v2678 = vpop.f32.mrb[0].mxu0
    %v2679 = vadd.f32 %v2467, %v2678
    %v2680 = vpop.f32.mrb[0].mxu0
    %2681 = vmatprep.mubr.bf16.mxu0 0
    %2682 = vmatmul.mubr.bf16.gmra.mrb[0].mxu0 %v2509
    %v2683 = vpop.f32.mrb[0].mxu0
    %v2684 = vadd.f32 %v2467, %v2683
    %v2685 = vpop.f32.mrb[0].mxu0
    %v2686 = vpop.f32.mrb[0].mxu0
    %v2687 = vadd.f32 %v2467, %v2686
    %v2688 = vpop.f32.mrb[0].mxu0
    %2689 = vmatprep.mubr.bf16.mxu0 0
    %2690 = vmatmul.mubr.bf16.gmra.mrb[0].mxu0 %v2511
    %v2691 = vpop.f32.mrb[0].mxu0
    %v2692 = vadd.f32 %v2467, %v2691
    %v2693 = vpop.f32.mrb[0].mxu0
    %v2694 = vpop.f32.mrb[0].mxu0
    %v2695 = vadd.f32 %v2467, %v2694
    %v2696 = vpop.f32.mrb[0].mxu0
    %2697 = vmatprep.mubr.bf16.mxu0 0
    %2698 = vmatmul.mubr.bf16.gmra.mrb[0].mxu0 %v2513
    %v2699 = vpop.f32.mrb[0].mxu0
    %v2700 = vadd.f32 %v2467, %v2699
    %v2701 = vpop.f32.mrb[0].mxu0
    %v2702 = vpop.f32.mrb[0].mxu0
    %v2703 = vadd.f32 %v2467, %v2702
    %v2704 = vpop.f32.mrb[0].mxu0
    %2705 = vmatprep.mubr.bf16.mxu0 0
    %2706 = vmatmul.mubr.bf16.gmra.mrb[0].mxu0 %v2515
    %v2707 = vpop.f32.mrb[0].mxu0
    %v2708 = vadd.f32 %v2467, %v2707
    %v2709 = vpop.f32.mrb[0].mxu0
    %v2710 = vpop.f32.mrb[0].mxu0
    %v2711 = vadd.f32 %v2467, %v2710
    %v2712 = vpop.f32.mrb[0].mxu0
    %2713 = vmatprep.mubr.bf16.mxu0 0
    %2714 = vmatmul.mubr.bf16.gmra.mrb[0].mxu0 %v2517
    %v2715 = vpop.f32.mrb[0].mxu0
    %v2716 = vadd.f32 %v2467, %v2715
    %v2717 = vpop.f32.mrb[0].mxu0
    %v2718 = vpop.f32.mrb[0].mxu0
    %v2719 = vadd.f32 %v2467, %v2718
    %v2720 = vpop.f32.mrb[0].mxu0
    %2721 = vmatprep.mubr.bf16.mxu0 0
    %2722 = vmatmul.mubr.bf16.gmra.mrb[0].mxu0 %v2519
    %v2723 = vpop.f32.mrb[0].mxu0
    %v2724 = vadd.f32 %v2467, %v2723
    %v2725 = vpop.f32.mrb[0].mxu0
    %v2726 = vpop.f32.mrb[0].mxu0
    %v2727 = vadd.f32 %v2467, %v2726
    %v2728 = vpop.f32.mrb[0].mxu0
    %2729 = vmatprep.mubr.bf16.mxu0 0
    %2730 = vmatmul.mubr.bf16.gmra.mrb[0].mxu0 %v2521
    %v2731 = vpop.f32.mrb[0].mxu0
    %v2732 = vadd.f32 %v2467, %v2731
    %v2733 = vpop.f32.mrb[0].mxu0
    %v2734 = vpop.f32.mrb[0].mxu0
    %v2735 = vadd.f32 %v2467, %v2734
    %v2736 = vpop.f32.mrb[0].mxu0
    %2737 = vmatprep.mubr.bf16.mxu0 0
    %2738 = vmatmul.mubr.bf16.gmra.mrb[0].mxu0 %v2523
    %v2739 = vpop.f32.mrb[0].mxu0
    %v2740 = vadd.f32 %v2467, %v2739
    %v2741 = vpop.f32.mrb[0].mxu0
    %v2742 = vpop.f32.mrb[0].mxu0
    %v2743 = vadd.f32 %v2467, %v2742
    %v2744 = vpop.f32.mrb[0].mxu0
    %2745 = vmatprep.mubr.bf16.mxu0 0
    %2746 = vmatmul.mubr.bf16.gmra.mrb[0].mxu0 %v2525
    %v2747 = vpop.f32.mrb[0].mxu0
    %v2748 = vadd.f32 %v2467, %v2747
    %v2749 = vpop.f32.mrb[0].mxu0
    %v2750 = vpop.f32.mrb[0].mxu0
    %v2751 = vadd.f32 %v2467, %v2750
    %v2752 = vpop.f32.mrb[0].mxu0
    %2753 = vmatprep.mubr.bf16.mxu0 0
    %2754 = vmatmul.mubr.bf16.gmra.mrb[0].mxu0 %v2527
    %v2755 = vpop.f32.mrb[0].mxu0
    %v2756 = vadd.f32 %v2467, %v2755
    %v2757 = vpop.f32.mrb[0].mxu0
    %v2758 = vpop.f32.mrb[0].mxu0
    %v2759 = vadd.f32 %v2467, %v2758
    %v2760 = vpop.f32.mrb[0].mxu0
    %2761 = vmatprep.mubr.bf16.mxu0 0
    %2762 = vmatmul.mubr.bf16.gmra.mrb[0].mxu0 %v2529
    %v2763 = vpop.f32.mrb[0].mxu0
    %v2764 = vadd.f32 %v2467, %v2763
    %v2765 = vpop.f32.mrb[0].mxu0
    %v2766 = vpop.f32.mrb[0].mxu0
    %v2767 = vadd.f32 %v2467, %v2766
    %v2768 = vpop.f32.mrb[0].mxu0
    %2769 = vmatprep.mubr.bf16.mxu0 0
    %2770 = vmatmul.mubr.bf16.gmra.mrb[0].mxu0 %v2531
    %v2771 = vpop.f32.mrb[0].mxu0
    %v2772 = vadd.f32 %v2467, %v2771
    %v2773 = vpop.f32.mrb[0].mxu0
    %v2774 = vpop.f32.mrb[0].mxu0
    %v2775 = vadd.f32 %v2467, %v2774
    %v2776 = vpop.f32.mrb[0].mxu0
    %2777 = vmatprep.mubr.bf16.mxu0 0
    %2778 = vmatmul.mubr.bf16.gmra.mrb[0].mxu0 %v2533
    %v2779 = vpop.f32.mrb[0].mxu0
    %v2780 = vadd.f32 %v2467, %v2779
    %v2781 = vpop.f32.mrb[0].mxu0
    %v2782 = vpop.f32.mrb[0].mxu0
    %v2783 = vadd.f32 %v2467, %v2782
    %v2784 = vpop.f32.mrb[0].mxu0
    %2785 = vmatprep.mubr.bf16.mxu0 0
    %2786 = vmatmul.mubr.bf16.gmra.mrb[0].mxu0 %v2535
    %v2787 = vpop.f32.mrb[0].mxu0
    %v2788 = vadd.f32 %v2467, %v2787
    %v2789 = vpop.f32.mrb[0].mxu0
    %v2790 = vpop.f32.mrb[0].mxu0
    %v2791 = vadd.f32 %v2467, %v2790
    %v2792 = vpop.f32.mrb[0].mxu0
    %2793 = vmatprep.mubr.bf16.mxu0 0
    %2794 = vmatmul.mubr.bf16.gmra.mrb[0].mxu0 %v2537
    %v2795 = vpop.f32.mrb[0].mxu0
    %v2796 = vadd.f32 %v2467, %v2795
    %v2797 = vpop.f32.mrb[0].mxu0
    %v2798 = vpop.f32.mrb[0].mxu0
    %v2799 = vadd.f32 %v2467, %v2798
    %v2800 = vpop.f32.mrb[0].mxu0
    %2801 = vmatprep.mubr.bf16.mxu0 0
    %2802 = vmatmul.mubr.bf16.gmra.mrb[0].mxu0 %v2539
    %v2803 = vpop.f32.mrb[0].mxu0
    %v2804 = vadd.f32 %v2467, %v2803
    %v2805 = vpop.f32.mrb[0].mxu0
    %v2806 = vpop.f32.mrb[0].mxu0
    %v2807 = vadd.f32 %v2467, %v2806
    %v2808 = vpop.f32.mrb[0].mxu0
    %2809 = vmatprep.mubr.bf16.mxu0 0
    %2810 = vmatmul.mubr.bf16.gmra.mrb[0].mxu0 %v2541
    %v2811 = vpop.f32.mrb[0].mxu0
    %v2812 = vadd.f32 %v2467, %v2811
    %v2813 = vpop.f32.mrb[0].mxu0
    %v2814 = vpop.f32.mrb[0].mxu0
    %v2815 = vadd.f32 %v2467, %v2814
    %v2816 = vpop.f32.mrb[0].mxu0
    %2817 = vmatprep.mubr.bf16.mxu0 0
    %2818 = vmatmul.mubr.bf16.gmra.mrb[0].mxu0 %v2543
    %v2819 = vpop.f32.mrb[0].mxu0
    %v2820 = vadd.f32 %v2467, %v2819
    %v2821 = vpop.f32.mrb[0].mxu0
    %v2822 = vpop.f32.mrb[0].mxu0
    %v2823 = vadd.f32 %v2467, %v2822
    %v2824 = vpop.f32.mrb[0].mxu0
    %2825 = vmatprep.mubr.bf16.mxu0 0
    %2826 = vmatmul.mubr.bf16.gmra.mrb[0].mxu0 %v2545
    %v2827 = vpop.f32.mrb[0].mxu0
    %v2828 = vadd.f32 %v2467, %v2827
    %v2829 = vpop.f32.mrb[0].mxu0
    %v2830 = vpop.f32.mrb[0].mxu0
    %v2831 = vadd.f32 %v2467, %v2830
    %v2832 = vpop.f32.mrb[0].mxu0
    %2833 = vmatprep.mubr.bf16.mxu0 0
    %2834 = vmatmul.mubr.bf16.gmra.mrb[0].mxu0 %v2547
    %v2835 = vpop.f32.mrb[0].mxu0
    %v2836 = vadd.f32 %v2467, %v2835
    %v2837 = vpop.f32.mrb[0].mxu0
    %v2838 = vpop.f32.mrb[0].mxu0
    %v2839 = vadd.f32 %v2467, %v2838
    %v2840 = vpop.f32.mrb[0].mxu0
    %2841 = vdwg.mxu0
    %v2842 = vsel %vm2132, %v2588, 0.0
    %v2843 = vsel %vm2132, %v2591, 0.0
    %v2844 = vadd.f32 %v2842, %v2843
    %v2845 = vsel %vm2132, %v2596, 0.0
    %v2846 = vadd.f32 %v2844, %v2845
    %v2847 = vsel %vm2132, %v2599, 0.0
    %v2848 = vadd.f32 %v2846, %v2847
    %v2849 = vsel %vm2132, %v2604, 0.0
    %v2850 = vadd.f32 %v2848, %v2849
    %v2851 = vsel %vm2132, %v2607, 0.0
    %v2852 = vadd.f32 %v2850, %v2851
    %v2853 = vsel %vm2132, %v2612, 0.0
    %v2854 = vadd.f32 %v2852, %v2853
    %v2855 = vsel %vm2132, %v2615, 0.0
    %v2856 = vadd.f32 %v2854, %v2855
    %v2857 = vsel %vm2132, %v2620, 0.0
    %v2858 = vadd.f32 %v2856, %v2857
    %v2859 = vsel %vm2132, %v2623, 0.0
    %v2860 = vadd.f32 %v2858, %v2859
    %v2861 = vsel %vm2132, %v2628, 0.0
    %v2862 = vadd.f32 %v2860, %v2861
    %v2863 = vsel %vm2132, %v2631, 0.0
    %v2864 = vadd.f32 %v2862, %v2863
    %v2865 = vsel %vm2132, %v2636, 0.0
    %v2866 = vadd.f32 %v2864, %v2865
    %v2867 = vsel %vm2132, %v2639, 0.0
    %v2868 = vadd.f32 %v2866, %v2867
    %v2869 = vsel %vm2132, %v2644, 0.0
    %v2870 = vadd.f32 %v2868, %v2869
    %v2871 = vsel %vm2132, %v2647, 0.0
    %v2872 = vadd.f32 %v2870, %v2871
    %v2873 = vsel %vm2132, %v2652, 0.0
    %v2874 = vadd.f32 %v2872, %v2873
    %v2875 = vsel %vm2132, %v2655, 0.0
    %v2876 = vadd.f32 %v2874, %v2875
    %v2877 = vsel %vm2132, %v2660, 0.0
    %v2878 = vadd.f32 %v2876, %v2877
    %v2879 = vsel %vm2132, %v2663, 0.0
    %v2880 = vadd.f32 %v2878, %v2879
    %v2881 = vsel %vm2132, %v2668, 0.0
    %v2882 = vadd.f32 %v2880, %v2881
    %v2883 = vsel %vm2132, %v2671, 0.0
    %v2884 = vadd.f32 %v2882, %v2883
    %v2885 = vsel %vm2132, %v2676, 0.0
    %v2886 = vadd.f32 %v2884, %v2885
    %v2887 = vsel %vm2132, %v2679, 0.0
    %v2888 = vadd.f32 %v2886, %v2887
    %v2889 = vsel %vm2132, %v2684, 0.0
    %v2890 = vadd.f32 %v2888, %v2889
    %v2891 = vsel %vm2132, %v2687, 0.0
    %v2892 = vadd.f32 %v2890, %v2891
    %v2893 = vsel %vm2132, %v2692, 0.0
    %v2894 = vadd.f32 %v2892, %v2893
    %v2895 = vsel %vm2132, %v2695, 0.0
    %v2896 = vadd.f32 %v2894, %v2895
    %v2897 = vsel %vm2132, %v2700, 0.0
    %v2898 = vadd.f32 %v2896, %v2897
    %v2899 = vsel %vm2132, %v2703, 0.0
    %v2900 = vadd.f32 %v2898, %v2899
    %v2901 = vsel %vm2132, %v2708, 0.0
    %v2902 = vadd.f32 %v2900, %v2901
    %v2903 = vsel %vm2132, %v2711, 0.0
    %v2904 = vadd.f32 %v2902, %v2903
    %v2905 = vrot.slane %v2904, 4
    %v2906 = vadd.f32 %v2904, %v2905
    %v2907 = vrot.slane %v2906, 2
    %v2908 = vadd.f32 %v2906, %v2907
    %v2909 = vrot.slane %v2908, 1
    %v2910 = vadd.f32 %v2908, %v2909
    %v2911 = vsel %vm2132, %v2716, 0.0
    %v2912 = vsel %vm2132, %v2719, 0.0
    %v2913 = vadd.f32 %v2911, %v2912
    %v2914 = vsel %vm2132, %v2724, 0.0
    %v2915 = vadd.f32 %v2913, %v2914
    %v2916 = vsel %vm2132, %v2727, 0.0
    %v2917 = vadd.f32 %v2915, %v2916
    %v2918 = vsel %vm2132, %v2732, 0.0
    %v2919 = vadd.f32 %v2917, %v2918
    %v2920 = vsel %vm2132, %v2735, 0.0
    %v2921 = vadd.f32 %v2919, %v2920
    %v2922 = vsel %vm2132, %v2740, 0.0
    %v2923 = vadd.f32 %v2921, %v2922
    %v2924 = vsel %vm2132, %v2743, 0.0
    %v2925 = vadd.f32 %v2923, %v2924
    %v2926 = vsel %vm2132, %v2748, 0.0
    %v2927 = vadd.f32 %v2925, %v2926
    %v2928 = vsel %vm2132, %v2751, 0.0
    %v2929 = vadd.f32 %v2927, %v2928
    %v2930 = vsel %vm2132, %v2756, 0.0
    %v2931 = vadd.f32 %v2929, %v2930
    %v2932 = vsel %vm2132, %v2759, 0.0
    %v2933 = vadd.f32 %v2931, %v2932
    %v2934 = vsel %vm2132, %v2764, 0.0
    %v2935 = vadd.f32 %v2933, %v2934
    %v2936 = vsel %vm2132, %v2767, 0.0
    %v2937 = vadd.f32 %v2935, %v2936
    %v2938 = vsel %vm2132, %v2772, 0.0
    %v2939 = vadd.f32 %v2937, %v2938
    %v2940 = vsel %vm2132, %v2775, 0.0
    %v2941 = vadd.f32 %v2939, %v2940
    %v2942 = vsel %vm2132, %v2780, 0.0
    %v2943 = vadd.f32 %v2941, %v2942
    %v2944 = vsel %vm2132, %v2783, 0.0
    %v2945 = vadd.f32 %v2943, %v2944
    %v2946 = vsel %vm2132, %v2788, 0.0
    %v2947 = vadd.f32 %v2945, %v2946
    %v2948 = vsel %vm2132, %v2791, 0.0
    %v2949 = vadd.f32 %v2947, %v2948
    %v2950 = vsel %vm2132, %v2796, 0.0
    %v2951 = vadd.f32 %v2949, %v2950
    %v2952 = vsel %vm2132, %v2799, 0.0
    %v2953 = vadd.f32 %v2951, %v2952
    %v2954 = vsel %vm2132, %v2804, 0.0
    %v2955 = vadd.f32 %v2953, %v2954
    %v2956 = vsel %vm2132, %v2807, 0.0
    %v2957 = vadd.f32 %v2955, %v2956
    %v2958 = vsel %vm2132, %v2812, 0.0
    %v2959 = vadd.f32 %v2957, %v2958
    %v2960 = vsel %vm2132, %v2815, 0.0
    %v2961 = vadd.f32 %v2959, %v2960
    %v2962 = vsel %vm2132, %v2820, 0.0
    %v2963 = vadd.f32 %v2961, %v2962
    %v2964 = vsel %vm2132, %v2823, 0.0
    %v2965 = vadd.f32 %v2963, %v2964
    %v2966 = vsel %vm2132, %v2828, 0.0
    %v2967 = vadd.f32 %v2965, %v2966
    %v2968 = vsel %vm2132, %v2831, 0.0
    %v2969 = vadd.f32 %v2967, %v2968
    %v2970 = vsel %vm2132, %v2836, 0.0
    %v2971 = vadd.f32 %v2969, %v2970
    %v2972 = vsel %vm2132, %v2839, 0.0
    %v2973 = vadd.f32 %v2971, %v2972
    %v2974 = vrot.slane %v2973, 4
    %v2975 = vadd.f32 %v2973, %v2974
    %v2976 = vrot.slane %v2975, 2
    %v2977 = vadd.f32 %v2975, %v2976
    %v2978 = vrot.slane %v2977, 1
    %v2979 = vadd.f32 %v2977, %v2978
    %v2980 = vmul.f32 %v2588, %v2588
    %v2981 = vmul.f32 %v2591, %v2591
    %v2982 = vmul.f32 %v2596, %v2596
    %v2983 = vmul.f32 %v2599, %v2599
    %v2984 = vmul.f32 %v2604, %v2604
    %v2985 = vmul.f32 %v2607, %v2607
    %v2986 = vmul.f32 %v2612, %v2612
    %v2987 = vmul.f32 %v2615, %v2615
    %v2988 = vmul.f32 %v2620, %v2620
    %v2989 = vmul.f32 %v2623, %v2623
    %v2990 = vmul.f32 %v2628, %v2628
    %v2991 = vmul.f32 %v2631, %v2631
    %v2992 = vmul.f32 %v2636, %v2636
    %v2993 = vmul.f32 %v2639, %v2639
    %v2994 = vmul.f32 %v2644, %v2644
    %v2995 = vmul.f32 %v2647, %v2647
    %v2996 = vmul.f32 %v2652, %v2652
    %v2997 = vmul.f32 %v2655, %v2655
    %v2998 = vmul.f32 %v2660, %v2660
    %v2999 = vmul.f32 %v2663, %v2663
    %v3000 = vmul.f32 %v2668, %v2668
    %v3001 = vmul.f32 %v2671, %v2671
    %v3002 = vmul.f32 %v2676, %v2676
    %v3003 = vmul.f32 %v2679, %v2679
    %v3004 = vmul.f32 %v2684, %v2684
    %v3005 = vmul.f32 %v2687, %v2687
    %v3006 = vmul.f32 %v2692, %v2692
    %v3007 = vmul.f32 %v2695, %v2695
    %v3008 = vmul.f32 %v2700, %v2700
    %v3009 = vmul.f32 %v2703, %v2703
    %v3010 = vmul.f32 %v2708, %v2708
    %v3011 = vmul.f32 %v2711, %v2711
    %v3012 = vmul.f32 %v2716, %v2716
    %v3013 = vmul.f32 %v2719, %v2719
    %v3014 = vmul.f32 %v2724, %v2724
    %v3015 = vmul.f32 %v2727, %v2727
    %v3016 = vmul.f32 %v2732, %v2732
    %v3017 = vmul.f32 %v2735, %v2735
    %v3018 = vmul.f32 %v2740, %v2740
    %v3019 = vmul.f32 %v2743, %v2743
    %v3020 = vmul.f32 %v2748, %v2748
    %v3021 = vmul.f32 %v2751, %v2751
    %v3022 = vmul.f32 %v2756, %v2756
    %v3023 = vmul.f32 %v2759, %v2759
    %v3024 = vmul.f32 %v2764, %v2764
    %v3025 = vmul.f32 %v2767, %v2767
    %v3026 = vmul.f32 %v2772, %v2772
    %v3027 = vmul.f32 %v2775, %v2775
    %v3028 = vmul.f32 %v2780, %v2780
    %v3029 = vmul.f32 %v2783, %v2783
    %v3030 = vmul.f32 %v2788, %v2788
    %v3031 = vmul.f32 %v2791, %v2791
    %v3032 = vmul.f32 %v2796, %v2796
    %v3033 = vmul.f32 %v2799, %v2799
    %v3034 = vmul.f32 %v2804, %v2804
    %v3035 = vmul.f32 %v2807, %v2807
    %v3036 = vmul.f32 %v2812, %v2812
    %v3037 = vmul.f32 %v2815, %v2815
    %v3038 = vmul.f32 %v2820, %v2820
    %v3039 = vmul.f32 %v2823, %v2823
    %v3040 = vmul.f32 %v2828, %v2828
    %v3041 = vmul.f32 %v2831, %v2831
    %v3042 = vmul.f32 %v2836, %v2836
    %v3043 = vmul.f32 %v2839, %v2839
    %v3044 = vsel %vm2132, %v2980, 0.0
    %v3045 = vsel %vm2132, %v2981, 0.0
    %v3046 = vadd.f32 %v3044, %v3045
    %v3047 = vsel %vm2132, %v2982, 0.0
    %v3048 = vadd.f32 %v3046, %v3047
    %v3049 = vsel %vm2132, %v2983, 0.0
    %v3050 = vadd.f32 %v3048, %v3049
    %v3051 = vsel %vm2132, %v2984, 0.0
    %v3052 = vadd.f32 %v3050, %v3051
    %v3053 = vsel %vm2132, %v2985, 0.0
    %v3054 = vadd.f32 %v3052, %v3053
    %v3055 = vsel %vm2132, %v2986, 0.0
    %v3056 = vadd.f32 %v3054, %v3055
    %v3057 = vsel %vm2132, %v2987, 0.0
    %v3058 = vadd.f32 %v3056, %v3057
    %v3059 = vsel %vm2132, %v2988, 0.0
    %v3060 = vadd.f32 %v3058, %v3059
    %v3061 = vsel %vm2132, %v2989, 0.0
    %v3062 = vadd.f32 %v3060, %v3061
    %v3063 = vsel %vm2132, %v2990, 0.0
    %v3064 = vadd.f32 %v3062, %v3063
    %v3065 = vsel %vm2132, %v2991, 0.0
    %v3066 = vadd.f32 %v3064, %v3065
    %v3067 = vsel %vm2132, %v2992, 0.0
    %v3068 = vadd.f32 %v3066, %v3067
    %v3069 = vsel %vm2132, %v2993, 0.0
    %v3070 = vadd.f32 %v3068, %v3069
    %v3071 = vsel %vm2132, %v2994, 0.0
    %v3072 = vadd.f32 %v3070, %v3071
    %v3073 = vsel %vm2132, %v2995, 0.0
    %v3074 = vadd.f32 %v3072, %v3073
    %v3075 = vsel %vm2132, %v2996, 0.0
    %v3076 = vadd.f32 %v3074, %v3075
    %v3077 = vsel %vm2132, %v2997, 0.0
    %v3078 = vadd.f32 %v3076, %v3077
    %v3079 = vsel %vm2132, %v2998, 0.0
    %v3080 = vadd.f32 %v3078, %v3079
    %v3081 = vsel %vm2132, %v2999, 0.0
    %v3082 = vadd.f32 %v3080, %v3081
    %v3083 = vsel %vm2132, %v3000, 0.0
    %v3084 = vadd.f32 %v3082, %v3083
    %v3085 = vsel %vm2132, %v3001, 0.0
    %v3086 = vadd.f32 %v3084, %v3085
    %v3087 = vsel %vm2132, %v3002, 0.0
    %v3088 = vadd.f32 %v3086, %v3087
    %v3089 = vsel %vm2132, %v3003, 0.0
    %v3090 = vadd.f32 %v3088, %v3089
    %v3091 = vsel %vm2132, %v3004, 0.0
    %v3092 = vadd.f32 %v3090, %v3091
    %v3093 = vsel %vm2132, %v3005, 0.0
    %v3094 = vadd.f32 %v3092, %v3093
    %v3095 = vsel %vm2132, %v3006, 0.0
    %v3096 = vadd.f32 %v3094, %v3095
    %v3097 = vsel %vm2132, %v3007, 0.0
    %v3098 = vadd.f32 %v3096, %v3097
    %v3099 = vsel %vm2132, %v3008, 0.0
    %v3100 = vadd.f32 %v3098, %v3099
    %v3101 = vsel %vm2132, %v3009, 0.0
    %v3102 = vadd.f32 %v3100, %v3101
    %v3103 = vsel %vm2132, %v3010, 0.0
    %v3104 = vadd.f32 %v3102, %v3103
    %v3105 = vsel %vm2132, %v3011, 0.0
    %v3106 = vadd.f32 %v3104, %v3105
    %v3107 = vrot.slane %v3106, 4
    %v3108 = vadd.f32 %v3106, %v3107
    %v3109 = vrot.slane %v3108, 2
    %v3110 = vadd.f32 %v3108, %v3109
    %v3111 = vrot.slane %v3110, 1
    %v3112 = vadd.f32 %v3110, %v3111
    %v3113 = vsel %vm2132, %v3012, 0.0
    %v3114 = vsel %vm2132, %v3013, 0.0
    %v3115 = vadd.f32 %v3113, %v3114
    %v3116 = vsel %vm2132, %v3014, 0.0
    %v3117 = vadd.f32 %v3115, %v3116
    %v3118 = vsel %vm2132, %v3015, 0.0
    %v3119 = vadd.f32 %v3117, %v3118
    %v3120 = vsel %vm2132, %v3016, 0.0
    %v3121 = vadd.f32 %v3119, %v3120
    %v3122 = vsel %vm2132, %v3017, 0.0
    %v3123 = vadd.f32 %v3121, %v3122
    %v3124 = vsel %vm2132, %v3018, 0.0
    %v3125 = vadd.f32 %v3123, %v3124
    %v3126 = vsel %vm2132, %v3019, 0.0
    %v3127 = vadd.f32 %v3125, %v3126
    %v3128 = vsel %vm2132, %v3020, 0.0
    %v3129 = vadd.f32 %v3127, %v3128
    %v3130 = vsel %vm2132, %v3021, 0.0
    %v3131 = vadd.f32 %v3129, %v3130
    %v3132 = vsel %vm2132, %v3022, 0.0
    %v3133 = vadd.f32 %v3131, %v3132
    %v3134 = vsel %vm2132, %v3023, 0.0
    %v3135 = vadd.f32 %v3133, %v3134
    %v3136 = vsel %vm2132, %v3024, 0.0
    %v3137 = vadd.f32 %v3135, %v3136
    %v3138 = vsel %vm2132, %v3025, 0.0
    %v3139 = vadd.f32 %v3137, %v3138
    %v3140 = vsel %vm2132, %v3026, 0.0
    %v3141 = vadd.f32 %v3139, %v3140
    %v3142 = vsel %vm2132, %v3027, 0.0
    %v3143 = vadd.f32 %v3141, %v3142
    %v3144 = vsel %vm2132, %v3028, 0.0
    %v3145 = vadd.f32 %v3143, %v3144
    %v3146 = vsel %vm2132, %v3029, 0.0
    %v3147 = vadd.f32 %v3145, %v3146
    %v3148 = vsel %vm2132, %v3030, 0.0
    %v3149 = vadd.f32 %v3147, %v3148
    %v3150 = vsel %vm2132, %v3031, 0.0
    %v3151 = vadd.f32 %v3149, %v3150
    %v3152 = vsel %vm2132, %v3032, 0.0
    %v3153 = vadd.f32 %v3151, %v3152
    %v3154 = vsel %vm2132, %v3033, 0.0
    %v3155 = vadd.f32 %v3153, %v3154
    %v3156 = vsel %vm2132, %v3034, 0.0
    %v3157 = vadd.f32 %v3155, %v3156
    %v3158 = vsel %vm2132, %v3035, 0.0
    %v3159 = vadd.f32 %v3157, %v3158
    %v3160 = vsel %vm2132, %v3036, 0.0
    %v3161 = vadd.f32 %v3159, %v3160
    %v3162 = vsel %vm2132, %v3037, 0.0
    %v3163 = vadd.f32 %v3161, %v3162
    %v3164 = vsel %vm2132, %v3038, 0.0
    %v3165 = vadd.f32 %v3163, %v3164
    %v3166 = vsel %vm2132, %v3039, 0.0
    %v3167 = vadd.f32 %v3165, %v3166
    %v3168 = vsel %vm2132, %v3040, 0.0
    %v3169 = vadd.f32 %v3167, %v3168
    %v3170 = vsel %vm2132, %v3041, 0.0
    %v3171 = vadd.f32 %v3169, %v3170
    %v3172 = vsel %vm2132, %v3042, 0.0
    %v3173 = vadd.f32 %v3171, %v3172
    %v3174 = vsel %vm2132, %v3043, 0.0
    %v3175 = vadd.f32 %v3173, %v3174
    %v3176 = vrot.slane %v3175, 4
    %v3177 = vadd.f32 %v3175, %v3176
    %v3178 = vrot.slane %v3177, 2
    %v3179 = vadd.f32 %v3177, %v3178
    %v3180 = vrot.slane %v3179, 1
    %v3181 = vadd.f32 %v3179, %v3180
    %vm3184 = vcmask 1041409
    %v3185 = vsel %vm3184, %v2979, %v2910
    %vm3189 = vcmask 1043459
    %v3190 = vsel %vm3189, %v3181, %v3112
    %v3192 = vsel %vm2549, %v3185, %v3190
    %v3193 = vmul.f32 %v3192, 0.00390625
    %v3194 = vld [vmem:[%s13] sm:$0xff]
    %v3195 = vld [vmem:[%s13 + $0x8] sm:$0xff]
    %v3197 = vsel %vm2132, %v3193, 0
    %3199 = vmatprep.subr.mxu0 0.0
    %3200 = vmatpush1.msra.mxu0 %v3194
    %3201 = vmatprep.subr.mxu0 0.0
    %3202 = vmatpush1.msra.mxu0 %v3195
    %3203 = vmatprep.subr.mxu0 0.0
    %3204 = vmatpush1.msra.mxu0 0.0
    %3205 = vmatprep.subr.mxu0 0.0
    %3206 = vmatpush1.msra.mxu0 0.0
    %3207 = vmatprep.subr.mxu0 0.0
    %3208 = vmatpush1.msra.mxu0 0.0
    %3209 = vmatprep.subr.mxu0 0.0
    %3210 = vmatpush1.msra.mxu0 0.0
    %3211 = vmatprep.subr.mxu0 0.0
    %3212 = vmatpush1.msra.mxu0 0.0
    %3213 = vmatprep.subr.mxu0 0.0
    %3214 = vmatpush1.msra.mxu0 0.0
    %3215 = vmatprep.subr.mxu0 0.0
    %3216 = vmatpush1.msra.mxu0 0.0
    %3217 = vmatprep.subr.mxu0 0.0
    %3218 = vmatpush1.msra.mxu0 0.0
    %3219 = vmatprep.subr.mxu0 0.0
    %3220 = vmatpush1.msra.mxu0 0.0
    %3221 = vmatprep.subr.mxu0 0.0
    %3222 = vmatpush1.msra.mxu0 0.0
    %3223 = vmatprep.subr.mxu0 0.0
    %3224 = vmatpush1.msra.mxu0 0.0
    %3225 = vmatprep.subr.mxu0 0.0
    %3226 = vmatpush1.msra.mxu0 0.0
    %3227 = vmatprep.subr.mxu0 0.0
    %3228 = vmatpush1.msra.mxu0 0.0
    %3229 = vmatprep.subr.mxu0 0.0
    %3230 = vmatpush1.msra.mxu0 0.0
    %3231 = vmatprep.subr.mxu0 0.0
    %3232 = vmatpush1.msra.mxu0 0.0
    %3233 = vmatprep.subr.mxu0 0.0
    %3234 = vmatpush1.msra.mxu0 0.0
    %3235 = vmatprep.subr.mxu0 0.0
    %3236 = vmatpush1.msra.mxu0 0.0
    %3237 = vmatprep.subr.mxu0 0.0
    %3238 = vmatpush1.msra.mxu0 0.0
    %3239 = vmatprep.subr.mxu0 0.0
    %3240 = vmatpush1.msra.mxu0 0.0
    %3241 = vmatprep.subr.mxu0 0.0
    %3242 = vmatpush1.msra.mxu0 0.0
    %3243 = vmatprep.subr.mxu0 0.0
    %3244 = vmatpush1.msra.mxu0 0.0
    %3245 = vmatprep.subr.mxu0 0.0
    %3246 = vmatpush1.msra.mxu0 0.0
    %3247 = vmatprep.subr.mxu0 0.0
    %3248 = vmatpush1.msra.mxu0 0.0
    %3249 = vmatprep.subr.mxu0 0.0
    %3250 = vmatpush1.msra.mxu0 0.0
    %3251 = vmatprep.subr.mxu0 0.0
    %3252 = vmatpush1.msra.mxu0 0.0
    %3253 = vmatprep.subr.mxu0 0.0
    %3254 = vmatpush1.msra.mxu0 0.0
    %3255 = vmatprep.subr.mxu0 0.0
    %3256 = vmatpush1.msra.mxu0 0.0
    %3257 = vmatprep.subr.mxu0 0.0
    %3258 = vmatpush1.msra.mxu0 0.0
    %3259 = vmatprep.subr.mxu0 0.0
    %3260 = vmatpush1.msra.mxu0 0.0
    %3261 = vmatprep.subr.mxu0 0.0
    %3262 = vmatpush1.msra.mxu0 0.0
    %3263 = vmatprep.mubr.f32.mxu0 0.0
    %3264 = vmatmul.mubr.f32.gmra.mrb[0].mxu0 %v3197
    %v3265 = vpop.f32.mrb[0].mxu0
    %v3266 = vadd.f32 0.0, %v3265
    %v3267 = vpop.f32.mrb[0].mxu0
    %3268 = vdwg.mxu0
    %v3269 = vmul.f32 %v3266, %v3266
    %v3271 = vrot.slane %v3269, 6
    %v3273 = vsub.f32 %v3266, %v3271
    %v3274 = vmax.f32 %v3273, 0.0
    %v3277 = vunpack.c.l.s4 1966171168
    %v3278 = vunpack.c.0.s8 %v3277
    %v3279 = vlaneseq
    %v3280 = vshrl.u32 %v3279, 7
    %v3281 = vsub.s32 %v3278, %v3280
    %v3282 = vrot.slane %v3266, %v3281
    %v3283 = vcombine.high %v3282, %v3282
    %v3285 = vunpack.c.l.s4 1966171168
    %v3286 = vunpack.c.0.s8 %v3285
    %v3287 = vlaneseq
    %v3288 = vshrl.u32 %v3287, 7
    %v3289 = vsub.s32 %v3286, %v3288
    %v3290 = vrot.slane %v3282, %v3289
    %v3292 = vunpack.c.l.s4 1966171168
    %v3293 = vunpack.c.0.s8 %v3292
    %v3294 = vlaneseq
    %v3295 = vshrl.u32 %v3294, 7
    %v3296 = vsub.s32 %v3293, %v3295
    %v3297 = vrot.slane %v3283, %v3296
    %v3298 = vlaneseq
    %v3299 = vshrl.u32 %v3298, 7
    %v3300 = vsub.s32 0, %v3299
    %v3301 = vrot.slane %v3290, %v3300
    %v3302 = vlaneseq
    %v3303 = vshrl.u32 %v3302, 7
    %v3304 = vsub.s32 0, %v3303
    %v3305 = vrot.slane %v3297, %v3304
    %v3308 = vsub.f32 %v2588, %v3301
    %v3309 = vsub.f32 %v2591, %v3301
    %v3310 = vsub.f32 %v2596, %v3301
    %v3311 = vsub.f32 %v2599, %v3301
    %v3312 = vsub.f32 %v2604, %v3301
    %v3313 = vsub.f32 %v2607, %v3301
    %v3314 = vsub.f32 %v2612, %v3301
    %v3315 = vsub.f32 %v2615, %v3301
    %v3316 = vsub.f32 %v2620, %v3301
    %v3317 = vsub.f32 %v2623, %v3301
    %v3318 = vsub.f32 %v2628, %v3301
    %v3319 = vsub.f32 %v2631, %v3301
    %v3320 = vsub.f32 %v2636, %v3301
    %v3321 = vsub.f32 %v2639, %v3301
    %v3322 = vsub.f32 %v2644, %v3301
    %v3323 = vsub.f32 %v2647, %v3301
    %v3324 = vsub.f32 %v2652, %v3301
    %v3325 = vsub.f32 %v2655, %v3301
    %v3326 = vsub.f32 %v2660, %v3301
    %v3327 = vsub.f32 %v2663, %v3301
    %v3328 = vsub.f32 %v2668, %v3301
    %v3329 = vsub.f32 %v2671, %v3301
    %v3330 = vsub.f32 %v2676, %v3301
    %v3331 = vsub.f32 %v2679, %v3301
    %v3332 = vsub.f32 %v2684, %v3301
    %v3333 = vsub.f32 %v2687, %v3301
    %v3334 = vsub.f32 %v2692, %v3301
    %v3335 = vsub.f32 %v2695, %v3301
    %v3336 = vsub.f32 %v2700, %v3301
    %v3337 = vsub.f32 %v2703, %v3301
    %v3338 = vsub.f32 %v2708, %v3301
    %v3339 = vsub.f32 %v2711, %v3301
    %v3340 = vsub.f32 %v2716, %v3305
    %v3341 = vsub.f32 %v2719, %v3305
    %v3342 = vsub.f32 %v2724, %v3305
    %v3343 = vsub.f32 %v2727, %v3305
    %v3344 = vsub.f32 %v2732, %v3305
    %v3345 = vsub.f32 %v2735, %v3305
    %v3346 = vsub.f32 %v2740, %v3305
    %v3347 = vsub.f32 %v2743, %v3305
    %v3348 = vsub.f32 %v2748, %v3305
    %v3349 = vsub.f32 %v2751, %v3305
    %v3350 = vsub.f32 %v2756, %v3305
    %v3351 = vsub.f32 %v2759, %v3305
    %v3352 = vsub.f32 %v2764, %v3305
    %v3353 = vsub.f32 %v2767, %v3305
    %v3354 = vsub.f32 %v2772, %v3305
    %v3355 = vsub.f32 %v2775, %v3305
    %v3356 = vsub.f32 %v2780, %v3305
    %v3357 = vsub.f32 %v2783, %v3305
    %v3358 = vsub.f32 %v2788, %v3305
    %v3359 = vsub.f32 %v2791, %v3305
    %v3360 = vsub.f32 %v2796, %v3305
    %v3361 = vsub.f32 %v2799, %v3305
    %v3362 = vsub.f32 %v2804, %v3305
    %v3363 = vsub.f32 %v2807, %v3305
    %v3364 = vsub.f32 %v2812, %v3305
    %v3365 = vsub.f32 %v2815, %v3305
    %v3366 = vsub.f32 %v2820, %v3305
    %v3367 = vsub.f32 %v2823, %v3305
    %v3368 = vsub.f32 %v2828, %v3305
    %v3369 = vsub.f32 %v2831, %v3305
    %v3370 = vsub.f32 %v2836, %v3305
    %v3371 = vsub.f32 %v2839, %v3305
    %v3372 = vrsqrt.pop %v3274
    %v3375 = vunpack.c.l.s4 1966171168
    %v3376 = vunpack.c.0.s8 %v3375
    %v3377 = vlaneseq
    %v3378 = vshrl.u32 %v3377, 7
    %v3379 = vsub.s32 %v3376, %v3378
    %v3380 = vrot.slane %v3372, %v3379
    %v3381 = vcombine.high %v3380, %v3380
    %v3383 = vunpack.c.l.s4 1966171168
    %v3384 = vunpack.c.0.s8 %v3383
    %v3385 = vlaneseq
    %v3386 = vshrl.u32 %v3385, 7
    %v3387 = vsub.s32 %v3384, %v3386
    %v3388 = vrot.slane %v3380, %v3387
    %v3390 = vunpack.c.l.s4 1966171168
    %v3391 = vunpack.c.0.s8 %v3390
    %v3392 = vlaneseq
    %v3393 = vshrl.u32 %v3392, 7
    %v3394 = vsub.s32 %v3391, %v3393
    %v3395 = vrot.slane %v3381, %v3394
    %v3396 = vcombine.high %v3388, %v3388
    %v3397 = vcombine.high %v3395, %v3395
    %v3398 = vlaneseq
    %v3399 = vshrl.u32 %v3398, 7
    %v3400 = vsub.s32 0, %v3399
    %v3401 = vrot.slane %v3396, %v3400
    %v3402 = vlaneseq
    %v3403 = vshrl.u32 %v3402, 7
    %v3404 = vsub.s32 0, %v3403
    %v3405 = vrot.slane %v3397, %v3404
    %v3408 = vmul.f32 %v3308, %v3401
    %v3409 = vmul.f32 %v3309, %v3401
    %v3410 = vmul.f32 %v3310, %v3401
    %v3411 = vmul.f32 %v3311, %v3401
    %v3412 = vmul.f32 %v3312, %v3401
    %v3413 = vmul.f32 %v3313, %v3401
    %v3414 = vmul.f32 %v3314, %v3401
    %v3415 = vmul.f32 %v3315, %v3401
    %v3416 = vmul.f32 %v3316, %v3401
    %v3417 = vmul.f32 %v3317, %v3401
    %v3418 = vmul.f32 %v3318, %v3401
    %v3419 = vmul.f32 %v3319, %v3401
    %v3420 = vmul.f32 %v3320, %v3401
    %v3421 = vmul.f32 %v3321, %v3401
    %v3422 = vmul.f32 %v3322, %v3401
    %v3423 = vmul.f32 %v3323, %v3401
    %v3424 = vmul.f32 %v3324, %v3401
    %v3425 = vmul.f32 %v3325, %v3401
    %v3426 = vmul.f32 %v3326, %v3401
    %v3427 = vmul.f32 %v3327, %v3401
    %v3428 = vmul.f32 %v3328, %v3401
    %v3429 = vmul.f32 %v3329, %v3401
    %v3430 = vmul.f32 %v3330, %v3401
    %v3431 = vmul.f32 %v3331, %v3401
    %v3432 = vmul.f32 %v3332, %v3401
    %v3433 = vmul.f32 %v3333, %v3401
    %v3434 = vmul.f32 %v3334, %v3401
    %v3435 = vmul.f32 %v3335, %v3401
    %v3436 = vmul.f32 %v3336, %v3401
    %v3437 = vmul.f32 %v3337, %v3401
    %v3438 = vmul.f32 %v3338, %v3401
    %v3439 = vmul.f32 %v3339, %v3401
    %v3440 = vmul.f32 %v3340, %v3405
    %v3441 = vmul.f32 %v3341, %v3405
    %v3442 = vmul.f32 %v3342, %v3405
    %v3443 = vmul.f32 %v3343, %v3405
    %v3444 = vmul.f32 %v3344, %v3405
    %v3445 = vmul.f32 %v3345, %v3405
    %v3446 = vmul.f32 %v3346, %v3405
    %v3447 = vmul.f32 %v3347, %v3405
    %v3448 = vmul.f32 %v3348, %v3405
    %v3449 = vmul.f32 %v3349, %v3405
    %v3450 = vmul.f32 %v3350, %v3405
    %v3451 = vmul.f32 %v3351, %v3405
    %v3452 = vmul.f32 %v3352, %v3405
    %v3453 = vmul.f32 %v3353, %v3405
    %v3454 = vmul.f32 %v3354, %v3405
    %v3455 = vmul.f32 %v3355, %v3405
    %v3456 = vmul.f32 %v3356, %v3405
    %v3457 = vmul.f32 %v3357, %v3405
    %v3458 = vmul.f32 %v3358, %v3405
    %v3459 = vmul.f32 %v3359, %v3405
    %v3460 = vmul.f32 %v3360, %v3405
    %v3461 = vmul.f32 %v3361, %v3405
    %v3462 = vmul.f32 %v3362, %v3405
    %v3463 = vmul.f32 %v3363, %v3405
    %v3464 = vmul.f32 %v3364, %v3405
    %v3465 = vmul.f32 %v3365, %v3405
    %v3466 = vmul.f32 %v3366, %v3405
    %v3467 = vmul.f32 %v3367, %v3405
    %v3468 = vmul.f32 %v3368, %v3405
    %v3469 = vmul.f32 %v3369, %v3405
    %v3470 = vmul.f32 %v3370, %v3405
    %v3471 = vmul.f32 %v3371, %v3405
    %v3472 = vmax.f32 %v3408, 0.0
    %v3473 = vmax.f32 %v3409, 0.0
    %v3474 = vmax.f32 %v3410, 0.0
    %v3475 = vmax.f32 %v3411, 0.0
    %v3476 = vmax.f32 %v3412, 0.0
    %v3477 = vmax.f32 %v3413, 0.0
    %v3478 = vmax.f32 %v3414, 0.0
    %v3479 = vmax.f32 %v3415, 0.0
    %v3480 = vmax.f32 %v3416, 0.0
    %v3481 = vmax.f32 %v3417, 0.0
    %v3482 = vmax.f32 %v3418, 0.0
    %v3483 = vmax.f32 %v3419, 0.0
    %v3484 = vmax.f32 %v3420, 0.0
    %v3485 = vmax.f32 %v3421, 0.0
    %v3486 = vmax.f32 %v3422, 0.0
    %v3487 = vmax.f32 %v3423, 0.0
    %v3488 = vmax.f32 %v3424, 0.0
    %v3489 = vmax.f32 %v3425, 0.0
    %v3490 = vmax.f32 %v3426, 0.0
    %v3491 = vmax.f32 %v3427, 0.0
    %v3492 = vmax.f32 %v3428, 0.0
    %v3493 = vmax.f32 %v3429, 0.0
    %v3494 = vmax.f32 %v3430, 0.0
    %v3495 = vmax.f32 %v3431, 0.0
    %v3496 = vmax.f32 %v3432, 0.0
    %v3497 = vmax.f32 %v3433, 0.0
    %v3498 = vmax.f32 %v3434, 0.0
    %v3499 = vmax.f32 %v3435, 0.0
    %v3500 = vmax.f32 %v3436, 0.0
    %v3501 = vmax.f32 %v3437, 0.0
    %v3502 = vmax.f32 %v3438, 0.0
    %v3503 = vmax.f32 %v3439, 0.0
    %v3504 = vmax.f32 %v3440, 0.0
    %v3505 = vmax.f32 %v3441, 0.0
    %v3506 = vmax.f32 %v3442, 0.0
    %v3507 = vmax.f32 %v3443, 0.0
    %v3508 = vmax.f32 %v3444, 0.0
    %v3509 = vmax.f32 %v3445, 0.0
    %v3510 = vmax.f32 %v3446, 0.0
    %v3511 = vmax.f32 %v3447, 0.0
    %v3512 = vmax.f32 %v3448, 0.0
    %v3513 = vmax.f32 %v3449, 0.0
    %v3514 = vmax.f32 %v3450, 0.0
    %v3515 = vmax.f32 %v3451, 0.0
    %v3516 = vmax.f32 %v3452, 0.0
    %v3517 = vmax.f32 %v3453, 0.0
    %v3518 = vmax.f32 %v3454, 0.0
    %v3519 = vmax.f32 %v3455, 0.0
    %v3520 = vmax.f32 %v3456, 0.0
    %v3521 = vmax.f32 %v3457, 0.0
    %v3522 = vmax.f32 %v3458, 0.0
    %v3523 = vmax.f32 %v3459, 0.0
    %v3524 = vmax.f32 %v3460, 0.0
    %v3525 = vmax.f32 %v3461, 0.0
    %v3526 = vmax.f32 %v3462, 0.0
    %v3527 = vmax.f32 %v3463, 0.0
    %v3528 = vmax.f32 %v3464, 0.0
    %v3529 = vmax.f32 %v3465, 0.0
    %v3530 = vmax.f32 %v3466, 0.0
    %v3531 = vmax.f32 %v3467, 0.0
    %v3532 = vmax.f32 %v3468, 0.0
    %v3533 = vmax.f32 %v3469, 0.0
    %v3534 = vmax.f32 %v3470, 0.0
    %v3535 = vmax.f32 %v3471, 0.0
    %v3536 = vsel %vm2132, %v3472, -inf
    %v3537 = vsel %vm2132, %v3474, -inf
    %v3538 = vmax.f32 %v3536, %v3537
    %v3539 = vsel %vm2132, %v3473, -inf
    %v3540 = vsel %vm2132, %v3475, -inf
    %v3541 = vmax.f32 %v3539, %v3540
    %v3542 = vsel %vm2132, %v3476, -inf
    %v3543 = vsel %vm2132, %v3478, -inf
    %v3544 = vmax.f32 %v3542, %v3543
    %v3545 = vsel %vm2132, %v3477, -inf
    %v3546 = vsel %vm2132, %v3479, -inf
    %v3547 = vmax.f32 %v3545, %v3546
    %v3548 = vsel %vm2132, %v3480, -inf
    %v3549 = vsel %vm2132, %v3482, -inf
    %v3550 = vmax.f32 %v3548, %v3549
    %v3551 = vsel %vm2132, %v3481, -inf
    %v3552 = vsel %vm2132, %v3483, -inf
    %v3553 = vmax.f32 %v3551, %v3552
    %v3554 = vsel %vm2132, %v3484, -inf
    %v3555 = vsel %vm2132, %v3486, -inf
    %v3556 = vmax.f32 %v3554, %v3555
    %v3557 = vsel %vm2132, %v3485, -inf
    %v3558 = vsel %vm2132, %v3487, -inf
    %v3559 = vmax.f32 %v3557, %v3558
    %v3560 = vsel %vm2132, %v3488, -inf
    %v3561 = vsel %vm2132, %v3490, -inf
    %v3562 = vmax.f32 %v3560, %v3561
    %v3563 = vsel %vm2132, %v3489, -inf
    %v3564 = vsel %vm2132, %v3491, -inf
    %v3565 = vmax.f32 %v3563, %v3564
    %v3566 = vsel %vm2132, %v3492, -inf
    %v3567 = vsel %vm2132, %v3494, -inf
    %v3568 = vmax.f32 %v3566, %v3567
    %v3569 = vsel %vm2132, %v3493, -inf
    %v3570 = vsel %vm2132, %v3495, -inf
    %v3571 = vmax.f32 %v3569, %v3570
    %v3572 = vsel %vm2132, %v3496, -inf
    %v3573 = vsel %vm2132, %v3498, -inf
    %v3574 = vmax.f32 %v3572, %v3573
    %v3575 = vsel %vm2132, %v3497, -inf
    %v3576 = vsel %vm2132, %v3499, -inf
    %v3577 = vmax.f32 %v3575, %v3576
    %v3578 = vsel %vm2132, %v3500, -inf
    %v3579 = vsel %vm2132, %v3502, -inf
    %v3580 = vmax.f32 %v3578, %v3579
    %v3581 = vsel %vm2132, %v3501, -inf
    %v3582 = vsel %vm2132, %v3503, -inf
    %v3583 = vmax.f32 %v3581, %v3582
    %v3584 = vsel %vm2132, %v3504, -inf
    %v3585 = vsel %vm2132, %v3506, -inf
    %v3586 = vmax.f32 %v3584, %v3585
    %v3587 = vsel %vm2132, %v3505, -inf
    %v3588 = vsel %vm2132, %v3507, -inf
    %v3589 = vmax.f32 %v3587, %v3588
    %v3590 = vsel %vm2132, %v3508, -inf
    %v3591 = vsel %vm2132, %v3510, -inf
    %v3592 = vmax.f32 %v3590, %v3591
    %v3593 = vsel %vm2132, %v3509, -inf
    %v3594 = vsel %vm2132, %v3511, -inf
    %v3595 = vmax.f32 %v3593, %v3594
    %v3596 = vsel %vm2132, %v3512, -inf
    %v3597 = vsel %vm2132, %v3514, -inf
    %v3598 = vmax.f32 %v3596, %v3597
    %v3599 = vsel %vm2132, %v3513, -inf
    %v3600 = vsel %vm2132, %v3515, -inf
    %v3601 = vmax.f32 %v3599, %v3600
    %v3602 = vsel %vm2132, %v3516, -inf
    %v3603 = vsel %vm2132, %v3518, -inf
    %v3604 = vmax.f32 %v3602, %v3603
    %v3605 = vsel %vm2132, %v3517, -inf
    %v3606 = vsel %vm2132, %v3519, -inf
    %v3607 = vmax.f32 %v3605, %v3606
    %v3608 = vsel %vm2132, %v3520, -inf
    %v3609 = vsel %vm2132, %v3522, -inf
    %v3610 = vmax.f32 %v3608, %v3609
    %v3611 = vsel %vm2132, %v3521, -inf
    %v3612 = vsel %vm2132, %v3523, -inf
    %v3613 = vmax.f32 %v3611, %v3612
    %v3614 = vsel %vm2132, %v3524, -inf
    %v3615 = vsel %vm2132, %v3526, -inf
    %v3616 = vmax.f32 %v3614, %v3615
    %v3617 = vsel %vm2132, %v3525, -inf
    %v3618 = vsel %vm2132, %v3527, -inf
    %v3619 = vmax.f32 %v3617, %v3618
    %v3620 = vsel %vm2132, %v3528, -inf
    %v3621 = vsel %vm2132, %v3530, -inf
    %v3622 = vmax.f32 %v3620, %v3621
    %v3623 = vsel %vm2132, %v3529, -inf
    %v3624 = vsel %vm2132, %v3531, -inf
    %v3625 = vmax.f32 %v3623, %v3624
    %v3626 = vsel %vm2132, %v3532, -inf
    %v3627 = vsel %vm2132, %v3534, -inf
    %v3628 = vmax.f32 %v3626, %v3627
    %v3629 = vsel %vm2132, %v3533, -inf
    %v3630 = vsel %vm2132, %v3535, -inf
    %v3631 = vmax.f32 %v3629, %v3630
    %3632 = vst.msk [vmem:[#allocation5] sm:$0xff] %vm2132, %v3538
    %3633 = vst.msk [vmem:[#allocation5 + $0x8] sm:$0xff] %vm2132, %v3541
    %3634 = vst.msk [vmem:[#allocation5 + $0x10] sm:$0xff] %vm2132, %v3544
    %3635 = vst.msk [vmem:[#allocation5 + $0x18] sm:$0xff] %vm2132, %v3547
    %3636 = vst.msk [vmem:[#allocation5 + $0x20] sm:$0xff] %vm2132, %v3550
    %3637 = vst.msk [vmem:[#allocation5 + $0x28] sm:$0xff] %vm2132, %v3553
    %3638 = vst.msk [vmem:[#allocation5 + $0x30] sm:$0xff] %vm2132, %v3556
    %3639 = vst.msk [vmem:[#allocation5 + $0x38] sm:$0xff] %vm2132, %v3559
    %3640 = vst.msk [vmem:[#allocation5 + $0x40] sm:$0xff] %vm2132, %v3562
    %3641 = vst.msk [vmem:[#allocation5 + $0x48] sm:$0xff] %vm2132, %v3565
    %3642 = vst.msk [vmem:[#allocation5 + $0x50] sm:$0xff] %vm2132, %v3568
    %3643 = vst.msk [vmem:[#allocation5 + $0x58] sm:$0xff] %vm2132, %v3571
    %3644 = vst.msk [vmem:[#allocation5 + $0x60] sm:$0xff] %vm2132, %v3574
    %3645 = vst.msk [vmem:[#allocation5 + $0x68] sm:$0xff] %vm2132, %v3577
    %3646 = vst.msk [vmem:[#allocation5 + $0x70] sm:$0xff] %vm2132, %v3580
    %3647 = vst.msk [vmem:[#allocation5 + $0x78] sm:$0xff] %vm2132, %v3583
    %3648 = vst.msk [vmem:[#allocation5 + $0x80] sm:$0xff] %vm2132, %v3586
    %3649 = vst.msk [vmem:[#allocation5 + $0x88] sm:$0xff] %vm2132, %v3589
    %3650 = vst.msk [vmem:[#allocation5 + $0x90] sm:$0xff] %vm2132, %v3592
    %3651 = vst.msk [vmem:[#allocation5 + $0x98] sm:$0xff] %vm2132, %v3595
    %3652 = vst.msk [vmem:[#allocation5 + $0xa0] sm:$0xff] %vm2132, %v3598
    %3653 = vst.msk [vmem:[#allocation5 + $0xa8] sm:$0xff] %vm2132, %v3601
    %3654 = vst.msk [vmem:[#allocation5 + $0xb0] sm:$0xff] %vm2132, %v3604
    %3655 = vst.msk [vmem:[#allocation5 + $0xb8] sm:$0xff] %vm2132, %v3607
    %3656 = vst.msk [vmem:[#allocation5 + $0xc0] sm:$0xff] %vm2132, %v3610
    %3657 = vst.msk [vmem:[#allocation5 + $0xc8] sm:$0xff] %vm2132, %v3613
    %3658 = vst.msk [vmem:[#allocation5 + $0xd0] sm:$0xff] %vm2132, %v3616
    %3659 = vst.msk [vmem:[#allocation5 + $0xd8] sm:$0xff] %vm2132, %v3619
    %3660 = vst.msk [vmem:[#allocation5 + $0xe0] sm:$0xff] %vm2132, %v3622
    %3661 = vst.msk [vmem:[#allocation5 + $0xe8] sm:$0xff] %vm2132, %v3625
    %3662 = vst.msk [vmem:[#allocation5 + $0xf0] sm:$0xff] %vm2132, %v3628
    %3663 = vst.msk [vmem:[#allocation5 + $0xf8] sm:$0xff] %vm2132, %v3631
    %v3664 = vld [vmem:[#allocation5] ss:$2 sm:$0xff]
    %s3665 = scalar_lea.vmem [#allocation5], 16
    %v3666 = vld [vmem:[%s3665] ss:$2 sm:$0xff]
    %s3667 = scalar_lea.vmem [#allocation5], 32
    %v3668 = vld [vmem:[%s3667] ss:$2 sm:$0xff]
    %s3669 = scalar_lea.vmem [#allocation5], 48
    %v3670 = vld [vmem:[%s3669] ss:$2 sm:$0xff]
    %s3671 = scalar_lea.vmem [#allocation5], 64
    %v3672 = vld [vmem:[%s3671] ss:$2 sm:$0xff]
    %s3673 = scalar_lea.vmem [#allocation5], 80
    %v3674 = vld [vmem:[%s3673] ss:$2 sm:$0xff]
    %s3675 = scalar_lea.vmem [#allocation5], 96
    %v3676 = vld [vmem:[%s3675] ss:$2 sm:$0xff]
    %s3677 = scalar_lea.vmem [#allocation5], 112
    %v3678 = vld [vmem:[%s3677] ss:$2 sm:$0xff]
    %s3679 = scalar_lea.vmem [#allocation5], 128
    %v3680 = vld [vmem:[%s3679] ss:$2 sm:$0xff]
    %s3681 = scalar_lea.vmem [#allocation5], 144
    %v3682 = vld [vmem:[%s3681] ss:$2 sm:$0xff]
    %s3683 = scalar_lea.vmem [#allocation5], 160
    %v3684 = vld [vmem:[%s3683] ss:$2 sm:$0xff]
    %s3685 = scalar_lea.vmem [#allocation5], 176
    %v3686 = vld [vmem:[%s3685] ss:$2 sm:$0xff]
    %s3687 = scalar_lea.vmem [#allocation5], 192
    %v3688 = vld [vmem:[%s3687] ss:$2 sm:$0xff]
    %s3689 = scalar_lea.vmem [#allocation5], 208
    %v3690 = vld [vmem:[%s3689] ss:$2 sm:$0xff]
    %s3691 = scalar_lea.vmem [#allocation5], 224
    %v3692 = vld [vmem:[%s3691] ss:$2 sm:$0xff]
    %s3693 = scalar_lea.vmem [#allocation5], 240
    %v3694 = vld [vmem:[%s3693] ss:$2 sm:$0xff]
    %s3695 = scalar_lea.vmem [#allocation5], 1
    %v3696 = vld [vmem:[%s3695] ss:$2 sm:$0xff]
    %s3697 = scalar_lea.vmem [#allocation5], 17
    %v3698 = vld [vmem:[%s3697] ss:$2 sm:$0xff]
    %s3699 = scalar_lea.vmem [#allocation5], 33
    %v3700 = vld [vmem:[%s3699] ss:$2 sm:$0xff]
    %s3701 = scalar_lea.vmem [#allocation5], 49
    %v3702 = vld [vmem:[%s3701] ss:$2 sm:$0xff]
    %s3703 = scalar_lea.vmem [#allocation5], 65
    %v3704 = vld [vmem:[%s3703] ss:$2 sm:$0xff]
    %s3705 = scalar_lea.vmem [#allocation5], 81
    %v3706 = vld [vmem:[%s3705] ss:$2 sm:$0xff]
    %s3707 = scalar_lea.vmem [#allocation5], 97
    %v3708 = vld [vmem:[%s3707] ss:$2 sm:$0xff]
    %s3709 = scalar_lea.vmem [#allocation5], 113
    %v3710 = vld [vmem:[%s3709] ss:$2 sm:$0xff]
    %s3711 = scalar_lea.vmem [#allocation5], 129
    %v3712 = vld [vmem:[%s3711] ss:$2 sm:$0xff]
    %s3713 = scalar_lea.vmem [#allocation5], 145
    %v3714 = vld [vmem:[%s3713] ss:$2 sm:$0xff]
    %s3715 = scalar_lea.vmem [#allocation5], 161
    %v3716 = vld [vmem:[%s3715] ss:$2 sm:$0xff]
    %s3717 = scalar_lea.vmem [#allocation5], 177
    %v3718 = vld [vmem:[%s3717] ss:$2 sm:$0xff]
    %s3719 = scalar_lea.vmem [#allocation5], 193
    %v3720 = vld [vmem:[%s3719] ss:$2 sm:$0xff]
    %s3721 = scalar_lea.vmem [#allocation5], 209
    %v3722 = vld [vmem:[%s3721] ss:$2 sm:$0xff]
    %s3723 = scalar_lea.vmem [#allocation5], 225
    %v3724 = vld [vmem:[%s3723] ss:$2 sm:$0xff]
    %s3725 = scalar_lea.vmem [#allocation5], 241
    %v3726 = vld [vmem:[%s3725] ss:$2 sm:$0xff]
    %v3727 = vmax.f32 %v3664, %v3696
    %v3728 = vmax.f32 %v3666, %v3698
    %v3729 = vmax.f32 %v3668, %v3700
    %v3730 = vmax.f32 %v3670, %v3702
    %v3731 = vmax.f32 %v3672, %v3704
    %v3732 = vmax.f32 %v3674, %v3706
    %v3733 = vmax.f32 %v3676, %v3708
    %v3734 = vmax.f32 %v3678, %v3710
    %v3735 = vmax.f32 %v3680, %v3712
    %v3736 = vmax.f32 %v3682, %v3714
    %v3737 = vmax.f32 %v3684, %v3716
    %v3738 = vmax.f32 %v3686, %v3718
    %v3739 = vmax.f32 %v3688, %v3720
    %v3740 = vmax.f32 %v3690, %v3722
    %v3741 = vmax.f32 %v3692, %v3724
    %v3742 = vmax.f32 %v3694, %v3726
    %3743 = vst.msk [vmem:[#allocation3] sm:$0xff] %vm2132, 0.0
    %vm3744 = vcmask 123904
    %3745 = vst.msk [vmem:[#allocation3 + $0x8] sm:$0x3] %vm3744, 0.0
    %3746 = vst.msk [vmem:[#allocation3 + $0xa0] sm:$0xff] %vm2132, 0.0
    %3747 = vst.msk [vmem:[#allocation3 + $0xa8] sm:$0x3] %vm3744, 0.0
    %s3748 = scalar_lea.vmem [#allocation3], 144
    %3749 = vst.msk [vmem:[%s3748] sm:$0xff] %vm2132, 0.0
    %3750 = vst.msk [vmem:[%s3748 + $0x8] sm:$0x3] %vm3744, 0.0
    %3751 = vst.msk [vmem:[%s3748 + $0xa0] sm:$0xff] %vm2132, 0.0
    %3752 = vst.msk [vmem:[%s3748 + $0xa8] sm:$0x3] %vm3744, 0.0
    %s3753 = scalar_lea.vmem [#allocation3], 16
    %vm3754 = vcmask 122880
    %3755 = vst.msk [vmem:[%s3753] sm:$0x1] %vm3754, 0.0
    %3756 = vst.msk [vmem:[%s3753 + $0x10] sm:$0x1] %vm3754, 0.0
    %3757 = vst.msk [vmem:[%s3753 + $0x20] sm:$0x1] %vm3754, 0.0
    %3758 = vst.msk [vmem:[%s3753 + $0x30] sm:$0x1] %vm3754, 0.0
    %3759 = vst.msk [vmem:[%s3753 + $0x40] sm:$0x1] %vm3754, 0.0
    %3760 = vst.msk [vmem:[%s3753 + $0x50] sm:$0x1] %vm3754, 0.0
    %3761 = vst.msk [vmem:[%s3753 + $0x60] sm:$0x1] %vm3754, 0.0
    %3762 = vst.msk [vmem:[%s3753 + $0x70] sm:$0x1] %vm3754, 0.0
    %3763 = vst.msk [vmem:[%s3753 + $0xa0] sm:$0x1] %vm3754, 0.0
    %3764 = vst.msk [vmem:[%s3753 + $0xb0] sm:$0x1] %vm3754, 0.0
    %3765 = vst.msk [vmem:[%s3753 + $0xc0] sm:$0x1] %vm3754, 0.0
    %3766 = vst.msk [vmem:[%s3753 + $0xd0] sm:$0x1] %vm3754, 0.0
    %3767 = vst.msk [vmem:[%s3753 + $0xe0] sm:$0x1] %vm3754, 0.0
    %3768 = vst.msk [vmem:[%s3753 + $0xf0] sm:$0x1] %vm3754, 0.0
    %3769 = vst.msk [vmem:[%s3753 + $0x100] sm:$0x1] %vm3754, 0.0
    %3770 = vst.msk [vmem:[%s3753 + $0x110] sm:$0x1] %vm3754, 0.0
    %3771 = vst.msk [vmem:[%s3753 + $0x9] sm:$0x1] %vm3754, 0.0
    %3772 = vst.msk [vmem:[%s3753 + $0x19] sm:$0x1] %vm3754, 0.0
    %3773 = vst.msk [vmem:[%s3753 + $0x29] sm:$0x1] %vm3754, 0.0
    %3774 = vst.msk [vmem:[%s3753 + $0x39] sm:$0x1] %vm3754, 0.0
    %3775 = vst.msk [vmem:[%s3753 + $0x49] sm:$0x1] %vm3754, 0.0
    %3776 = vst.msk [vmem:[%s3753 + $0x59] sm:$0x1] %vm3754, 0.0
    %3777 = vst.msk [vmem:[%s3753 + $0x69] sm:$0x1] %vm3754, 0.0
    %3778 = vst.msk [vmem:[%s3753 + $0x79] sm:$0x1] %vm3754, 0.0
    %3779 = vst.msk [vmem:[%s3753 + $0xa9] sm:$0x1] %vm3754, 0.0
    %3780 = vst.msk [vmem:[%s3753 + $0xb9] sm:$0x1] %vm3754, 0.0
    %3781 = vst.msk [vmem:[%s3753 + $0xc9] sm:$0x1] %vm3754, 0.0
    %3782 = vst.msk [vmem:[%s3753 + $0xd9] sm:$0x1] %vm3754, 0.0
    %3783 = vst.msk [vmem:[%s3753 + $0xe9] sm:$0x1] %vm3754, 0.0
    %3784 = vst.msk [vmem:[%s3753 + $0xf9] sm:$0x1] %vm3754, 0.0
    %3785 = vst.msk [vmem:[%s3753 + $0x109] sm:$0x1] %vm3754, 0.0
    %3786 = vst.msk [vmem:[%s3753 + $0x119] sm:$0x1] %vm3754, 0.0
    %3787 = vst.msk [vmem:[%s3753 + $0x1] sm:$0xff] %vm2132, %v3727
    %3788 = vst.msk [vmem:[%s3753 + $0x11] sm:$0xff] %vm2132, %v3728
    %3789 = vst.msk [vmem:[%s3753 + $0x21] sm:$0xff] %vm2132, %v3729
    %3790 = vst.msk [vmem:[%s3753 + $0x31] sm:$0xff] %vm2132, %v3730
    %3791 = vst.msk [vmem:[%s3753 + $0x41] sm:$0xff] %vm2132, %v3731
    %3792 = vst.msk [vmem:[%s3753 + $0x51] sm:$0xff] %vm2132, %v3732
    %3793 = vst.msk [vmem:[%s3753 + $0x61] sm:$0xff] %vm2132, %v3733
    %3794 = vst.msk [vmem:[%s3753 + $0x71] sm:$0xff] %vm2132, %v3734
    %3795 = vst.msk [vmem:[%s3753 + $0xa1] sm:$0xff] %vm2132, %v3735
    %3796 = vst.msk [vmem:[%s3753 + $0xb1] sm:$0xff] %vm2132, %v3736
    %3797 = vst.msk [vmem:[%s3753 + $0xc1] sm:$0xff] %vm2132, %v3737
    %3798 = vst.msk [vmem:[%s3753 + $0xd1] sm:$0xff] %vm2132, %v3738
    %3799 = vst.msk [vmem:[%s3753 + $0xe1] sm:$0xff] %vm2132, %v3739
    %3800 = vst.msk [vmem:[%s3753 + $0xf1] sm:$0xff] %vm2132, %v3740
    %3801 = vst.msk [vmem:[%s3753 + $0x101] sm:$0xff] %vm2132, %v3741
    %3802 = vst.msk [vmem:[%s3753 + $0x111] sm:$0xff] %vm2132, %v3742
    %v3803 = vld [vmem:[#allocation3] sm:$0xff]
    %v3804 = vld [vmem:[#allocation3 + $0x10] sm:$0xff]
    %v3805 = vld [vmem:[#allocation3 + $0x20] sm:$0xff]
    %v3806 = vld [vmem:[#allocation3 + $0x30] sm:$0xff]
    %v3807 = vld [vmem:[#allocation3 + $0x40] sm:$0xff]
    %v3808 = vld [vmem:[#allocation3 + $0x50] sm:$0xff]
    %v3809 = vld [vmem:[#allocation3 + $0x60] sm:$0xff]
    %v3810 = vld [vmem:[#allocation3 + $0x70] sm:$0xff]
    %v3811 = vld [vmem:[#allocation3 + $0xa0] sm:$0xff]
    %v3812 = vld [vmem:[#allocation3 + $0xb0] sm:$0xff]
    %v3813 = vld [vmem:[#allocation3 + $0xc0] sm:$0xff]
    %v3814 = vld [vmem:[#allocation3 + $0xd0] sm:$0xff]
    %v3815 = vld [vmem:[#allocation3 + $0xe0] sm:$0xff]
    %v3816 = vld [vmem:[#allocation3 + $0xf0] sm:$0xff]
    %v3817 = vld [vmem:[#allocation3 + $0x100] sm:$0xff]
    %v3818 = vld [vmem:[#allocation3 + $0x110] sm:$0xff]
    %v3819 = vpack.c.bf16 %v3804, %v3803
    %v3820 = vpack.c.bf16 %v3806, %v3805
    %v3821 = vpack.c.bf16 %v3808, %v3807
    %v3822 = vpack.c.bf16 %v3810, %v3809
    %v3823 = vpack.c.bf16 %v3812, %v3811
    %v3824 = vpack.c.bf16 %v3814, %v3813
    %v3825 = vpack.c.bf16 %v3816, %v3815
    %v3826 = vpack.c.bf16 %v3818, %v3817
    %v3827 = vld [vmem:[#allocation3 + $0x1] sm:$0xff]
    %v3828 = vld [vmem:[#allocation3 + $0x11] sm:$0xff]
    %v3829 = vld [vmem:[#allocation3 + $0x21] sm:$0xff]
    %v3830 = vld [vmem:[#allocation3 + $0x31] sm:$0xff]
    %v3831 = vld [vmem:[#allocation3 + $0x41] sm:$0xff]
    %v3832 = vld [vmem:[#allocation3 + $0x51] sm:$0xff]
    %v3833 = vld [vmem:[#allocation3 + $0x61] sm:$0xff]
    %v3834 = vld [vmem:[#allocation3 + $0x71] sm:$0xff]
    %v3835 = vld [vmem:[#allocation3 + $0xa1] sm:$0xff]
    %v3836 = vld [vmem:[#allocation3 + $0xb1] sm:$0xff]
    %v3837 = vld [vmem:[#allocation3 + $0xc1] sm:$0xff]
    %v3838 = vld [vmem:[#allocation3 + $0xd1] sm:$0xff]
    %v3839 = vld [vmem:[#allocation3 + $0xe1] sm:$0xff]
    %v3840 = vld [vmem:[#allocation3 + $0xf1] sm:$0xff]
    %v3841 = vld [vmem:[#allocation3 + $0x101] sm:$0xff]
    %v3842 = vld [vmem:[#allocation3 + $0x111] sm:$0xff]
    %v3843 = vpack.c.bf16 %v3828, %v3827
    %v3844 = vpack.c.bf16 %v3830, %v3829
    %v3845 = vpack.c.bf16 %v3832, %v3831
    %v3846 = vpack.c.bf16 %v3834, %v3833
    %v3847 = vpack.c.bf16 %v3836, %v3835
    %v3848 = vpack.c.bf16 %v3838, %v3837
    %v3849 = vpack.c.bf16 %v3840, %v3839
    %v3850 = vpack.c.bf16 %v3842, %v3841
    %v3851 = vld [vmem:[#allocation3 + $0x2] sm:$0xff]
    %v3852 = vld [vmem:[#allocation3 + $0x12] sm:$0xff]
    %v3853 = vld [vmem:[#allocation3 + $0x22] sm:$0xff]
    %v3854 = vld [vmem:[#allocation3 + $0x32] sm:$0xff]
    %v3855 = vld [vmem:[#allocation3 + $0x42] sm:$0xff]
    %v3856 = vld [vmem:[#allocation3 + $0x52] sm:$0xff]
    %v3857 = vld [vmem:[#allocation3 + $0x62] sm:$0xff]
    %v3858 = vld [vmem:[#allocation3 + $0x72] sm:$0xff]
    %v3859 = vld [vmem:[#allocation3 + $0xa2] sm:$0xff]
    %v3860 = vld [vmem:[#allocation3 + $0xb2] sm:$0xff]
    %v3861 = vld [vmem:[#allocation3 + $0xc2] sm:$0xff]
    %v3862 = vld [vmem:[#allocation3 + $0xd2] sm:$0xff]
    %v3863 = vld [vmem:[#allocation3 + $0xe2] sm:$0xff]
    %v3864 = vld [vmem:[#allocation3 + $0xf2] sm:$0xff]
    %v3865 = vld [vmem:[#allocation3 + $0x102] sm:$0xff]
    %v3866 = vld [vmem:[#allocation3 + $0x112] sm:$0xff]
    %v3867 = vpack.c.bf16 %v3852, %v3851
    %v3868 = vpack.c.bf16 %v3854, %v3853
    %v3869 = vpack.c.bf16 %v3856, %v3855
    %v3870 = vpack.c.bf16 %v3858, %v3857
    %v3871 = vpack.c.bf16 %v3860, %v3859
    %v3872 = vpack.c.bf16 %v3862, %v3861
    %v3873 = vpack.c.bf16 %v3864, %v3863
    %v3874 = vpack.c.bf16 %v3866, %v3865
    %v3875 = vld [vmem:[%s3753] sm:$0xff]
    %v3876 = vld [vmem:[%s3753 + $0x10] sm:$0xff]
    %v3877 = vld [vmem:[%s3753 + $0x20] sm:$0xff]
    %v3878 = vld [vmem:[%s3753 + $0x30] sm:$0xff]
    %v3879 = vld [vmem:[%s3753 + $0x40] sm:$0xff]
    %v3880 = vld [vmem:[%s3753 + $0x50] sm:$0xff]
    %v3881 = vld [vmem:[%s3753 + $0x60] sm:$0xff]
    %v3882 = vld [vmem:[%s3753 + $0x70] sm:$0xff]
    %v3883 = vld [vmem:[%s3753 + $0xa0] sm:$0xff]
    %v3884 = vld [vmem:[%s3753 + $0xb0] sm:$0xff]
    %v3885 = vld [vmem:[%s3753 + $0xc0] sm:$0xff]
    %v3886 = vld [vmem:[%s3753 + $0xd0] sm:$0xff]
    %v3887 = vld [vmem:[%s3753 + $0xe0] sm:$0xff]
    %v3888 = vld [vmem:[%s3753 + $0xf0] sm:$0xff]
    %v3889 = vld [vmem:[%s3753 + $0x100] sm:$0xff]
    %v3890 = vld [vmem:[%s3753 + $0x110] sm:$0xff]
    %v3891 = vpack.c.bf16 %v3876, %v3875
    %v3892 = vpack.c.bf16 %v3878, %v3877
    %v3893 = vpack.c.bf16 %v3880, %v3879
    %v3894 = vpack.c.bf16 %v3882, %v3881
    %v3895 = vpack.c.bf16 %v3884, %v3883
    %v3896 = vpack.c.bf16 %v3886, %v3885
    %v3897 = vpack.c.bf16 %v3888, %v3887
    %v3898 = vpack.c.bf16 %v3890, %v3889
    %v3899 = vld [vmem:[%s3753 + $0x1] sm:$0xff]
    %v3900 = vld [vmem:[%s3753 + $0x11] sm:$0xff]
    %v3901 = vld [vmem:[%s3753 + $0x21] sm:$0xff]
    %v3902 = vld [vmem:[%s3753 + $0x31] sm:$0xff]
    %v3903 = vld [vmem:[%s3753 + $0x41] sm:$0xff]
    %v3904 = vld [vmem:[%s3753 + $0x51] sm:$0xff]
    %v3905 = vld [vmem:[%s3753 + $0x61] sm:$0xff]
    %v3906 = vld [vmem:[%s3753 + $0x71] sm:$0xff]
    %v3907 = vld [vmem:[%s3753 + $0xa1] sm:$0xff]
    %v3908 = vld [vmem:[%s3753 + $0xb1] sm:$0xff]
    %v3909 = vld [vmem:[%s3753 + $0xc1] sm:$0xff]
    %v3910 = vld [vmem:[%s3753 + $0xd1] sm:$0xff]
    %v3911 = vld [vmem:[%s3753 + $0xe1] sm:$0xff]
    %v3912 = vld [vmem:[%s3753 + $0xf1] sm:$0xff]
    %v3913 = vld [vmem:[%s3753 + $0x101] sm:$0xff]
    %v3914 = vld [vmem:[%s3753 + $0x111] sm:$0xff]
    %v3915 = vpack.c.bf16 %v3900, %v3899
    %v3916 = vpack.c.bf16 %v3902, %v3901
    %v3917 = vpack.c.bf16 %v3904, %v3903
    %v3918 = vpack.c.bf16 %v3906, %v3905
    %v3919 = vpack.c.bf16 %v3908, %v3907
    %v3920 = vpack.c.bf16 %v3910, %v3909
    %v3921 = vpack.c.bf16 %v3912, %v3911
    %v3922 = vpack.c.bf16 %v3914, %v3913
    %v3923 = vld [vmem:[%s3753 + $0x2] sm:$0xff]
    %v3924 = vld [vmem:[%s3753 + $0x12] sm:$0xff]
    %v3925 = vld [vmem:[%s3753 + $0x22] sm:$0xff]
    %v3926 = vld [vmem:[%s3753 + $0x32] sm:$0xff]
    %v3927 = vld [vmem:[%s3753 + $0x42] sm:$0xff]
    %v3928 = vld [vmem:[%s3753 + $0x52] sm:$0xff]
    %v3929 = vld [vmem:[%s3753 + $0x62] sm:$0xff]
    %v3930 = vld [vmem:[%s3753 + $0x72] sm:$0xff]
    %v3931 = vld [vmem:[%s3753 + $0xa2] sm:$0xff]
    %v3932 = vld [vmem:[%s3753 + $0xb2] sm:$0xff]
    %v3933 = vld [vmem:[%s3753 + $0xc2] sm:$0xff]
    %v3934 = vld [vmem:[%s3753 + $0xd2] sm:$0xff]
    %v3935 = vld [vmem:[%s3753 + $0xe2] sm:$0xff]
    %v3936 = vld [vmem:[%s3753 + $0xf2] sm:$0xff]
    %v3937 = vld [vmem:[%s3753 + $0x102] sm:$0xff]
    %v3938 = vld [vmem:[%s3753 + $0x112] sm:$0xff]
    %v3939 = vpack.c.bf16 %v3924, %v3923
    %v3940 = vpack.c.bf16 %v3926, %v3925
    %v3941 = vpack.c.bf16 %v3928, %v3927
    %v3942 = vpack.c.bf16 %v3930, %v3929
    %v3943 = vpack.c.bf16 %v3932, %v3931
    %v3944 = vpack.c.bf16 %v3934, %v3933
    %v3945 = vpack.c.bf16 %v3936, %v3935
    %v3946 = vpack.c.bf16 %v3938, %v3937
    %s3947 = scalar_lea.vmem [#allocation3], 32
    %v3948 = vld [vmem:[%s3947] sm:$0xff]
    %v3949 = vld [vmem:[%s3947 + $0x10] sm:$0xff]
    %v3950 = vld [vmem:[%s3947 + $0x20] sm:$0xff]
    %v3951 = vld [vmem:[%s3947 + $0x30] sm:$0xff]
    %v3952 = vld [vmem:[%s3947 + $0x40] sm:$0xff]
    %v3953 = vld [vmem:[%s3947 + $0x50] sm:$0xff]
    %v3954 = vld [vmem:[%s3947 + $0x60] sm:$0xff]
    %v3955 = vld [vmem:[%s3947 + $0x70] sm:$0xff]
    %v3956 = vld [vmem:[%s3947 + $0xa0] sm:$0xff]
    %v3957 = vld [vmem:[%s3947 + $0xb0] sm:$0xff]
    %v3958 = vld [vmem:[%s3947 + $0xc0] sm:$0xff]
    %v3959 = vld [vmem:[%s3947 + $0xd0] sm:$0xff]
    %v3960 = vld [vmem:[%s3947 + $0xe0] sm:$0xff]
    %v3961 = vld [vmem:[%s3947 + $0xf0] sm:$0xff]
    %v3962 = vld [vmem:[%s3947 + $0x100] sm:$0xff]
    %v3963 = vld [vmem:[%s3947 + $0x110] sm:$0xff]
    %v3964 = vpack.c.bf16 %v3949, %v3948
    %v3965 = vpack.c.bf16 %v3951, %v3950
    %v3966 = vpack.c.bf16 %v3953, %v3952
    %v3967 = vpack.c.bf16 %v3955, %v3954
    %v3968 = vpack.c.bf16 %v3957, %v3956
    %v3969 = vpack.c.bf16 %v3959, %v3958
    %v3970 = vpack.c.bf16 %v3961, %v3960
    %v3971 = vpack.c.bf16 %v3963, %v3962
    %v3972 = vld [vmem:[%s3947 + $0x1] sm:$0xff]
    %v3973 = vld [vmem:[%s3947 + $0x11] sm:$0xff]
    %v3974 = vld [vmem:[%s3947 + $0x21] sm:$0xff]
    %v3975 = vld [vmem:[%s3947 + $0x31] sm:$0xff]
    %v3976 = vld [vmem:[%s3947 + $0x41] sm:$0xff]
    %v3977 = vld [vmem:[%s3947 + $0x51] sm:$0xff]
    %v3978 = vld [vmem:[%s3947 + $0x61] sm:$0xff]
    %v3979 = vld [vmem:[%s3947 + $0x71] sm:$0xff]
    %v3980 = vld [vmem:[%s3947 + $0xa1] sm:$0xff]
    %v3981 = vld [vmem:[%s3947 + $0xb1] sm:$0xff]
    %v3982 = vld [vmem:[%s3947 + $0xc1] sm:$0xff]
    %v3983 = vld [vmem:[%s3947 + $0xd1] sm:$0xff]
    %v3984 = vld [vmem:[%s3947 + $0xe1] sm:$0xff]
    %v3985 = vld [vmem:[%s3947 + $0xf1] sm:$0xff]
    %v3986 = vld [vmem:[%s3947 + $0x101] sm:$0xff]
    %v3987 = vld [vmem:[%s3947 + $0x111] sm:$0xff]
    %v3988 = vpack.c.bf16 %v3973, %v3972
    %v3989 = vpack.c.bf16 %v3975, %v3974
    %v3990 = vpack.c.bf16 %v3977, %v3976
    %v3991 = vpack.c.bf16 %v3979, %v3978
    %v3992 = vpack.c.bf16 %v3981, %v3980
    %v3993 = vpack.c.bf16 %v3983, %v3982
    %v3994 = vpack.c.bf16 %v3985, %v3984
    %v3995 = vpack.c.bf16 %v3987, %v3986
    %v3996 = vld [vmem:[%s3947 + $0x2] sm:$0xff]
    %v3997 = vld [vmem:[%s3947 + $0x12] sm:$0xff]
    %v3998 = vld [vmem:[%s3947 + $0x22] sm:$0xff]
    %v3999 = vld [vmem:[%s3947 + $0x32] sm:$0xff]
    %v4000 = vld [vmem:[%s3947 + $0x42] sm:$0xff]
    %v4001 = vld [vmem:[%s3947 + $0x52] sm:$0xff]
    %v4002 = vld [vmem:[%s3947 + $0x62] sm:$0xff]
    %v4003 = vld [vmem:[%s3947 + $0x72] sm:$0xff]
    %v4004 = vld [vmem:[%s3947 + $0xa2] sm:$0xff]
    %v4005 = vld [vmem:[%s3947 + $0xb2] sm:$0xff]
    %v4006 = vld [vmem:[%s3947 + $0xc2] sm:$0xff]
    %v4007 = vld [vmem:[%s3947 + $0xd2] sm:$0xff]
    %v4008 = vld [vmem:[%s3947 + $0xe2] sm:$0xff]
    %v4009 = vld [vmem:[%s3947 + $0xf2] sm:$0xff]
    %v4010 = vld [vmem:[%s3947 + $0x102] sm:$0xff]
    %v4011 = vld [vmem:[%s3947 + $0x112] sm:$0xff]
    %v4012 = vpack.c.bf16 %v3997, %v3996
    %v4013 = vpack.c.bf16 %v3999, %v3998
    %v4014 = vpack.c.bf16 %v4001, %v4000
    %v4015 = vpack.c.bf16 %v4003, %v4002
    %v4016 = vpack.c.bf16 %v4005, %v4004
    %v4017 = vpack.c.bf16 %v4007, %v4006
    %v4018 = vpack.c.bf16 %v4009, %v4008
    %v4019 = vpack.c.bf16 %v4011, %v4010
    %4028 = vrot.lane.b32.xlu0 %v3843, 16
    %v4029 = vpop.permute.xlu0 %4028
    %4030 = vrot.lane.b32.xlu0 %v3844, 16
    %v4031 = vpop.permute.xlu0 %4030
    %4032 = vrot.lane.b32.xlu0 %v3845, 16
    %v4033 = vpop.permute.xlu0 %4032
    %4034 = vrot.lane.b32.xlu0 %v3846, 16
    %v4035 = vpop.permute.xlu0 %4034
    %4036 = vrot.lane.b32.xlu0 %v3847, 16
    %v4037 = vpop.permute.xlu0 %4036
    %4038 = vrot.lane.b32.xlu0 %v3848, 16
    %v4039 = vpop.permute.xlu0 %4038
    %4040 = vrot.lane.b32.xlu0 %v3849, 16
    %v4041 = vpop.permute.xlu0 %4040
    %4042 = vrot.lane.b32.xlu0 %v3850, 16
    %v4043 = vpop.permute.xlu0 %4042
    %4052 = vrot.lane.b32.xlu0 %v3867, 32
    %v4053 = vpop.permute.xlu0 %4052
    %4054 = vrot.lane.b32.xlu0 %v3868, 32
    %v4055 = vpop.permute.xlu0 %4054
    %4056 = vrot.lane.b32.xlu0 %v3869, 32
    %v4057 = vpop.permute.xlu0 %4056
    %4058 = vrot.lane.b32.xlu0 %v3870, 32
    %v4059 = vpop.permute.xlu0 %4058
    %4060 = vrot.lane.b32.xlu0 %v3871, 32
    %v4061 = vpop.permute.xlu0 %4060
    %4062 = vrot.lane.b32.xlu0 %v3872, 32
    %v4063 = vpop.permute.xlu0 %4062
    %4064 = vrot.lane.b32.xlu0 %v3873, 32
    %v4065 = vpop.permute.xlu0 %4064
    %4066 = vrot.lane.b32.xlu0 %v3874, 32
    %v4067 = vpop.permute.xlu0 %4066
    %4076 = vrot.lane.b32.xlu0 %v3891, 48
    %v4077 = vpop.permute.xlu0 %4076
    %4078 = vrot.lane.b32.xlu0 %v3892, 48
    %v4079 = vpop.permute.xlu0 %4078
    %4080 = vrot.lane.b32.xlu0 %v3893, 48
    %v4081 = vpop.permute.xlu0 %4080
    %4082 = vrot.lane.b32.xlu0 %v3894, 48
    %v4083 = vpop.permute.xlu0 %4082
    %4084 = vrot.lane.b32.xlu0 %v3895, 48
    %v4085 = vpop.permute.xlu0 %4084
    %4086 = vrot.lane.b32.xlu0 %v3896, 48
    %v4087 = vpop.permute.xlu0 %4086
    %4088 = vrot.lane.b32.xlu0 %v3897, 48
    %v4089 = vpop.permute.xlu0 %4088
    %4090 = vrot.lane.b32.xlu0 %v3898, 48
    %v4091 = vpop.permute.xlu0 %4090
    %4100 = vrot.lane.b32.xlu0 %v3915, 64
    %v4101 = vpop.permute.xlu0 %4100
    %4102 = vrot.lane.b32.xlu0 %v3916, 64
    %v4103 = vpop.permute.xlu0 %4102
    %4104 = vrot.lane.b32.xlu0 %v3917, 64
    %v4105 = vpop.permute.xlu0 %4104
    %4106 = vrot.lane.b32.xlu0 %v3918, 64
    %v4107 = vpop.permute.xlu0 %4106
    %4108 = vrot.lane.b32.xlu0 %v3919, 64
    %v4109 = vpop.permute.xlu0 %4108
    %4110 = vrot.lane.b32.xlu0 %v3920, 64
    %v4111 = vpop.permute.xlu0 %4110
    %4112 = vrot.lane.b32.xlu0 %v3921, 64
    %v4113 = vpop.permute.xlu0 %4112
    %4114 = vrot.lane.b32.xlu0 %v3922, 64
    %v4115 = vpop.permute.xlu0 %4114
    %4124 = vrot.lane.b32.xlu0 %v3939, 80
    %v4125 = vpop.permute.xlu0 %4124
    %4126 = vrot.lane.b32.xlu0 %v3940, 80
    %v4127 = vpop.permute.xlu0 %4126
    %4128 = vrot.lane.b32.xlu0 %v3941, 80
    %v4129 = vpop.permute.xlu0 %4128
    %4130 = vrot.lane.b32.xlu0 %v3942, 80
    %v4131 = vpop.permute.xlu0 %4130
    %4132 = vrot.lane.b32.xlu0 %v3943, 80
    %v4133 = vpop.permute.xlu0 %4132
    %4134 = vrot.lane.b32.xlu0 %v3944, 80
    %v4135 = vpop.permute.xlu0 %4134
    %4136 = vrot.lane.b32.xlu0 %v3945, 80
    %v4137 = vpop.permute.xlu0 %4136
    %4138 = vrot.lane.b32.xlu0 %v3946, 80
    %v4139 = vpop.permute.xlu0 %4138
    %4148 = vrot.lane.b32.xlu0 %v3964, 96
    %v4149 = vpop.permute.xlu0 %4148
    %4150 = vrot.lane.b32.xlu0 %v3965, 96
    %v4151 = vpop.permute.xlu0 %4150
    %4152 = vrot.lane.b32.xlu0 %v3966, 96
    %v4153 = vpop.permute.xlu0 %4152
    %4154 = vrot.lane.b32.xlu0 %v3967, 96
    %v4155 = vpop.permute.xlu0 %4154
    %4156 = vrot.lane.b32.xlu0 %v3968, 96
    %v4157 = vpop.permute.xlu0 %4156
    %4158 = vrot.lane.b32.xlu0 %v3969, 96
    %v4159 = vpop.permute.xlu0 %4158
    %4160 = vrot.lane.b32.xlu0 %v3970, 96
    %v4161 = vpop.permute.xlu0 %4160
    %4162 = vrot.lane.b32.xlu0 %v3971, 96
    %v4163 = vpop.permute.xlu0 %4162
    %4172 = vrot.lane.b32.xlu0 %v3988, 112
    %v4173 = vpop.permute.xlu0 %4172
    %4174 = vrot.lane.b32.xlu0 %v3989, 112
    %v4175 = vpop.permute.xlu0 %4174
    %4176 = vrot.lane.b32.xlu0 %v3990, 112
    %v4177 = vpop.permute.xlu0 %4176
    %4178 = vrot.lane.b32.xlu0 %v3991, 112
    %v4179 = vpop.permute.xlu0 %4178
    %4180 = vrot.lane.b32.xlu0 %v3992, 112
    %v4181 = vpop.permute.xlu0 %4180
    %4182 = vrot.lane.b32.xlu0 %v3993, 112
    %v4183 = vpop.permute.xlu0 %4182
    %4184 = vrot.lane.b32.xlu0 %v3994, 112
    %v4185 = vpop.permute.xlu0 %4184
    %4186 = vrot.lane.b32.xlu0 %v3995, 112
    %v4187 = vpop.permute.xlu0 %4186
    %v4190 = vsel %vm2132, %v3819, %v4029
    %v4193 = vsel %vm2132, %v3820, %v4031
    %v4196 = vsel %vm2132, %v3821, %v4033
    %v4199 = vsel %vm2132, %v3822, %v4035
    %v4202 = vsel %vm2132, %v3823, %v4037
    %v4205 = vsel %vm2132, %v3824, %v4039
    %v4208 = vsel %vm2132, %v3825, %v4041
    %v4211 = vsel %vm2132, %v3826, %v4043
    %v4213 = vsel %vm2392, %v4190, %v4053
    %v4215 = vsel %vm2392, %v4193, %v4055
    %v4217 = vsel %vm2392, %v4196, %v4057
    %v4219 = vsel %vm2392, %v4199, %v4059
    %v4221 = vsel %vm2392, %v4202, %v4061
    %v4223 = vsel %vm2392, %v4205, %v4063
    %v4225 = vsel %vm2392, %v4208, %v4065
    %v4227 = vsel %vm2392, %v4211, %v4067
    %vm4228 = vcmask 392192
    %v4230 = vsel %vm4228, %v4213, %v4077
    %v4232 = vsel %vm4228, %v4215, %v4079
    %v4234 = vsel %vm4228, %v4217, %v4081
    %v4236 = vsel %vm4228, %v4219, %v4083
    %v4238 = vsel %vm4228, %v4221, %v4085
    %v4240 = vsel %vm4228, %v4223, %v4087
    %v4242 = vsel %vm4228, %v4225, %v4089
    %v4244 = vsel %vm4228, %v4227, %v4091
    %vm4245 = vcmask 523264
    %v4247 = vsel %vm4245, %v4230, %v4101
    %v4249 = vsel %vm4245, %v4232, %v4103
    %v4251 = vsel %vm4245, %v4234, %v4105
    %v4253 = vsel %vm4245, %v4236, %v4107
    %v4255 = vsel %vm4245, %v4238, %v4109
    %v4257 = vsel %vm4245, %v4240, %v4111
    %v4259 = vsel %vm4245, %v4242, %v4113
    %v4261 = vsel %vm4245, %v4244, %v4115
    %vm4262 = vcmask 654336
    %v4264 = vsel %vm4262, %v4247, %v4125
    %v4266 = vsel %vm4262, %v4249, %v4127
    %v4268 = vsel %vm4262, %v4251, %v4129
    %v4270 = vsel %vm4262, %v4253, %v4131
    %v4272 = vsel %vm4262, %v4255, %v4133
    %v4274 = vsel %vm4262, %v4257, %v4135
    %v4276 = vsel %vm4262, %v4259, %v4137
    %v4278 = vsel %vm4262, %v4261, %v4139
    %vm4279 = vcmask 785408
    %v4281 = vsel %vm4279, %v4264, %v4149
    %v4283 = vsel %vm4279, %v4266, %v4151
    %v4285 = vsel %vm4279, %v4268, %v4153
    %v4287 = vsel %vm4279, %v4270, %v4155
    %v4289 = vsel %vm4279, %v4272, %v4157
    %v4291 = vsel %vm4279, %v4274, %v4159
    %v4293 = vsel %vm4279, %v4276, %v4161
    %v4295 = vsel %vm4279, %v4278, %v4163
    %vm4296 = vcmask 916480
    %v4298 = vsel %vm4296, %v4281, %v4173
    %v4301 = vsel %vm4296, %v4283, %v4175
    %v4304 = vsel %vm4296, %v4285, %v4177
    %v4307 = vsel %vm4296, %v4287, %v4179
    %v4310 = vsel %vm4296, %v4289, %v4181
    %v4313 = vsel %vm4296, %v4291, %v4183
    %v4316 = vsel %vm4296, %v4293, %v4185
    %v4319 = vsel %vm4296, %v4295, %v4187
    %v4321 = vld [vmem:[%s3] sm:$0xf]
    %v4322 = vld [vmem:[%s3 + $0x4] sm:$0xf]
    %v4323 = vld [vmem:[%s3 + $0x8] sm:$0xf]
    %v4324 = vld [vmem:[%s3 + $0xc] sm:$0xf]
    %v4325 = vld [vmem:[%s3 + $0x10] sm:$0xf]
    %v4326 = vld [vmem:[%s3 + $0x14] sm:$0xf]
    %v4327 = vld [vmem:[%s3 + $0x18] sm:$0xf]
    %v4328 = vld [vmem:[%s3 + $0x1c] sm:$0xf]
    %v4329 = vld [vmem:[%s3 + $0x20] sm:$0xf]
    %v4330 = vld [vmem:[%s3 + $0x24] sm:$0xf]
    %v4331 = vld [vmem:[%s3 + $0x28] sm:$0xf]
    %v4332 = vld [vmem:[%s3 + $0x2c] sm:$0xf]
    %v4333 = vld [vmem:[%s3 + $0x30] sm:$0xf]
    %v4334 = vld [vmem:[%s3 + $0x34] sm:$0xf]
    %v4335 = vld [vmem:[%s3 + $0x38] sm:$0xf]
    %v4336 = vld [vmem:[%s3 + $0x3c] sm:$0xf]
    %v4337 = vld [vmem:[%s3 + $0x40] sm:$0xf]
    %v4338 = vld [vmem:[%s3 + $0x44] sm:$0xf]
    %v4339 = vld [vmem:[%s4] sm:$0x1]
    %v4341 = vlaneseq
    %v4342 = vshrl.u32 %v4341, 7
    %v4343 = vsub.s32 0, %v4342
    %v4344 = vrot.slane %v4339, %v4343
    %v4364 = vunpack.c.l.b16 %v4321
    %v4365 = vunpack.c.l.b16 %v4322
    %v4366 = vunpack.c.l.b16 %v4323
    %v4367 = vunpack.c.l.b16 %v4324
    %v4368 = vunpack.c.l.b16 %v4325
    %v4369 = vunpack.c.l.b16 %v4326
    %v4370 = vunpack.c.l.b16 %v4327
    %v4371 = vunpack.c.l.b16 %v4328
    %v4372 = vunpack.c.l.b16 %v4329
    %v4373 = vunpack.c.l.b16 %v4330
    %v4374 = vunpack.c.l.b16 %v4331
    %v4375 = vunpack.c.l.b16 %v4332
    %v4376 = vunpack.c.l.b16 %v4333
    %v4377 = vunpack.c.l.b16 %v4334
    %v4378 = vunpack.c.l.b16 %v4335
    %v4379 = vunpack.c.l.b16 %v4336
    %v4380 = vunpack.c.l.b16 %v4337
    %v4381 = vunpack.c.l.b16 %v4338
    %v4382 = vpack.c.b16 %v4365, %v4364
    %v4383 = vpack.c.b16 %v4367, %v4366
    %v4384 = vpack.c.b16 %v4369, %v4368
    %v4385 = vpack.c.b16 %v4371, %v4370
    %v4386 = vpack.c.b16 %v4373, %v4372
    %v4387 = vpack.c.b16 %v4375, %v4374
    %v4388 = vpack.c.b16 %v4377, %v4376
    %v4389 = vpack.c.b16 %v4379, %v4378
    %v4390 = vpack.c.b16 %v4381, %v4380
    %v4401 = vsel %vm2132, %v4012, 0
    %v4404 = vsel %vm2132, %v4013, 0
    %v4407 = vsel %vm2132, %v4014, 0
    %v4410 = vsel %vm2132, %v4015, 0
    %v4413 = vsel %vm2132, %v4016, 0
    %v4416 = vsel %vm2132, %v4017, 0
    %v4419 = vsel %vm2132, %v4018, 0
    %v4422 = vsel %vm2132, %v4019, 0
    %4424 = vmatprep.subr.bf16.mxu0 0
    %4425 = vmatpush1.bf16.msra.mxu0 %v4382
    %4426 = vmatprep.subr.bf16.mxu0 0
    %4427 = vmatpush1.bf16.msra.mxu0 %v4383
    %4428 = vmatprep.subr.bf16.mxu0 0
    %4429 = vmatpush1.bf16.msra.mxu0 %v4384
    %4430 = vmatprep.subr.bf16.mxu0 0
    %4431 = vmatpush1.bf16.msra.mxu0 %v4385
    %4432 = vmatprep.subr.bf16.mxu0 0
    %4433 = vmatpush1.bf16.msra.mxu0 %v4386
    %4434 = vmatprep.subr.bf16.mxu0 0
    %4435 = vmatpush1.bf16.msra.mxu0 %v4387
    %4436 = vmatprep.subr.bf16.mxu0 0
    %4437 = vmatpush1.bf16.msra.mxu0 %v4388
    %4438 = vmatprep.subr.bf16.mxu0 0
    %4439 = vmatpush1.bf16.msra.mxu0 %v4389
    %4440 = vmatprep.subr.bf16.mxu0 0
    %4441 = vmatpush1.bf16.msra.mxu0 %v4390
    %4442 = vmatprep.subr.bf16.mxu0 0
    %4443 = vmatpush1.bf16.msra.mxu0 0
    %4444 = vmatprep.subr.bf16.mxu0 0
    %4445 = vmatpush1.bf16.msra.mxu0 0
    %4446 = vmatprep.subr.bf16.mxu0 0
    %4447 = vmatpush1.bf16.msra.mxu0 0
    %4448 = vmatprep.subr.bf16.mxu0 0
    %4449 = vmatpush1.bf16.msra.mxu0 0
    %4450 = vmatprep.subr.bf16.mxu0 0
    %4451 = vmatpush1.bf16.msra.mxu0 0
    %4452 = vmatprep.subr.bf16.mxu0 0
    %4453 = vmatpush1.bf16.msra.mxu0 0
    %4454 = vmatprep.subr.bf16.mxu0 0
    %4455 = vmatpush1.bf16.msra.mxu0 0
    %4456 = vmatprep.mubr.bf16.mxu0 %v4401
    %4457 = vmatmul.mubr.bf16.gmra.mrb[0].mxu0 %v4298
    %v4458 = vpop.f32.mrb[0].mxu0
    %v4459 = vadd.f32 %v4344, %v4458
    %v4460 = vpop.f32.mrb[0].mxu0
    %v4461 = vpop.f32.mrb[0].mxu0
    %v4462 = vadd.f32 %v4344, %v4461
    %v4463 = vpop.f32.mrb[0].mxu0
    %4464 = vmatprep.mubr.bf16.mxu0 %v4404
    %4465 = vmatmul.mubr.bf16.gmra.mrb[0].mxu0 %v4301
    %v4466 = vpop.f32.mrb[0].mxu0
    %v4467 = vadd.f32 %v4344, %v4466
    %v4468 = vpop.f32.mrb[0].mxu0
    %v4469 = vpop.f32.mrb[0].mxu0
    %v4470 = vadd.f32 %v4344, %v4469
    %v4471 = vpop.f32.mrb[0].mxu0
    %4472 = vmatprep.mubr.bf16.mxu0 %v4407
    %4473 = vmatmul.mubr.bf16.gmra.mrb[0].mxu0 %v4304
    %v4474 = vpop.f32.mrb[0].mxu0
    %v4475 = vadd.f32 %v4344, %v4474
    %v4476 = vpop.f32.mrb[0].mxu0
    %v4477 = vpop.f32.mrb[0].mxu0
    %v4478 = vadd.f32 %v4344, %v4477
    %v4479 = vpop.f32.mrb[0].mxu0
    %4480 = vmatprep.mubr.bf16.mxu0 %v4410
    %4481 = vmatmul.mubr.bf16.gmra.mrb[0].mxu0 %v4307
    %v4482 = vpop.f32.mrb[0].mxu0
    %v4483 = vadd.f32 %v4344, %v4482
    %v4484 = vpop.f32.mrb[0].mxu0
    %v4485 = vpop.f32.mrb[0].mxu0
    %v4486 = vadd.f32 %v4344, %v4485
    %v4487 = vpop.f32.mrb[0].mxu0
    %4488 = vmatprep.mubr.bf16.mxu0 %v4413
    %4489 = vmatmul.mubr.bf16.gmra.mrb[0].mxu0 %v4310
    %v4490 = vpop.f32.mrb[0].mxu0
    %v4491 = vadd.f32 %v4344, %v4490
    %v4492 = vpop.f32.mrb[0].mxu0
    %v4493 = vpop.f32.mrb[0].mxu0
    %v4494 = vadd.f32 %v4344, %v4493
    %v4495 = vpop.f32.mrb[0].mxu0
    %4496 = vmatprep.mubr.bf16.mxu0 %v4416
    %4497 = vmatmul.mubr.bf16.gmra.mrb[0].mxu0 %v4313
    %v4498 = vpop.f32.mrb[0].mxu0
    %v4499 = vadd.f32 %v4344, %v4498
    %v4500 = vpop.f32.mrb[0].mxu0
    %v4501 = vpop.f32.mrb[0].mxu0
    %v4502 = vadd.f32 %v4344, %v4501
    %v4503 = vpop.f32.mrb[0].mxu0
    %4504 = vmatprep.mubr.bf16.mxu0 %v4419
    %4505 = vmatmul.mubr.bf16.gmra.mrb[0].mxu0 %v4316
    %v4506 = vpop.f32.mrb[0].mxu0
    %v4507 = vadd.f32 %v4344, %v4506
    %v4508 = vpop.f32.mrb[0].mxu0
    %v4509 = vpop.f32.mrb[0].mxu0
    %v4510 = vadd.f32 %v4344, %v4509
    %v4511 = vpop.f32.mrb[0].mxu0
    %4512 = vmatprep.mubr.bf16.mxu0 %v4422
    %4513 = vmatmul.mubr.bf16.gmra.mrb[0].mxu0 %v4319
    %v4514 = vpop.f32.mrb[0].mxu0
    %v4515 = vadd.f32 %v4344, %v4514
    %v4516 = vpop.f32.mrb[0].mxu0
    %v4517 = vpop.f32.mrb[0].mxu0
    %v4518 = vadd.f32 %v4344, %v4517
    %v4519 = vpop.f32.mrb[0].mxu0
    %4520 = vdwg.mxu0
    %v4521 = vsel %vm2002, %v4459, 0.0
    %v4522 = vsel %vm2002, %v4462, 0.0
    %v4523 = vadd.f32 %v4521, %v4522
    %v4524 = vsel %vm2002, %v4467, 0.0
    %v4525 = vadd.f32 %v4523, %v4524
    %v4526 = vsel %vm2002, %v4470, 0.0
    %v4527 = vadd.f32 %v4525, %v4526
    %v4528 = vsel %vm2002, %v4475, 0.0
    %v4529 = vadd.f32 %v4527, %v4528
    %v4530 = vsel %vm2002, %v4478, 0.0
    %v4531 = vadd.f32 %v4529, %v4530
    %v4532 = vsel %vm2002, %v4483, 0.0
    %v4533 = vadd.f32 %v4531, %v4532
    %v4534 = vsel %vm2002, %v4486, 0.0
    %v4535 = vadd.f32 %v4533, %v4534
    %v4536 = vrot.slane %v4535, 4
    %v4537 = vadd.f32 %v4535, %v4536
    %v4538 = vrot.slane %v4537, 2
    %v4539 = vadd.f32 %v4537, %v4538
    %v4540 = vrot.slane %v4539, 1
    %v4541 = vadd.f32 %v4539, %v4540
    %v4542 = vsel %vm2002, %v4491, 0.0
    %v4543 = vsel %vm2002, %v4494, 0.0
    %v4544 = vadd.f32 %v4542, %v4543
    %v4545 = vsel %vm2002, %v4499, 0.0
    %v4546 = vadd.f32 %v4544, %v4545
    %v4547 = vsel %vm2002, %v4502, 0.0
    %v4548 = vadd.f32 %v4546, %v4547
    %v4549 = vsel %vm2002, %v4507, 0.0
    %v4550 = vadd.f32 %v4548, %v4549
    %v4551 = vsel %vm2002, %v4510, 0.0
    %v4552 = vadd.f32 %v4550, %v4551
    %v4553 = vsel %vm2002, %v4515, 0.0
    %v4554 = vadd.f32 %v4552, %v4553
    %v4555 = vsel %vm2002, %v4518, 0.0
    %v4556 = vadd.f32 %v4554, %v4555
    %v4557 = vrot.slane %v4556, 4
    %v4558 = vadd.f32 %v4556, %v4557
    %v4559 = vrot.slane %v4558, 2
    %v4560 = vadd.f32 %v4558, %v4559
    %v4561 = vrot.slane %v4560, 1
    %v4562 = vadd.f32 %v4560, %v4561
    %v4563 = vmul.f32 %v4459, %v4459
    %v4564 = vmul.f32 %v4462, %v4462
    %v4565 = vmul.f32 %v4467, %v4467
    %v4566 = vmul.f32 %v4470, %v4470
    %v4567 = vmul.f32 %v4475, %v4475
    %v4568 = vmul.f32 %v4478, %v4478
    %v4569 = vmul.f32 %v4483, %v4483
    %v4570 = vmul.f32 %v4486, %v4486
    %v4571 = vmul.f32 %v4491, %v4491
    %v4572 = vmul.f32 %v4494, %v4494
    %v4573 = vmul.f32 %v4499, %v4499
    %v4574 = vmul.f32 %v4502, %v4502
    %v4575 = vmul.f32 %v4507, %v4507
    %v4576 = vmul.f32 %v4510, %v4510
    %v4577 = vmul.f32 %v4515, %v4515
    %v4578 = vmul.f32 %v4518, %v4518
    %v4579 = vsel %vm2002, %v4563, 0.0
    %v4580 = vsel %vm2002, %v4564, 0.0
    %v4581 = vadd.f32 %v4579, %v4580
    %v4582 = vsel %vm2002, %v4565, 0.0
    %v4583 = vadd.f32 %v4581, %v4582
    %v4584 = vsel %vm2002, %v4566, 0.0
    %v4585 = vadd.f32 %v4583, %v4584
    %v4586 = vsel %vm2002, %v4567, 0.0
    %v4587 = vadd.f32 %v4585, %v4586
    %v4588 = vsel %vm2002, %v4568, 0.0
    %v4589 = vadd.f32 %v4587, %v4588
    %v4590 = vsel %vm2002, %v4569, 0.0
    %v4591 = vadd.f32 %v4589, %v4590
    %v4592 = vsel %vm2002, %v4570, 0.0
    %v4593 = vadd.f32 %v4591, %v4592
    %v4594 = vrot.slane %v4593, 4
    %v4595 = vadd.f32 %v4593, %v4594
    %v4596 = vrot.slane %v4595, 2
    %v4597 = vadd.f32 %v4595, %v4596
    %v4598 = vrot.slane %v4597, 1
    %v4599 = vadd.f32 %v4597, %v4598
    %v4600 = vsel %vm2002, %v4571, 0.0
    %v4601 = vsel %vm2002, %v4572, 0.0
    %v4602 = vadd.f32 %v4600, %v4601
    %v4603 = vsel %vm2002, %v4573, 0.0
    %v4604 = vadd.f32 %v4602, %v4603
    %v4605 = vsel %vm2002, %v4574, 0.0
    %v4606 = vadd.f32 %v4604, %v4605
    %v4607 = vsel %vm2002, %v4575, 0.0
    %v4608 = vadd.f32 %v4606, %v4607
    %v4609 = vsel %vm2002, %v4576, 0.0
    %v4610 = vadd.f32 %v4608, %v4609
    %v4611 = vsel %vm2002, %v4577, 0.0
    %v4612 = vadd.f32 %v4610, %v4611
    %v4613 = vsel %vm2002, %v4578, 0.0
    %v4614 = vadd.f32 %v4612, %v4613
    %v4615 = vrot.slane %v4614, 4
    %v4616 = vadd.f32 %v4614, %v4615
    %v4617 = vrot.slane %v4616, 2
    %v4618 = vadd.f32 %v4616, %v4617
    %v4619 = vrot.slane %v4618, 1
    %v4620 = vadd.f32 %v4618, %v4619
    %v4623 = vsel %vm3184, %v4562, %v4541
    %v4627 = vsel %vm3189, %v4620, %v4599
    %v4629 = vsel %vm2549, %v4623, %v4627
    %v4630 = vmul.f32 %v4629, 0.015625
    %v4631 = vld [vmem:[%s14] sm:$0xff]
    %v4633 = vsel %vm2002, %v4630, 0
    %4635 = vmatprep.subr.mxu0 0.0
    %4636 = vmatpush1.msra.mxu0 %v4631
    %4637 = vmatprep.subr.mxu0 0.0
    %4638 = vmatpush1.msra.mxu0 0.0
    %4639 = vmatprep.subr.mxu0 0.0
    %4640 = vmatpush1.msra.mxu0 0.0
    %4641 = vmatprep.subr.mxu0 0.0
    %4642 = vmatpush1.msra.mxu0 0.0
    %4643 = vmatprep.subr.mxu0 0.0
    %4644 = vmatpush1.msra.mxu0 0.0
    %4645 = vmatprep.subr.mxu0 0.0
    %4646 = vmatpush1.msra.mxu0 0.0
    %4647 = vmatprep.subr.mxu0 0.0
    %4648 = vmatpush1.msra.mxu0 0.0
    %4649 = vmatprep.subr.mxu0 0.0
    %4650 = vmatpush1.msra.mxu0 0.0
    %4651 = vmatprep.subr.mxu0 0.0
    %4652 = vmatpush1.msra.mxu0 0.0
    %4653 = vmatprep.subr.mxu0 0.0
    %4654 = vmatpush1.msra.mxu0 0.0
    %4655 = vmatprep.subr.mxu0 0.0
    %4656 = vmatpush1.msra.mxu0 0.0
    %4657 = vmatprep.subr.mxu0 0.0
    %4658 = vmatpush1.msra.mxu0 0.0
    %4659 = vmatprep.subr.mxu0 0.0
    %4660 = vmatpush1.msra.mxu0 0.0
    %4661 = vmatprep.subr.mxu0 0.0
    %4662 = vmatpush1.msra.mxu0 0.0
    %4663 = vmatprep.subr.mxu0 0.0
    %4664 = vmatpush1.msra.mxu0 0.0
    %4665 = vmatprep.subr.mxu0 0.0
    %4666 = vmatpush1.msra.mxu0 0.0
    %4667 = vmatprep.subr.mxu0 0.0
    %4668 = vmatpush1.msra.mxu0 0.0
    %4669 = vmatprep.subr.mxu0 0.0
    %4670 = vmatpush1.msra.mxu0 0.0
    %4671 = vmatprep.subr.mxu0 0.0
    %4672 = vmatpush1.msra.mxu0 0.0
    %4673 = vmatprep.subr.mxu0 0.0
    %4674 = vmatpush1.msra.mxu0 0.0
    %4675 = vmatprep.subr.mxu0 0.0
    %4676 = vmatpush1.msra.mxu0 0.0
    %4677 = vmatprep.subr.mxu0 0.0
    %4678 = vmatpush1.msra.mxu0 0.0
    %4679 = vmatprep.subr.mxu0 0.0
    %4680 = vmatpush1.msra.mxu0 0.0
    %4681 = vmatprep.subr.mxu0 0.0
    %4682 = vmatpush1.msra.mxu0 0.0
    %4683 = vmatprep.subr.mxu0 0.0
    %4684 = vmatpush1.msra.mxu0 0.0
    %4685 = vmatprep.subr.mxu0 0.0
    %4686 = vmatpush1.msra.mxu0 0.0
    %4687 = vmatprep.subr.mxu0 0.0
    %4688 = vmatpush1.msra.mxu0 0.0
    %4689 = vmatprep.subr.mxu0 0.0
    %4690 = vmatpush1.msra.mxu0 0.0
    %4691 = vmatprep.subr.mxu0 0.0
    %4692 = vmatpush1.msra.mxu0 0.0
    %4693 = vmatprep.subr.mxu0 0.0
    %4694 = vmatpush1.msra.mxu0 0.0
    %4695 = vmatprep.subr.mxu0 0.0
    %4696 = vmatpush1.msra.mxu0 0.0
    %4697 = vmatprep.subr.mxu0 0.0
    %4698 = vmatpush1.msra.mxu0 0.0
    %4699 = vmatprep.mubr.f32.mxu0 0.0
    %4700 = vmatmul.mubr.f32.gmra.mrb[0].mxu0 %v4633
    %v4701 = vpop.f32.mrb[0].mxu0
    %v4702 = vadd.f32 0.0, %v4701
    %v4703 = vpop.f32.mrb[0].mxu0
    %4704 = vdwg.mxu0
    %v4705 = vmul.f32 %v4702, %v4702
    %v4707 = vrot.slane %v4705, 6
    %v4709 = vsub.f32 %v4702, %v4707
    %v4710 = vmax.f32 %v4709, 0.0
    %v4713 = vunpack.c.l.s4 1966171168
    %v4714 = vunpack.c.0.s8 %v4713
    %v4715 = vlaneseq
    %v4716 = vshrl.u32 %v4715, 7
    %v4717 = vsub.s32 %v4714, %v4716
    %v4718 = vrot.slane %v4702, %v4717
    %v4719 = vcombine.high %v4718, %v4718
    %v4721 = vunpack.c.l.s4 1966171168
    %v4722 = vunpack.c.0.s8 %v4721
    %v4723 = vlaneseq
    %v4724 = vshrl.u32 %v4723, 7
    %v4725 = vsub.s32 %v4722, %v4724
    %v4726 = vrot.slane %v4718, %v4725
    %v4728 = vunpack.c.l.s4 1966171168
    %v4729 = vunpack.c.0.s8 %v4728
    %v4730 = vlaneseq
    %v4731 = vshrl.u32 %v4730, 7
    %v4732 = vsub.s32 %v4729, %v4731
    %v4733 = vrot.slane %v4719, %v4732
    %v4734 = vlaneseq
    %v4735 = vshrl.u32 %v4734, 7
    %v4736 = vsub.s32 0, %v4735
    %v4737 = vrot.slane %v4726, %v4736
    %v4738 = vlaneseq
    %v4739 = vshrl.u32 %v4738, 7
    %v4740 = vsub.s32 0, %v4739
    %v4741 = vrot.slane %v4733, %v4740
    %v4744 = vsub.f32 %v4459, %v4737
    %v4745 = vsub.f32 %v4462, %v4737
    %v4746 = vsub.f32 %v4467, %v4737
    %v4747 = vsub.f32 %v4470, %v4737
    %v4748 = vsub.f32 %v4475, %v4737
    %v4749 = vsub.f32 %v4478, %v4737
    %v4750 = vsub.f32 %v4483, %v4737
    %v4751 = vsub.f32 %v4486, %v4737
    %v4752 = vsub.f32 %v4491, %v4741
    %v4753 = vsub.f32 %v4494, %v4741
    %v4754 = vsub.f32 %v4499, %v4741
    %v4755 = vsub.f32 %v4502, %v4741
    %v4756 = vsub.f32 %v4507, %v4741
    %v4757 = vsub.f32 %v4510, %v4741
    %v4758 = vsub.f32 %v4515, %v4741
    %v4759 = vsub.f32 %v4518, %v4741
    %v4760 = vrsqrt.pop %v4710
    %v4763 = vunpack.c.l.s4 1966171168
    %v4764 = vunpack.c.0.s8 %v4763
    %v4765 = vlaneseq
    %v4766 = vshrl.u32 %v4765, 7
    %v4767 = vsub.s32 %v4764, %v4766
    %v4768 = vrot.slane %v4760, %v4767
    %v4769 = vcombine.high %v4768, %v4768
    %v4771 = vunpack.c.l.s4 1966171168
    %v4772 = vunpack.c.0.s8 %v4771
    %v4773 = vlaneseq
    %v4774 = vshrl.u32 %v4773, 7
    %v4775 = vsub.s32 %v4772, %v4774
    %v4776 = vrot.slane %v4768, %v4775
    %v4778 = vunpack.c.l.s4 1966171168
    %v4779 = vunpack.c.0.s8 %v4778
    %v4780 = vlaneseq
    %v4781 = vshrl.u32 %v4780, 7
    %v4782 = vsub.s32 %v4779, %v4781
    %v4783 = vrot.slane %v4769, %v4782
    %v4784 = vcombine.high %v4776, %v4776
    %v4785 = vcombine.high %v4783, %v4783
    %v4786 = vlaneseq
    %v4787 = vshrl.u32 %v4786, 7
    %v4788 = vsub.s32 0, %v4787
    %v4789 = vrot.slane %v4784, %v4788
    %v4790 = vlaneseq
    %v4791 = vshrl.u32 %v4790, 7
    %v4792 = vsub.s32 0, %v4791
    %v4793 = vrot.slane %v4785, %v4792
    %v4796 = vmul.f32 %v4744, %v4789
    %v4797 = vmul.f32 %v4745, %v4789
    %v4798 = vmul.f32 %v4746, %v4789
    %v4799 = vmul.f32 %v4747, %v4789
    %v4800 = vmul.f32 %v4748, %v4789
    %v4801 = vmul.f32 %v4749, %v4789
    %v4802 = vmul.f32 %v4750, %v4789
    %v4803 = vmul.f32 %v4751, %v4789
    %v4804 = vmul.f32 %v4752, %v4793
    %v4805 = vmul.f32 %v4753, %v4793
    %v4806 = vmul.f32 %v4754, %v4793
    %v4807 = vmul.f32 %v4755, %v4793
    %v4808 = vmul.f32 %v4756, %v4793
    %v4809 = vmul.f32 %v4757, %v4793
    %v4810 = vmul.f32 %v4758, %v4793
    %v4811 = vmul.f32 %v4759, %v4793
    %v4812 = vmax.f32 %v4796, 0.0
    %v4813 = vmax.f32 %v4797, 0.0
    %v4814 = vmax.f32 %v4798, 0.0
    %v4815 = vmax.f32 %v4799, 0.0
    %v4816 = vmax.f32 %v4800, 0.0
    %v4817 = vmax.f32 %v4801, 0.0
    %v4818 = vmax.f32 %v4802, 0.0
    %v4819 = vmax.f32 %v4803, 0.0
    %v4820 = vmax.f32 %v4804, 0.0
    %v4821 = vmax.f32 %v4805, 0.0
    %v4822 = vmax.f32 %v4806, 0.0
    %v4823 = vmax.f32 %v4807, 0.0
    %v4824 = vmax.f32 %v4808, 0.0
    %v4825 = vmax.f32 %v4809, 0.0
    %v4826 = vmax.f32 %v4810, 0.0
    %v4827 = vmax.f32 %v4811, 0.0
    %v4828 = vsel %vm2002, %v4812, -inf
    %v4829 = vsel %vm2002, %v4813, -inf
    %v4830 = vmax.f32 %v4828, %v4829
    %v4831 = vsel %vm2002, %v4814, -inf
    %v4832 = vsel %vm2002, %v4815, -inf
    %v4833 = vmax.f32 %v4831, %v4832
    %v4834 = vsel %vm2002, %v4816, -inf
    %v4835 = vsel %vm2002, %v4817, -inf
    %v4836 = vmax.f32 %v4834, %v4835
    %v4837 = vsel %vm2002, %v4818, -inf
    %v4838 = vsel %vm2002, %v4819, -inf
    %v4839 = vmax.f32 %v4837, %v4838
    %v4840 = vsel %vm2002, %v4820, -inf
    %v4841 = vsel %vm2002, %v4821, -inf
    %v4842 = vmax.f32 %v4840, %v4841
    %v4843 = vsel %vm2002, %v4822, -inf
    %v4844 = vsel %vm2002, %v4823, -inf
    %v4845 = vmax.f32 %v4843, %v4844
    %v4846 = vsel %vm2002, %v4824, -inf
    %v4847 = vsel %vm2002, %v4825, -inf
    %v4848 = vmax.f32 %v4846, %v4847
    %v4849 = vsel %vm2002, %v4826, -inf
    %v4850 = vsel %vm2002, %v4827, -inf
    %v4851 = vmax.f32 %v4849, %v4850
    %4852 = vst.msk [vmem:[#allocation6] sm:$0xff] %vm2002, %v4830
    %4853 = vst.msk [vmem:[#allocation6 + $0x8] sm:$0xff] %vm2002, %v4833
    %4854 = vst.msk [vmem:[#allocation6 + $0x10] sm:$0xff] %vm2002, %v4836
    %4855 = vst.msk [vmem:[#allocation6 + $0x18] sm:$0xff] %vm2002, %v4839
    %4856 = vst.msk [vmem:[#allocation6 + $0x20] sm:$0xff] %vm2002, %v4842
    %4857 = vst.msk [vmem:[#allocation6 + $0x28] sm:$0xff] %vm2002, %v4845
    %4858 = vst.msk [vmem:[#allocation6 + $0x30] sm:$0xff] %vm2002, %v4848
    %4859 = vst.msk [vmem:[#allocation6 + $0x38] sm:$0xff] %vm2002, %v4851
    %v4860 = vld [vmem:[#allocation6] ss:$2 sm:$0xf]
    %s4861 = scalar_lea.vmem [#allocation6], 8
    %v4862 = vld [vmem:[%s4861] ss:$2 sm:$0xf]
    %s4863 = scalar_lea.vmem [#allocation6], 16
    %v4864 = vld [vmem:[%s4863] ss:$2 sm:$0xf]
    %s4865 = scalar_lea.vmem [#allocation6], 24
    %v4866 = vld [vmem:[%s4865] ss:$2 sm:$0xf]
    %s4867 = scalar_lea.vmem [#allocation6], 32
    %v4868 = vld [vmem:[%s4867] ss:$2 sm:$0xf]
    %s4869 = scalar_lea.vmem [#allocation6], 40
    %v4870 = vld [vmem:[%s4869] ss:$2 sm:$0xf]
    %s4871 = scalar_lea.vmem [#allocation6], 48
    %v4872 = vld [vmem:[%s4871] ss:$2 sm:$0xf]
    %s4873 = scalar_lea.vmem [#allocation6], 56
    %v4874 = vld [vmem:[%s4873] ss:$2 sm:$0xf]
    %s4875 = scalar_lea.vmem [#allocation6], 1
    %v4876 = vld [vmem:[%s4875] ss:$2 sm:$0xf]
    %s4877 = scalar_lea.vmem [#allocation6], 9
    %v4878 = vld [vmem:[%s4877] ss:$2 sm:$0xf]
    %s4879 = scalar_lea.vmem [#allocation6], 17
    %v4880 = vld [vmem:[%s4879] ss:$2 sm:$0xf]
    %s4881 = scalar_lea.vmem [#allocation6], 25
    %v4882 = vld [vmem:[%s4881] ss:$2 sm:$0xf]
    %s4883 = scalar_lea.vmem [#allocation6], 33
    %v4884 = vld [vmem:[%s4883] ss:$2 sm:$0xf]
    %s4885 = scalar_lea.vmem [#allocation6], 41
    %v4886 = vld [vmem:[%s4885] ss:$2 sm:$0xf]
    %s4887 = scalar_lea.vmem [#allocation6], 49
    %v4888 = vld [vmem:[%s4887] ss:$2 sm:$0xf]
    %s4889 = scalar_lea.vmem [#allocation6], 57
    %v4890 = vld [vmem:[%s4889] ss:$2 sm:$0xf]
    %v4891 = vmax.f32 %v4860, %v4876
    %v4892 = vmax.f32 %v4862, %v4878
    %v4893 = vmax.f32 %v4864, %v4880
    %v4894 = vmax.f32 %v4866, %v4882
    %v4895 = vmax.f32 %v4868, %v4884
    %v4896 = vmax.f32 %v4870, %v4886
    %v4897 = vmax.f32 %v4872, %v4888
    %v4898 = vmax.f32 %v4874, %v4890
    %vm4899 = vcmask 62464
    %4900 = vst.msk [vmem:[#allocation4] sm:$0x3f] %vm4899, 0.0
    %4901 = vst.msk [vmem:[#allocation4 + $0x30] sm:$0x3f] %vm4899, 0.0
    %s4902 = scalar_lea.vmem [#allocation4], 40
    %4903 = vst.msk [vmem:[%s4902] sm:$0x3f] %vm4899, 0.0
    %4904 = vst.msk [vmem:[%s4902 + $0x30] sm:$0x3f] %vm4899, 0.0
    %s4905 = scalar_lea.vmem [#allocation4], 8
    %vm4906 = vcmask 57344
    %4907 = vst.msk [vmem:[%s4905] sm:$0x1] %vm4906, 0.0
    %4908 = vst.msk [vmem:[%s4905 + $0x8] sm:$0x1] %vm4906, 0.0
    %4909 = vst.msk [vmem:[%s4905 + $0x10] sm:$0x1] %vm4906, 0.0
    %4910 = vst.msk [vmem:[%s4905 + $0x18] sm:$0x1] %vm4906, 0.0
    %4911 = vst.msk [vmem:[%s4905 + $0x30] sm:$0x1] %vm4906, 0.0
    %4912 = vst.msk [vmem:[%s4905 + $0x38] sm:$0x1] %vm4906, 0.0
    %4913 = vst.msk [vmem:[%s4905 + $0x40] sm:$0x1] %vm4906, 0.0
    %4914 = vst.msk [vmem:[%s4905 + $0x48] sm:$0x1] %vm4906, 0.0
    %4915 = vst.msk [vmem:[%s4905 + $0x5] sm:$0x1] %vm4906, 0.0
    %4916 = vst.msk [vmem:[%s4905 + $0xd] sm:$0x1] %vm4906, 0.0
    %4917 = vst.msk [vmem:[%s4905 + $0x15] sm:$0x1] %vm4906, 0.0
    %4918 = vst.msk [vmem:[%s4905 + $0x1d] sm:$0x1] %vm4906, 0.0
    %4919 = vst.msk [vmem:[%s4905 + $0x35] sm:$0x1] %vm4906, 0.0
    %4920 = vst.msk [vmem:[%s4905 + $0x3d] sm:$0x1] %vm4906, 0.0
    %4921 = vst.msk [vmem:[%s4905 + $0x45] sm:$0x1] %vm4906, 0.0
    %4922 = vst.msk [vmem:[%s4905 + $0x4d] sm:$0x1] %vm4906, 0.0
    %vm4923 = vcmask 60416
    %4924 = vst.msk [vmem:[%s4905 + $0x1] sm:$0xf] %vm4923, %v4891
    %4925 = vst.msk [vmem:[%s4905 + $0x9] sm:$0xf] %vm4923, %v4892
    %4926 = vst.msk [vmem:[%s4905 + $0x11] sm:$0xf] %vm4923, %v4893
    %4927 = vst.msk [vmem:[%s4905 + $0x19] sm:$0xf] %vm4923, %v4894
    %4928 = vst.msk [vmem:[%s4905 + $0x31] sm:$0xf] %vm4923, %v4895
    %4929 = vst.msk [vmem:[%s4905 + $0x39] sm:$0xf] %vm4923, %v4896
    %4930 = vst.msk [vmem:[%s4905 + $0x41] sm:$0xf] %vm4923, %v4897
    %4931 = vst.msk [vmem:[%s4905 + $0x49] sm:$0xf] %vm4923, %v4898
    %v4932 = vld [vmem:[#allocation4] sm:$0xf]
    %v4933 = vld [vmem:[#allocation4 + $0x8] sm:$0xf]
    %v4934 = vld [vmem:[#allocation4 + $0x10] sm:$0xf]
    %v4935 = vld [vmem:[#allocation4 + $0x18] sm:$0xf]
    %v4936 = vld [vmem:[#allocation4 + $0x30] sm:$0xf]
    %v4937 = vld [vmem:[#allocation4 + $0x38] sm:$0xf]
    %v4938 = vld [vmem:[#allocation4 + $0x40] sm:$0xf]
    %v4939 = vld [vmem:[#allocation4 + $0x48] sm:$0xf]
    %v4948 = vcombine.low %v4932, %v4933
    %v4949 = vcombine.low %v4934, %v4935
    %v4950 = vcombine.low %v4936, %v4937
    %v4951 = vcombine.low %v4938, %v4939
    %v4956 = vpack.c.bf16 %v4949, %v4948
    %v4957 = vpack.c.bf16 %v4951, %v4950
    %v4958 = vld [vmem:[#allocation4 + $0x1] sm:$0xf]
    %v4959 = vld [vmem:[#allocation4 + $0x9] sm:$0xf]
    %v4960 = vld [vmem:[#allocation4 + $0x11] sm:$0xf]
    %v4961 = vld [vmem:[#allocation4 + $0x19] sm:$0xf]
    %v4962 = vld [vmem:[#allocation4 + $0x31] sm:$0xf]
    %v4963 = vld [vmem:[#allocation4 + $0x39] sm:$0xf]
    %v4964 = vld [vmem:[#allocation4 + $0x41] sm:$0xf]
    %v4965 = vld [vmem:[#allocation4 + $0x49] sm:$0xf]
    %v4974 = vcombine.low %v4958, %v4959
    %v4975 = vcombine.low %v4960, %v4961
    %v4976 = vcombine.low %v4962, %v4963
    %v4977 = vcombine.low %v4964, %v4965
    %v4982 = vpack.c.bf16 %v4975, %v4974
    %v4983 = vpack.c.bf16 %v4977, %v4976
    %v4984 = vld [vmem:[#allocation4 + $0x2] sm:$0xf]
    %v4985 = vld [vmem:[#allocation4 + $0xa] sm:$0xf]
    %v4986 = vld [vmem:[#allocation4 + $0x12] sm:$0xf]
    %v4987 = vld [vmem:[#allocation4 + $0x1a] sm:$0xf]
    %v4988 = vld [vmem:[#allocation4 + $0x32] sm:$0xf]
    %v4989 = vld [vmem:[#allocation4 + $0x3a] sm:$0xf]
    %v4990 = vld [vmem:[#allocation4 + $0x42] sm:$0xf]
    %v4991 = vld [vmem:[#allocation4 + $0x4a] sm:$0xf]
    %v5000 = vcombine.low %v4984, %v4985
    %v5001 = vcombine.low %v4986, %v4987
    %v5002 = vcombine.low %v4988, %v4989
    %v5003 = vcombine.low %v4990, %v4991
    %v5008 = vpack.c.bf16 %v5001, %v5000
    %v5009 = vpack.c.bf16 %v5003, %v5002
    %v5010 = vld [vmem:[%s4905] sm:$0xf]
    %v5011 = vld [vmem:[%s4905 + $0x8] sm:$0xf]
    %v5012 = vld [vmem:[%s4905 + $0x10] sm:$0xf]
    %v5013 = vld [vmem:[%s4905 + $0x18] sm:$0xf]
    %v5014 = vld [vmem:[%s4905 + $0x30] sm:$0xf]
    %v5015 = vld [vmem:[%s4905 + $0x38] sm:$0xf]
    %v5016 = vld [vmem:[%s4905 + $0x40] sm:$0xf]
    %v5017 = vld [vmem:[%s4905 + $0x48] sm:$0xf]
    %v5026 = vcombine.low %v5010, %v5011
    %v5027 = vcombine.low %v5012, %v5013
    %v5028 = vcombine.low %v5014, %v5015
    %v5029 = vcombine.low %v5016, %v5017
    %v5034 = vpack.c.bf16 %v5027, %v5026
    %v5035 = vpack.c.bf16 %v5029, %v5028
    %v5036 = vld [vmem:[%s4905 + $0x1] sm:$0xf]
    %v5037 = vld [vmem:[%s4905 + $0x9] sm:$0xf]
    %v5038 = vld [vmem:[%s4905 + $0x11] sm:$0xf]
    %v5039 = vld [vmem:[%s4905 + $0x19] sm:$0xf]
    %v5040 = vld [vmem:[%s4905 + $0x31] sm:$0xf]
    %v5041 = vld [vmem:[%s4905 + $0x39] sm:$0xf]
    %v5042 = vld [vmem:[%s4905 + $0x41] sm:$0xf]
    %v5043 = vld [vmem:[%s4905 + $0x49] sm:$0xf]
    %v5052 = vcombine.low %v5036, %v5037
    %v5053 = vcombine.low %v5038, %v5039
    %v5054 = vcombine.low %v5040, %v5041
    %v5055 = vcombine.low %v5042, %v5043
    %v5060 = vpack.c.bf16 %v5053, %v5052
    %v5061 = vpack.c.bf16 %v5055, %v5054
    %v5062 = vld [vmem:[%s4905 + $0x2] sm:$0xf]
    %v5063 = vld [vmem:[%s4905 + $0xa] sm:$0xf]
    %v5064 = vld [vmem:[%s4905 + $0x12] sm:$0xf]
    %v5065 = vld [vmem:[%s4905 + $0x1a] sm:$0xf]
    %v5066 = vld [vmem:[%s4905 + $0x32] sm:$0xf]
    %v5067 = vld [vmem:[%s4905 + $0x3a] sm:$0xf]
    %v5068 = vld [vmem:[%s4905 + $0x42] sm:$0xf]
    %v5069 = vld [vmem:[%s4905 + $0x4a] sm:$0xf]
    %v5078 = vcombine.low %v5062, %v5063
    %v5079 = vcombine.low %v5064, %v5065
    %v5080 = vcombine.low %v5066, %v5067
    %v5081 = vcombine.low %v5068, %v5069
    %v5086 = vpack.c.bf16 %v5079, %v5078
    %v5087 = vpack.c.bf16 %v5081, %v5080
    %s5088 = scalar_lea.vmem [#allocation4], 16
    %v5089 = vld [vmem:[%s5088] sm:$0xf]
    %v5090 = vld [vmem:[%s5088 + $0x8] sm:$0xf]
    %v5091 = vld [vmem:[%s5088 + $0x10] sm:$0xf]
    %v5092 = vld [vmem:[%s5088 + $0x18] sm:$0xf]
    %v5093 = vld [vmem:[%s5088 + $0x30] sm:$0xf]
    %v5094 = vld [vmem:[%s5088 + $0x38] sm:$0xf]
    %v5095 = vld [vmem:[%s5088 + $0x40] sm:$0xf]
    %v5096 = vld [vmem:[%s5088 + $0x48] sm:$0xf]
    %v5105 = vcombine.low %v5089, %v5090
    %v5106 = vcombine.low %v5091, %v5092
    %v5107 = vcombine.low %v5093, %v5094
    %v5108 = vcombine.low %v5095, %v5096
    %v5113 = vpack.c.bf16 %v5106, %v5105
    %v5114 = vpack.c.bf16 %v5108, %v5107
    %v5115 = vld [vmem:[%s5088 + $0x1] sm:$0xf]
    %v5116 = vld [vmem:[%s5088 + $0x9] sm:$0xf]
    %v5117 = vld [vmem:[%s5088 + $0x11] sm:$0xf]
    %v5118 = vld [vmem:[%s5088 + $0x19] sm:$0xf]
    %v5119 = vld [vmem:[%s5088 + $0x31] sm:$0xf]
    %v5120 = vld [vmem:[%s5088 + $0x39] sm:$0xf]
    %v5121 = vld [vmem:[%s5088 + $0x41] sm:$0xf]
    %v5122 = vld [vmem:[%s5088 + $0x49] sm:$0xf]
    %v5131 = vcombine.low %v5115, %v5116
    %v5132 = vcombine.low %v5117, %v5118
    %v5133 = vcombine.low %v5119, %v5120
    %v5134 = vcombine.low %v5121, %v5122
    %v5139 = vpack.c.bf16 %v5132, %v5131
    %v5140 = vpack.c.bf16 %v5134, %v5133
    %v5141 = vld [vmem:[%s5088 + $0x2] sm:$0xf]
    %v5142 = vld [vmem:[%s5088 + $0xa] sm:$0xf]
    %v5143 = vld [vmem:[%s5088 + $0x12] sm:$0xf]
    %v5144 = vld [vmem:[%s5088 + $0x1a] sm:$0xf]
    %v5145 = vld [vmem:[%s5088 + $0x32] sm:$0xf]
    %v5146 = vld [vmem:[%s5088 + $0x3a] sm:$0xf]
    %v5147 = vld [vmem:[%s5088 + $0x42] sm:$0xf]
    %v5148 = vld [vmem:[%s5088 + $0x4a] sm:$0xf]
    %v5157 = vcombine.low %v5141, %v5142
    %v5158 = vcombine.low %v5143, %v5144
    %v5159 = vcombine.low %v5145, %v5146
    %v5160 = vcombine.low %v5147, %v5148
    %v5165 = vpack.c.bf16 %v5158, %v5157
    %v5166 = vpack.c.bf16 %v5160, %v5159
    %5169 = vrot.lane.b32.xlu0 %v4982, 8
    %v5170 = vpop.permute.xlu0 %5169
    %5171 = vrot.lane.b32.xlu0 %v4983, 8
    %v5172 = vpop.permute.xlu0 %5171
    %5175 = vrot.lane.b32.xlu0 %v5008, 16
    %v5176 = vpop.permute.xlu0 %5175
    %5177 = vrot.lane.b32.xlu0 %v5009, 16
    %v5178 = vpop.permute.xlu0 %5177
    %5181 = vrot.lane.b32.xlu0 %v5034, 24
    %v5182 = vpop.permute.xlu0 %5181
    %5183 = vrot.lane.b32.xlu0 %v5035, 24
    %v5184 = vpop.permute.xlu0 %5183
    %5187 = vrot.lane.b32.xlu0 %v5060, 32
    %v5188 = vpop.permute.xlu0 %5187
    %5189 = vrot.lane.b32.xlu0 %v5061, 32
    %v5190 = vpop.permute.xlu0 %5189
    %5193 = vrot.lane.b32.xlu0 %v5086, 40
    %v5194 = vpop.permute.xlu0 %5193
    %5195 = vrot.lane.b32.xlu0 %v5087, 40
    %v5196 = vpop.permute.xlu0 %5195
    %5199 = vrot.lane.b32.xlu0 %v5113, 48
    %v5200 = vpop.permute.xlu0 %5199
    %5201 = vrot.lane.b32.xlu0 %v5114, 48
    %v5202 = vpop.permute.xlu0 %5201
    %5205 = vrot.lane.b32.xlu0 %v5139, 56
    %v5206 = vpop.permute.xlu0 %5205
    %5207 = vrot.lane.b32.xlu0 %v5140, 56
    %v5208 = vpop.permute.xlu0 %5207
    %5211 = vrot.lane.b32.xlu0 %v5165, 64
    %v5212 = vpop.permute.xlu0 %5211
    %5213 = vrot.lane.b32.xlu0 %v5166, 64
    %v5214 = vpop.permute.xlu0 %5213
    %v5217 = vsel %vm2002, %v4956, %v5170
    %v5220 = vsel %vm2002, %v4957, %v5172
    %v5222 = vsel %vm2132, %v5217, %v5176
    %v5224 = vsel %vm2132, %v5220, %v5178
    %v5226 = vsel %vm2262, %v5222, %v5182
    %v5228 = vsel %vm2262, %v5224, %v5184
    %v5230 = vsel %vm2392, %v5226, %v5188
    %v5232 = vsel %vm2392, %v5228, %v5190
    %vm5233 = vcmask 326656
    %v5235 = vsel %vm5233, %v5230, %v5194
    %v5237 = vsel %vm5233, %v5232, %v5196
    %v5239 = vsel %vm4228, %v5235, %v5200
    %v5241 = vsel %vm4228, %v5237, %v5202
    %vm5242 = vcmask 457728
    %v5244 = vsel %vm5242, %v5239, %v5206
    %v5246 = vsel %vm5242, %v5241, %v5208
    %v5248 = vsel %vm4245, %v5244, %v5212
    %v5250 = vsel %vm4245, %v5246, %v5214
    %v5251 = vld [vmem:[%s5] sm:$0xf]
    %v5252 = vld [vmem:[%s5 + $0x4] sm:$0xf]
    %v5253 = vld [vmem:[%s5 + $0x8] sm:$0xf]
    %v5254 = vld [vmem:[%s5 + $0xc] sm:$0xf]
    %v5255 = vld [vmem:[%s5 + $0x10] sm:$0xf]
    %v5256 = vld [vmem:[%s5 + $0x14] sm:$0xf]
    %v5257 = vld [vmem:[%s5 + $0x18] sm:$0xf]
    %v5258 = vld [vmem:[%s5 + $0x1c] sm:$0xf]
    %v5259 = vld [vmem:[%s5 + $0x20] sm:$0xf]
    %v5260 = vld [vmem:[%s6] sm:$0x1]
    %v5262 = vlaneseq
    %v5263 = vshrl.u32 %v5262, 7
    %v5264 = vsub.s32 0, %v5263
    %v5265 = vrot.slane %v5260, %v5264
    %v5276 = vunpack.c.l.b16 %v5251
    %v5277 = vunpack.c.l.b16 %v5252
    %v5278 = vunpack.c.l.b16 %v5253
    %v5279 = vunpack.c.l.b16 %v5254
    %v5280 = vunpack.c.l.b16 %v5255
    %v5281 = vunpack.c.l.b16 %v5256
    %v5282 = vunpack.c.l.b16 %v5257
    %v5283 = vunpack.c.l.b16 %v5258
    %v5284 = vunpack.c.l.b16 %v5259
    %v5285 = vpack.c.b16 %v5277, %v5276
    %v5286 = vpack.c.b16 %v5279, %v5278
    %v5287 = vpack.c.b16 %v5281, %v5280
    %v5288 = vpack.c.b16 %v5283, %v5282
    %v5289 = vpack.c.b16 %v5284, %v5284
    %vm5294 = vcmask 588800
    %v5295 = vsel %vm5294, %v5248, 0
    %v5297 = vsel %vm5294, %v5250, 0
    %vm5299 = vcmask 1043456
    %v5301 = vsel %vm5299, %v5289, 0
    %5303 = vmatprep.subr.bf16.mxu0 0
    %5304 = vmatpush1.bf16.msra.mxu0 %v5285
    %5305 = vmatprep.subr.bf16.mxu0 0
    %5306 = vmatpush1.bf16.msra.mxu0 %v5286
    %5307 = vmatprep.subr.bf16.mxu0 0
    %5308 = vmatpush1.bf16.msra.mxu0 %v5287
    %5309 = vmatprep.subr.bf16.mxu0 0
    %5310 = vmatpush1.bf16.msra.mxu0 %v5288
    %5311 = vmatprep.subr.bf16.mxu0 0
    %5312 = vmatpush1.bf16.msra.mxu0 %v5301
    %5313 = vmatprep.subr.bf16.mxu0 0
    %5314 = vmatpush1.bf16.msra.mxu0 0
    %5315 = vmatprep.subr.bf16.mxu0 0
    %5316 = vmatpush1.bf16.msra.mxu0 0
    %5317 = vmatprep.subr.bf16.mxu0 0
    %5318 = vmatpush1.bf16.msra.mxu0 0
    %5319 = vmatprep.subr.bf16.mxu0 0
    %5320 = vmatpush1.bf16.msra.mxu0 0
    %5321 = vmatprep.subr.bf16.mxu0 0
    %5322 = vmatpush1.bf16.msra.mxu0 0
    %5323 = vmatprep.subr.bf16.mxu0 0
    %5324 = vmatpush1.bf16.msra.mxu0 0
    %5325 = vmatprep.subr.bf16.mxu0 0
    %5326 = vmatpush1.bf16.msra.mxu0 0
    %5327 = vmatprep.subr.bf16.mxu0 0
    %5328 = vmatpush1.bf16.msra.mxu0 0
    %5329 = vmatprep.subr.bf16.mxu0 0
    %5330 = vmatpush1.bf16.msra.mxu0 0
    %5331 = vmatprep.subr.bf16.mxu0 0
    %5332 = vmatpush1.bf16.msra.mxu0 0
    %5333 = vmatprep.subr.bf16.mxu0 0
    %5334 = vmatpush1.bf16.msra.mxu0 0
    %5335 = vmatprep.mubr.bf16.mxu0 0
    %5336 = vmatmul.mubr.bf16.gmra.mrb[0].mxu0 %v5295
    %v5337 = vpop.f32.mrb[0].mxu0
    %v5338 = vadd.f32 %v5265, %v5337
    %v5339 = vpop.f32.mrb[0].mxu0
    %v5340 = vpop.f32.mrb[0].mxu0
    %v5341 = vadd.f32 %v5265, %v5340
    %v5342 = vpop.f32.mrb[0].mxu0
    %5343 = vmatprep.mubr.bf16.mxu0 0
    %5344 = vmatmul.mubr.bf16.gmra.mrb[0].mxu0 %v5297
    %v5345 = vpop.f32.mrb[0].mxu0
    %v5346 = vadd.f32 %v5265, %v5345
    %v5347 = vpop.f32.mrb[0].mxu0
    %v5348 = vpop.f32.mrb[0].mxu0
    %v5349 = vadd.f32 %v5265, %v5348
    %v5350 = vpop.f32.mrb[0].mxu0
    %5351 = vdwg.mxu0
    %v5352 = vsel %vm2002, %v5338, 0.0
    %v5353 = vsel %vm2002, %v5341, 0.0
    %v5354 = vadd.f32 %v5352, %v5353
    %v5355 = vrot.slane %v5354, 4
    %v5356 = vadd.f32 %v5354, %v5355
    %v5357 = vrot.slane %v5356, 2
    %v5358 = vadd.f32 %v5356, %v5357
    %v5359 = vrot.slane %v5358, 1
    %v5360 = vadd.f32 %v5358, %v5359
    %v5361 = vsel %vm2002, %v5346, 0.0
    %v5362 = vsel %vm2002, %v5349, 0.0
    %v5363 = vadd.f32 %v5361, %v5362
    %v5364 = vrot.slane %v5363, 4
    %v5365 = vadd.f32 %v5363, %v5364
    %v5366 = vrot.slane %v5365, 2
    %v5367 = vadd.f32 %v5365, %v5366
    %v5368 = vrot.slane %v5367, 1
    %v5369 = vadd.f32 %v5367, %v5368
    %v5370 = vmul.f32 %v5338, %v5338
    %v5371 = vmul.f32 %v5341, %v5341
    %v5372 = vmul.f32 %v5346, %v5346
    %v5373 = vmul.f32 %v5349, %v5349
    %v5374 = vsel %vm2002, %v5370, 0.0
    %v5375 = vsel %vm2002, %v5371, 0.0
    %v5376 = vadd.f32 %v5374, %v5375
    %v5377 = vrot.slane %v5376, 4
    %v5378 = vadd.f32 %v5376, %v5377
    %v5379 = vrot.slane %v5378, 2
    %v5380 = vadd.f32 %v5378, %v5379
    %v5381 = vrot.slane %v5380, 1
    %v5382 = vadd.f32 %v5380, %v5381
    %v5383 = vsel %vm2002, %v5372, 0.0
    %v5384 = vsel %vm2002, %v5373, 0.0
    %v5385 = vadd.f32 %v5383, %v5384
    %v5386 = vrot.slane %v5385, 4
    %v5387 = vadd.f32 %v5385, %v5386
    %v5388 = vrot.slane %v5387, 2
    %v5389 = vadd.f32 %v5387, %v5388
    %v5390 = vrot.slane %v5389, 1
    %v5391 = vadd.f32 %v5389, %v5390
    %v5394 = vsel %vm3184, %v5369, %v5360
    %v5398 = vsel %vm3189, %v5391, %v5382
    %v5400 = vsel %vm2549, %v5394, %v5398
    %v5401 = vmul.f32 %v5400, 0.0625
    %v5402 = vld [vmem:[%s14] sm:$0xff]
    %v5404 = vsel %vm2002, %v5401, 0
    %5406 = vmatprep.subr.mxu0 0.0
    %5407 = vmatpush1.msra.mxu0 %v5402
    %5408 = vmatprep.subr.mxu0 0.0
    %5409 = vmatpush1.msra.mxu0 0.0
    %5410 = vmatprep.subr.mxu0 0.0
    %5411 = vmatpush1.msra.mxu0 0.0
    %5412 = vmatprep.subr.mxu0 0.0
    %5413 = vmatpush1.msra.mxu0 0.0
    %5414 = vmatprep.subr.mxu0 0.0
    %5415 = vmatpush1.msra.mxu0 0.0
    %5416 = vmatprep.subr.mxu0 0.0
    %5417 = vmatpush1.msra.mxu0 0.0
    %5418 = vmatprep.subr.mxu0 0.0
    %5419 = vmatpush1.msra.mxu0 0.0
    %5420 = vmatprep.subr.mxu0 0.0
    %5421 = vmatpush1.msra.mxu0 0.0
    %5422 = vmatprep.subr.mxu0 0.0
    %5423 = vmatpush1.msra.mxu0 0.0
    %5424 = vmatprep.subr.mxu0 0.0
    %5425 = vmatpush1.msra.mxu0 0.0
    %5426 = vmatprep.subr.mxu0 0.0
    %5427 = vmatpush1.msra.mxu0 0.0
    %5428 = vmatprep.subr.mxu0 0.0
    %5429 = vmatpush1.msra.mxu0 0.0
    %5430 = vmatprep.subr.mxu0 0.0
    %5431 = vmatpush1.msra.mxu0 0.0
    %5432 = vmatprep.subr.mxu0 0.0
    %5433 = vmatpush1.msra.mxu0 0.0
    %5434 = vmatprep.subr.mxu0 0.0
    %5435 = vmatpush1.msra.mxu0 0.0
    %5436 = vmatprep.subr.mxu0 0.0
    %5437 = vmatpush1.msra.mxu0 0.0
    %5438 = vmatprep.subr.mxu0 0.0
    %5439 = vmatpush1.msra.mxu0 0.0
    %5440 = vmatprep.subr.mxu0 0.0
    %5441 = vmatpush1.msra.mxu0 0.0
    %5442 = vmatprep.subr.mxu0 0.0
    %5443 = vmatpush1.msra.mxu0 0.0
    %5444 = vmatprep.subr.mxu0 0.0
    %5445 = vmatpush1.msra.mxu0 0.0
    %5446 = vmatprep.subr.mxu0 0.0
    %5447 = vmatpush1.msra.mxu0 0.0
    %5448 = vmatprep.subr.mxu0 0.0
    %5449 = vmatpush1.msra.mxu0 0.0
    %5450 = vmatprep.subr.mxu0 0.0
    %5451 = vmatpush1.msra.mxu0 0.0
    %5452 = vmatprep.subr.mxu0 0.0
    %5453 = vmatpush1.msra.mxu0 0.0
    %5454 = vmatprep.subr.mxu0 0.0
    %5455 = vmatpush1.msra.mxu0 0.0
    %5456 = vmatprep.subr.mxu0 0.0
    %5457 = vmatpush1.msra.mxu0 0.0
    %5458 = vmatprep.subr.mxu0 0.0
    %5459 = vmatpush1.msra.mxu0 0.0
    %5460 = vmatprep.subr.mxu0 0.0
    %5461 = vmatpush1.msra.mxu0 0.0
    %5462 = vmatprep.subr.mxu0 0.0
    %5463 = vmatpush1.msra.mxu0 0.0
    %5464 = vmatprep.subr.mxu0 0.0
    %5465 = vmatpush1.msra.mxu0 0.0
    %5466 = vmatprep.subr.mxu0 0.0
    %5467 = vmatpush1.msra.mxu0 0.0
    %5468 = vmatprep.subr.mxu0 0.0
    %5469 = vmatpush1.msra.mxu0 0.0
    %5470 = vmatprep.mubr.f32.mxu0 0.0
    %5471 = vmatmul.mubr.f32.gmra.mrb[0].mxu0 %v5404
    %v5472 = vpop.f32.mrb[0].mxu0
    %v5473 = vadd.f32 0.0, %v5472
    %v5474 = vpop.f32.mrb[0].mxu0
    %5475 = vdwg.mxu0
    %v5476 = vmul.f32 %v5473, %v5473
    %v5478 = vrot.slane %v5476, 6
    %v5480 = vsub.f32 %v5473, %v5478
    %v5481 = vmax.f32 %v5480, 0.0
    %v5484 = vunpack.c.l.s4 1966171168
    %v5485 = vunpack.c.0.s8 %v5484
    %v5486 = vlaneseq
    %v5487 = vshrl.u32 %v5486, 7
    %v5488 = vsub.s32 %v5485, %v5487
    %v5489 = vrot.slane %v5473, %v5488
    %v5490 = vcombine.high %v5489, %v5489
    %v5492 = vunpack.c.l.s4 1966171168
    %v5493 = vunpack.c.0.s8 %v5492
    %v5494 = vlaneseq
    %v5495 = vshrl.u32 %v5494, 7
    %v5496 = vsub.s32 %v5493, %v5495
    %v5497 = vrot.slane %v5489, %v5496
    %v5499 = vunpack.c.l.s4 1966171168
    %v5500 = vunpack.c.0.s8 %v5499
    %v5501 = vlaneseq
    %v5502 = vshrl.u32 %v5501, 7
    %v5503 = vsub.s32 %v5500, %v5502
    %v5504 = vrot.slane %v5490, %v5503
    %v5505 = vlaneseq
    %v5506 = vshrl.u32 %v5505, 7
    %v5507 = vsub.s32 0, %v5506
    %v5508 = vrot.slane %v5497, %v5507
    %v5509 = vlaneseq
    %v5510 = vshrl.u32 %v5509, 7
    %v5511 = vsub.s32 0, %v5510
    %v5512 = vrot.slane %v5504, %v5511
    %v5515 = vsub.f32 %v5338, %v5508
    %v5516 = vsub.f32 %v5341, %v5508
    %v5517 = vsub.f32 %v5346, %v5512
    %v5518 = vsub.f32 %v5349, %v5512
    %v5519 = vrsqrt.pop %v5481
    %v5522 = vunpack.c.l.s4 1966171168
    %v5523 = vunpack.c.0.s8 %v5522
    %v5524 = vlaneseq
    %v5525 = vshrl.u32 %v5524, 7
    %v5526 = vsub.s32 %v5523, %v5525
    %v5527 = vrot.slane %v5519, %v5526
    %v5528 = vcombine.high %v5527, %v5527
    %v5530 = vunpack.c.l.s4 1966171168
    %v5531 = vunpack.c.0.s8 %v5530
    %v5532 = vlaneseq
    %v5533 = vshrl.u32 %v5532, 7
    %v5534 = vsub.s32 %v5531, %v5533
    %v5535 = vrot.slane %v5527, %v5534
    %v5537 = vunpack.c.l.s4 1966171168
    %v5538 = vunpack.c.0.s8 %v5537
    %v5539 = vlaneseq
    %v5540 = vshrl.u32 %v5539, 7
    %v5541 = vsub.s32 %v5538, %v5540
    %v5542 = vrot.slane %v5528, %v5541
    %v5543 = vcombine.high %v5535, %v5535
    %v5544 = vcombine.high %v5542, %v5542
    %v5545 = vlaneseq
    %v5546 = vshrl.u32 %v5545, 7
    %v5547 = vsub.s32 0, %v5546
    %v5548 = vrot.slane %v5543, %v5547
    %v5549 = vlaneseq
    %v5550 = vshrl.u32 %v5549, 7
    %v5551 = vsub.s32 0, %v5550
    %v5552 = vrot.slane %v5544, %v5551
    %v5555 = vmul.f32 %v5515, %v5548
    %v5556 = vmul.f32 %v5516, %v5548
    %v5557 = vmul.f32 %v5517, %v5552
    %v5558 = vmul.f32 %v5518, %v5552
    %v5559 = vmax.f32 %v5555, 0.0
    %v5560 = vmax.f32 %v5556, 0.0
    %v5561 = vmax.f32 %v5557, 0.0
    %v5562 = vmax.f32 %v5558, 0.0
    %v5567 = vcombine.high %v5559, %v5559
    %v5568 = vcombine.high %v5560, %v5560
    %v5569 = vcombine.high %v5561, %v5561
    %v5570 = vcombine.high %v5562, %v5562
    %v5575 = vsel %vm4923, %v5559, -inf
    %v5576 = vsel %vm4923, %v5567, -inf
    %v5577 = vmax.f32 %v5575, %v5576
    %v5578 = vsel %vm4923, %v5560, -inf
    %v5579 = vsel %vm4923, %v5568, -inf
    %v5580 = vmax.f32 %v5578, %v5579
    %v5581 = vsel %vm4923, %v5561, -inf
    %v5582 = vsel %vm4923, %v5569, -inf
    %v5583 = vmax.f32 %v5581, %v5582
    %v5584 = vsel %vm4923, %v5562, -inf
    %v5585 = vsel %vm4923, %v5570, -inf
    %v5586 = vmax.f32 %v5584, %v5585
    %5587 = vst.msk [vmem:[#allocation7] sm:$0xf] %vm4923, %v5577
    %5588 = vst.msk [vmem:[#allocation7 + $0x4] sm:$0xf] %vm4923, %v5580
    %5589 = vst.msk [vmem:[#allocation7 + $0x8] sm:$0xf] %vm4923, %v5583
    %5590 = vst.msk [vmem:[#allocation7 + $0xc] sm:$0xf] %vm4923, %v5586
    %v5591 = vld [vmem:[#allocation7] ss:$2 sm:$0x3]
    %s5592 = scalar_lea.vmem [#allocation7], 4
    %v5593 = vld [vmem:[%s5592] ss:$2 sm:$0x3]
    %s5594 = scalar_lea.vmem [#allocation7], 8
    %v5595 = vld [vmem:[%s5594] ss:$2 sm:$0x3]
    %s5596 = scalar_lea.vmem [#allocation7], 12
    %v5597 = vld [vmem:[%s5596] ss:$2 sm:$0x3]
    %s5598 = scalar_lea.vmem [#allocation7], 1
    %v5599 = vld [vmem:[%s5598] ss:$2 sm:$0x3]
    %s5600 = scalar_lea.vmem [#allocation7], 5
    %v5601 = vld [vmem:[%s5600] ss:$2 sm:$0x3]
    %s5602 = scalar_lea.vmem [#allocation7], 9
    %v5603 = vld [vmem:[%s5602] ss:$2 sm:$0x3]
    %s5604 = scalar_lea.vmem [#allocation7], 13
    %v5605 = vld [vmem:[%s5604] ss:$2 sm:$0x3]
    %v5606 = vmax.f32 %v5591, %v5599
    %v5607 = vmax.f32 %v5593, %v5601
    %v5608 = vmax.f32 %v5595, %v5603
    %v5609 = vmax.f32 %v5597, %v5605
    %v5612 = vrot.slane %v5608, 7
    %v5613 = vsel %vm3184, %v5612, %v5606
    %v5615 = vrot.slane %v5606, 1
    %v5616 = vsel %vm3184, %v5608, %v5615
    %5617 = vrot.lane.b32.xlu0 %v5616, 8
    %v5618 = vpop.permute.xlu0 %5617
    %v5622 = vrot.slane %v5609, 7
    %v5623 = vsel %vm3184, %v5622, %v5607
    %5624 = vrot.lane.b32.xlu0 %v5623, 16
    %v5625 = vpop.permute.xlu0 %5624
    %v5627 = vrot.slane %v5607, 1
    %v5628 = vsel %vm3184, %v5609, %v5627
    %5629 = vrot.lane.b32.xlu0 %v5628, 24
    %v5630 = vpop.permute.xlu0 %5629
    %v5632 = vsel %vm2002, %v5613, %v5618
    %v5633 = vsel %vm2132, %v5632, %v5625
    %v5634 = vsel %vm2262, %v5633, %v5630
    %v5635 = vpack.c.bf16 %v5634, %v5634
    %v5636 = vld [vmem:[%s7] sm:$0xff]
    %v5637 = vld [vmem:[%s7 + $0x8] sm:$0xf]
    %v5638 = vld [vmem:[%s7 + $0xc] sm:$0xff]
    %v5639 = vld [vmem:[%s7 + $0x14] sm:$0xf]
    %v5640 = vld [vmem:[%s7 + $0x18] sm:$0xff]
    %v5641 = vld [vmem:[%s7 + $0x20] sm:$0xf]
    %v5642 = vld [vmem:[%s7 + $0x24] sm:$0xff]
    %v5643 = vld [vmem:[%s7 + $0x2c] sm:$0xf]
    %v5644 = vld [vmem:[%s8] sm:$0x7]
    %v5646 = vlaneseq
    %v5647 = vshrl.u32 %v5646, 7
    %v5648 = vsub.s32 0, %v5647
    %v5649 = vrot.slane %v5644, %v5648
    %v5650 = vlaneseq
    %v5651 = vshrl.u32 %v5650, 7
    %v5652 = vsub.s32 1, %v5651
    %v5653 = vrot.slane %v5644, %v5652
    %v5654 = vlaneseq
    %v5655 = vshrl.u32 %v5654, 7
    %v5656 = vsub.s32 2, %v5655
    %v5657 = vrot.slane %v5644, %v5656
    %v5669 = vunpack.c.l.b16 %v5636
    %v5670 = vunpack.c.h.b16 %v5636
    %v5671 = vunpack.c.l.b16 %v5637
    %v5672 = vunpack.c.l.b16 %v5638
    %v5673 = vunpack.c.h.b16 %v5638
    %v5674 = vunpack.c.l.b16 %v5639
    %v5675 = vunpack.c.l.b16 %v5640
    %v5676 = vunpack.c.h.b16 %v5640
    %v5677 = vunpack.c.l.b16 %v5641
    %v5678 = vunpack.c.l.b16 %v5642
    %v5679 = vunpack.c.h.b16 %v5642
    %v5680 = vunpack.c.l.b16 %v5643
    %v5681 = vpack.c.b16 %v5672, %v5669
    %v5682 = vpack.c.b16 %v5673, %v5670
    %v5683 = vpack.c.b16 %v5674, %v5671
    %v5684 = vpack.c.b16 %v5678, %v5675
    %v5685 = vpack.c.b16 %v5679, %v5676
    %v5686 = vpack.c.b16 %v5680, %v5677
    %v5694 = vsel %vm2392, %v5635, 0
    %5696 = vmatprep.subr.bf16.mxu0 %v5682
    %5697 = vmatpush1.bf16.msra.mxu0 %v5681
    %5698 = vmatprep.subr.bf16.mxu0 %v5685
    %5699 = vmatpush1.bf16.msra.mxu0 %v5684
    %5700 = vmatprep.subr.bf16.mxu0 0
    %5701 = vmatpush1.bf16.msra.mxu0 0
    %5702 = vmatprep.subr.bf16.mxu0 0
    %5703 = vmatpush1.bf16.msra.mxu0 0
    %5704 = vmatprep.subr.bf16.mxu0 0
    %5705 = vmatpush1.bf16.msra.mxu0 0
    %5706 = vmatprep.subr.bf16.mxu0 0
    %5707 = vmatpush1.bf16.msra.mxu0 0
    %5708 = vmatprep.subr.bf16.mxu0 0
    %5709 = vmatpush1.bf16.msra.mxu0 0
    %5710 = vmatprep.subr.bf16.mxu0 0
    %5711 = vmatpush1.bf16.msra.mxu0 0
    %5712 = vmatprep.subr.bf16.mxu0 0
    %5713 = vmatpush1.bf16.msra.mxu0 0
    %5714 = vmatprep.subr.bf16.mxu0 0
    %5715 = vmatpush1.bf16.msra.mxu0 0
    %5716 = vmatprep.subr.bf16.mxu0 0
    %5717 = vmatpush1.bf16.msra.mxu0 0
    %5718 = vmatprep.subr.bf16.mxu0 0
    %5719 = vmatpush1.bf16.msra.mxu0 0
    %5720 = vmatprep.subr.bf16.mxu0 0
    %5721 = vmatpush1.bf16.msra.mxu0 0
    %5722 = vmatprep.subr.bf16.mxu0 0
    %5723 = vmatpush1.bf16.msra.mxu0 0
    %5724 = vmatprep.subr.bf16.mxu0 0
    %5725 = vmatpush1.bf16.msra.mxu0 0
    %5726 = vmatprep.subr.bf16.mxu0 0
    %5727 = vmatpush1.bf16.msra.mxu0 0
    %5728 = vmatprep.mubr.bf16.mxu0 0
    %5729 = vmatmul.mubr.bf16.gmra.mrb[0].mxu0 %v5694
    %v5730 = vpop.f32.mrb[0].mxu0
    %v5731 = vadd.f32 %v5649, %v5730
    %v5732 = vpop.f32.mrb[0].mxu0
    %v5733 = vadd.f32 %v5653, %v5732
    %v5734 = vpop.f32.mrb[0].mxu0
    %v5735 = vpop.f32.mrb[0].mxu0
    %5736 = vdwg.mxu0
    %5737 = vmatprep.subr.bf16.mxu0 0
    %5738 = vmatpush1.bf16.msra.mxu0 %v5683
    %5739 = vmatprep.subr.bf16.mxu0 0
    %5740 = vmatpush1.bf16.msra.mxu0 %v5686
    %5741 = vmatprep.subr.bf16.mxu0 0
    %5742 = vmatpush1.bf16.msra.mxu0 0
    %5743 = vmatprep.subr.bf16.mxu0 0
    %5744 = vmatpush1.bf16.msra.mxu0 0
    %5745 = vmatprep.subr.bf16.mxu0 0
    %5746 = vmatpush1.bf16.msra.mxu0 0
    %5747 = vmatprep.subr.bf16.mxu0 0
    %5748 = vmatpush1.bf16.msra.mxu0 0
    %5749 = vmatprep.subr.bf16.mxu0 0
    %5750 = vmatpush1.bf16.msra.mxu0 0
    %5751 = vmatprep.subr.bf16.mxu0 0
    %5752 = vmatpush1.bf16.msra.mxu0 0
    %5753 = vmatprep.subr.bf16.mxu0 0
    %5754 = vmatpush1.bf16.msra.mxu0 0
    %5755 = vmatprep.subr.bf16.mxu0 0
    %5756 = vmatpush1.bf16.msra.mxu0 0
    %5757 = vmatprep.subr.bf16.mxu0 0
    %5758 = vmatpush1.bf16.msra.mxu0 0
    %5759 = vmatprep.subr.bf16.mxu0 0
    %5760 = vmatpush1.bf16.msra.mxu0 0
    %5761 = vmatprep.subr.bf16.mxu0 0
    %5762 = vmatpush1.bf16.msra.mxu0 0
    %5763 = vmatprep.subr.bf16.mxu0 0
    %5764 = vmatpush1.bf16.msra.mxu0 0
    %5765 = vmatprep.subr.bf16.mxu0 0
    %5766 = vmatpush1.bf16.msra.mxu0 0
    %5767 = vmatprep.subr.bf16.mxu0 0
    %5768 = vmatpush1.bf16.msra.mxu0 0
    %5769 = vmatprep.mubr.bf16.mxu0 0
    %5770 = vmatmul.mubr.bf16.gmra.mrb[0].mxu0 %v5694
    %v5771 = vpop.f32.mrb[0].mxu0
    %v5772 = vadd.f32 %v5657, %v5771
    %v5773 = vpop.f32.mrb[0].mxu0
    %v5774 = vpop.f32.mrb[0].mxu0
    %v5775 = vpop.f32.mrb[0].mxu0
    %5776 = vdwg.mxu0
    %v5777 = vmul.f32 %v5731, %v5731
    %v5778 = vmul.f32 %v5733, %v5733
    %v5779 = vmul.f32 %v5772, %v5772
    %v5783 = vrot.slane %v5777, 6
    %v5784 = vrot.slane %v5778, 6
    %v5785 = vrot.slane %v5779, 6
    %v5789 = vsel %vm2549, %v5731, %v5783
    %v5790 = vsel %vm2549, %v5733, %v5784
    %v5791 = vsel %vm2549, %v5772, %v5785
    %v5792 = vld [vmem:[%s15] sm:$0xff]
    %v5793 = vld [vmem:[%s15 + $0x8] sm:$0xff]
    %v5794 = vld [vmem:[%s15 + $0x10] sm:$0xff]
    %v5795 = vld [vmem:[%s15 + $0x18] sm:$0xff]
    %v5796 = vld [vmem:[%s15 + $0x20] sm:$0xff]
    %v5797 = vld [vmem:[%s15 + $0x28] sm:$0xff]
    %v5798 = vld [vmem:[%s15 + $0x30] sm:$0xff]
    %v5799 = vld [vmem:[%s15 + $0x38] sm:$0xff]
    %v5800 = vld [vmem:[%s15 + $0x40] sm:$0xff]
    %v5801 = vld [vmem:[%s15 + $0x48] sm:$0xff]
    %v5802 = vld [vmem:[%s15 + $0x50] sm:$0xff]
    %v5803 = vld [vmem:[%s15 + $0x58] sm:$0xff]
    %v5804 = vld [vmem:[%s15 + $0x60] sm:$0xff]
    %v5805 = vld [vmem:[%s15 + $0x68] sm:$0xff]
    %v5806 = vld [vmem:[%s15 + $0x70] sm:$0xff]
    %v5807 = vld [vmem:[%s15 + $0x78] sm:$0xff]
    %v5808 = vld [vmem:[%s15 + $0x80] sm:$0xff]
    %v5809 = vld [vmem:[%s15 + $0x88] sm:$0xff]
    %v5810 = vld [vmem:[%s15 + $0x90] sm:$0xff]
    %v5811 = vld [vmem:[%s15 + $0x98] sm:$0xff]
    %v5812 = vld [vmem:[%s15 + $0xa0] sm:$0xff]
    %v5813 = vld [vmem:[%s15 + $0xa8] sm:$0xff]
    %v5814 = vld [vmem:[%s15 + $0xb0] sm:$0xff]
    %v5815 = vld [vmem:[%s15 + $0xb8] sm:$0xff]
    %v5816 = vld [vmem:[%s15 + $0xc0] sm:$0xff]
    %v5817 = vld [vmem:[%s15 + $0xc8] sm:$0xff]
    %v5818 = vld [vmem:[%s15 + $0xd0] sm:$0xff]
    %v5819 = vld [vmem:[%s15 + $0xd8] sm:$0xff]
    %v5820 = vld [vmem:[%s15 + $0xe0] sm:$0xff]
    %v5821 = vld [vmem:[%s15 + $0xe8] sm:$0xff]
    %v5822 = vld [vmem:[%s15 + $0xf0] sm:$0xff]
    %v5823 = vld [vmem:[%s15 + $0xf8] sm:$0xff]
    %v5824 = vld [vmem:[%s15 + $0x100] sm:$0xff]
    %v5825 = vld [vmem:[%s15 + $0x108] sm:$0xff]
    %v5826 = vld [vmem:[%s15 + $0x110] sm:$0xff]
    %v5827 = vld [vmem:[%s15 + $0x118] sm:$0xff]
    %v5829 = vsel %vm2392, %v5791, 0
    %5831 = vmatprep.subr.mxu0 0.0
    %5832 = vmatpush1.msra.mxu0 %v5792
    %5833 = vmatprep.subr.mxu0 0.0
    %5834 = vmatpush1.msra.mxu0 %v5793
    %5835 = vmatprep.subr.mxu0 0.0
    %5836 = vmatpush1.msra.mxu0 %v5794
    %5837 = vmatprep.subr.mxu0 0.0
    %5838 = vmatpush1.msra.mxu0 %v5795
    %5839 = vmatprep.subr.mxu0 0.0
    %5840 = vmatpush1.msra.mxu0 %v5796
    %5841 = vmatprep.subr.mxu0 0.0
    %5842 = vmatpush1.msra.mxu0 %v5797
    %5843 = vmatprep.subr.mxu0 0.0
    %5844 = vmatpush1.msra.mxu0 %v5798
    %5845 = vmatprep.subr.mxu0 0.0
    %5846 = vmatpush1.msra.mxu0 %v5799
    %5847 = vmatprep.subr.mxu0 0.0
    %5848 = vmatpush1.msra.mxu0 %v5800
    %5849 = vmatprep.subr.mxu0 0.0
    %5850 = vmatpush1.msra.mxu0 %v5801
    %5851 = vmatprep.subr.mxu0 0.0
    %5852 = vmatpush1.msra.mxu0 %v5802
    %5853 = vmatprep.subr.mxu0 0.0
    %5854 = vmatpush1.msra.mxu0 %v5803
    %5855 = vmatprep.subr.mxu0 0.0
    %5856 = vmatpush1.msra.mxu0 %v5804
    %5857 = vmatprep.subr.mxu0 0.0
    %5858 = vmatpush1.msra.mxu0 %v5805
    %5859 = vmatprep.subr.mxu0 0.0
    %5860 = vmatpush1.msra.mxu0 %v5806
    %5861 = vmatprep.subr.mxu0 0.0
    %5862 = vmatpush1.msra.mxu0 %v5807
    %5863 = vmatprep.subr.mxu0 0.0
    %5864 = vmatpush1.msra.mxu0 %v5808
    %5865 = vmatprep.subr.mxu0 0.0
    %5866 = vmatpush1.msra.mxu0 %v5809
    %5867 = vmatprep.subr.mxu0 0.0
    %5868 = vmatpush1.msra.mxu0 %v5810
    %5869 = vmatprep.subr.mxu0 0.0
    %5870 = vmatpush1.msra.mxu0 %v5811
    %5871 = vmatprep.subr.mxu0 0.0
    %5872 = vmatpush1.msra.mxu0 %v5812
    %5873 = vmatprep.subr.mxu0 0.0
    %5874 = vmatpush1.msra.mxu0 %v5813
    %5875 = vmatprep.subr.mxu0 0.0
    %5876 = vmatpush1.msra.mxu0 %v5814
    %5877 = vmatprep.subr.mxu0 0.0
    %5878 = vmatpush1.msra.mxu0 %v5815
    %5879 = vmatprep.subr.mxu0 0.0
    %5880 = vmatpush1.msra.mxu0 %v5816
    %5881 = vmatprep.subr.mxu0 0.0
    %5882 = vmatpush1.msra.mxu0 %v5817
    %5883 = vmatprep.subr.mxu0 0.0
    %5884 = vmatpush1.msra.mxu0 %v5818
    %5885 = vmatprep.subr.mxu0 0.0
    %5886 = vmatpush1.msra.mxu0 %v5819
    %5887 = vmatprep.subr.mxu0 0.0
    %5888 = vmatpush1.msra.mxu0 %v5820
    %5889 = vmatprep.subr.mxu0 0.0
    %5890 = vmatpush1.msra.mxu0 %v5821
    %5891 = vmatprep.subr.mxu0 0.0
    %5892 = vmatpush1.msra.mxu0 %v5822
    %5893 = vmatprep.subr.mxu0 0.0
    %5894 = vmatpush1.msra.mxu0 %v5823
    %5895 = vmatprep.mubr.f32.mxu0 %v5790
    %5896 = vmatmul.mubr.f32.gmra.mrb[0].mxu0 %v5789
    %v5897 = vpop.f32.mrb[0].mxu0
    %v5898 = vadd.f32 0.0, %v5897
    %v5899 = vpop.f32.mrb[0].mxu0
    %5900 = vdwg.mxu0
    %5901 = vmatprep.subr.mxu0 0.0
    %5902 = vmatpush1.msra.mxu0 %v5824
    %5903 = vmatprep.subr.mxu0 0.0
    %5904 = vmatpush1.msra.mxu0 %v5825
    %5905 = vmatprep.subr.mxu0 0.0
    %5906 = vmatpush1.msra.mxu0 %v5826
    %5907 = vmatprep.subr.mxu0 0.0
    %5908 = vmatpush1.msra.mxu0 %v5827
    %5909 = vmatprep.subr.mxu0 0.0
    %5910 = vmatpush1.msra.mxu0 0.0
    %5911 = vmatprep.subr.mxu0 0.0
    %5912 = vmatpush1.msra.mxu0 0.0
    %5913 = vmatprep.subr.mxu0 0.0
    %5914 = vmatpush1.msra.mxu0 0.0
    %5915 = vmatprep.subr.mxu0 0.0
    %5916 = vmatpush1.msra.mxu0 0.0
    %5917 = vmatprep.subr.mxu0 0.0
    %5918 = vmatpush1.msra.mxu0 0.0
    %5919 = vmatprep.subr.mxu0 0.0
    %5920 = vmatpush1.msra.mxu0 0.0
    %5921 = vmatprep.subr.mxu0 0.0
    %5922 = vmatpush1.msra.mxu0 0.0
    %5923 = vmatprep.subr.mxu0 0.0
    %5924 = vmatpush1.msra.mxu0 0.0
    %5925 = vmatprep.subr.mxu0 0.0
    %5926 = vmatpush1.msra.mxu0 0.0
    %5927 = vmatprep.subr.mxu0 0.0
    %5928 = vmatpush1.msra.mxu0 0.0
    %5929 = vmatprep.subr.mxu0 0.0
    %5930 = vmatpush1.msra.mxu0 0.0
    %5931 = vmatprep.subr.mxu0 0.0
    %5932 = vmatpush1.msra.mxu0 0.0
    %5933 = vmatprep.subr.mxu0 0.0
    %5934 = vmatpush1.msra.mxu0 0.0
    %5935 = vmatprep.subr.mxu0 0.0
    %5936 = vmatpush1.msra.mxu0 0.0
    %5937 = vmatprep.subr.mxu0 0.0
    %5938 = vmatpush1.msra.mxu0 0.0
    %5939 = vmatprep.subr.mxu0 0.0
    %5940 = vmatpush1.msra.mxu0 0.0
    %5941 = vmatprep.subr.mxu0 0.0
    %5942 = vmatpush1.msra.mxu0 0.0
    %5943 = vmatprep.subr.mxu0 0.0
    %5944 = vmatpush1.msra.mxu0 0.0
    %5945 = vmatprep.subr.mxu0 0.0
    %5946 = vmatpush1.msra.mxu0 0.0
    %5947 = vmatprep.subr.mxu0 0.0
    %5948 = vmatpush1.msra.mxu0 0.0
    %5949 = vmatprep.subr.mxu0 0.0
    %5950 = vmatpush1.msra.mxu0 0.0
    %5951 = vmatprep.subr.mxu0 0.0
    %5952 = vmatpush1.msra.mxu0 0.0
    %5953 = vmatprep.subr.mxu0 0.0
    %5954 = vmatpush1.msra.mxu0 0.0
    %5955 = vmatprep.subr.mxu0 0.0
    %5956 = vmatpush1.msra.mxu0 0.0
    %5957 = vmatprep.subr.mxu0 0.0
    %5958 = vmatpush1.msra.mxu0 0.0
    %5959 = vmatprep.subr.mxu0 0.0
    %5960 = vmatpush1.msra.mxu0 0.0
    %5961 = vmatprep.subr.mxu0 0.0
    %5962 = vmatpush1.msra.mxu0 0.0
    %5963 = vmatprep.subr.mxu0 0.0
    %5964 = vmatpush1.msra.mxu0 0.0
    %5965 = vmatprep.mubr.f32.mxu0 0.0
    %5966 = vmatmul.mubr.f32.gmra.mrb[0].mxu0 %v5829
    %v5967 = vpop.f32.mrb[0].mxu0
    %v5968 = vadd.f32 %v5898, %v5967
    %v5969 = vpop.f32.mrb[0].mxu0
    %5970 = vdwg.mxu0
    %v5971 = vld [vmem:[%s16] sm:$0xff]
    %v5972 = vld [vmem:[%s16 + $0x8] sm:$0xf]
    %v5975 = vcombine.high %v5971, %v5971
    %v5977 = vsel %vm128, %v5968, 0
    %v5979 = vsel %vm5299, %v5971, 0
    %v5981 = vsel %vm5299, %v5975, 0
    %v5983 = vsel %vm5299, %v5972, 0
    %5985 = vmatprep.subr.mxu0 %v5981
    %5986 = vmatpush1.msra.mxu0 %v5979
    %5987 = vmatprep.subr.mxu0 0.0
    %5988 = vmatpush1.msra.mxu0 0.0
    %5989 = vmatprep.subr.mxu0 0.0
    %5990 = vmatpush1.msra.mxu0 0.0
    %5991 = vmatprep.subr.mxu0 0.0
    %5992 = vmatpush1.msra.mxu0 0.0
    %5993 = vmatprep.subr.mxu0 0.0
    %5994 = vmatpush1.msra.mxu0 0.0
    %5995 = vmatprep.subr.mxu0 0.0
    %5996 = vmatpush1.msra.mxu0 0.0
    %5997 = vmatprep.subr.mxu0 0.0
    %5998 = vmatpush1.msra.mxu0 0.0
    %5999 = vmatprep.subr.mxu0 0.0
    %6000 = vmatpush1.msra.mxu0 0.0
    %6001 = vmatprep.subr.mxu0 0.0
    %6002 = vmatpush1.msra.mxu0 0.0
    %6003 = vmatprep.subr.mxu0 0.0
    %6004 = vmatpush1.msra.mxu0 0.0
    %6005 = vmatprep.subr.mxu0 0.0
    %6006 = vmatpush1.msra.mxu0 0.0
    %6007 = vmatprep.subr.mxu0 0.0
    %6008 = vmatpush1.msra.mxu0 0.0
    %6009 = vmatprep.subr.mxu0 0.0
    %6010 = vmatpush1.msra.mxu0 0.0
    %6011 = vmatprep.subr.mxu0 0.0
    %6012 = vmatpush1.msra.mxu0 0.0
    %6013 = vmatprep.subr.mxu0 0.0
    %6014 = vmatpush1.msra.mxu0 0.0
    %6015 = vmatprep.subr.mxu0 0.0
    %6016 = vmatpush1.msra.mxu0 0.0
    %6017 = vmatprep.subr.mxu0 0.0
    %6018 = vmatpush1.msra.mxu0 0.0
    %6019 = vmatprep.subr.mxu0 0.0
    %6020 = vmatpush1.msra.mxu0 0.0
    %6021 = vmatprep.subr.mxu0 0.0
    %6022 = vmatpush1.msra.mxu0 0.0
    %6023 = vmatprep.subr.mxu0 0.0
    %6024 = vmatpush1.msra.mxu0 0.0
    %6025 = vmatprep.subr.mxu0 0.0
    %6026 = vmatpush1.msra.mxu0 0.0
    %6027 = vmatprep.subr.mxu0 0.0
    %6028 = vmatpush1.msra.mxu0 0.0
    %6029 = vmatprep.subr.mxu0 0.0
    %6030 = vmatpush1.msra.mxu0 0.0
    %6031 = vmatprep.subr.mxu0 0.0
    %6032 = vmatpush1.msra.mxu0 0.0
    %6033 = vmatprep.subr.mxu0 0.0
    %6034 = vmatpush1.msra.mxu0 0.0
    %6035 = vmatprep.subr.mxu0 0.0
    %6036 = vmatpush1.msra.mxu0 0.0
    %6037 = vmatprep.subr.mxu0 0.0
    %6038 = vmatpush1.msra.mxu0 0.0
    %6039 = vmatprep.subr.mxu0 0.0
    %6040 = vmatpush1.msra.mxu0 0.0
    %6041 = vmatprep.subr.mxu0 0.0
    %6042 = vmatpush1.msra.mxu0 0.0
    %6043 = vmatprep.subr.mxu0 0.0
    %6044 = vmatpush1.msra.mxu0 0.0
    %6045 = vmatprep.subr.mxu0 0.0
    %6046 = vmatpush1.msra.mxu0 0.0
    %6047 = vmatprep.subr.mxu0 0.0
    %6048 = vmatpush1.msra.mxu0 0.0
    %6049 = vmatprep.mubr.f32.mxu0 0.0
    %6050 = vmatmul.mubr.f32.gmra.mrb[0].mxu0 %v5977
    %v6051 = vpop.f32.mrb[0].mxu0
    %v6052 = vadd.f32 0.0, %v6051
    %v6053 = vpop.f32.mrb[0].mxu0
    %v6054 = vadd.f32 0.0, %v6053
    %6055 = vdwg.mxu0
    %6056 = vmatprep.subr.mxu0 0.0
    %6057 = vmatpush1.msra.mxu0 %v5983
    %6058 = vmatprep.subr.mxu0 0.0
    %6059 = vmatpush1.msra.mxu0 0.0
    %6060 = vmatprep.subr.mxu0 0.0
    %6061 = vmatpush1.msra.mxu0 0.0
    %6062 = vmatprep.subr.mxu0 0.0
    %6063 = vmatpush1.msra.mxu0 0.0
    %6064 = vmatprep.subr.mxu0 0.0
    %6065 = vmatpush1.msra.mxu0 0.0
    %6066 = vmatprep.subr.mxu0 0.0
    %6067 = vmatpush1.msra.mxu0 0.0
    %6068 = vmatprep.subr.mxu0 0.0
    %6069 = vmatpush1.msra.mxu0 0.0
    %6070 = vmatprep.subr.mxu0 0.0
    %6071 = vmatpush1.msra.mxu0 0.0
    %6072 = vmatprep.subr.mxu0 0.0
    %6073 = vmatpush1.msra.mxu0 0.0
    %6074 = vmatprep.subr.mxu0 0.0
    %6075 = vmatpush1.msra.mxu0 0.0
    %6076 = vmatprep.subr.mxu0 0.0
    %6077 = vmatpush1.msra.mxu0 0.0
    %6078 = vmatprep.subr.mxu0 0.0
    %6079 = vmatpush1.msra.mxu0 0.0
    %6080 = vmatprep.subr.mxu0 0.0
    %6081 = vmatpush1.msra.mxu0 0.0
    %6082 = vmatprep.subr.mxu0 0.0
    %6083 = vmatpush1.msra.mxu0 0.0
    %6084 = vmatprep.subr.mxu0 0.0
    %6085 = vmatpush1.msra.mxu0 0.0
    %6086 = vmatprep.subr.mxu0 0.0
    %6087 = vmatpush1.msra.mxu0 0.0
    %6088 = vmatprep.subr.mxu0 0.0
    %6089 = vmatpush1.msra.mxu0 0.0
    %6090 = vmatprep.subr.mxu0 0.0
    %6091 = vmatpush1.msra.mxu0 0.0
    %6092 = vmatprep.subr.mxu0 0.0
    %6093 = vmatpush1.msra.mxu0 0.0
    %6094 = vmatprep.subr.mxu0 0.0
    %6095 = vmatpush1.msra.mxu0 0.0
    %6096 = vmatprep.subr.mxu0 0.0
    %6097 = vmatpush1.msra.mxu0 0.0
    %6098 = vmatprep.subr.mxu0 0.0
    %6099 = vmatpush1.msra.mxu0 0.0
    %6100 = vmatprep.subr.mxu0 0.0
    %6101 = vmatpush1.msra.mxu0 0.0
    %6102 = vmatprep.subr.mxu0 0.0
    %6103 = vmatpush1.msra.mxu0 0.0
    %6104 = vmatprep.subr.mxu0 0.0
    %6105 = vmatpush1.msra.mxu0 0.0
    %6106 = vmatprep.subr.mxu0 0.0
    %6107 = vmatpush1.msra.mxu0 0.0
    %6108 = vmatprep.subr.mxu0 0.0
    %6109 = vmatpush1.msra.mxu0 0.0
    %6110 = vmatprep.subr.mxu0 0.0
    %6111 = vmatpush1.msra.mxu0 0.0
    %6112 = vmatprep.subr.mxu0 0.0
    %6113 = vmatpush1.msra.mxu0 0.0
    %6114 = vmatprep.subr.mxu0 0.0
    %6115 = vmatpush1.msra.mxu0 0.0
    %6116 = vmatprep.subr.mxu0 0.0
    %6117 = vmatpush1.msra.mxu0 0.0
    %6118 = vmatprep.subr.mxu0 0.0
    %6119 = vmatpush1.msra.mxu0 0.0
    %6120 = vmatprep.mubr.f32.mxu0 0.0
    %6121 = vmatmul.mubr.f32.gmra.mrb[0].mxu0 %v5977
    %v6122 = vpop.f32.mrb[0].mxu0
    %v6123 = vadd.f32 0.0, %v6122
    %v6124 = vpop.f32.mrb[0].mxu0
    %6125 = vdwg.mxu0
    %v6126 = vmul.f32 %v6052, %v6052
    %v6127 = vmul.f32 %v6054, %v6054
    %v6128 = vmul.f32 %v6123, %v6123
    %v6132 = vrot.slane %v6126, 6
    %v6133 = vrot.slane %v6127, 6
    %v6134 = vrot.slane %v6128, 6
    %v6138 = vsub.f32 %v6052, %v6132
    %v6139 = vsub.f32 %v6054, %v6133
    %v6140 = vsub.f32 %v6123, %v6134
    %v6141 = vmax.f32 %v6138, 0.0
    %v6142 = vmax.f32 %v6139, 0.0
    %v6143 = vmax.f32 %v6140, 0.0
    %v6144 = vsub.f32 %v5731, %v6052
    %v6145 = vsub.f32 %v5733, %v6054
    %v6146 = vsub.f32 %v5772, %v6123
    %v6147 = vrsqrt.pop %v6141
    %v6148 = vrsqrt.pop %v6142
    %v6149 = vrsqrt.pop %v6143
    %v6153 = vrot.slane %v6147, 2
    %v6154 = vrot.slane %v6148, 2
    %v6155 = vrot.slane %v6149, 2
    %v6159 = vmul.f32 %v6144, %v6153
    %v6160 = vmul.f32 %v6145, %v6154
    %v6161 = vmul.f32 %v6146, %v6155
    %v6162 = vmax.f32 %v6159, 0.0
    %v6163 = vmax.f32 %v6160, 0.0
    %v6164 = vmax.f32 %v6161, 0.0
    %v6165 = vpack.c.bf16 %v6162, %v6162
    %v6166 = vpack.c.bf16 %v6163, %v6163
    %v6167 = vpack.c.bf16 %v6164, %v6164
    %v6168 = vld [vmem:[%s9] sm:$0xff]
    %v6169 = vld [vmem:[%s9 + $0x8] sm:$0xff]
    %v6170 = vld [vmem:[%s9 + $0x10] sm:$0xff]
    %v6171 = vld [vmem:[%s9 + $0x18] sm:$0xff]
    %v6172 = vld [vmem:[%s9 + $0x20] sm:$0xff]
    %v6173 = vld [vmem:[%s9 + $0x28] sm:$0xff]
    %v6174 = vld [vmem:[%s9 + $0x30] sm:$0xff]
    %v6175 = vld [vmem:[%s9 + $0x38] sm:$0xff]
    %v6176 = vld [vmem:[%s9 + $0x40] sm:$0xff]
    %v6177 = vld [vmem:[%s9 + $0x48] sm:$0xff]
    %v6178 = vld [vmem:[%s9 + $0x50] sm:$0xff]
    %v6179 = vld [vmem:[%s9 + $0x58] sm:$0xff]
    %v6180 = vld [vmem:[%s9 + $0x60] sm:$0xff]
    %v6181 = vld [vmem:[%s9 + $0x68] sm:$0xff]
    %v6182 = vld [vmem:[%s9 + $0x70] sm:$0xff]
    %v6183 = vld [vmem:[%s9 + $0x78] sm:$0xff]
    %v6184 = vld [vmem:[%s9 + $0x80] sm:$0xff]
    %v6185 = vld [vmem:[%s9 + $0x88] sm:$0xff]
    %v6186 = vld [vmem:[%s9 + $0x90] sm:$0xff]
    %v6187 = vld [vmem:[%s9 + $0x98] sm:$0xff]
    %v6188 = vld [vmem:[%s9 + $0xa0] sm:$0xff]
    %v6189 = vld [vmem:[%s9 + $0xa8] sm:$0xff]
    %v6190 = vld [vmem:[%s9 + $0xb0] sm:$0xff]
    %v6191 = vld [vmem:[%s9 + $0xb8] sm:$0xff]
    %v6192 = vld [vmem:[%s9 + $0xc0] sm:$0xff]
    %v6193 = vld [vmem:[%s9 + $0xc8] sm:$0xff]
    %v6194 = vld [vmem:[%s9 + $0xd0] sm:$0xff]
    %v6195 = vld [vmem:[%s9 + $0xd8] sm:$0xff]
    %v6196 = vld [vmem:[%s9 + $0xe0] sm:$0xff]
    %v6197 = vld [vmem:[%s9 + $0xe8] sm:$0xff]
    %v6198 = vld [vmem:[%s9 + $0xf0] sm:$0xff]
    %v6199 = vld [vmem:[%s9 + $0xf8] sm:$0xff]
    %v6200 = vld [vmem:[%s9 + $0x100] sm:$0xff]
    %v6201 = vld [vmem:[%s9 + $0x108] sm:$0xff]
    %v6202 = vld [vmem:[%s9 + $0x110] sm:$0xff]
    %v6203 = vld [vmem:[%s9 + $0x118] sm:$0xff]
    %v6204 = vld [vmem:[%s10] sm:$0x3]
    %v6206 = vlaneseq
    %v6207 = vshrl.u32 %v6206, 7
    %v6208 = vsub.s32 0, %v6207
    %v6209 = vrot.slane %v6204, %v6208
    %v6210 = vlaneseq
    %v6211 = vshrl.u32 %v6210, 7
    %v6212 = vsub.s32 1, %v6211
    %v6213 = vrot.slane %v6204, %v6212
    %v6252 = vunpack.c.l.b16 %v6168
    %v6253 = vunpack.c.h.b16 %v6168
    %v6254 = vunpack.c.l.b16 %v6169
    %v6255 = vunpack.c.h.b16 %v6169
    %v6256 = vunpack.c.l.b16 %v6170
    %v6257 = vunpack.c.h.b16 %v6170
    %v6258 = vunpack.c.l.b16 %v6171
    %v6259 = vunpack.c.h.b16 %v6171
    %v6260 = vunpack.c.l.b16 %v6172
    %v6261 = vunpack.c.h.b16 %v6172
    %v6262 = vunpack.c.l.b16 %v6173
    %v6263 = vunpack.c.h.b16 %v6173
    %v6264 = vunpack.c.l.b16 %v6174
    %v6265 = vunpack.c.h.b16 %v6174
    %v6266 = vunpack.c.l.b16 %v6175
    %v6267 = vunpack.c.h.b16 %v6175
    %v6268 = vunpack.c.l.b16 %v6176
    %v6269 = vunpack.c.h.b16 %v6176
    %v6270 = vunpack.c.l.b16 %v6177
    %v6271 = vunpack.c.h.b16 %v6177
    %v6272 = vunpack.c.l.b16 %v6178
    %v6273 = vunpack.c.h.b16 %v6178
    %v6274 = vunpack.c.l.b16 %v6179
    %v6275 = vunpack.c.h.b16 %v6179
    %v6276 = vunpack.c.l.b16 %v6180
    %v6277 = vunpack.c.h.b16 %v6180
    %v6278 = vunpack.c.l.b16 %v6181
    %v6279 = vunpack.c.h.b16 %v6181
    %v6280 = vunpack.c.l.b16 %v6182
    %v6281 = vunpack.c.h.b16 %v6182
    %v6282 = vunpack.c.l.b16 %v6183
    %v6283 = vunpack.c.h.b16 %v6183
    %v6284 = vunpack.c.l.b16 %v6184
    %v6285 = vunpack.c.h.b16 %v6184
    %v6286 = vunpack.c.l.b16 %v6185
    %v6287 = vunpack.c.h.b16 %v6185
    %v6288 = vunpack.c.l.b16 %v6186
    %v6289 = vunpack.c.h.b16 %v6186
    %v6290 = vunpack.c.l.b16 %v6187
    %v6291 = vunpack.c.h.b16 %v6187
    %v6292 = vunpack.c.l.b16 %v6188
    %v6293 = vunpack.c.h.b16 %v6188
    %v6294 = vunpack.c.l.b16 %v6189
    %v6295 = vunpack.c.h.b16 %v6189
    %v6296 = vunpack.c.l.b16 %v6190
    %v6297 = vunpack.c.h.b16 %v6190
    %v6298 = vunpack.c.l.b16 %v6191
    %v6299 = vunpack.c.h.b16 %v6191
    %v6300 = vunpack.c.l.b16 %v6192
    %v6301 = vunpack.c.h.b16 %v6192
    %v6302 = vunpack.c.l.b16 %v6193
    %v6303 = vunpack.c.h.b16 %v6193
    %v6304 = vunpack.c.l.b16 %v6194
    %v6305 = vunpack.c.h.b16 %v6194
    %v6306 = vunpack.c.l.b16 %v6195
    %v6307 = vunpack.c.h.b16 %v6195
    %v6308 = vunpack.c.l.b16 %v6196
    %v6309 = vunpack.c.h.b16 %v6196
    %v6310 = vunpack.c.l.b16 %v6197
    %v6311 = vunpack.c.h.b16 %v6197
    %v6312 = vunpack.c.l.b16 %v6198
    %v6313 = vunpack.c.h.b16 %v6198
    %v6314 = vunpack.c.l.b16 %v6199
    %v6315 = vunpack.c.h.b16 %v6199
    %v6316 = vunpack.c.l.b16 %v6200
    %v6317 = vunpack.c.h.b16 %v6200
    %v6318 = vunpack.c.l.b16 %v6201
    %v6319 = vunpack.c.h.b16 %v6201
    %v6320 = vunpack.c.l.b16 %v6202
    %v6321 = vunpack.c.h.b16 %v6202
    %v6322 = vunpack.c.l.b16 %v6203
    %v6323 = vunpack.c.h.b16 %v6203
    %v6324 = vpack.c.b16 %v6254, %v6252
    %v6325 = vpack.c.b16 %v6255, %v6253
    %v6326 = vpack.c.b16 %v6258, %v6256
    %v6327 = vpack.c.b16 %v6259, %v6257
    %v6328 = vpack.c.b16 %v6262, %v6260
    %v6329 = vpack.c.b16 %v6263, %v6261
    %v6330 = vpack.c.b16 %v6266, %v6264
    %v6331 = vpack.c.b16 %v6267, %v6265
    %v6332 = vpack.c.b16 %v6270, %v6268
    %v6333 = vpack.c.b16 %v6271, %v6269
    %v6334 = vpack.c.b16 %v6274, %v6272
    %v6335 = vpack.c.b16 %v6275, %v6273
    %v6336 = vpack.c.b16 %v6278, %v6276
    %v6337 = vpack.c.b16 %v6279, %v6277
    %v6338 = vpack.c.b16 %v6282, %v6280
    %v6339 = vpack.c.b16 %v6283, %v6281
    %v6340 = vpack.c.b16 %v6286, %v6284
    %v6341 = vpack.c.b16 %v6287, %v6285
    %v6342 = vpack.c.b16 %v6290, %v6288
    %v6343 = vpack.c.b16 %v6291, %v6289
    %v6344 = vpack.c.b16 %v6294, %v6292
    %v6345 = vpack.c.b16 %v6295, %v6293
    %v6346 = vpack.c.b16 %v6298, %v6296
    %v6347 = vpack.c.b16 %v6299, %v6297
    %v6348 = vpack.c.b16 %v6302, %v6300
    %v6349 = vpack.c.b16 %v6303, %v6301
    %v6350 = vpack.c.b16 %v6306, %v6304
    %v6351 = vpack.c.b16 %v6307, %v6305
    %v6352 = vpack.c.b16 %v6310, %v6308
    %v6353 = vpack.c.b16 %v6311, %v6309
    %v6354 = vpack.c.b16 %v6314, %v6312
    %v6355 = vpack.c.b16 %v6315, %v6313
    %v6356 = vpack.c.b16 %v6318, %v6316
    %v6357 = vpack.c.b16 %v6319, %v6317
    %v6358 = vpack.c.b16 %v6322, %v6320
    %v6359 = vpack.c.b16 %v6323, %v6321
    %v6397 = vsel %vm2392, %v6167, 0
    %6399 = vmatprep.subr.bf16.mxu0 %v6325
    %6400 = vmatpush1.bf16.msra.mxu0 %v6324
    %6401 = vmatprep.subr.bf16.mxu0 %v6327
    %6402 = vmatpush1.bf16.msra.mxu0 %v6326
    %6403 = vmatprep.subr.bf16.mxu0 %v6329
    %6404 = vmatpush1.bf16.msra.mxu0 %v6328
    %6405 = vmatprep.subr.bf16.mxu0 %v6331
    %6406 = vmatpush1.bf16.msra.mxu0 %v6330
    %6407 = vmatprep.subr.bf16.mxu0 %v6333
    %6408 = vmatpush1.bf16.msra.mxu0 %v6332
    %6409 = vmatprep.subr.bf16.mxu0 %v6335
    %6410 = vmatpush1.bf16.msra.mxu0 %v6334
    %6411 = vmatprep.subr.bf16.mxu0 %v6337
    %6412 = vmatpush1.bf16.msra.mxu0 %v6336
    %6413 = vmatprep.subr.bf16.mxu0 %v6339
    %6414 = vmatpush1.bf16.msra.mxu0 %v6338
    %6415 = vmatprep.subr.bf16.mxu0 %v6341
    %6416 = vmatpush1.bf16.msra.mxu0 %v6340
    %6417 = vmatprep.subr.bf16.mxu0 %v6343
    %6418 = vmatpush1.bf16.msra.mxu0 %v6342
    %6419 = vmatprep.subr.bf16.mxu0 %v6345
    %6420 = vmatpush1.bf16.msra.mxu0 %v6344
    %6421 = vmatprep.subr.bf16.mxu0 %v6347
    %6422 = vmatpush1.bf16.msra.mxu0 %v6346
    %6423 = vmatprep.subr.bf16.mxu0 %v6349
    %6424 = vmatpush1.bf16.msra.mxu0 %v6348
    %6425 = vmatprep.subr.bf16.mxu0 %v6351
    %6426 = vmatpush1.bf16.msra.mxu0 %v6350
    %6427 = vmatprep.subr.bf16.mxu0 %v6353
    %6428 = vmatpush1.bf16.msra.mxu0 %v6352
    %6429 = vmatprep.subr.bf16.mxu0 %v6355
    %6430 = vmatpush1.bf16.msra.mxu0 %v6354
    %6431 = vmatprep.mubr.bf16.mxu0 %v6166
    %6432 = vmatmul.mubr.bf16.gmra.mrb[0].mxu0 %v6165
    %v6433 = vpop.f32.mrb[0].mxu0
    %v6434 = vadd.f32 %v6209, %v6433
    %v6435 = vpop.f32.mrb[0].mxu0
    %v6436 = vadd.f32 %v6213, %v6435
    %v6437 = vpop.f32.mrb[0].mxu0
    %v6438 = vpop.f32.mrb[0].mxu0
    %6439 = vdwg.mxu0
    %6440 = vmatprep.subr.bf16.mxu0 %v6357
    %6441 = vmatpush1.bf16.msra.mxu0 %v6356
    %6442 = vmatprep.subr.bf16.mxu0 %v6359
    %6443 = vmatpush1.bf16.msra.mxu0 %v6358
    %6444 = vmatprep.subr.bf16.mxu0 0
    %6445 = vmatpush1.bf16.msra.mxu0 0
    %6446 = vmatprep.subr.bf16.mxu0 0
    %6447 = vmatpush1.bf16.msra.mxu0 0
    %6448 = vmatprep.subr.bf16.mxu0 0
    %6449 = vmatpush1.bf16.msra.mxu0 0
    %6450 = vmatprep.subr.bf16.mxu0 0
    %6451 = vmatpush1.bf16.msra.mxu0 0
    %6452 = vmatprep.subr.bf16.mxu0 0
    %6453 = vmatpush1.bf16.msra.mxu0 0
    %6454 = vmatprep.subr.bf16.mxu0 0
    %6455 = vmatpush1.bf16.msra.mxu0 0
    %6456 = vmatprep.subr.bf16.mxu0 0
    %6457 = vmatpush1.bf16.msra.mxu0 0
    %6458 = vmatprep.subr.bf16.mxu0 0
    %6459 = vmatpush1.bf16.msra.mxu0 0
    %6460 = vmatprep.subr.bf16.mxu0 0
    %6461 = vmatpush1.bf16.msra.mxu0 0
    %6462 = vmatprep.subr.bf16.mxu0 0
    %6463 = vmatpush1.bf16.msra.mxu0 0
    %6464 = vmatprep.subr.bf16.mxu0 0
    %6465 = vmatpush1.bf16.msra.mxu0 0
    %6466 = vmatprep.subr.bf16.mxu0 0
    %6467 = vmatpush1.bf16.msra.mxu0 0
    %6468 = vmatprep.subr.bf16.mxu0 0
    %6469 = vmatpush1.bf16.msra.mxu0 0
    %6470 = vmatprep.subr.bf16.mxu0 0
    %6471 = vmatpush1.bf16.msra.mxu0 0
    %6472 = vmatprep.mubr.bf16.mxu0 0
    %6473 = vmatmul.mubr.bf16.gmra.mrb[0].mxu0 %v6397
    %v6474 = vpop.f32.mrb[0].mxu0
    %v6475 = vadd.f32 %v6434, %v6474
    %v6476 = vpop.f32.mrb[0].mxu0
    %v6477 = vadd.f32 %v6436, %v6476
    %v6478 = vpop.f32.mrb[0].mxu0
    %v6479 = vpop.f32.mrb[0].mxu0
    %6480 = vdwg.mxu0
    %v6481 = vmul.f32 %v6475, %v6475
    %v6482 = vmul.f32 %v6477, %v6477
    %v6485 = vrot.slane %v6481, 6
    %v6486 = vrot.slane %v6482, 6
    %v6489 = vsel %vm2549, %v6475, %v6485
    %v6490 = vsel %vm2549, %v6477, %v6486
    %v6491 = vld [vmem:[%s17] sm:$0xff]
    %v6492 = vld [vmem:[%s17 + $0x8] sm:$0xff]
    %v6493 = vld [vmem:[%s17 + $0x10] sm:$0xff]
    %v6494 = vld [vmem:[%s17 + $0x18] sm:$0xff]
    %v6495 = vld [vmem:[%s17 + $0x20] sm:$0xff]
    %v6496 = vld [vmem:[%s17 + $0x28] sm:$0xff]
    %v6497 = vld [vmem:[%s17 + $0x30] sm:$0xff]
    %v6498 = vld [vmem:[%s17 + $0x38] sm:$0xff]
    %v6499 = vld [vmem:[%s17 + $0x40] sm:$0xff]
    %v6500 = vld [vmem:[%s17 + $0x48] sm:$0xff]
    %v6501 = vld [vmem:[%s17 + $0x50] sm:$0xff]
    %v6502 = vld [vmem:[%s17 + $0x58] sm:$0xff]
    %v6503 = vld [vmem:[%s17 + $0x60] sm:$0xff]
    %v6504 = vld [vmem:[%s17 + $0x68] sm:$0xff]
    %v6505 = vld [vmem:[%s17 + $0x70] sm:$0xff]
    %v6506 = vld [vmem:[%s17 + $0x78] sm:$0xff]
    %v6507 = vld [vmem:[%s17 + $0x80] sm:$0xff]
    %v6508 = vld [vmem:[%s17 + $0x88] sm:$0xff]
    %v6510 = vsel %vm2132, %v6490, 0
    %6512 = vmatprep.subr.mxu0 0.0
    %6513 = vmatpush1.msra.mxu0 %v6491
    %6514 = vmatprep.subr.mxu0 0.0
    %6515 = vmatpush1.msra.mxu0 %v6492
    %6516 = vmatprep.subr.mxu0 0.0
    %6517 = vmatpush1.msra.mxu0 %v6493
    %6518 = vmatprep.subr.mxu0 0.0
    %6519 = vmatpush1.msra.mxu0 %v6494
    %6520 = vmatprep.subr.mxu0 0.0
    %6521 = vmatpush1.msra.mxu0 %v6495
    %6522 = vmatprep.subr.mxu0 0.0
    %6523 = vmatpush1.msra.mxu0 %v6496
    %6524 = vmatprep.subr.mxu0 0.0
    %6525 = vmatpush1.msra.mxu0 %v6497
    %6526 = vmatprep.subr.mxu0 0.0
    %6527 = vmatpush1.msra.mxu0 %v6498
    %6528 = vmatprep.subr.mxu0 0.0
    %6529 = vmatpush1.msra.mxu0 %v6499
    %6530 = vmatprep.subr.mxu0 0.0
    %6531 = vmatpush1.msra.mxu0 %v6500
    %6532 = vmatprep.subr.mxu0 0.0
    %6533 = vmatpush1.msra.mxu0 %v6501
    %6534 = vmatprep.subr.mxu0 0.0
    %6535 = vmatpush1.msra.mxu0 %v6502
    %6536 = vmatprep.subr.mxu0 0.0
    %6537 = vmatpush1.msra.mxu0 %v6503
    %6538 = vmatprep.subr.mxu0 0.0
    %6539 = vmatpush1.msra.mxu0 %v6504
    %6540 = vmatprep.subr.mxu0 0.0
    %6541 = vmatpush1.msra.mxu0 %v6505
    %6542 = vmatprep.subr.mxu0 0.0
    %6543 = vmatpush1.msra.mxu0 %v6506
    %6544 = vmatprep.subr.mxu0 0.0
    %6545 = vmatpush1.msra.mxu0 %v6507
    %6546 = vmatprep.subr.mxu0 0.0
    %6547 = vmatpush1.msra.mxu0 %v6508
    %6548 = vmatprep.subr.mxu0 0.0
    %6549 = vmatpush1.msra.mxu0 0.0
    %6550 = vmatprep.subr.mxu0 0.0
    %6551 = vmatpush1.msra.mxu0 0.0
    %6552 = vmatprep.subr.mxu0 0.0
    %6553 = vmatpush1.msra.mxu0 0.0
    %6554 = vmatprep.subr.mxu0 0.0
    %6555 = vmatpush1.msra.mxu0 0.0
    %6556 = vmatprep.subr.mxu0 0.0
    %6557 = vmatpush1.msra.mxu0 0.0
    %6558 = vmatprep.subr.mxu0 0.0
    %6559 = vmatpush1.msra.mxu0 0.0
    %6560 = vmatprep.subr.mxu0 0.0
    %6561 = vmatpush1.msra.mxu0 0.0
    %6562 = vmatprep.subr.mxu0 0.0
    %6563 = vmatpush1.msra.mxu0 0.0
    %6564 = vmatprep.subr.mxu0 0.0
    %6565 = vmatpush1.msra.mxu0 0.0
    %6566 = vmatprep.subr.mxu0 0.0
    %6567 = vmatpush1.msra.mxu0 0.0
    %6568 = vmatprep.subr.mxu0 0.0
    %6569 = vmatpush1.msra.mxu0 0.0
    %6570 = vmatprep.subr.mxu0 0.0
    %6571 = vmatpush1.msra.mxu0 0.0
    %6572 = vmatprep.subr.mxu0 0.0
    %6573 = vmatpush1.msra.mxu0 0.0
    %6574 = vmatprep.subr.mxu0 0.0
    %6575 = vmatpush1.msra.mxu0 0.0
    %6576 = vmatprep.mubr.f32.mxu0 %v6510
    %6577 = vmatmul.mubr.f32.gmra.mrb[0].mxu0 %v6489
    %v6578 = vpop.f32.mrb[0].mxu0
    %v6579 = vadd.f32 0.0, %v6578
    %v6580 = vpop.f32.mrb[0].mxu0
    %6581 = vdwg.mxu0
    %v6582 = vld [vmem:[%s18] sm:$0xff]
    %v6584 = vcombine.high %v6582, %v6582
    %v6586 = vsel %vm128, %v6579, 0
    %v6588 = vsel %vm5299, %v6582, 0
    %v6590 = vsel %vm5299, %v6584, 0
    %6592 = vmatprep.subr.mxu0 %v6590
    %6593 = vmatpush1.msra.mxu0 %v6588
    %6594 = vmatprep.subr.mxu0 0.0
    %6595 = vmatpush1.msra.mxu0 0.0
    %6596 = vmatprep.subr.mxu0 0.0
    %6597 = vmatpush1.msra.mxu0 0.0
    %6598 = vmatprep.subr.mxu0 0.0
    %6599 = vmatpush1.msra.mxu0 0.0
    %6600 = vmatprep.subr.mxu0 0.0
    %6601 = vmatpush1.msra.mxu0 0.0
    %6602 = vmatprep.subr.mxu0 0.0
    %6603 = vmatpush1.msra.mxu0 0.0
    %6604 = vmatprep.subr.mxu0 0.0
    %6605 = vmatpush1.msra.mxu0 0.0
    %6606 = vmatprep.subr.mxu0 0.0
    %6607 = vmatpush1.msra.mxu0 0.0
    %6608 = vmatprep.subr.mxu0 0.0
    %6609 = vmatpush1.msra.mxu0 0.0
    %6610 = vmatprep.subr.mxu0 0.0
    %6611 = vmatpush1.msra.mxu0 0.0
    %6612 = vmatprep.subr.mxu0 0.0
    %6613 = vmatpush1.msra.mxu0 0.0
    %6614 = vmatprep.subr.mxu0 0.0
    %6615 = vmatpush1.msra.mxu0 0.0
    %6616 = vmatprep.subr.mxu0 0.0
    %6617 = vmatpush1.msra.mxu0 0.0
    %6618 = vmatprep.subr.mxu0 0.0
    %6619 = vmatpush1.msra.mxu0 0.0
    %6620 = vmatprep.subr.mxu0 0.0
    %6621 = vmatpush1.msra.mxu0 0.0
    %6622 = vmatprep.subr.mxu0 0.0
    %6623 = vmatpush1.msra.mxu0 0.0
    %6624 = vmatprep.subr.mxu0 0.0
    %6625 = vmatpush1.msra.mxu0 0.0
    %6626 = vmatprep.subr.mxu0 0.0
    %6627 = vmatpush1.msra.mxu0 0.0
    %6628 = vmatprep.subr.mxu0 0.0
    %6629 = vmatpush1.msra.mxu0 0.0
    %6630 = vmatprep.subr.mxu0 0.0
    %6631 = vmatpush1.msra.mxu0 0.0
    %6632 = vmatprep.subr.mxu0 0.0
    %6633 = vmatpush1.msra.mxu0 0.0
    %6634 = vmatprep.subr.mxu0 0.0
    %6635 = vmatpush1.msra.mxu0 0.0
    %6636 = vmatprep.subr.mxu0 0.0
    %6637 = vmatpush1.msra.mxu0 0.0
    %6638 = vmatprep.subr.mxu0 0.0
    %6639 = vmatpush1.msra.mxu0 0.0
    %6640 = vmatprep.subr.mxu0 0.0
    %6641 = vmatpush1.msra.mxu0 0.0
    %6642 = vmatprep.subr.mxu0 0.0
    %6643 = vmatpush1.msra.mxu0 0.0
    %6644 = vmatprep.subr.mxu0 0.0
    %6645 = vmatpush1.msra.mxu0 0.0
    %6646 = vmatprep.subr.mxu0 0.0
    %6647 = vmatpush1.msra.mxu0 0.0
    %6648 = vmatprep.subr.mxu0 0.0
    %6649 = vmatpush1.msra.mxu0 0.0
    %6650 = vmatprep.subr.mxu0 0.0
    %6651 = vmatpush1.msra.mxu0 0.0
    %6652 = vmatprep.subr.mxu0 0.0
    %6653 = vmatpush1.msra.mxu0 0.0
    %6654 = vmatprep.subr.mxu0 0.0
    %6655 = vmatpush1.msra.mxu0 0.0
    %6656 = vmatprep.mubr.f32.mxu0 0.0
    %6657 = vmatmul.mubr.f32.gmra.mrb[0].mxu0 %v6586
    %v6658 = vpop.f32.mrb[0].mxu0
    %v6659 = vadd.f32 0.0, %v6658
    %v6660 = vpop.f32.mrb[0].mxu0
    %v6661 = vadd.f32 0.0, %v6660
    %6662 = vdwg.mxu0
    %v6663 = vmul.f32 %v6659, %v6659
    %v6664 = vmul.f32 %v6661, %v6661
    %v6667 = vrot.slane %v6663, 6
    %v6668 = vrot.slane %v6664, 6
    %v6671 = vsub.f32 %v6659, %v6667
    %v6672 = vsub.f32 %v6661, %v6668
    %v6673 = vmax.f32 %v6671, 0.0
    %v6674 = vmax.f32 %v6672, 0.0
    %v6675 = vsub.f32 %v6475, %v6659
    %v6676 = vsub.f32 %v6477, %v6661
    %v6677 = vrsqrt.pop %v6673
    %v6678 = vrsqrt.pop %v6674
    %v6681 = vrot.slane %v6677, 2
    %v6682 = vrot.slane %v6678, 2
    %v6685 = vmul.f32 %v6675, %v6681
    %v6686 = vmul.f32 %v6676, %v6682
    %v6687 = vmax.f32 %v6685, 0.0
    %v6688 = vmax.f32 %v6686, 0.0
    %v6689 = vpack.c.bf16 %v6687, %v6687
    %v6690 = vpack.c.bf16 %v6688, %v6688
    %v6691 = vld [vmem:[%s11] sm:$0xf]
    %v6692 = vld [vmem:[%s11 + $0x4] sm:$0xf]
    %v6693 = vld [vmem:[%s11 + $0x8] sm:$0xf]
    %v6694 = vld [vmem:[%s11 + $0xc] sm:$0xf]
    %v6695 = vld [vmem:[%s11 + $0x10] sm:$0xf]
    %v6696 = vld [vmem:[%s11 + $0x14] sm:$0xf]
    %v6697 = vld [vmem:[%s11 + $0x18] sm:$0xf]
    %v6698 = vld [vmem:[%s11 + $0x1c] sm:$0xf]
    %v6699 = vld [vmem:[%s11 + $0x20] sm:$0xf]
    %v6700 = vld [vmem:[%s11 + $0x24] sm:$0xf]
    %v6701 = vld [vmem:[%s11 + $0x28] sm:$0xf]
    %v6702 = vld [vmem:[%s11 + $0x2c] sm:$0xf]
    %v6703 = vld [vmem:[%s11 + $0x30] sm:$0xf]
    %v6704 = vld [vmem:[%s11 + $0x34] sm:$0xf]
    %v6705 = vld [vmem:[%s11 + $0x38] sm:$0xf]
    %v6706 = vld [vmem:[%s11 + $0x3c] sm:$0xf]
    %v6707 = vld [vmem:[%s11 + $0x40] sm:$0xf]
    %v6708 = vld [vmem:[%s11 + $0x44] sm:$0xf]
    %v6709 = vld [vmem:[%s12] sm:$0x1]
    %v6711 = vlaneseq
    %v6712 = vshrl.u32 %v6711, 7
    %v6713 = vsub.s32 0, %v6712
    %v6714 = vrot.slane %v6709, %v6713
    %v6734 = vunpack.c.l.b16 %v6691
    %v6735 = vunpack.c.l.b16 %v6692
    %v6736 = vunpack.c.l.b16 %v6693
    %v6737 = vunpack.c.l.b16 %v6694
    %v6738 = vunpack.c.l.b16 %v6695
    %v6739 = vunpack.c.l.b16 %v6696
    %v6740 = vunpack.c.l.b16 %v6697
    %v6741 = vunpack.c.l.b16 %v6698
    %v6742 = vunpack.c.l.b16 %v6699
    %v6743 = vunpack.c.l.b16 %v6700
    %v6744 = vunpack.c.l.b16 %v6701
    %v6745 = vunpack.c.l.b16 %v6702
    %v6746 = vunpack.c.l.b16 %v6703
    %v6747 = vunpack.c.l.b16 %v6704
    %v6748 = vunpack.c.l.b16 %v6705
    %v6749 = vunpack.c.l.b16 %v6706
    %v6750 = vunpack.c.l.b16 %v6707
    %v6751 = vunpack.c.l.b16 %v6708
    %v6752 = vpack.c.b16 %v6735, %v6734
    %v6753 = vpack.c.b16 %v6737, %v6736
    %v6754 = vpack.c.b16 %v6739, %v6738
    %v6755 = vpack.c.b16 %v6741, %v6740
    %v6756 = vpack.c.b16 %v6743, %v6742
    %v6757 = vpack.c.b16 %v6745, %v6744
    %v6758 = vpack.c.b16 %v6747, %v6746
    %v6759 = vpack.c.b16 %v6749, %v6748
    %v6760 = vpack.c.b16 %v6751, %v6750
    %v6771 = vsel %vm2132, %v6690, 0
    %6773 = vmatprep.subr.bf16.mxu0 0
    %6774 = vmatpush1.bf16.msra.mxu0 %v6752
    %6775 = vmatprep.subr.bf16.mxu0 0
    %6776 = vmatpush1.bf16.msra.mxu0 %v6753
    %6777 = vmatprep.subr.bf16.mxu0 0
    %6778 = vmatpush1.bf16.msra.mxu0 %v6754
    %6779 = vmatprep.subr.bf16.mxu0 0
    %6780 = vmatpush1.bf16.msra.mxu0 %v6755
    %6781 = vmatprep.subr.bf16.mxu0 0
    %6782 = vmatpush1.bf16.msra.mxu0 %v6756
    %6783 = vmatprep.subr.bf16.mxu0 0
    %6784 = vmatpush1.bf16.msra.mxu0 %v6757
    %6785 = vmatprep.subr.bf16.mxu0 0
    %6786 = vmatpush1.bf16.msra.mxu0 %v6758
    %6787 = vmatprep.subr.bf16.mxu0 0
    %6788 = vmatpush1.bf16.msra.mxu0 %v6759
    %6789 = vmatprep.subr.bf16.mxu0 0
    %6790 = vmatpush1.bf16.msra.mxu0 %v6760
    %6791 = vmatprep.subr.bf16.mxu0 0
    %6792 = vmatpush1.bf16.msra.mxu0 0
    %6793 = vmatprep.subr.bf16.mxu0 0
    %6794 = vmatpush1.bf16.msra.mxu0 0
    %6795 = vmatprep.subr.bf16.mxu0 0
    %6796 = vmatpush1.bf16.msra.mxu0 0
    %6797 = vmatprep.subr.bf16.mxu0 0
    %6798 = vmatpush1.bf16.msra.mxu0 0
    %6799 = vmatprep.subr.bf16.mxu0 0
    %6800 = vmatpush1.bf16.msra.mxu0 0
    %6801 = vmatprep.subr.bf16.mxu0 0
    %6802 = vmatpush1.bf16.msra.mxu0 0
    %6803 = vmatprep.subr.bf16.mxu0 0
    %6804 = vmatpush1.bf16.msra.mxu0 0
    %6805 = vmatprep.mubr.bf16.mxu0 %v6771
    %6806 = vmatmul.mubr.bf16.gmra.mrb[0].mxu0 %v6689
    %v6807 = vpop.f32.mrb[0].mxu0
    %v6808 = vadd.f32 %v6714, %v6807
    %v6809 = vpop.f32.mrb[0].mxu0
    %v6810 = vpop.f32.mrb[0].mxu0
    %v6811 = vpop.f32.mrb[0].mxu0
    %6812 = vdwg.mxu0
    %vm6813 = vcmask 9216
    %6814 = vst.msk [vmem:[#allocation8] sm:$0x3] %vm6813, %v6808
    // Predicated region
    $region78: #{feature_discriminator_dann_forward.1} parent=1 // pred_check
      _
    $region79: #{feature_discriminator_dann_forward.1} parent=1 // pred_check_branch
      %6816 = sbr.rel (0) target = $region81
    $region80: #{feature_discriminator_dann_forward.1} parent=1 // pred_region
      %s6818 = ssub.s32 32, 32
      %6819 = vsyncadd [#allocation9], %s6818
      %s6821 = sshll.u32 [#allocation8], 4
      %s6822 = int_to_ptr.vmem [resolvable:$true] %s6821
      %6824 = dma.vmem_to_hbm [thread:$0]  %s6822, 32, %s19, [#allocation9]
    $region81: #{feature_discriminator_dann_forward.1} parent=1 // pred_fallthru
      _
    // Predicated region
    $region82: #{feature_discriminator_dann_forward.1} parent=1 // pred_check
      _
    $region83: #{feature_discriminator_dann_forward.1} parent=1 // pred_check_branch
      %6826 = sbr.rel (0) target = $region85
    $region84: #{feature_discriminator_dann_forward.1} parent=1 // pred_region
      %6827 = dma.done [#allocation9], 32
    $region85: #{feature_discriminator_dann_forward.1} parent=1 // pred_fallthru
      _
    %6828 = vsyncpa [#allocation9], 1

</llo_original>
